<compile_context>
chip_gen: v6e
topology: v6e:2x2x1
jax: 0.10.0
libtpu: 0.0.40
codegen_flags: <defaults>
</compile_context>

<pallas_src>
import math

import jax
import jax.numpy as jnp
from jax import lax
from jax.experimental import pallas as pl
from jax.experimental.pallas import tpu as pltpu


# ---------------------------------------------------------------------------
# small in-kernel helpers
# ---------------------------------------------------------------------------
def _mm(w, z):
    """1x1-conv channel matmul  W[Cout,Cin] @ Z[Cin, lanes]  (f32 accumulate)."""
    return lax.dot_general(w, z.astype(w.dtype), (((1,), (0,)), ((), ())),
                           preferred_element_type=jnp.float32)


def _mix(z, a_t):
    """Node diffusion Z @ A^T (A^T is passed pre-transposed), f32 accumulate."""
    return lax.dot_general(z.astype(a_t.dtype), a_t, (((1,), (0,)), ((), ())),
                           preferred_element_type=jnp.float32)


# ---------------------------------------------------------------------------
# fused per-(direction, batch, time-chunk) recurrence kernel
# ---------------------------------------------------------------------------
def _bigril_chunk_kernel(
    prelu_ref,                                   # SMEM (2,)  per-direction PReLU slope
    x_ref, m_ref, h0_ref,                        # (1,Tc,F,Np) (1,Tc,F,Np) (1,H,Np)
    a1t_ref, a1st_ref, a2t_ref, a2st_ref,        # (Np,Np) transposed supports (bf16)
    w_fs_ref, b_fs_ref,                          # first_stage
    w_lix_ref, w_lim_ref, w_lih_ref, b_li_ref,   # decoder lin_in (column split)
    w_gc_ref, b_gc_ref,                          # decoder graph_conv (per-term stacked)
    w_log_ref, w_loh_ref, b_lo_ref,              # decoder lin_out (column split)
    w_roa_ref, w_roh_ref, b_ro_ref,              # decoder read_out (column split)
    w_ru_ref, b_ru_ref,                          # GRU gates r|u, per-term stacked
    w_cv_ref, w_ch_ref, b_c_ref,                 # GRU candidate, per-term / input|hidden
    pred_ref, imp_ref, repr_ref,                 # outputs
    h_scr,                                       # VMEM (H, Np) f32 carried hidden state
):
    d = pl.program_id(0)            # direction: 0 = forward, 1 = backward
    chunk = pl.program_id(2)        # time chunk (innermost grid axis)
    Tc = x_ref.shape[1]
    F = x_ref.shape[2]
    H = h_scr.shape[0]

    @pl.when(chunk == 0)
    def _():
        h_scr[...] = h0_ref[0]

    p_slope = prelu_ref[d]
    a1t, a1st = a1t_ref[...], a1st_ref[...]
    a2t, a2st = a2t_ref[...], a2st_ref[...]

    def step(t, h):
        # Within-chunk time index; the backward direction walks the chunk in reverse.
        # Combined with the flipped chunk index_map, bwd outputs come out un-reversed.
        t_idx = t + d * (Tc - 1 - 2 * t)
        x_s = x_ref[0, t_idx]                    # (F, Np) f32
        m_s = m_ref[0, t_idx]
        m_known = m_s != 0.0                     # mask assumed binary {0,1}

        # ---------------- first stage ----------------
        xs_hat_1 = _mm(w_fs_ref[0], h) + b_fs_ref[0]
        x1 = jnp.where(m_known, x_s, xs_hat_1)

        # ------------- spatial decoder (split weights, no concats) -------------
        x_in = (_mm(w_lix_ref[0], x1) + _mm(w_lim_ref[0], m_s)
                + _mm(w_lih_ref[0], h) + b_li_ref[0])
        gc = (_mm(w_gc_ref[0, 0], _mix(x_in, a1t))
              + _mm(w_gc_ref[0, 1], _mix(x_in, a2t)) + b_gc_ref[0])
        lo = _mm(w_log_ref[0], gc) + _mm(w_loh_ref[0], h) + b_lo_ref[0]
        lo = jnp.where(lo >= 0.0, lo, p_slope * lo)                 # PReLU
        xs_hat_2 = _mm(w_roa_ref[0], lo) + _mm(w_roh_ref[0], h) + b_ro_ref[0]
        x2 = jnp.where(m_known, x1, xs_hat_2)

        # ---------------- per-step outputs (lane-dense stores) ----------------
        pred_ref[0, 0, t_idx] = xs_hat_1
        imp_ref[0, 0, t_idx] = xs_hat_2
        repr_ref[0, 0, t_idx, :H] = lo           # repr = cat([prelu_out, h])
        repr_ref[0, 0, t_idx, H:] = h

        # ---------------- GCGRU cell ----------------
        # z = cat([x2, m, h]) matches the cell's cat([x, h]) column layout, so diffusing z
        # once per support covers both the input and hidden columns of the gate weights.
        z = jnp.concatenate([x2, m_s, h], axis=0)            # (2F+H, Np)
        z1, z1s = _mix(z, a1t), _mix(z, a1st)
        z2, z2s = _mix(z, a2t), _mix(z, a2st)
        ru = (_mm(w_ru_ref[0, 0], z) + _mm(w_ru_ref[0, 1], z1)
              + _mm(w_ru_ref[0, 2], z1s) + _mm(w_ru_ref[0, 3], z2)
              + _mm(w_ru_ref[0, 4], z2s) + b_ru_ref[0])
        ru = jax.nn.sigmoid(ru)                               # (2H, Np)
        r, u = ru[:H], ru[H:]

        rh = r * h
        rh1, rh1s = _mix(rh, a1t), _mix(rh, a1st)
        rh2, rh2s = _mix(rh, a2t), _mix(rh, a2st)
        nF = 2 * F
        cpre = (_mm(w_cv_ref[0, 0], z[:nF]) + _mm(w_ch_ref[0, 0], rh)
                + _mm(w_cv_ref[0, 1], z1[:nF]) + _mm(w_ch_ref[0, 1], rh1)
                + _mm(w_cv_ref[0, 2], z1s[:nF]) + _mm(w_ch_ref[0, 2], rh1s)
                + _mm(w_cv_ref[0, 3], z2[:nF]) + _mm(w_ch_ref[0, 3], rh2)
                + _mm(w_cv_ref[0, 4], z2s[:nF]) + _mm(w_ch_ref[0, 4], rh2s)
                + b_c_ref[0])
        cand = jnp.tanh(cpre)
        return u * h + (1.0 - u) * cand                       # f32 state update

    h_scr[...] = lax.fori_loop(0, Tc, step, h_scr[...])


# ---------------------------------------------------------------------------
# merge MLP kernel: Conv2d 1x1 -> ReLU -> Conv2d 1x1, tiled over (batch, time)
# ---------------------------------------------------------------------------
def _merge_mlp_kernel(rf_ref, rb_ref, m_ref, w1f_ref, w1b_ref, w1m_ref,
                      b1_ref, w2_ref, b2_ref, o_ref):
    Sc = o_ref.shape[1]
    for t in range(Sc):   # static loop; per-step lane-dense (C, Np) matmuls
        hid = (_mm(w1f_ref[...], rf_ref[0, 0, t])
               + _mm(w1b_ref[...], rb_ref[0, 0, t])
               + _mm(w1m_ref[...], m_ref[0, t]) + b1_ref[...])
        hid = jnp.maximum(hid, 0.0)
        # TODO(synk): nn.Dropout(ff_dropout) is identity here (eval / prob 0).
        o_ref[0, t] = _mm(w2_ref[...], hid) + b2_ref[...]


# ---------------------------------------------------------------------------
# forward pass
# ---------------------------------------------------------------------------
def _largest_divisor_at_most(n, cap):
    c = min(n, cap)
    while n % c:
        c -= 1
    return c


def bigril_forward(params, x, adj, mask=None, *, matmul_dtype=jnp.bfloat16,
                   time_chunk=None, mlp_time_chunk=None):
    """BiGRIL forward: returns (imputation, predictions)."""
    B, F_, N, S = x.shape
    H = params["h0"].shape[1]
    D = 2 * F_ + H

    Np = max(128, ((N + 127) // 128) * 128)            # lane-padded node count
    Tc = time_chunk or _largest_divisor_at_most(S, 16)  # timesteps per grid step
    NC = S // Tc

    if mask is None:
        mask = jnp.ones_like(x)

    # ---- supports: (N,N) (NOT block-diagonal over batch), 2-hop precomputed,
    #      pre-transposed so every node mix is a plain Z @ A^T matmul --------------
    adj = adj.astype(jnp.float32)
    a_fwd = adj / (adj.sum(1, keepdims=True) + 1e-8)
    adj_t = adj.T
    a_bwd = adj_t / (adj_t.sum(1, keepdims=True) + 1e-8)
    pad_nn = lambda a: jnp.pad(a, ((0, Np - N), (0, Np - N)))
    a1t = pad_nn(a_fwd.T)
    a2t = pad_nn(a_bwd.T)
    a1st = a1t @ a1t                      # (A1 @ A1)^T, 2-hop (no diag zeroing: order-1 decoder)
    a2st = a2t @ a2t
    A1t, A1st = a1t.astype(matmul_dtype), a1st.astype(matmul_dtype)
    A2t, A2st = a2t.astype(matmul_dtype), a2st.astype(matmul_dtype)

    # ---- activations: (B, C, N, S) -> (B, S, C, Np) with lane-padded nodes -------
    def to_kernel_layout(t):
        t = jnp.transpose(t, (0, 3, 1, 2)).astype(jnp.float32)
        return jnp.pad(t, ((0, 0), (0, 0), (0, 0), (0, Np - N)))

    x_l = to_kernel_layout(x)
    m_l = to_kernel_layout(mask)
    h0 = jnp.pad(params["h0"].astype(jnp.float32), ((0, 0), (0, 0), (0, Np - N)))

    wb = lambda name: params[name].astype(matmul_dtype)   # bf16 matmul weights
    fp = lambda name: params[name].astype(jnp.float32)    # f32 biases

    def tmap(c, d):                     # chunk index flip for the backward direction
        return c + d * (NC - 1 - 2 * c)

    xm_spec = pl.BlockSpec((1, Tc, F_, Np), lambda d, b, c: (b, tmap(c, d), 0, 0))
    adj_spec = pl.BlockSpec((Np, Np), lambda d, b, c: (0, 0))

    def dirw(*shape):                   # per-direction constant-index parameter block
        nd = len(shape)
        return pl.BlockSpec((1,) + tuple(shape), lambda d, b, c: (d,) + (0,) * nd)

    out_fp = pl.BlockSpec((1, 1, Tc, F_, Np), lambda d, b, c: (d, b, tmap(c, d), 0, 0))
    out_rp = pl.BlockSpec((1, 1, Tc, 2 * H, Np), lambda d, b, c: (d, b, tmap(c, d), 0, 0))

    pred_all, imp_all, repr_all = pl.pallas_call(
        _bigril_chunk_kernel,
        out_shape=(
            jax.ShapeDtypeStruct((2, B, S, F_, Np), jnp.float32),     # xs_hat_1
            jax.ShapeDtypeStruct((2, B, S, F_, Np), jnp.float32),     # xs_hat_2
            jax.ShapeDtypeStruct((2, B, S, 2 * H, Np), jnp.float32),  # representations
        ),
        grid=(2, B, NC),
        in_specs=[
            pl.BlockSpec(memory_space=pltpu.MemorySpace.SMEM),        # prelu (2,)
            xm_spec, xm_spec,                                         # x, mask
            dirw(H, Np),                                              # h0
            adj_spec, adj_spec, adj_spec, adj_spec,                   # A1^T, A1^2T, A2^T, A2^2T
            dirw(F_, H), dirw(F_, 1),                                 # first_stage
            dirw(H, F_), dirw(H, F_), dirw(H, H), dirw(H, 1),         # lin_in split
            dirw(2, H, H), dirw(H, 1),                                # graph_conv terms
            dirw(H, H), dirw(H, H), dirw(H, 1),                       # lin_out split
            dirw(F_, H), dirw(F_, H), dirw(F_, 1),                    # read_out split
            dirw(5, 2 * H, D), dirw(2 * H, 1),                        # GRU gates r|u per term
            dirw(5, H, 2 * F_), dirw(5, H, H), dirw(H, 1),            # GRU candidate per term
        ],
        out_specs=(out_fp, out_fp, out_rp),
        scratch_shapes=[pltpu.VMEM((H, Np), jnp.float32)],
        compiler_params=pltpu.CompilerParams(
            dimension_semantics=("parallel", "parallel", "arbitrary"),
            vmem_limit_bytes=32 * 1024 * 1024),
    )(params["prelu"].astype(jnp.float32), x_l, m_l, h0,
      A1t, A1st, A2t, A2st,
      wb("w_fs"), fp("b_fs"),
      wb("w_li_x"), wb("w_li_m"), wb("w_li_h"), fp("b_li"),
      wb("w_gc"), fp("b_gc"),
      wb("w_lo_g"), wb("w_lo_h"), fp("b_lo"),
      wb("w_ro_a"), wb("w_ro_h"), fp("b_ro"),
      wb("w_ru"), fp("b_ru"),
      wb("w_c_v"), wb("w_c_h"), fp("b_c"))

    # ---- merge == 'mlp' (embedding_size == 0): tiled, lane-dense, consumes repr in the
    #      layout the recurrence produced (no large HBM transposes) --------------------
    Sc = mlp_time_chunk or _largest_divisor_at_most(S, 16)
    w1 = params["out1_w"]                                  # (ff, 4H + F), column split
    w1f = w1[:, :2 * H].astype(matmul_dtype)
    w1b = w1[:, 2 * H:4 * H].astype(matmul_dtype)
    w1m = w1[:, 4 * H:].astype(matmul_dtype)
    w2 = params["out2_w"].astype(matmul_dtype)
    b1 = params["out1_b"].astype(jnp.float32)
    b2 = params["out2_b"].astype(jnp.float32)

    def full(a):
        nd = a.ndim
        return pl.BlockSpec(a.shape, lambda b, sc: (0,) * nd)

    imputation_l = pl.pallas_call(
        _merge_mlp_kernel,
        out_shape=jax.ShapeDtypeStruct((B, S, F_, Np), jnp.float32),
        grid=(B, S // Sc),
        in_specs=[
            pl.BlockSpec((1, 1, Sc, 2 * H, Np), lambda b, sc: (0, b, sc, 0, 0)),  # fwd repr
            pl.BlockSpec((1, 1, Sc, 2 * H, Np), lambda b, sc: (1, b, sc, 0, 0)),  # bwd repr
            pl.BlockSpec((1, Sc, F_, Np), lambda b, sc: (b, sc, 0, 0)),           # mask
            full(w1f), full(w1b), full(w1m), full(b1), full(w2), full(b2),
        ],
        out_specs=pl.BlockSpec((1, Sc, F_, Np), lambda b, sc: (b, sc, 0, 0)),
        compiler_params=pltpu.CompilerParams(
            dimension_semantics=("parallel", "parallel"),
            vmem_limit_bytes=32 * 1024 * 1024),
    )(repr_all, repr_all, m_l, w1f, w1b, w1m, b1, w2, b2)

    # ---- back to the module's (B, C, N, S) layout (only small F-channel tensors) ----
    def to_module_layout(t):            # (B, S, C, Np) -> (B, C, N, S)
        return jnp.transpose(t[..., :N], (0, 2, 3, 1))

    imputation = to_module_layout(imputation_l)
    predictions = jnp.stack(
        [to_module_layout(imp_all[0]), to_module_layout(imp_all[1]),
         to_module_layout(pred_all[0]), to_module_layout(pred_all[1])], axis=0)
    return imputation, predictions


# ---------------------------------------------------------------------------
# Deterministic parameter initialization (shapes follow the PyTorch __init__);
# concatenated-input conv weights are stored pre-split / per-diffusion-term.
# ---------------------------------------------------------------------------
def _init_conv(key, c_out, c_in):
    kw, kb = jax.random.split(key)
    bound = 1.0 / math.sqrt(c_in)
    w = jax.random.uniform(kw, (c_out, c_in), jnp.float32, -bound, bound)
    b = jax.random.uniform(kb, (c_out, 1), jnp.float32, -bound, bound)
    return w, b


def init_gril_params(key, input_size, hidden_size, n_nodes,
                     support_len=2, kernel_size=2):
    F_, H = input_size, hidden_size
    rnn_in = 2 * F_                           # u_size = 0
    D = rnn_in + H
    n_terms = support_len * kernel_size + 1   # [self, A1, A1^2, A2, A2^2]
    keys = jax.random.split(key, 10)
    w_fs, b_fs = _init_conv(keys[0], F_, H)
    w_r, b_r = _init_conv(keys[1], H, n_terms * D)
    w_u, b_u = _init_conv(keys[2], H, n_terms * D)
    w_c, b_c = _init_conv(keys[3], H, n_terms * D)
    w_li, b_li = _init_conv(keys[4], H, D)
    w_gc, b_gc = _init_conv(keys[5], H, 2 * H)
    w_lo, b_lo = _init_conv(keys[6], H, 2 * H)
    w_ro, b_ro = _init_conv(keys[7], F_, 2 * H)
    h0 = jax.random.normal(keys[8], (H, n_nodes), jnp.float32) / math.sqrt(H)

    per_term = lambda w: w.reshape(w.shape[0], n_terms, D).transpose(1, 0, 2)
    w_r_t, w_u_t, w_c_t = per_term(w_r), per_term(w_u), per_term(w_c)

    # TODO(synk): TRAE_layer(8) is instantiated by GRIL but never used in
    # forward(), so it is intentionally omitted here.
    return {
        "w_fs": w_fs, "b_fs": b_fs,
        "w_li_x": w_li[:, :F_], "w_li_m": w_li[:, F_:2 * F_], "w_li_h": w_li[:, 2 * F_:],
        "b_li": b_li,
        "w_gc": jnp.stack([w_gc[:, :H], w_gc[:, H:]], axis=0), "b_gc": b_gc,
        "w_lo_g": w_lo[:, :H], "w_lo_h": w_lo[:, H:], "b_lo": b_lo,
        "w_ro_a": w_ro[:, :H], "w_ro_h": w_ro[:, H:], "b_ro": b_ro,
        "w_ru": jnp.concatenate([w_r_t, w_u_t], axis=1),   # (5, 2H, 2F+H)
        "b_ru": jnp.concatenate([b_r, b_u], axis=0),
        "w_c_v": w_c_t[..., :rnn_in], "w_c_h": w_c_t[..., rnn_in:],
        "b_c": b_c,
        "h0": h0,
        "prelu": jnp.asarray(0.25, jnp.float32),
    }


def init_bigril_params(key, input_size, hidden_size, ff_size, n_nodes):
    k1, k2, k3, k4 = jax.random.split(key, 4)
    fwd = init_gril_params(k1, input_size, hidden_size, n_nodes)
    bwd = init_gril_params(k2, input_size, hidden_size, n_nodes)
    params = jax.tree_util.tree_map(lambda a, b: jnp.stack([a, b], axis=0), fwd, bwd)
    out1_w, out1_b = _init_conv(k3, ff_size, 4 * hidden_size + input_size)
    out2_w, out2_b = _init_conv(k4, input_size, ff_size)
    params.update({"out1_w": out1_w, "out1_b": out1_b,
                   "out2_w": out2_w, "out2_b": out2_b})
    return params


# ---------------------------------------------------------------------------
if __name__ == "__main__":
    B, F_, N, S = 2, 4, 16, 8          # batch, features, nodes, steps
    HIDDEN, FF = 32, 64

    key = jax.random.PRNGKey(0)
    kx, km, ka, kp = jax.random.split(key, 4)
    x = jax.random.normal(kx, (B, F_, N, S), jnp.float32)
    mask = (jax.random.uniform(km, (B, F_, N, S)) > 0.3).astype(jnp.float32)
    adj = jax.random.uniform(ka, (N, N), jnp.float32)
    params = init_bigril_params(kp, F_, HIDDEN, FF, N)

    fwd = jax.jit(bigril_forward)
    imputation, predictions = fwd(params, x, adj, mask)
    jax.block_until_ready((imputation, predictions))

    assert imputation.shape == (B, F_, N, S)
    assert predictions.shape == (4, B, F_, N, S)
    assert bool(jnp.all(jnp.isfinite(imputation)))
    assert bool(jnp.all(jnp.isfinite(predictions)))
    print("KERNEL_OK")
</pallas_src>

<mosaic_0001>
module attributes {stable_mosaic.version = 11 : i64} {
  func.func @_bigril_chunk_kernel(%arg0: i32, %arg1: i32, %arg2: i32, %arg3: memref<2xf32, #tpu.memory_space<smem>>, %arg4: memref<1x8x4x128xf32, #tpu.memory_space<vmem>>, %arg5: memref<1x8x4x128xf32, #tpu.memory_space<vmem>>, %arg6: memref<1x32x128xf32, #tpu.memory_space<vmem>>, %arg7: memref<128x128xbf16, #tpu.memory_space<vmem>>, %arg8: memref<128x128xbf16, #tpu.memory_space<vmem>>, %arg9: memref<128x128xbf16, #tpu.memory_space<vmem>>, %arg10: memref<128x128xbf16, #tpu.memory_space<vmem>>, %arg11: memref<1x4x32xbf16, #tpu.memory_space<vmem>>, %arg12: memref<1x4x1xf32, #tpu.memory_space<vmem>>, %arg13: memref<1x32x4xbf16, #tpu.memory_space<vmem>>, %arg14: memref<1x32x4xbf16, #tpu.memory_space<vmem>>, %arg15: memref<1x32x32xbf16, #tpu.memory_space<vmem>>, %arg16: memref<1x32x1xf32, #tpu.memory_space<vmem>>, %arg17: memref<1x2x32x32xbf16, #tpu.memory_space<vmem>>, %arg18: memref<1x32x1xf32, #tpu.memory_space<vmem>>, %arg19: memref<1x32x32xbf16, #tpu.memory_space<vmem>>, %arg20: memref<1x32x32xbf16, #tpu.memory_space<vmem>>, %arg21: memref<1x32x1xf32, #tpu.memory_space<vmem>>, %arg22: memref<1x4x32xbf16, #tpu.memory_space<vmem>>, %arg23: memref<1x4x32xbf16, #tpu.memory_space<vmem>>, %arg24: memref<1x4x1xf32, #tpu.memory_space<vmem>>, %arg25: memref<1x5x64x40xbf16, #tpu.memory_space<vmem>>, %arg26: memref<1x64x1xf32, #tpu.memory_space<vmem>>, %arg27: memref<1x5x32x8xbf16, #tpu.memory_space<vmem>>, %arg28: memref<1x5x32x32xbf16, #tpu.memory_space<vmem>>, %arg29: memref<1x32x1xf32, #tpu.memory_space<vmem>>, %arg30: memref<1x1x8x4x128xf32, #tpu.memory_space<vmem>>, %arg31: memref<1x1x8x4x128xf32, #tpu.memory_space<vmem>>, %arg32: memref<1x1x8x64x128xf32, #tpu.memory_space<vmem>>, %arg33: memref<32x128xf32, #tpu.memory_space<vmem>>) attributes {dimension_semantics = [#tpu.dimension_semantics<parallel>, #tpu.dimension_semantics<parallel>, #tpu.dimension_semantics<arbitrary>], iteration_bounds = array<i64: 2, 2, 1>, scalar_prefetch = 0 : i64, scratch_operands = 1 : i64, tpu.core_type = #tpu.core_type<tc>, window_params = [{transform_indices = @transform_0, window_bounds = array<i64: 2>}, {transform_indices = @transform_1, window_bounds = array<i64: 1, 8, 4, 128>}, {transform_indices = @transform_2, window_bounds = array<i64: 1, 8, 4, 128>}, {transform_indices = @transform_3, window_bounds = array<i64: 1, 32, 128>}, {pipeline_mode = #tpu.pipeline_mode<synchronous>, transform_indices = @transform_4, window_bounds = array<i64: 128, 128>}, {pipeline_mode = #tpu.pipeline_mode<synchronous>, transform_indices = @transform_5, window_bounds = array<i64: 128, 128>}, {pipeline_mode = #tpu.pipeline_mode<synchronous>, transform_indices = @transform_6, window_bounds = array<i64: 128, 128>}, {pipeline_mode = #tpu.pipeline_mode<synchronous>, transform_indices = @transform_7, window_bounds = array<i64: 128, 128>}, {transform_indices = @transform_8, window_bounds = array<i64: 1, 4, 32>}, {transform_indices = @transform_9, window_bounds = array<i64: 1, 4, 1>}, {transform_indices = @transform_10, window_bounds = array<i64: 1, 32, 4>}, {transform_indices = @transform_11, window_bounds = array<i64: 1, 32, 4>}, {transform_indices = @transform_12, window_bounds = array<i64: 1, 32, 32>}, {transform_indices = @transform_13, window_bounds = array<i64: 1, 32, 1>}, {transform_indices = @transform_14, window_bounds = array<i64: 1, 2, 32, 32>}, {transform_indices = @transform_15, window_bounds = array<i64: 1, 32, 1>}, {transform_indices = @transform_16, window_bounds = array<i64: 1, 32, 32>}, {transform_indices = @transform_17, window_bounds = array<i64: 1, 32, 32>}, {transform_indices = @transform_18, window_bounds = array<i64: 1, 32, 1>}, {transform_indices = @transform_19, window_bounds = array<i64: 1, 4, 32>}, {transform_indices = @transform_20, window_bounds = array<i64: 1, 4, 32>}, {transform_indices = @transform_21, window_bounds = array<i64: 1, 4, 1>}, {transform_indices = @transform_22, window_bounds = array<i64: 1, 5, 64, 40>}, {transform_indices = @transform_23, window_bounds = array<i64: 1, 64, 1>}, {transform_indices = @transform_24, window_bounds = array<i64: 1, 5, 32, 8>}, {transform_indices = @transform_25, window_bounds = array<i64: 1, 5, 32, 32>}, {transform_indices = @transform_26, window_bounds = array<i64: 1, 32, 1>}, {transform_indices = @transform_27, window_bounds = array<i64: 1, 1, 8, 4, 128>}, {transform_indices = @transform_28, window_bounds = array<i64: 1, 1, 8, 4, 128>}, {transform_indices = @transform_29, window_bounds = array<i64: 1, 1, 8, 64, 128>}]} {
    %c0_i32 = arith.constant 0 : i32
    %0 = arith.cmpi eq, %arg2, %c0_i32 : i32
    %1 = arith.extui %0 : i1 to i32
    %c0_i32_0 = arith.constant 0 : i32
    %2 = arith.cmpi ne, %1, %c0_i32_0 : i32
    scf.if %2 {
      %c0_14 = arith.constant 0 : index
      %c0_15 = arith.constant 0 : index
      %c0_16 = arith.constant 0 : index
      %13 = vector.load %arg6[%c0_14, %c0_15, %c0_16] : memref<1x32x128xf32, #tpu.memory_space<vmem>>, vector<1x32x128xf32>
      %14 = vector.shape_cast %13 : vector<1x32x128xf32> to vector<32x128xf32>
      %c0_17 = arith.constant 0 : index
      %c0_18 = arith.constant 0 : index
      %15 = vector.load %arg33[%c0_17, %c0_18] : memref<32x128xf32, #tpu.memory_space<vmem>>, vector<32x128xf32>
      tpu.vector_store %arg33[%c0_17, %c0_18], %14 {strides = array<i32>} : memref<32x128xf32, #tpu.memory_space<vmem>>, vector<32x128xf32>,
    } else {
    }
    %3 = arith.index_cast %arg0 : i32 to index
    %4 = memref.load %arg3[%3] : memref<2xf32, #tpu.memory_space<smem>>
    %c0 = arith.constant 0 : index
    %c0_1 = arith.constant 0 : index
    %5 = vector.load %arg7[%c0, %c0_1] : memref<128x128xbf16, #tpu.memory_space<vmem>>, vector<128x128xbf16>
    %c0_2 = arith.constant 0 : index
    %c0_3 = arith.constant 0 : index
    %6 = vector.load %arg8[%c0_2, %c0_3] : memref<128x128xbf16, #tpu.memory_space<vmem>>, vector<128x128xbf16>
    %c0_4 = arith.constant 0 : index
    %c0_5 = arith.constant 0 : index
    %7 = vector.load %arg9[%c0_4, %c0_5] : memref<128x128xbf16, #tpu.memory_space<vmem>>, vector<128x128xbf16>
    %c0_6 = arith.constant 0 : index
    %c0_7 = arith.constant 0 : index
    %8 = vector.load %arg10[%c0_6, %c0_7] : memref<128x128xbf16, #tpu.memory_space<vmem>>, vector<128x128xbf16>
    %c0_8 = arith.constant 0 : index
    %c0_9 = arith.constant 0 : index
    %9 = vector.load %arg33[%c0_8, %c0_9] : memref<32x128xf32, #tpu.memory_space<vmem>>, vector<32x128xf32>
    %c0_i32_10 = arith.constant 0 : i32
    %c8_i32 = arith.constant 8 : i32
    %10 = arith.addi %c0_i32_10, %c8_i32 : i32
    %c1_i32 = arith.constant 1 : i32
    %11 = scf.for %arg34 = %c0_i32_10 to %10 step %c1_i32 iter_args(%arg35 = %9) -> (vector<32x128xf32>)  : i32 {
      %c2_i32 = arith.constant 2 : i32
      %13 = arith.muli %c2_i32, %arg34 : i32
      %c7_i32 = arith.constant 7 : i32
      %14 = arith.subi %c7_i32, %13 : i32
      %15 = arith.muli %arg0, %14 : i32
      %16 = arith.addi %arg34, %15 : i32
      %c0_14 = arith.constant 0 : index
      %17 = arith.index_cast %16 : i32 to index
      %c0_15 = arith.constant 0 : index
      %c0_16 = arith.constant 0 : index
      %18 = vector.load %arg4[%c0_14, %17, %c0_15, %c0_16] : memref<1x8x4x128xf32, #tpu.memory_space<vmem>>, vector<1x1x4x128xf32>
      %19 = vector.shape_cast %18 : vector<1x1x4x128xf32> to vector<4x128xf32>
      %c0_17 = arith.constant 0 : index
      %20 = arith.index_cast %16 : i32 to index
      %c0_18 = arith.constant 0 : index
      %c0_19 = arith.constant 0 : index
      %21 = vector.load %arg5[%c0_17, %20, %c0_18, %c0_19] : memref<1x8x4x128xf32, #tpu.memory_space<vmem>>, vector<1x1x4x128xf32>
      %22 = vector.shape_cast %21 : vector<1x1x4x128xf32> to vector<4x128xf32>
      %cst = arith.constant 0.000000e+00 : f32
      %23 = vector.broadcast %cst : f32 to vector<4x128xf32>
      %24 = arith.cmpf one, %22, %23 : vector<4x128xf32>
      %c0_20 = arith.constant 0 : index
      %c0_21 = arith.constant 0 : index
      %c0_22 = arith.constant 0 : index
      %25 = vector.load %arg11[%c0_20, %c0_21, %c0_22] : memref<1x4x32xbf16, #tpu.memory_space<vmem>>, vector<1x4x32xbf16>
      %26 = vector.shape_cast %25 : vector<1x4x32xbf16> to vector<4x32xbf16>
      %27 = arith.truncf %arg35 : vector<32x128xf32> to vector<32x128xbf16>
      %cst_23 = arith.constant dense<0.000000e+00> : vector<4x128xf32>
      %28 = tpu.matmul %26, %27, %cst_23 {dimension_numbers = #tpu.dot_dimension_numbers<[1], [0], [0], [1], [0, 0, 1, 1], [], []>} : vector<4x32xbf16>, vector<32x128xbf16>, vector<4x128xf32> -> vector<4x128xf32>
      %c0_24 = arith.constant 0 : index
      %c0_25 = arith.constant 0 : index
      %c0_26 = arith.constant 0 : index
      %29 = vector.load %arg12[%c0_24, %c0_25, %c0_26] : memref<1x4x1xf32, #tpu.memory_space<vmem>>, vector<1x4x1xf32>
      %30 = vector.shape_cast %29 : vector<1x4x1xf32> to vector<4x1xf32>
      %31 = vector.broadcast %30 : vector<4x1xf32> to vector<4x128xf32>
      %32 = arith.addf %28, %31 : vector<4x128xf32>
      %33 = arith.select %24, %19, %32 : vector<4x128xi1>, vector<4x128xf32>
      %c0_27 = arith.constant 0 : index
      %c0_28 = arith.constant 0 : index
      %c0_29 = arith.constant 0 : index
      %34 = vector.load %arg13[%c0_27, %c0_28, %c0_29] : memref<1x32x4xbf16, #tpu.memory_space<vmem>>, vector<1x32x4xbf16>
      %35 = vector.shape_cast %34 : vector<1x32x4xbf16> to vector<32x4xbf16>
      %36 = arith.truncf %33 : vector<4x128xf32> to vector<4x128xbf16>
      %cst_30 = arith.constant dense<0.000000e+00> : vector<32x128xf32>
      %37 = tpu.matmul %35, %36, %cst_30 {dimension_numbers = #tpu.dot_dimension_numbers<[1], [0], [0], [1], [0, 0, 1, 1], [], []>} : vector<32x4xbf16>, vector<4x128xbf16>, vector<32x128xf32> -> vector<32x128xf32>
      %c0_31 = arith.constant 0 : index
      %c0_32 = arith.constant 0 : index
      %c0_33 = arith.constant 0 : index
      %38 = vector.load %arg14[%c0_31, %c0_32, %c0_33] : memref<1x32x4xbf16, #tpu.memory_space<vmem>>, vector<1x32x4xbf16>
      %39 = vector.shape_cast %38 : vector<1x32x4xbf16> to vector<32x4xbf16>
      %40 = arith.truncf %22 : vector<4x128xf32> to vector<4x128xbf16>
      %cst_34 = arith.constant dense<0.000000e+00> : vector<32x128xf32>
      %41 = tpu.matmul %39, %40, %cst_34 {dimension_numbers = #tpu.dot_dimension_numbers<[1], [0], [0], [1], [0, 0, 1, 1], [], []>} : vector<32x4xbf16>, vector<4x128xbf16>, vector<32x128xf32> -> vector<32x128xf32>
      %42 = arith.addf %37, %41 : vector<32x128xf32>
      %c0_35 = arith.constant 0 : index
      %c0_36 = arith.constant 0 : index
      %c0_37 = arith.constant 0 : index
      %43 = vector.load %arg15[%c0_35, %c0_36, %c0_37] : memref<1x32x32xbf16, #tpu.memory_space<vmem>>, vector<1x32x32xbf16>
      %44 = vector.shape_cast %43 : vector<1x32x32xbf16> to vector<32x32xbf16>
      %45 = arith.truncf %arg35 : vector<32x128xf32> to vector<32x128xbf16>
      %cst_38 = arith.constant dense<0.000000e+00> : vector<32x128xf32>
      %46 = tpu.matmul %44, %45, %cst_38 {dimension_numbers = #tpu.dot_dimension_numbers<[1], [0], [0], [1], [0, 0, 1, 1], [], []>} : vector<32x32xbf16>, vector<32x128xbf16>, vector<32x128xf32> -> vector<32x128xf32>
      %47 = arith.addf %42, %46 : vector<32x128xf32>
      %c0_39 = arith.constant 0 : index
      %c0_40 = arith.constant 0 : index
      %c0_41 = arith.constant 0 : index
      %48 = vector.load %arg16[%c0_39, %c0_40, %c0_41] : memref<1x32x1xf32, #tpu.memory_space<vmem>>, vector<1x32x1xf32>
      %49 = vector.shape_cast %48 : vector<1x32x1xf32> to vector<32x1xf32>
      %50 = vector.broadcast %49 : vector<32x1xf32> to vector<32x128xf32>
      %51 = arith.addf %47, %50 : vector<32x128xf32>
      %c0_42 = arith.constant 0 : index
      %c0_43 = arith.constant 0 : index
      %c0_44 = arith.constant 0 : index
      %c0_45 = arith.constant 0 : index
      %52 = vector.load %arg17[%c0_42, %c0_43, %c0_44, %c0_45] : memref<1x2x32x32xbf16, #tpu.memory_space<vmem>>, vector<1x1x32x32xbf16>
      %53 = vector.shape_cast %52 : vector<1x1x32x32xbf16> to vector<32x32xbf16>
      %54 = arith.truncf %51 : vector<32x128xf32> to vector<32x128xbf16>
      %cst_46 = arith.constant dense<0.000000e+00> : vector<32x128xf32>
      %55 = tpu.matmul %54, %5, %cst_46 {dimension_numbers = #tpu.dot_dimension_numbers<[1], [0], [0], [1], [0, 0, 1, 1], [], []>} : vector<32x128xbf16>, vector<128x128xbf16>, vector<32x128xf32> -> vector<32x128xf32>
      %56 = arith.truncf %55 : vector<32x128xf32> to vector<32x128xbf16>
      %cst_47 = arith.constant dense<0.000000e+00> : vector<32x128xf32>
      %57 = tpu.matmul %53, %56, %cst_47 {dimension_numbers = #tpu.dot_dimension_numbers<[1], [0], [0], [1], [0, 0, 1, 1], [], []>} : vector<32x32xbf16>, vector<32x128xbf16>, vector<32x128xf32> -> vector<32x128xf32>
      %c0_48 = arith.constant 0 : index
      %c1 = arith.constant 1 : index
      %c0_49 = arith.constant 0 : index
      %c0_50 = arith.constant 0 : index
      %58 = vector.load %arg17[%c0_48, %c1, %c0_49, %c0_50] : memref<1x2x32x32xbf16, #tpu.memory_space<vmem>>, vector<1x1x32x32xbf16>
      %59 = vector.shape_cast %58 : vector<1x1x32x32xbf16> to vector<32x32xbf16>
      %60 = arith.truncf %51 : vector<32x128xf32> to vector<32x128xbf16>
      %cst_51 = arith.constant dense<0.000000e+00> : vector<32x128xf32>
      %61 = tpu.matmul %60, %7, %cst_51 {dimension_numbers = #tpu.dot_dimension_numbers<[1], [0], [0], [1], [0, 0, 1, 1], [], []>} : vector<32x128xbf16>, vector<128x128xbf16>, vector<32x128xf32> -> vector<32x128xf32>
      %62 = arith.truncf %61 : vector<32x128xf32> to vector<32x128xbf16>
      %cst_52 = arith.constant dense<0.000000e+00> : vector<32x128xf32>
      %63 = tpu.matmul %59, %62, %cst_52 {dimension_numbers = #tpu.dot_dimension_numbers<[1], [0], [0], [1], [0, 0, 1, 1], [], []>} : vector<32x32xbf16>, vector<32x128xbf16>, vector<32x128xf32> -> vector<32x128xf32>
      %64 = arith.addf %57, %63 : vector<32x128xf32>
      %c0_53 = arith.constant 0 : index
      %c0_54 = arith.constant 0 : index
      %c0_55 = arith.constant 0 : index
      %65 = vector.load %arg18[%c0_53, %c0_54, %c0_55] : memref<1x32x1xf32, #tpu.memory_space<vmem>>, vector<1x32x1xf32>
      %66 = vector.shape_cast %65 : vector<1x32x1xf32> to vector<32x1xf32>
      %67 = vector.broadcast %66 : vector<32x1xf32> to vector<32x128xf32>
      %68 = arith.addf %64, %67 : vector<32x128xf32>
      %c0_56 = arith.constant 0 : index
      %c0_57 = arith.constant 0 : index
      %c0_58 = arith.constant 0 : index
      %69 = vector.load %arg19[%c0_56, %c0_57, %c0_58] : memref<1x32x32xbf16, #tpu.memory_space<vmem>>, vector<1x32x32xbf16>
      %70 = vector.shape_cast %69 : vector<1x32x32xbf16> to vector<32x32xbf16>
      %71 = arith.truncf %68 : vector<32x128xf32> to vector<32x128xbf16>
      %cst_59 = arith.constant dense<0.000000e+00> : vector<32x128xf32>
      %72 = tpu.matmul %70, %71, %cst_59 {dimension_numbers = #tpu.dot_dimension_numbers<[1], [0], [0], [1], [0, 0, 1, 1], [], []>} : vector<32x32xbf16>, vector<32x128xbf16>, vector<32x128xf32> -> vector<32x128xf32>
      %c0_60 = arith.constant 0 : index
      %c0_61 = arith.constant 0 : index
      %c0_62 = arith.constant 0 : index
      %73 = vector.load %arg20[%c0_60, %c0_61, %c0_62] : memref<1x32x32xbf16, #tpu.memory_space<vmem>>, vector<1x32x32xbf16>
      %74 = vector.shape_cast %73 : vector<1x32x32xbf16> to vector<32x32xbf16>
      %75 = arith.truncf %arg35 : vector<32x128xf32> to vector<32x128xbf16>
      %cst_63 = arith.constant dense<0.000000e+00> : vector<32x128xf32>
      %76 = tpu.matmul %74, %75, %cst_63 {dimension_numbers = #tpu.dot_dimension_numbers<[1], [0], [0], [1], [0, 0, 1, 1], [], []>} : vector<32x32xbf16>, vector<32x128xbf16>, vector<32x128xf32> -> vector<32x128xf32>
      %77 = arith.addf %72, %76 : vector<32x128xf32>
      %c0_64 = arith.constant 0 : index
      %c0_65 = arith.constant 0 : index
      %c0_66 = arith.constant 0 : index
      %78 = vector.load %arg21[%c0_64, %c0_65, %c0_66] : memref<1x32x1xf32, #tpu.memory_space<vmem>>, vector<1x32x1xf32>
      %79 = vector.shape_cast %78 : vector<1x32x1xf32> to vector<32x1xf32>
      %80 = vector.broadcast %79 : vector<32x1xf32> to vector<32x128xf32>
      %81 = arith.addf %77, %80 : vector<32x128xf32>
      %cst_67 = arith.constant 0.000000e+00 : f32
      %82 = vector.broadcast %cst_67 : f32 to vector<32x128xf32>
      %83 = arith.cmpf oge, %81, %82 : vector<32x128xf32>
      %84 = vector.broadcast %4 : f32 to vector<32x128xf32>
      %85 = arith.mulf %84, %81 : vector<32x128xf32>
      %86 = arith.select %83, %81, %85 : vector<32x128xi1>, vector<32x128xf32>
      %c0_68 = arith.constant 0 : index
      %c0_69 = arith.constant 0 : index
      %c0_70 = arith.constant 0 : index
      %87 = vector.load %arg22[%c0_68, %c0_69, %c0_70] : memref<1x4x32xbf16, #tpu.memory_space<vmem>>, vector<1x4x32xbf16>
      %88 = vector.shape_cast %87 : vector<1x4x32xbf16> to vector<4x32xbf16>
      %89 = arith.truncf %86 : vector<32x128xf32> to vector<32x128xbf16>
      %cst_71 = arith.constant dense<0.000000e+00> : vector<4x128xf32>
      %90 = tpu.matmul %88, %89, %cst_71 {dimension_numbers = #tpu.dot_dimension_numbers<[1], [0], [0], [1], [0, 0, 1, 1], [], []>} : vector<4x32xbf16>, vector<32x128xbf16>, vector<4x128xf32> -> vector<4x128xf32>
      %c0_72 = arith.constant 0 : index
      %c0_73 = arith.constant 0 : index
      %c0_74 = arith.constant 0 : index
      %91 = vector.load %arg23[%c0_72, %c0_73, %c0_74] : memref<1x4x32xbf16, #tpu.memory_space<vmem>>, vector<1x4x32xbf16>
      %92 = vector.shape_cast %91 : vector<1x4x32xbf16> to vector<4x32xbf16>
      %93 = arith.truncf %arg35 : vector<32x128xf32> to vector<32x128xbf16>
      %cst_75 = arith.constant dense<0.000000e+00> : vector<4x128xf32>
      %94 = tpu.matmul %92, %93, %cst_75 {dimension_numbers = #tpu.dot_dimension_numbers<[1], [0], [0], [1], [0, 0, 1, 1], [], []>} : vector<4x32xbf16>, vector<32x128xbf16>, vector<4x128xf32> -> vector<4x128xf32>
      %95 = arith.addf %90, %94 : vector<4x128xf32>
      %c0_76 = arith.constant 0 : index
      %c0_77 = arith.constant 0 : index
      %c0_78 = arith.constant 0 : index
      %96 = vector.load %arg24[%c0_76, %c0_77, %c0_78] : memref<1x4x1xf32, #tpu.memory_space<vmem>>, vector<1x4x1xf32>
      %97 = vector.shape_cast %96 : vector<1x4x1xf32> to vector<4x1xf32>
      %98 = vector.broadcast %97 : vector<4x1xf32> to vector<4x128xf32>
      %99 = arith.addf %95, %98 : vector<4x128xf32>
      %100 = arith.select %24, %33, %99 : vector<4x128xi1>, vector<4x128xf32>
      %c0_79 = arith.constant 0 : index
      %c0_80 = arith.constant 0 : index
      %101 = arith.index_cast %16 : i32 to index
      %c0_81 = arith.constant 0 : index
      %c0_82 = arith.constant 0 : index
      %102 = vector.load %arg30[%c0_79, %c0_80, %101, %c0_81, %c0_82] : memref<1x1x8x4x128xf32, #tpu.memory_space<vmem>>, vector<1x1x1x4x128xf32>
      %103 = vector.shape_cast %102 : vector<1x1x1x4x128xf32> to vector<4x128xf32>
      %104 = vector.shape_cast %32 : vector<4x128xf32> to vector<1x1x1x4x128xf32>
      tpu.vector_store %arg30[%c0_79, %c0_80, %101, %c0_81, %c0_82], %104 {strides = array<i32>} : memref<1x1x8x4x128xf32, #tpu.memory_space<vmem>>, vector<1x1x1x4x128xf32>,
      %c0_83 = arith.constant 0 : index
      %c0_84 = arith.constant 0 : index
      %105 = arith.index_cast %16 : i32 to index
      %c0_85 = arith.constant 0 : index
      %c0_86 = arith.constant 0 : index
      %106 = vector.load %arg31[%c0_83, %c0_84, %105, %c0_85, %c0_86] : memref<1x1x8x4x128xf32, #tpu.memory_space<vmem>>, vector<1x1x1x4x128xf32>
      %107 = vector.shape_cast %106 : vector<1x1x1x4x128xf32> to vector<4x128xf32>
      %108 = vector.shape_cast %99 : vector<4x128xf32> to vector<1x1x1x4x128xf32>
      tpu.vector_store %arg31[%c0_83, %c0_84, %105, %c0_85, %c0_86], %108 {strides = array<i32>} : memref<1x1x8x4x128xf32, #tpu.memory_space<vmem>>, vector<1x1x1x4x128xf32>,
      %c0_87 = arith.constant 0 : index
      %c0_88 = arith.constant 0 : index
      %109 = arith.index_cast %16 : i32 to index
      %c0_89 = arith.constant 0 : index
      %c0_90 = arith.constant 0 : index
      %110 = vector.load %arg32[%c0_87, %c0_88, %109, %c0_89, %c0_90] : memref<1x1x8x64x128xf32, #tpu.memory_space<vmem>>, vector<1x1x1x32x128xf32>
      %111 = vector.shape_cast %110 : vector<1x1x1x32x128xf32> to vector<32x128xf32>
      %112 = vector.shape_cast %86 : vector<32x128xf32> to vector<1x1x1x32x128xf32>
      tpu.vector_store %arg32[%c0_87, %c0_88, %109, %c0_89, %c0_90], %112 {strides = array<i32>} : memref<1x1x8x64x128xf32, #tpu.memory_space<vmem>>, vector<1x1x1x32x128xf32>,
      %c0_91 = arith.constant 0 : index
      %c0_92 = arith.constant 0 : index
      %113 = arith.index_cast %16 : i32 to index
      %c32 = arith.constant 32 : index
      %c0_93 = arith.constant 0 : index
      %114 = vector.load %arg32[%c0_91, %c0_92, %113, %c32, %c0_93] : memref<1x1x8x64x128xf32, #tpu.memory_space<vmem>>, vector<1x1x1x32x128xf32>
      %115 = vector.shape_cast %114 : vector<1x1x1x32x128xf32> to vector<32x128xf32>
      %116 = vector.shape_cast %arg35 : vector<32x128xf32> to vector<1x1x1x32x128xf32>
      tpu.vector_store %arg32[%c0_91, %c0_92, %113, %c32, %c0_93], %116 {strides = array<i32>} : memref<1x1x8x64x128xf32, #tpu.memory_space<vmem>>, vector<1x1x1x32x128xf32>,
      %117 = tpu.concatenate %100, %22, %arg35 in 0 : vector<4x128xf32>, vector<4x128xf32>, vector<32x128xf32> -> vector<40x128xf32>
      %118 = arith.truncf %117 : vector<40x128xf32> to vector<40x128xbf16>
      %cst_94 = arith.constant dense<0.000000e+00> : vector<40x128xf32>
      %119 = tpu.matmul %118, %5, %cst_94 {dimension_numbers = #tpu.dot_dimension_numbers<[1], [0], [0], [1], [0, 0, 1, 1], [], []>} : vector<40x128xbf16>, vector<128x128xbf16>, vector<40x128xf32> -> vector<40x128xf32>
      %120 = arith.truncf %117 : vector<40x128xf32> to vector<40x128xbf16>
      %cst_95 = arith.constant dense<0.000000e+00> : vector<40x128xf32>
      %121 = tpu.matmul %120, %6, %cst_95 {dimension_numbers = #tpu.dot_dimension_numbers<[1], [0], [0], [1], [0, 0, 1, 1], [], []>} : vector<40x128xbf16>, vector<128x128xbf16>, vector<40x128xf32> -> vector<40x128xf32>
      %122 = arith.truncf %117 : vector<40x128xf32> to vector<40x128xbf16>
      %cst_96 = arith.constant dense<0.000000e+00> : vector<40x128xf32>
      %123 = tpu.matmul %122, %7, %cst_96 {dimension_numbers = #tpu.dot_dimension_numbers<[1], [0], [0], [1], [0, 0, 1, 1], [], []>} : vector<40x128xbf16>, vector<128x128xbf16>, vector<40x128xf32> -> vector<40x128xf32>
      %124 = arith.truncf %117 : vector<40x128xf32> to vector<40x128xbf16>
      %cst_97 = arith.constant dense<0.000000e+00> : vector<40x128xf32>
      %125 = tpu.matmul %124, %8, %cst_97 {dimension_numbers = #tpu.dot_dimension_numbers<[1], [0], [0], [1], [0, 0, 1, 1], [], []>} : vector<40x128xbf16>, vector<128x128xbf16>, vector<40x128xf32> -> vector<40x128xf32>
      %c0_98 = arith.constant 0 : index
      %c0_99 = arith.constant 0 : index
      %c0_100 = arith.constant 0 : index
      %c0_101 = arith.constant 0 : index
      %126 = vector.load %arg25[%c0_98, %c0_99, %c0_100, %c0_101] : memref<1x5x64x40xbf16, #tpu.memory_space<vmem>>, vector<1x1x64x40xbf16>
      %127 = vector.shape_cast %126 : vector<1x1x64x40xbf16> to vector<64x40xbf16>
      %128 = arith.truncf %117 : vector<40x128xf32> to vector<40x128xbf16>
      %cst_102 = arith.constant dense<0.000000e+00> : vector<64x128xf32>
      %129 = tpu.matmul %127, %128, %cst_102 {dimension_numbers = #tpu.dot_dimension_numbers<[1], [0], [0], [1], [0, 0, 1, 1], [], []>} : vector<64x40xbf16>, vector<40x128xbf16>, vector<64x128xf32> -> vector<64x128xf32>
      %c0_103 = arith.constant 0 : index
      %c1_104 = arith.constant 1 : index
      %c0_105 = arith.constant 0 : index
      %c0_106 = arith.constant 0 : index
      %130 = vector.load %arg25[%c0_103, %c1_104, %c0_105, %c0_106] : memref<1x5x64x40xbf16, #tpu.memory_space<vmem>>, vector<1x1x64x40xbf16>
      %131 = vector.shape_cast %130 : vector<1x1x64x40xbf16> to vector<64x40xbf16>
      %132 = arith.truncf %119 : vector<40x128xf32> to vector<40x128xbf16>
      %cst_107 = arith.constant dense<0.000000e+00> : vector<64x128xf32>
      %133 = tpu.matmul %131, %132, %cst_107 {dimension_numbers = #tpu.dot_dimension_numbers<[1], [0], [0], [1], [0, 0, 1, 1], [], []>} : vector<64x40xbf16>, vector<40x128xbf16>, vector<64x128xf32> -> vector<64x128xf32>
      %134 = arith.addf %129, %133 : vector<64x128xf32>
      %c0_108 = arith.constant 0 : index
      %c2 = arith.constant 2 : index
      %c0_109 = arith.constant 0 : index
      %c0_110 = arith.constant 0 : index
      %135 = vector.load %arg25[%c0_108, %c2, %c0_109, %c0_110] : memref<1x5x64x40xbf16, #tpu.memory_space<vmem>>, vector<1x1x64x40xbf16>
      %136 = vector.shape_cast %135 : vector<1x1x64x40xbf16> to vector<64x40xbf16>
      %137 = arith.truncf %121 : vector<40x128xf32> to vector<40x128xbf16>
      %cst_111 = arith.constant dense<0.000000e+00> : vector<64x128xf32>
      %138 = tpu.matmul %136, %137, %cst_111 {dimension_numbers = #tpu.dot_dimension_numbers<[1], [0], [0], [1], [0, 0, 1, 1], [], []>} : vector<64x40xbf16>, vector<40x128xbf16>, vector<64x128xf32> -> vector<64x128xf32>
      %139 = arith.addf %134, %138 : vector<64x128xf32>
      %c0_112 = arith.constant 0 : index
      %c3 = arith.constant 3 : index
      %c0_113 = arith.constant 0 : index
      %c0_114 = arith.constant 0 : index
      %140 = vector.load %arg25[%c0_112, %c3, %c0_113, %c0_114] : memref<1x5x64x40xbf16, #tpu.memory_space<vmem>>, vector<1x1x64x40xbf16>
      %141 = vector.shape_cast %140 : vector<1x1x64x40xbf16> to vector<64x40xbf16>
      %142 = arith.truncf %123 : vector<40x128xf32> to vector<40x128xbf16>
      %cst_115 = arith.constant dense<0.000000e+00> : vector<64x128xf32>
      %143 = tpu.matmul %141, %142, %cst_115 {dimension_numbers = #tpu.dot_dimension_numbers<[1], [0], [0], [1], [0, 0, 1, 1], [], []>} : vector<64x40xbf16>, vector<40x128xbf16>, vector<64x128xf32> -> vector<64x128xf32>
      %144 = arith.addf %139, %143 : vector<64x128xf32>
      %c0_116 = arith.constant 0 : index
      %c4 = arith.constant 4 : index
      %c0_117 = arith.constant 0 : index
      %c0_118 = arith.constant 0 : index
      %145 = vector.load %arg25[%c0_116, %c4, %c0_117, %c0_118] : memref<1x5x64x40xbf16, #tpu.memory_space<vmem>>, vector<1x1x64x40xbf16>
      %146 = vector.shape_cast %145 : vector<1x1x64x40xbf16> to vector<64x40xbf16>
      %147 = arith.truncf %125 : vector<40x128xf32> to vector<40x128xbf16>
      %cst_119 = arith.constant dense<0.000000e+00> : vector<64x128xf32>
      %148 = tpu.matmul %146, %147, %cst_119 {dimension_numbers = #tpu.dot_dimension_numbers<[1], [0], [0], [1], [0, 0, 1, 1], [], []>} : vector<64x40xbf16>, vector<40x128xbf16>, vector<64x128xf32> -> vector<64x128xf32>
      %149 = arith.addf %144, %148 : vector<64x128xf32>
      %c0_120 = arith.constant 0 : index
      %c0_121 = arith.constant 0 : index
      %c0_122 = arith.constant 0 : index
      %150 = vector.load %arg26[%c0_120, %c0_121, %c0_122] : memref<1x64x1xf32, #tpu.memory_space<vmem>>, vector<1x64x1xf32>
      %151 = vector.shape_cast %150 : vector<1x64x1xf32> to vector<64x1xf32>
      %152 = vector.broadcast %151 : vector<64x1xf32> to vector<64x128xf32>
      %153 = arith.addf %149, %152 : vector<64x128xf32>
      %154 = arith.negf %153 : vector<64x128xf32>
      %155 = math.exp %154 : vector<64x128xf32>
      %cst_123 = arith.constant 1.000000e+00 : f32
      %156 = vector.broadcast %cst_123 : f32 to vector<64x128xf32>
      %157 = arith.addf %156, %155 : vector<64x128xf32>
      %158 = arith.divf %156, %157 : vector<64x128xf32>
      %159 = vector.extract_strided_slice %158 {offsets = [0, 0], sizes = [32, 128], strides = [1, 1]} : vector<64x128xf32> to vector<32x128xf32>
      %160 = vector.extract_strided_slice %158 {offsets = [32, 0], sizes = [32, 128], strides = [1, 1]} : vector<64x128xf32> to vector<32x128xf32>
      %161 = arith.mulf %159, %arg35 : vector<32x128xf32>
      %162 = arith.truncf %161 : vector<32x128xf32> to vector<32x128xbf16>
      %cst_124 = arith.constant dense<0.000000e+00> : vector<32x128xf32>
      %163 = tpu.matmul %162, %5, %cst_124 {dimension_numbers = #tpu.dot_dimension_numbers<[1], [0], [0], [1], [0, 0, 1, 1], [], []>} : vector<32x128xbf16>, vector<128x128xbf16>, vector<32x128xf32> -> vector<32x128xf32>
      %164 = arith.truncf %161 : vector<32x128xf32> to vector<32x128xbf16>
      %cst_125 = arith.constant dense<0.000000e+00> : vector<32x128xf32>
      %165 = tpu.matmul %164, %6, %cst_125 {dimension_numbers = #tpu.dot_dimension_numbers<[1], [0], [0], [1], [0, 0, 1, 1], [], []>} : vector<32x128xbf16>, vector<128x128xbf16>, vector<32x128xf32> -> vector<32x128xf32>
      %166 = arith.truncf %161 : vector<32x128xf32> to vector<32x128xbf16>
      %cst_126 = arith.constant dense<0.000000e+00> : vector<32x128xf32>
      %167 = tpu.matmul %166, %7, %cst_126 {dimension_numbers = #tpu.dot_dimension_numbers<[1], [0], [0], [1], [0, 0, 1, 1], [], []>} : vector<32x128xbf16>, vector<128x128xbf16>, vector<32x128xf32> -> vector<32x128xf32>
      %168 = arith.truncf %161 : vector<32x128xf32> to vector<32x128xbf16>
      %cst_127 = arith.constant dense<0.000000e+00> : vector<32x128xf32>
      %169 = tpu.matmul %168, %8, %cst_127 {dimension_numbers = #tpu.dot_dimension_numbers<[1], [0], [0], [1], [0, 0, 1, 1], [], []>} : vector<32x128xbf16>, vector<128x128xbf16>, vector<32x128xf32> -> vector<32x128xf32>
      %c0_128 = arith.constant 0 : index
      %c0_129 = arith.constant 0 : index
      %c0_130 = arith.constant 0 : index
      %c0_131 = arith.constant 0 : index
      %170 = vector.load %arg27[%c0_128, %c0_129, %c0_130, %c0_131] : memref<1x5x32x8xbf16, #tpu.memory_space<vmem>>, vector<1x1x32x8xbf16>
      %171 = vector.shape_cast %170 : vector<1x1x32x8xbf16> to vector<32x8xbf16>
      %172 = vector.extract_strided_slice %117 {offsets = [0, 0], sizes = [8, 128], strides = [1, 1]} : vector<40x128xf32> to vector<8x128xf32>
      %173 = arith.truncf %172 : vector<8x128xf32> to vector<8x128xbf16>
      %cst_132 = arith.constant dense<0.000000e+00> : vector<32x128xf32>
      %174 = tpu.matmul %171, %173, %cst_132 {dimension_numbers = #tpu.dot_dimension_numbers<[1], [0], [0], [1], [0, 0, 1, 1], [], []>} : vector<32x8xbf16>, vector<8x128xbf16>, vector<32x128xf32> -> vector<32x128xf32>
      %c0_133 = arith.constant 0 : index
      %c0_134 = arith.constant 0 : index
      %c0_135 = arith.constant 0 : index
      %c0_136 = arith.constant 0 : index
      %175 = vector.load %arg28[%c0_133, %c0_134, %c0_135, %c0_136] : memref<1x5x32x32xbf16, #tpu.memory_space<vmem>>, vector<1x1x32x32xbf16>
      %176 = vector.shape_cast %175 : vector<1x1x32x32xbf16> to vector<32x32xbf16>
      %177 = arith.truncf %161 : vector<32x128xf32> to vector<32x128xbf16>
      %cst_137 = arith.constant dense<0.000000e+00> : vector<32x128xf32>
      %178 = tpu.matmul %176, %177, %cst_137 {dimension_numbers = #tpu.dot_dimension_numbers<[1], [0], [0], [1], [0, 0, 1, 1], [], []>} : vector<32x32xbf16>, vector<32x128xbf16>, vector<32x128xf32> -> vector<32x128xf32>
      %179 = arith.addf %174, %178 : vector<32x128xf32>
      %c0_138 = arith.constant 0 : index
      %c1_139 = arith.constant 1 : index
      %c0_140 = arith.constant 0 : index
      %c0_141 = arith.constant 0 : index
      %180 = vector.load %arg27[%c0_138, %c1_139, %c0_140, %c0_141] : memref<1x5x32x8xbf16, #tpu.memory_space<vmem>>, vector<1x1x32x8xbf16>
      %181 = vector.shape_cast %180 : vector<1x1x32x8xbf16> to vector<32x8xbf16>
      %182 = vector.extract_strided_slice %119 {offsets = [0, 0], sizes = [8, 128], strides = [1, 1]} : vector<40x128xf32> to vector<8x128xf32>
      %183 = arith.truncf %182 : vector<8x128xf32> to vector<8x128xbf16>
      %cst_142 = arith.constant dense<0.000000e+00> : vector<32x128xf32>
      %184 = tpu.matmul %181, %183, %cst_142 {dimension_numbers = #tpu.dot_dimension_numbers<[1], [0], [0], [1], [0, 0, 1, 1], [], []>} : vector<32x8xbf16>, vector<8x128xbf16>, vector<32x128xf32> -> vector<32x128xf32>
      %185 = arith.addf %179, %184 : vector<32x128xf32>
      %c0_143 = arith.constant 0 : index
      %c1_144 = arith.constant 1 : index
      %c0_145 = arith.constant 0 : index
      %c0_146 = arith.constant 0 : index
      %186 = vector.load %arg28[%c0_143, %c1_144, %c0_145, %c0_146] : memref<1x5x32x32xbf16, #tpu.memory_space<vmem>>, vector<1x1x32x32xbf16>
      %187 = vector.shape_cast %186 : vector<1x1x32x32xbf16> to vector<32x32xbf16>
      %188 = arith.truncf %163 : vector<32x128xf32> to vector<32x128xbf16>
      %cst_147 = arith.constant dense<0.000000e+00> : vector<32x128xf32>
      %189 = tpu.matmul %187, %188, %cst_147 {dimension_numbers = #tpu.dot_dimension_numbers<[1], [0], [0], [1], [0, 0, 1, 1], [], []>} : vector<32x32xbf16>, vector<32x128xbf16>, vector<32x128xf32> -> vector<32x128xf32>
      %190 = arith.addf %185, %189 : vector<32x128xf32>
      %c0_148 = arith.constant 0 : index
      %c2_149 = arith.constant 2 : index
      %c0_150 = arith.constant 0 : index
      %c0_151 = arith.constant 0 : index
      %191 = vector.load %arg27[%c0_148, %c2_149, %c0_150, %c0_151] : memref<1x5x32x8xbf16, #tpu.memory_space<vmem>>, vector<1x1x32x8xbf16>
      %192 = vector.shape_cast %191 : vector<1x1x32x8xbf16> to vector<32x8xbf16>
      %193 = vector.extract_strided_slice %121 {offsets = [0, 0], sizes = [8, 128], strides = [1, 1]} : vector<40x128xf32> to vector<8x128xf32>
      %194 = arith.truncf %193 : vector<8x128xf32> to vector<8x128xbf16>
      %cst_152 = arith.constant dense<0.000000e+00> : vector<32x128xf32>
      %195 = tpu.matmul %192, %194, %cst_152 {dimension_numbers = #tpu.dot_dimension_numbers<[1], [0], [0], [1], [0, 0, 1, 1], [], []>} : vector<32x8xbf16>, vector<8x128xbf16>, vector<32x128xf32> -> vector<32x128xf32>
      %196 = arith.addf %190, %195 : vector<32x128xf32>
      %c0_153 = arith.constant 0 : index
      %c2_154 = arith.constant 2 : index
      %c0_155 = arith.constant 0 : index
      %c0_156 = arith.constant 0 : index
      %197 = vector.load %arg28[%c0_153, %c2_154, %c0_155, %c0_156] : memref<1x5x32x32xbf16, #tpu.memory_space<vmem>>, vector<1x1x32x32xbf16>
      %198 = vector.shape_cast %197 : vector<1x1x32x32xbf16> to vector<32x32xbf16>
      %199 = arith.truncf %165 : vector<32x128xf32> to vector<32x128xbf16>
      %cst_157 = arith.constant dense<0.000000e+00> : vector<32x128xf32>
      %200 = tpu.matmul %198, %199, %cst_157 {dimension_numbers = #tpu.dot_dimension_numbers<[1], [0], [0], [1], [0, 0, 1, 1], [], []>} : vector<32x32xbf16>, vector<32x128xbf16>, vector<32x128xf32> -> vector<32x128xf32>
      %201 = arith.addf %196, %200 : vector<32x128xf32>
      %c0_158 = arith.constant 0 : index
      %c3_159 = arith.constant 3 : index
      %c0_160 = arith.constant 0 : index
      %c0_161 = arith.constant 0 : index
      %202 = vector.load %arg27[%c0_158, %c3_159, %c0_160, %c0_161] : memref<1x5x32x8xbf16, #tpu.memory_space<vmem>>, vector<1x1x32x8xbf16>
      %203 = vector.shape_cast %202 : vector<1x1x32x8xbf16> to vector<32x8xbf16>
      %204 = vector.extract_strided_slice %123 {offsets = [0, 0], sizes = [8, 128], strides = [1, 1]} : vector<40x128xf32> to vector<8x128xf32>
      %205 = arith.truncf %204 : vector<8x128xf32> to vector<8x128xbf16>
      %cst_162 = arith.constant dense<0.000000e+00> : vector<32x128xf32>
      %206 = tpu.matmul %203, %205, %cst_162 {dimension_numbers = #tpu.dot_dimension_numbers<[1], [0], [0], [1], [0, 0, 1, 1], [], []>} : vector<32x8xbf16>, vector<8x128xbf16>, vector<32x128xf32> -> vector<32x128xf32>
      %207 = arith.addf %201, %206 : vector<32x128xf32>
      %c0_163 = arith.constant 0 : index
      %c3_164 = arith.constant 3 : index
      %c0_165 = arith.constant 0 : index
      %c0_166 = arith.constant 0 : index
      %208 = vector.load %arg28[%c0_163, %c3_164, %c0_165, %c0_166] : memref<1x5x32x32xbf16, #tpu.memory_space<vmem>>, vector<1x1x32x32xbf16>
      %209 = vector.shape_cast %208 : vector<1x1x32x32xbf16> to vector<32x32xbf16>
      %210 = arith.truncf %167 : vector<32x128xf32> to vector<32x128xbf16>
      %cst_167 = arith.constant dense<0.000000e+00> : vector<32x128xf32>
      %211 = tpu.matmul %209, %210, %cst_167 {dimension_numbers = #tpu.dot_dimension_numbers<[1], [0], [0], [1], [0, 0, 1, 1], [], []>} : vector<32x32xbf16>, vector<32x128xbf16>, vector<32x128xf32> -> vector<32x128xf32>
      %212 = arith.addf %207, %211 : vector<32x128xf32>
      %c0_168 = arith.constant 0 : index
      %c4_169 = arith.constant 4 : index
      %c0_170 = arith.constant 0 : index
      %c0_171 = arith.constant 0 : index
      %213 = vector.load %arg27[%c0_168, %c4_169, %c0_170, %c0_171] : memref<1x5x32x8xbf16, #tpu.memory_space<vmem>>, vector<1x1x32x8xbf16>
      %214 = vector.shape_cast %213 : vector<1x1x32x8xbf16> to vector<32x8xbf16>
      %215 = vector.extract_strided_slice %125 {offsets = [0, 0], sizes = [8, 128], strides = [1, 1]} : vector<40x128xf32> to vector<8x128xf32>
      %216 = arith.truncf %215 : vector<8x128xf32> to vector<8x128xbf16>
      %cst_172 = arith.constant dense<0.000000e+00> : vector<32x128xf32>
      %217 = tpu.matmul %214, %216, %cst_172 {dimension_numbers = #tpu.dot_dimension_numbers<[1], [0], [0], [1], [0, 0, 1, 1], [], []>} : vector<32x8xbf16>, vector<8x128xbf16>, vector<32x128xf32> -> vector<32x128xf32>
      %218 = arith.addf %212, %217 : vector<32x128xf32>
      %c0_173 = arith.constant 0 : index
      %c4_174 = arith.constant 4 : index
      %c0_175 = arith.constant 0 : index
      %c0_176 = arith.constant 0 : index
      %219 = vector.load %arg28[%c0_173, %c4_174, %c0_175, %c0_176] : memref<1x5x32x32xbf16, #tpu.memory_space<vmem>>, vector<1x1x32x32xbf16>
      %220 = vector.shape_cast %219 : vector<1x1x32x32xbf16> to vector<32x32xbf16>
      %221 = arith.truncf %169 : vector<32x128xf32> to vector<32x128xbf16>
      %cst_177 = arith.constant dense<0.000000e+00> : vector<32x128xf32>
      %222 = tpu.matmul %220, %221, %cst_177 {dimension_numbers = #tpu.dot_dimension_numbers<[1], [0], [0], [1], [0, 0, 1, 1], [], []>} : vector<32x32xbf16>, vector<32x128xbf16>, vector<32x128xf32> -> vector<32x128xf32>
      %223 = arith.addf %218, %222 : vector<32x128xf32>
      %c0_178 = arith.constant 0 : index
      %c0_179 = arith.constant 0 : index
      %c0_180 = arith.constant 0 : index
      %224 = vector.load %arg29[%c0_178, %c0_179, %c0_180] : memref<1x32x1xf32, #tpu.memory_space<vmem>>, vector<1x32x1xf32>
      %225 = vector.shape_cast %224 : vector<1x32x1xf32> to vector<32x1xf32>
      %226 = vector.broadcast %225 : vector<32x1xf32> to vector<32x128xf32>
      %227 = arith.addf %223, %226 : vector<32x128xf32>
      %228 = math.tanh %227 : vector<32x128xf32>
      %229 = arith.mulf %160, %arg35 : vector<32x128xf32>
      %cst_181 = arith.constant 1.000000e+00 : f32
      %230 = vector.broadcast %cst_181 : f32 to vector<32x128xf32>
      %231 = arith.subf %230, %160 : vector<32x128xf32>
      %232 = arith.mulf %231, %228 : vector<32x128xf32>
      %233 = arith.addf %229, %232 : vector<32x128xf32>
      scf.yield %233 : vector<32x128xf32>
    }
    %c8_i32_11 = arith.constant 8 : i32
    %c0_12 = arith.constant 0 : index
    %c0_13 = arith.constant 0 : index
    %12 = vector.load %arg33[%c0_12, %c0_13] : memref<32x128xf32, #tpu.memory_space<vmem>>, vector<32x128xf32>
    tpu.vector_store %arg33[%c0_12, %c0_13], %11 {strides = array<i32>} : memref<32x128xf32, #tpu.memory_space<vmem>>, vector<32x128xf32>,
    return
  }
  func.func @transform_0(%arg0: i32, %arg1: i32, %arg2: i32) -> i32 {
    %c0_i32 = arith.constant 0 : i32
    %c0_i32_0 = arith.constant 0 : i32
    return %c0_i32 : i32
  }
  func.func @transform_1(%arg0: i32, %arg1: i32, %arg2: i32) -> (i32, i32, i32, i32) {
    %c2_i32 = arith.constant 2 : i32
    %0 = arith.muli %c2_i32, %arg2 : i32
    %c0_i32 = arith.constant 0 : i32
    %1 = arith.subi %c0_i32, %0 : i32
    %2 = arith.muli %arg0, %1 : i32
    %3 = arith.addi %arg2, %2 : i32
    %c0_i32_0 = arith.constant 0 : i32
    %c0_i32_1 = arith.constant 0 : i32
    %c0_i32_2 = arith.constant 0 : i32
    return %arg1, %3, %c0_i32_0, %c0_i32_1 : i32, i32, i32, i32
  }
  func.func @transform_2(%arg0: i32, %arg1: i32, %arg2: i32) -> (i32, i32, i32, i32) {
    %c2_i32 = arith.constant 2 : i32
    %0 = arith.muli %c2_i32, %arg2 : i32
    %c0_i32 = arith.constant 0 : i32
    %1 = arith.subi %c0_i32, %0 : i32
    %2 = arith.muli %arg0, %1 : i32
    %3 = arith.addi %arg2, %2 : i32
    %c0_i32_0 = arith.constant 0 : i32
    %c0_i32_1 = arith.constant 0 : i32
    %c0_i32_2 = arith.constant 0 : i32
    return %arg1, %3, %c0_i32_0, %c0_i32_1 : i32, i32, i32, i32
  }
  func.func @transform_3(%arg0: i32, %arg1: i32, %arg2: i32) -> (i32, i32, i32) {
    %c0_i32 = arith.constant 0 : i32
    %c0_i32_0 = arith.constant 0 : i32
    %c0_i32_1 = arith.constant 0 : i32
    return %arg0, %c0_i32, %c0_i32_0 : i32, i32, i32
  }
  func.func @transform_4(%arg0: i32, %arg1: i32, %arg2: i32) -> (i32, i32) {
    %c0_i32 = arith.constant 0 : i32
    %c0_i32_0 = arith.constant 0 : i32
    %c0_i32_1 = arith.constant 0 : i32
    return %c0_i32, %c0_i32_0 : i32, i32
  }
  func.func @transform_5(%arg0: i32, %arg1: i32, %arg2: i32) -> (i32, i32) {
    %c0_i32 = arith.constant 0 : i32
    %c0_i32_0 = arith.constant 0 : i32
    %c0_i32_1 = arith.constant 0 : i32
    return %c0_i32, %c0_i32_0 : i32, i32
  }
  func.func @transform_6(%arg0: i32, %arg1: i32, %arg2: i32) -> (i32, i32) {
    %c0_i32 = arith.constant 0 : i32
    %c0_i32_0 = arith.constant 0 : i32
    %c0_i32_1 = arith.constant 0 : i32
    return %c0_i32, %c0_i32_0 : i32, i32
  }
  func.func @transform_7(%arg0: i32, %arg1: i32, %arg2: i32) -> (i32, i32) {
    %c0_i32 = arith.constant 0 : i32
    %c0_i32_0 = arith.constant 0 : i32
    %c0_i32_1 = arith.constant 0 : i32
    return %c0_i32, %c0_i32_0 : i32, i32
  }
  func.func @transform_8(%arg0: i32, %arg1: i32, %arg2: i32) -> (i32, i32, i32) {
    %c0_i32 = arith.constant 0 : i32
    %c0_i32_0 = arith.constant 0 : i32
    %c0_i32_1 = arith.constant 0 : i32
    return %arg0, %c0_i32, %c0_i32_0 : i32, i32, i32
  }
  func.func @transform_9(%arg0: i32, %arg1: i32, %arg2: i32) -> (i32, i32, i32) {
    %c0_i32 = arith.constant 0 : i32
    %c0_i32_0 = arith.constant 0 : i32
    %c0_i32_1 = arith.constant 0 : i32
    return %arg0, %c0_i32, %c0_i32_0 : i32, i32, i32
  }
  func.func @transform_10(%arg0: i32, %arg1: i32, %arg2: i32) -> (i32, i32, i32) {
    %c0_i32 = arith.constant 0 : i32
    %c0_i32_0 = arith.constant 0 : i32
    %c0_i32_1 = arith.constant 0 : i32
    return %arg0, %c0_i32, %c0_i32_0 : i32, i32, i32
  }
  func.func @transform_11(%arg0: i32, %arg1: i32, %arg2: i32) -> (i32, i32, i32) {
    %c0_i32 = arith.constant 0 : i32
    %c0_i32_0 = arith.constant 0 : i32
    %c0_i32_1 = arith.constant 0 : i32
    return %arg0, %c0_i32, %c0_i32_0 : i32, i32, i32
  }
  func.func @transform_12(%arg0: i32, %arg1: i32, %arg2: i32) -> (i32, i32, i32) {
    %c0_i32 = arith.constant 0 : i32
    %c0_i32_0 = arith.constant 0 : i32
    %c0_i32_1 = arith.constant 0 : i32
    return %arg0, %c0_i32, %c0_i32_0 : i32, i32, i32
  }
  func.func @transform_13(%arg0: i32, %arg1: i32, %arg2: i32) -> (i32, i32, i32) {
    %c0_i32 = arith.constant 0 : i32
    %c0_i32_0 = arith.constant 0 : i32
    %c0_i32_1 = arith.constant 0 : i32
    return %arg0, %c0_i32, %c0_i32_0 : i32, i32, i32
  }
  func.func @transform_14(%arg0: i32, %arg1: i32, %arg2: i32) -> (i32, i32, i32, i32) {
    %c0_i32 = arith.constant 0 : i32
    %c0_i32_0 = arith.constant 0 : i32
    %c0_i32_1 = arith.constant 0 : i32
    %c0_i32_2 = arith.constant 0 : i32
    return %arg0, %c0_i32, %c0_i32_0, %c0_i32_1 : i32, i32, i32, i32
  }
  func.func @transform_15(%arg0: i32, %arg1: i32, %arg2: i32) -> (i32, i32, i32) {
    %c0_i32 = arith.constant 0 : i32
    %c0_i32_0 = arith.constant 0 : i32
    %c0_i32_1 = arith.constant 0 : i32
    return %arg0, %c0_i32, %c0_i32_0 : i32, i32, i32
  }
  func.func @transform_16(%arg0: i32, %arg1: i32, %arg2: i32) -> (i32, i32, i32) {
    %c0_i32 = arith.constant 0 : i32
    %c0_i32_0 = arith.constant 0 : i32
    %c0_i32_1 = arith.constant 0 : i32
    return %arg0, %c0_i32, %c0_i32_0 : i32, i32, i32
  }
  func.func @transform_17(%arg0: i32, %arg1: i32, %arg2: i32) -> (i32, i32, i32) {
    %c0_i32 = arith.constant 0 : i32
    %c0_i32_0 = arith.constant 0 : i32
    %c0_i32_1 = arith.constant 0 : i32
    return %arg0, %c0_i32, %c0_i32_0 : i32, i32, i32
  }
  func.func @transform_18(%arg0: i32, %arg1: i32, %arg2: i32) -> (i32, i32, i32) {
    %c0_i32 = arith.constant 0 : i32
    %c0_i32_0 = arith.constant 0 : i32
    %c0_i32_1 = arith.constant 0 : i32
    return %arg0, %c0_i32, %c0_i32_0 : i32, i32, i32
  }
  func.func @transform_19(%arg0: i32, %arg1: i32, %arg2: i32) -> (i32, i32, i32) {
    %c0_i32 = arith.constant 0 : i32
    %c0_i32_0 = arith.constant 0 : i32
    %c0_i32_1 = arith.constant 0 : i32
    return %arg0, %c0_i32, %c0_i32_0 : i32, i32, i32
  }
  func.func @transform_20(%arg0: i32, %arg1: i32, %arg2: i32) -> (i32, i32, i32) {
    %c0_i32 = arith.constant 0 : i32
    %c0_i32_0 = arith.constant 0 : i32
    %c0_i32_1 = arith.constant 0 : i32
    return %arg0, %c0_i32, %c0_i32_0 : i32, i32, i32
  }
  func.func @transform_21(%arg0: i32, %arg1: i32, %arg2: i32) -> (i32, i32, i32) {
    %c0_i32 = arith.constant 0 : i32
    %c0_i32_0 = arith.constant 0 : i32
    %c0_i32_1 = arith.constant 0 : i32
    return %arg0, %c0_i32, %c0_i32_0 : i32, i32, i32
  }
  func.func @transform_22(%arg0: i32, %arg1: i32, %arg2: i32) -> (i32, i32, i32, i32) {
    %c0_i32 = arith.constant 0 : i32
    %c0_i32_0 = arith.constant 0 : i32
    %c0_i32_1 = arith.constant 0 : i32
    %c0_i32_2 = arith.constant 0 : i32
    return %arg0, %c0_i32, %c0_i32_0, %c0_i32_1 : i32, i32, i32, i32
  }
  func.func @transform_23(%arg0: i32, %arg1: i32, %arg2: i32) -> (i32, i32, i32) {
    %c0_i32 = arith.constant 0 : i32
    %c0_i32_0 = arith.constant 0 : i32
    %c0_i32_1 = arith.constant 0 : i32
    return %arg0, %c0_i32, %c0_i32_0 : i32, i32, i32
  }
  func.func @transform_24(%arg0: i32, %arg1: i32, %arg2: i32) -> (i32, i32, i32, i32) {
    %c0_i32 = arith.constant 0 : i32
    %c0_i32_0 = arith.constant 0 : i32
    %c0_i32_1 = arith.constant 0 : i32
    %c0_i32_2 = arith.constant 0 : i32
    return %arg0, %c0_i32, %c0_i32_0, %c0_i32_1 : i32, i32, i32, i32
  }
  func.func @transform_25(%arg0: i32, %arg1: i32, %arg2: i32) -> (i32, i32, i32, i32) {
    %c0_i32 = arith.constant 0 : i32
    %c0_i32_0 = arith.constant 0 : i32
    %c0_i32_1 = arith.constant 0 : i32
    %c0_i32_2 = arith.constant 0 : i32
    return %arg0, %c0_i32, %c0_i32_0, %c0_i32_1 : i32, i32, i32, i32
  }
  func.func @transform_26(%arg0: i32, %arg1: i32, %arg2: i32) -> (i32, i32, i32) {
    %c0_i32 = arith.constant 0 : i32
    %c0_i32_0 = arith.constant 0 : i32
    %c0_i32_1 = arith.constant 0 : i32
    return %arg0, %c0_i32, %c0_i32_0 : i32, i32, i32
  }
  func.func @transform_27(%arg0: i32, %arg1: i32, %arg2: i32) -> (i32, i32, i32, i32, i32) {
    %c2_i32 = arith.constant 2 : i32
    %0 = arith.muli %c2_i32, %arg2 : i32
    %c0_i32 = arith.constant 0 : i32
    %1 = arith.subi %c0_i32, %0 : i32
    %2 = arith.muli %arg0, %1 : i32
    %3 = arith.addi %arg2, %2 : i32
    %c0_i32_0 = arith.constant 0 : i32
    %c0_i32_1 = arith.constant 0 : i32
    %c0_i32_2 = arith.constant 0 : i32
    return %arg0, %arg1, %3, %c0_i32_0, %c0_i32_1 : i32, i32, i32, i32, i32
  }
  func.func @transform_28(%arg0: i32, %arg1: i32, %arg2: i32) -> (i32, i32, i32, i32, i32) {
    %c2_i32 = arith.constant 2 : i32
    %0 = arith.muli %c2_i32, %arg2 : i32
    %c0_i32 = arith.constant 0 : i32
    %1 = arith.subi %c0_i32, %0 : i32
    %2 = arith.muli %arg0, %1 : i32
    %3 = arith.addi %arg2, %2 : i32
    %c0_i32_0 = arith.constant 0 : i32
    %c0_i32_1 = arith.constant 0 : i32
    %c0_i32_2 = arith.constant 0 : i32
    return %arg0, %arg1, %3, %c0_i32_0, %c0_i32_1 : i32, i32, i32, i32, i32
  }
  func.func @transform_29(%arg0: i32, %arg1: i32, %arg2: i32) -> (i32, i32, i32, i32, i32) {
    %c2_i32 = arith.constant 2 : i32
    %0 = arith.muli %c2_i32, %arg2 : i32
    %c0_i32 = arith.constant 0 : i32
    %1 = arith.subi %c0_i32, %0 : i32
    %2 = arith.muli %arg0, %1 : i32
    %3 = arith.addi %arg2, %2 : i32
    %c0_i32_0 = arith.constant 0 : i32
    %c0_i32_1 = arith.constant 0 : i32
    %c0_i32_2 = arith.constant 0 : i32
    return %arg0, %arg1, %3, %c0_i32_0, %c0_i32_1 : i32, i32, i32, i32, i32
  }
}

module attributes {stable_mosaic.version = 11 : i64} {
  func.func @_merge_mlp_kernel(%arg0: i32, %arg1: i32, %arg2: memref<1x1x8x64x128xf32, #tpu.memory_space<vmem>>, %arg3: memref<1x1x8x64x128xf32, #tpu.memory_space<vmem>>, %arg4: memref<1x8x4x128xf32, #tpu.memory_space<vmem>>, %arg5: memref<64x64xbf16, #tpu.memory_space<vmem>>, %arg6: memref<64x64xbf16, #tpu.memory_space<vmem>>, %arg7: memref<64x4xbf16, #tpu.memory_space<vmem>>, %arg8: memref<64x1xf32, #tpu.memory_space<vmem>>, %arg9: memref<4x64xbf16, #tpu.memory_space<vmem>>, %arg10: memref<4x1xf32, #tpu.memory_space<vmem>>, %arg11: memref<1x8x4x128xf32, #tpu.memory_space<vmem>>) attributes {dimension_semantics = [#tpu.dimension_semantics<parallel>, #tpu.dimension_semantics<parallel>], iteration_bounds = array<i64: 2, 1>, scalar_prefetch = 0 : i64, scratch_operands = 0 : i64, tpu.core_type = #tpu.core_type<tc>, window_params = [{transform_indices = @transform_0, window_bounds = array<i64: 1, 1, 8, 64, 128>}, {transform_indices = @transform_1, window_bounds = array<i64: 1, 1, 8, 64, 128>}, {transform_indices = @transform_2, window_bounds = array<i64: 1, 8, 4, 128>}, {pipeline_mode = #tpu.pipeline_mode<synchronous>, transform_indices = @transform_3, window_bounds = array<i64: 64, 64>}, {pipeline_mode = #tpu.pipeline_mode<synchronous>, transform_indices = @transform_4, window_bounds = array<i64: 64, 64>}, {pipeline_mode = #tpu.pipeline_mode<synchronous>, transform_indices = @transform_5, window_bounds = array<i64: 64, 4>}, {pipeline_mode = #tpu.pipeline_mode<synchronous>, transform_indices = @transform_6, window_bounds = array<i64: 64, 1>}, {pipeline_mode = #tpu.pipeline_mode<synchronous>, transform_indices = @transform_7, window_bounds = array<i64: 4, 64>}, {pipeline_mode = #tpu.pipeline_mode<synchronous>, transform_indices = @transform_8, window_bounds = array<i64: 4, 1>}, {transform_indices = @transform_9, window_bounds = array<i64: 1, 8, 4, 128>}]} {
    %c0 = arith.constant 0 : index
    %c0_0 = arith.constant 0 : index
    %0 = vector.load %arg5[%c0, %c0_0] : memref<64x64xbf16, #tpu.memory_space<vmem>>, vector<64x64xbf16>
    %c0_1 = arith.constant 0 : index
    %c0_2 = arith.constant 0 : index
    %c0_3 = arith.constant 0 : index
    %c0_4 = arith.constant 0 : index
    %c0_5 = arith.constant 0 : index
    %1 = vector.load %arg2[%c0_1, %c0_2, %c0_3, %c0_4, %c0_5] : memref<1x1x8x64x128xf32, #tpu.memory_space<vmem>>, vector<1x1x1x64x128xf32>
    %2 = vector.shape_cast %1 : vector<1x1x1x64x128xf32> to vector<64x128xf32>
    %3 = arith.truncf %2 : vector<64x128xf32> to vector<64x128xbf16>
    %cst = arith.constant dense<0.000000e+00> : vector<64x128xf32>
    %4 = tpu.matmul %0, %3, %cst {dimension_numbers = #tpu.dot_dimension_numbers<[1], [0], [0], [1], [0, 0, 1, 1], [], []>} : vector<64x64xbf16>, vector<64x128xbf16>, vector<64x128xf32> -> vector<64x128xf32>
    %c0_6 = arith.constant 0 : index
    %c0_7 = arith.constant 0 : index
    %5 = vector.load %arg6[%c0_6, %c0_7] : memref<64x64xbf16, #tpu.memory_space<vmem>>, vector<64x64xbf16>
    %c0_8 = arith.constant 0 : index
    %c0_9 = arith.constant 0 : index
    %c0_10 = arith.constant 0 : index
    %c0_11 = arith.constant 0 : index
    %c0_12 = arith.constant 0 : index
    %6 = vector.load %arg3[%c0_8, %c0_9, %c0_10, %c0_11, %c0_12] : memref<1x1x8x64x128xf32, #tpu.memory_space<vmem>>, vector<1x1x1x64x128xf32>
    %7 = vector.shape_cast %6 : vector<1x1x1x64x128xf32> to vector<64x128xf32>
    %8 = arith.truncf %7 : vector<64x128xf32> to vector<64x128xbf16>
    %cst_13 = arith.constant dense<0.000000e+00> : vector<64x128xf32>
    %9 = tpu.matmul %5, %8, %cst_13 {dimension_numbers = #tpu.dot_dimension_numbers<[1], [0], [0], [1], [0, 0, 1, 1], [], []>} : vector<64x64xbf16>, vector<64x128xbf16>, vector<64x128xf32> -> vector<64x128xf32>
    %10 = arith.addf %4, %9 : vector<64x128xf32>
    %c0_14 = arith.constant 0 : index
    %c0_15 = arith.constant 0 : index
    %11 = vector.load %arg7[%c0_14, %c0_15] : memref<64x4xbf16, #tpu.memory_space<vmem>>, vector<64x4xbf16>
    %c0_16 = arith.constant 0 : index
    %c0_17 = arith.constant 0 : index
    %c0_18 = arith.constant 0 : index
    %c0_19 = arith.constant 0 : index
    %12 = vector.load %arg4[%c0_16, %c0_17, %c0_18, %c0_19] : memref<1x8x4x128xf32, #tpu.memory_space<vmem>>, vector<1x1x4x128xf32>
    %13 = vector.shape_cast %12 : vector<1x1x4x128xf32> to vector<4x128xf32>
    %14 = arith.truncf %13 : vector<4x128xf32> to vector<4x128xbf16>
    %cst_20 = arith.constant dense<0.000000e+00> : vector<64x128xf32>
    %15 = tpu.matmul %11, %14, %cst_20 {dimension_numbers = #tpu.dot_dimension_numbers<[1], [0], [0], [1], [0, 0, 1, 1], [], []>} : vector<64x4xbf16>, vector<4x128xbf16>, vector<64x128xf32> -> vector<64x128xf32>
    %16 = arith.addf %10, %15 : vector<64x128xf32>
    %c0_21 = arith.constant 0 : index
    %c0_22 = arith.constant 0 : index
    %17 = vector.load %arg8[%c0_21, %c0_22] : memref<64x1xf32, #tpu.memory_space<vmem>>, vector<64x1xf32>
    %18 = vector.broadcast %17 : vector<64x1xf32> to vector<64x128xf32>
    %19 = arith.addf %16, %18 : vector<64x128xf32>
    %cst_23 = arith.constant 0.000000e+00 : f32
    %20 = vector.broadcast %cst_23 : f32 to vector<64x128xf32>
    %21 = arith.maximumf %19, %20 : vector<64x128xf32>
    %c0_24 = arith.constant 0 : index
    %c0_25 = arith.constant 0 : index
    %22 = vector.load %arg9[%c0_24, %c0_25] : memref<4x64xbf16, #tpu.memory_space<vmem>>, vector<4x64xbf16>
    %23 = arith.truncf %21 : vector<64x128xf32> to vector<64x128xbf16>
    %cst_26 = arith.constant dense<0.000000e+00> : vector<4x128xf32>
    %24 = tpu.matmul %22, %23, %cst_26 {dimension_numbers = #tpu.dot_dimension_numbers<[1], [0], [0], [1], [0, 0, 1, 1], [], []>} : vector<4x64xbf16>, vector<64x128xbf16>, vector<4x128xf32> -> vector<4x128xf32>
    %c0_27 = arith.constant 0 : index
    %c0_28 = arith.constant 0 : index
    %25 = vector.load %arg10[%c0_27, %c0_28] : memref<4x1xf32, #tpu.memory_space<vmem>>, vector<4x1xf32>
    %26 = vector.broadcast %25 : vector<4x1xf32> to vector<4x128xf32>
    %27 = arith.addf %24, %26 : vector<4x128xf32>
    %c0_29 = arith.constant 0 : index
    %c0_30 = arith.constant 0 : index
    %c0_31 = arith.constant 0 : index
    %c0_32 = arith.constant 0 : index
    %28 = vector.load %arg11[%c0_29, %c0_30, %c0_31, %c0_32] : memref<1x8x4x128xf32, #tpu.memory_space<vmem>>, vector<1x1x4x128xf32>
    %29 = vector.shape_cast %28 : vector<1x1x4x128xf32> to vector<4x128xf32>
    %30 = vector.shape_cast %27 : vector<4x128xf32> to vector<1x1x4x128xf32>
    tpu.vector_store %arg11[%c0_29, %c0_30, %c0_31, %c0_32], %30 {strides = array<i32>} : memref<1x8x4x128xf32, #tpu.memory_space<vmem>>, vector<1x1x4x128xf32>,
    %c0_33 = arith.constant 0 : index
    %c0_34 = arith.constant 0 : index
    %31 = vector.load %arg5[%c0_33, %c0_34] : memref<64x64xbf16, #tpu.memory_space<vmem>>, vector<64x64xbf16>
    %c0_35 = arith.constant 0 : index
    %c0_36 = arith.constant 0 : index
    %c1 = arith.constant 1 : index
    %c0_37 = arith.constant 0 : index
    %c0_38 = arith.constant 0 : index
    %32 = vector.load %arg2[%c0_35, %c0_36, %c1, %c0_37, %c0_38] : memref<1x1x8x64x128xf32, #tpu.memory_space<vmem>>, vector<1x1x1x64x128xf32>
    %33 = vector.shape_cast %32 : vector<1x1x1x64x128xf32> to vector<64x128xf32>
    %34 = arith.truncf %33 : vector<64x128xf32> to vector<64x128xbf16>
    %cst_39 = arith.constant dense<0.000000e+00> : vector<64x128xf32>
    %35 = tpu.matmul %31, %34, %cst_39 {dimension_numbers = #tpu.dot_dimension_numbers<[1], [0], [0], [1], [0, 0, 1, 1], [], []>} : vector<64x64xbf16>, vector<64x128xbf16>, vector<64x128xf32> -> vector<64x128xf32>
    %c0_40 = arith.constant 0 : index
    %c0_41 = arith.constant 0 : index
    %36 = vector.load %arg6[%c0_40, %c0_41] : memref<64x64xbf16, #tpu.memory_space<vmem>>, vector<64x64xbf16>
    %c0_42 = arith.constant 0 : index
    %c0_43 = arith.constant 0 : index
    %c1_44 = arith.constant 1 : index
    %c0_45 = arith.constant 0 : index
    %c0_46 = arith.constant 0 : index
    %37 = vector.load %arg3[%c0_42, %c0_43, %c1_44, %c0_45, %c0_46] : memref<1x1x8x64x128xf32, #tpu.memory_space<vmem>>, vector<1x1x1x64x128xf32>
    %38 = vector.shape_cast %37 : vector<1x1x1x64x128xf32> to vector<64x128xf32>
    %39 = arith.truncf %38 : vector<64x128xf32> to vector<64x128xbf16>
    %cst_47 = arith.constant dense<0.000000e+00> : vector<64x128xf32>
    %40 = tpu.matmul %36, %39, %cst_47 {dimension_numbers = #tpu.dot_dimension_numbers<[1], [0], [0], [1], [0, 0, 1, 1], [], []>} : vector<64x64xbf16>, vector<64x128xbf16>, vector<64x128xf32> -> vector<64x128xf32>
    %41 = arith.addf %35, %40 : vector<64x128xf32>
    %c0_48 = arith.constant 0 : index
    %c0_49 = arith.constant 0 : index
    %42 = vector.load %arg7[%c0_48, %c0_49] : memref<64x4xbf16, #tpu.memory_space<vmem>>, vector<64x4xbf16>
    %c0_50 = arith.constant 0 : index
    %c1_51 = arith.constant 1 : index
    %c0_52 = arith.constant 0 : index
    %c0_53 = arith.constant 0 : index
    %43 = vector.load %arg4[%c0_50, %c1_51, %c0_52, %c0_53] : memref<1x8x4x128xf32, #tpu.memory_space<vmem>>, vector<1x1x4x128xf32>
    %44 = vector.shape_cast %43 : vector<1x1x4x128xf32> to vector<4x128xf32>
    %45 = arith.truncf %44 : vector<4x128xf32> to vector<4x128xbf16>
    %cst_54 = arith.constant dense<0.000000e+00> : vector<64x128xf32>
    %46 = tpu.matmul %42, %45, %cst_54 {dimension_numbers = #tpu.dot_dimension_numbers<[1], [0], [0], [1], [0, 0, 1, 1], [], []>} : vector<64x4xbf16>, vector<4x128xbf16>, vector<64x128xf32> -> vector<64x128xf32>
    %47 = arith.addf %41, %46 : vector<64x128xf32>
    %c0_55 = arith.constant 0 : index
    %c0_56 = arith.constant 0 : index
    %48 = vector.load %arg8[%c0_55, %c0_56] : memref<64x1xf32, #tpu.memory_space<vmem>>, vector<64x1xf32>
    %49 = vector.broadcast %48 : vector<64x1xf32> to vector<64x128xf32>
    %50 = arith.addf %47, %49 : vector<64x128xf32>
    %cst_57 = arith.constant 0.000000e+00 : f32
    %51 = vector.broadcast %cst_57 : f32 to vector<64x128xf32>
    %52 = arith.maximumf %50, %51 : vector<64x128xf32>
    %c0_58 = arith.constant 0 : index
    %c0_59 = arith.constant 0 : index
    %53 = vector.load %arg9[%c0_58, %c0_59] : memref<4x64xbf16, #tpu.memory_space<vmem>>, vector<4x64xbf16>
    %54 = arith.truncf %52 : vector<64x128xf32> to vector<64x128xbf16>
    %cst_60 = arith.constant dense<0.000000e+00> : vector<4x128xf32>
    %55 = tpu.matmul %53, %54, %cst_60 {dimension_numbers = #tpu.dot_dimension_numbers<[1], [0], [0], [1], [0, 0, 1, 1], [], []>} : vector<4x64xbf16>, vector<64x128xbf16>, vector<4x128xf32> -> vector<4x128xf32>
    %c0_61 = arith.constant 0 : index
    %c0_62 = arith.constant 0 : index
    %56 = vector.load %arg10[%c0_61, %c0_62] : memref<4x1xf32, #tpu.memory_space<vmem>>, vector<4x1xf32>
    %57 = vector.broadcast %56 : vector<4x1xf32> to vector<4x128xf32>
    %58 = arith.addf %55, %57 : vector<4x128xf32>
    %c0_63 = arith.constant 0 : index
    %c1_64 = arith.constant 1 : index
    %c0_65 = arith.constant 0 : index
    %c0_66 = arith.constant 0 : index
    %59 = vector.load %arg11[%c0_63, %c1_64, %c0_65, %c0_66] : memref<1x8x4x128xf32, #tpu.memory_space<vmem>>, vector<1x1x4x128xf32>
    %60 = vector.shape_cast %59 : vector<1x1x4x128xf32> to vector<4x128xf32>
    %61 = vector.shape_cast %58 : vector<4x128xf32> to vector<1x1x4x128xf32>
    tpu.vector_store %arg11[%c0_63, %c1_64, %c0_65, %c0_66], %61 {strides = array<i32>} : memref<1x8x4x128xf32, #tpu.memory_space<vmem>>, vector<1x1x4x128xf32>,
    %c0_67 = arith.constant 0 : index
    %c0_68 = arith.constant 0 : index
    %62 = vector.load %arg5[%c0_67, %c0_68] : memref<64x64xbf16, #tpu.memory_space<vmem>>, vector<64x64xbf16>
    %c0_69 = arith.constant 0 : index
    %c0_70 = arith.constant 0 : index
    %c2 = arith.constant 2 : index
    %c0_71 = arith.constant 0 : index
    %c0_72 = arith.constant 0 : index
    %63 = vector.load %arg2[%c0_69, %c0_70, %c2, %c0_71, %c0_72] : memref<1x1x8x64x128xf32, #tpu.memory_space<vmem>>, vector<1x1x1x64x128xf32>
    %64 = vector.shape_cast %63 : vector<1x1x1x64x128xf32> to vector<64x128xf32>
    %65 = arith.truncf %64 : vector<64x128xf32> to vector<64x128xbf16>
    %cst_73 = arith.constant dense<0.000000e+00> : vector<64x128xf32>
    %66 = tpu.matmul %62, %65, %cst_73 {dimension_numbers = #tpu.dot_dimension_numbers<[1], [0], [0], [1], [0, 0, 1, 1], [], []>} : vector<64x64xbf16>, vector<64x128xbf16>, vector<64x128xf32> -> vector<64x128xf32>
    %c0_74 = arith.constant 0 : index
    %c0_75 = arith.constant 0 : index
    %67 = vector.load %arg6[%c0_74, %c0_75] : memref<64x64xbf16, #tpu.memory_space<vmem>>, vector<64x64xbf16>
    %c0_76 = arith.constant 0 : index
    %c0_77 = arith.constant 0 : index
    %c2_78 = arith.constant 2 : index
    %c0_79 = arith.constant 0 : index
    %c0_80 = arith.constant 0 : index
    %68 = vector.load %arg3[%c0_76, %c0_77, %c2_78, %c0_79, %c0_80] : memref<1x1x8x64x128xf32, #tpu.memory_space<vmem>>, vector<1x1x1x64x128xf32>
    %69 = vector.shape_cast %68 : vector<1x1x1x64x128xf32> to vector<64x128xf32>
    %70 = arith.truncf %69 : vector<64x128xf32> to vector<64x128xbf16>
    %cst_81 = arith.constant dense<0.000000e+00> : vector<64x128xf32>
    %71 = tpu.matmul %67, %70, %cst_81 {dimension_numbers = #tpu.dot_dimension_numbers<[1], [0], [0], [1], [0, 0, 1, 1], [], []>} : vector<64x64xbf16>, vector<64x128xbf16>, vector<64x128xf32> -> vector<64x128xf32>
    %72 = arith.addf %66, %71 : vector<64x128xf32>
    %c0_82 = arith.constant 0 : index
    %c0_83 = arith.constant 0 : index
    %73 = vector.load %arg7[%c0_82, %c0_83] : memref<64x4xbf16, #tpu.memory_space<vmem>>, vector<64x4xbf16>
    %c0_84 = arith.constant 0 : index
    %c2_85 = arith.constant 2 : index
    %c0_86 = arith.constant 0 : index
    %c0_87 = arith.constant 0 : index
    %74 = vector.load %arg4[%c0_84, %c2_85, %c0_86, %c0_87] : memref<1x8x4x128xf32, #tpu.memory_space<vmem>>, vector<1x1x4x128xf32>
    %75 = vector.shape_cast %74 : vector<1x1x4x128xf32> to vector<4x128xf32>
    %76 = arith.truncf %75 : vector<4x128xf32> to vector<4x128xbf16>
    %cst_88 = arith.constant dense<0.000000e+00> : vector<64x128xf32>
    %77 = tpu.matmul %73, %76, %cst_88 {dimension_numbers = #tpu.dot_dimension_numbers<[1], [0], [0], [1], [0, 0, 1, 1], [], []>} : vector<64x4xbf16>, vector<4x128xbf16>, vector<64x128xf32> -> vector<64x128xf32>
    %78 = arith.addf %72, %77 : vector<64x128xf32>
    %c0_89 = arith.constant 0 : index
    %c0_90 = arith.constant 0 : index
    %79 = vector.load %arg8[%c0_89, %c0_90] : memref<64x1xf32, #tpu.memory_space<vmem>>, vector<64x1xf32>
    %80 = vector.broadcast %79 : vector<64x1xf32> to vector<64x128xf32>
    %81 = arith.addf %78, %80 : vector<64x128xf32>
    %cst_91 = arith.constant 0.000000e+00 : f32
    %82 = vector.broadcast %cst_91 : f32 to vector<64x128xf32>
    %83 = arith.maximumf %81, %82 : vector<64x128xf32>
    %c0_92 = arith.constant 0 : index
    %c0_93 = arith.constant 0 : index
    %84 = vector.load %arg9[%c0_92, %c0_93] : memref<4x64xbf16, #tpu.memory_space<vmem>>, vector<4x64xbf16>
    %85 = arith.truncf %83 : vector<64x128xf32> to vector<64x128xbf16>
    %cst_94 = arith.constant dense<0.000000e+00> : vector<4x128xf32>
    %86 = tpu.matmul %84, %85, %cst_94 {dimension_numbers = #tpu.dot_dimension_numbers<[1], [0], [0], [1], [0, 0, 1, 1], [], []>} : vector<4x64xbf16>, vector<64x128xbf16>, vector<4x128xf32> -> vector<4x128xf32>
    %c0_95 = arith.constant 0 : index
    %c0_96 = arith.constant 0 : index
    %87 = vector.load %arg10[%c0_95, %c0_96] : memref<4x1xf32, #tpu.memory_space<vmem>>, vector<4x1xf32>
    %88 = vector.broadcast %87 : vector<4x1xf32> to vector<4x128xf32>
    %89 = arith.addf %86, %88 : vector<4x128xf32>
    %c0_97 = arith.constant 0 : index
    %c2_98 = arith.constant 2 : index
    %c0_99 = arith.constant 0 : index
    %c0_100 = arith.constant 0 : index
    %90 = vector.load %arg11[%c0_97, %c2_98, %c0_99, %c0_100] : memref<1x8x4x128xf32, #tpu.memory_space<vmem>>, vector<1x1x4x128xf32>
    %91 = vector.shape_cast %90 : vector<1x1x4x128xf32> to vector<4x128xf32>
    %92 = vector.shape_cast %89 : vector<4x128xf32> to vector<1x1x4x128xf32>
    tpu.vector_store %arg11[%c0_97, %c2_98, %c0_99, %c0_100], %92 {strides = array<i32>} : memref<1x8x4x128xf32, #tpu.memory_space<vmem>>, vector<1x1x4x128xf32>,
    %c0_101 = arith.constant 0 : index
    %c0_102 = arith.constant 0 : index
    %93 = vector.load %arg5[%c0_101, %c0_102] : memref<64x64xbf16, #tpu.memory_space<vmem>>, vector<64x64xbf16>
    %c0_103 = arith.constant 0 : index
    %c0_104 = arith.constant 0 : index
    %c3 = arith.constant 3 : index
    %c0_105 = arith.constant 0 : index
    %c0_106 = arith.constant 0 : index
    %94 = vector.load %arg2[%c0_103, %c0_104, %c3, %c0_105, %c0_106] : memref<1x1x8x64x128xf32, #tpu.memory_space<vmem>>, vector<1x1x1x64x128xf32>
    %95 = vector.shape_cast %94 : vector<1x1x1x64x128xf32> to vector<64x128xf32>
    %96 = arith.truncf %95 : vector<64x128xf32> to vector<64x128xbf16>
    %cst_107 = arith.constant dense<0.000000e+00> : vector<64x128xf32>
    %97 = tpu.matmul %93, %96, %cst_107 {dimension_numbers = #tpu.dot_dimension_numbers<[1], [0], [0], [1], [0, 0, 1, 1], [], []>} : vector<64x64xbf16>, vector<64x128xbf16>, vector<64x128xf32> -> vector<64x128xf32>
    %c0_108 = arith.constant 0 : index
    %c0_109 = arith.constant 0 : index
    %98 = vector.load %arg6[%c0_108, %c0_109] : memref<64x64xbf16, #tpu.memory_space<vmem>>, vector<64x64xbf16>
    %c0_110 = arith.constant 0 : index
    %c0_111 = arith.constant 0 : index
    %c3_112 = arith.constant 3 : index
    %c0_113 = arith.constant 0 : index
    %c0_114 = arith.constant 0 : index
    %99 = vector.load %arg3[%c0_110, %c0_111, %c3_112, %c0_113, %c0_114] : memref<1x1x8x64x128xf32, #tpu.memory_space<vmem>>, vector<1x1x1x64x128xf32>
    %100 = vector.shape_cast %99 : vector<1x1x1x64x128xf32> to vector<64x128xf32>
    %101 = arith.truncf %100 : vector<64x128xf32> to vector<64x128xbf16>
    %cst_115 = arith.constant dense<0.000000e+00> : vector<64x128xf32>
    %102 = tpu.matmul %98, %101, %cst_115 {dimension_numbers = #tpu.dot_dimension_numbers<[1], [0], [0], [1], [0, 0, 1, 1], [], []>} : vector<64x64xbf16>, vector<64x128xbf16>, vector<64x128xf32> -> vector<64x128xf32>
    %103 = arith.addf %97, %102 : vector<64x128xf32>
    %c0_116 = arith.constant 0 : index
    %c0_117 = arith.constant 0 : index
    %104 = vector.load %arg7[%c0_116, %c0_117] : memref<64x4xbf16, #tpu.memory_space<vmem>>, vector<64x4xbf16>
    %c0_118 = arith.constant 0 : index
    %c3_119 = arith.constant 3 : index
    %c0_120 = arith.constant 0 : index
    %c0_121 = arith.constant 0 : index
    %105 = vector.load %arg4[%c0_118, %c3_119, %c0_120, %c0_121] : memref<1x8x4x128xf32, #tpu.memory_space<vmem>>, vector<1x1x4x128xf32>
    %106 = vector.shape_cast %105 : vector<1x1x4x128xf32> to vector<4x128xf32>
    %107 = arith.truncf %106 : vector<4x128xf32> to vector<4x128xbf16>
    %cst_122 = arith.constant dense<0.000000e+00> : vector<64x128xf32>
    %108 = tpu.matmul %104, %107, %cst_122 {dimension_numbers = #tpu.dot_dimension_numbers<[1], [0], [0], [1], [0, 0, 1, 1], [], []>} : vector<64x4xbf16>, vector<4x128xbf16>, vector<64x128xf32> -> vector<64x128xf32>
    %109 = arith.addf %103, %108 : vector<64x128xf32>
    %c0_123 = arith.constant 0 : index
    %c0_124 = arith.constant 0 : index
    %110 = vector.load %arg8[%c0_123, %c0_124] : memref<64x1xf32, #tpu.memory_space<vmem>>, vector<64x1xf32>
    %111 = vector.broadcast %110 : vector<64x1xf32> to vector<64x128xf32>
    %112 = arith.addf %109, %111 : vector<64x128xf32>
    %cst_125 = arith.constant 0.000000e+00 : f32
    %113 = vector.broadcast %cst_125 : f32 to vector<64x128xf32>
    %114 = arith.maximumf %112, %113 : vector<64x128xf32>
    %c0_126 = arith.constant 0 : index
    %c0_127 = arith.constant 0 : index
    %115 = vector.load %arg9[%c0_126, %c0_127] : memref<4x64xbf16, #tpu.memory_space<vmem>>, vector<4x64xbf16>
    %116 = arith.truncf %114 : vector<64x128xf32> to vector<64x128xbf16>
    %cst_128 = arith.constant dense<0.000000e+00> : vector<4x128xf32>
    %117 = tpu.matmul %115, %116, %cst_128 {dimension_numbers = #tpu.dot_dimension_numbers<[1], [0], [0], [1], [0, 0, 1, 1], [], []>} : vector<4x64xbf16>, vector<64x128xbf16>, vector<4x128xf32> -> vector<4x128xf32>
    %c0_129 = arith.constant 0 : index
    %c0_130 = arith.constant 0 : index
    %118 = vector.load %arg10[%c0_129, %c0_130] : memref<4x1xf32, #tpu.memory_space<vmem>>, vector<4x1xf32>
    %119 = vector.broadcast %118 : vector<4x1xf32> to vector<4x128xf32>
    %120 = arith.addf %117, %119 : vector<4x128xf32>
    %c0_131 = arith.constant 0 : index
    %c3_132 = arith.constant 3 : index
    %c0_133 = arith.constant 0 : index
    %c0_134 = arith.constant 0 : index
    %121 = vector.load %arg11[%c0_131, %c3_132, %c0_133, %c0_134] : memref<1x8x4x128xf32, #tpu.memory_space<vmem>>, vector<1x1x4x128xf32>
    %122 = vector.shape_cast %121 : vector<1x1x4x128xf32> to vector<4x128xf32>
    %123 = vector.shape_cast %120 : vector<4x128xf32> to vector<1x1x4x128xf32>
    tpu.vector_store %arg11[%c0_131, %c3_132, %c0_133, %c0_134], %123 {strides = array<i32>} : memref<1x8x4x128xf32, #tpu.memory_space<vmem>>, vector<1x1x4x128xf32>,
    %c0_135 = arith.constant 0 : index
    %c0_136 = arith.constant 0 : index
    %124 = vector.load %arg5[%c0_135, %c0_136] : memref<64x64xbf16, #tpu.memory_space<vmem>>, vector<64x64xbf16>
    %c0_137 = arith.constant 0 : index
    %c0_138 = arith.constant 0 : index
    %c4 = arith.constant 4 : index
    %c0_139 = arith.constant 0 : index
    %c0_140 = arith.constant 0 : index
    %125 = vector.load %arg2[%c0_137, %c0_138, %c4, %c0_139, %c0_140] : memref<1x1x8x64x128xf32, #tpu.memory_space<vmem>>, vector<1x1x1x64x128xf32>
    %126 = vector.shape_cast %125 : vector<1x1x1x64x128xf32> to vector<64x128xf32>
    %127 = arith.truncf %126 : vector<64x128xf32> to vector<64x128xbf16>
    %cst_141 = arith.constant dense<0.000000e+00> : vector<64x128xf32>
    %128 = tpu.matmul %124, %127, %cst_141 {dimension_numbers = #tpu.dot_dimension_numbers<[1], [0], [0], [1], [0, 0, 1, 1], [], []>} : vector<64x64xbf16>, vector<64x128xbf16>, vector<64x128xf32> -> vector<64x128xf32>
    %c0_142 = arith.constant 0 : index
    %c0_143 = arith.constant 0 : index
    %129 = vector.load %arg6[%c0_142, %c0_143] : memref<64x64xbf16, #tpu.memory_space<vmem>>, vector<64x64xbf16>
    %c0_144 = arith.constant 0 : index
    %c0_145 = arith.constant 0 : index
    %c4_146 = arith.constant 4 : index
    %c0_147 = arith.constant 0 : index
    %c0_148 = arith.constant 0 : index
    %130 = vector.load %arg3[%c0_144, %c0_145, %c4_146, %c0_147, %c0_148] : memref<1x1x8x64x128xf32, #tpu.memory_space<vmem>>, vector<1x1x1x64x128xf32>
    %131 = vector.shape_cast %130 : vector<1x1x1x64x128xf32> to vector<64x128xf32>
    %132 = arith.truncf %131 : vector<64x128xf32> to vector<64x128xbf16>
    %cst_149 = arith.constant dense<0.000000e+00> : vector<64x128xf32>
    %133 = tpu.matmul %129, %132, %cst_149 {dimension_numbers = #tpu.dot_dimension_numbers<[1], [0], [0], [1], [0, 0, 1, 1], [], []>} : vector<64x64xbf16>, vector<64x128xbf16>, vector<64x128xf32> -> vector<64x128xf32>
    %134 = arith.addf %128, %133 : vector<64x128xf32>
    %c0_150 = arith.constant 0 : index
    %c0_151 = arith.constant 0 : index
    %135 = vector.load %arg7[%c0_150, %c0_151] : memref<64x4xbf16, #tpu.memory_space<vmem>>, vector<64x4xbf16>
    %c0_152 = arith.constant 0 : index
    %c4_153 = arith.constant 4 : index
    %c0_154 = arith.constant 0 : index
    %c0_155 = arith.constant 0 : index
    %136 = vector.load %arg4[%c0_152, %c4_153, %c0_154, %c0_155] : memref<1x8x4x128xf32, #tpu.memory_space<vmem>>, vector<1x1x4x128xf32>
    %137 = vector.shape_cast %136 : vector<1x1x4x128xf32> to vector<4x128xf32>
    %138 = arith.truncf %137 : vector<4x128xf32> to vector<4x128xbf16>
    %cst_156 = arith.constant dense<0.000000e+00> : vector<64x128xf32>
    %139 = tpu.matmul %135, %138, %cst_156 {dimension_numbers = #tpu.dot_dimension_numbers<[1], [0], [0], [1], [0, 0, 1, 1], [], []>} : vector<64x4xbf16>, vector<4x128xbf16>, vector<64x128xf32> -> vector<64x128xf32>
    %140 = arith.addf %134, %139 : vector<64x128xf32>
    %c0_157 = arith.constant 0 : index
    %c0_158 = arith.constant 0 : index
    %141 = vector.load %arg8[%c0_157, %c0_158] : memref<64x1xf32, #tpu.memory_space<vmem>>, vector<64x1xf32>
    %142 = vector.broadcast %141 : vector<64x1xf32> to vector<64x128xf32>
    %143 = arith.addf %140, %142 : vector<64x128xf32>
    %cst_159 = arith.constant 0.000000e+00 : f32
    %144 = vector.broadcast %cst_159 : f32 to vector<64x128xf32>
    %145 = arith.maximumf %143, %144 : vector<64x128xf32>
    %c0_160 = arith.constant 0 : index
    %c0_161 = arith.constant 0 : index
    %146 = vector.load %arg9[%c0_160, %c0_161] : memref<4x64xbf16, #tpu.memory_space<vmem>>, vector<4x64xbf16>
    %147 = arith.truncf %145 : vector<64x128xf32> to vector<64x128xbf16>
    %cst_162 = arith.constant dense<0.000000e+00> : vector<4x128xf32>
    %148 = tpu.matmul %146, %147, %cst_162 {dimension_numbers = #tpu.dot_dimension_numbers<[1], [0], [0], [1], [0, 0, 1, 1], [], []>} : vector<4x64xbf16>, vector<64x128xbf16>, vector<4x128xf32> -> vector<4x128xf32>
    %c0_163 = arith.constant 0 : index
    %c0_164 = arith.constant 0 : index
    %149 = vector.load %arg10[%c0_163, %c0_164] : memref<4x1xf32, #tpu.memory_space<vmem>>, vector<4x1xf32>
    %150 = vector.broadcast %149 : vector<4x1xf32> to vector<4x128xf32>
    %151 = arith.addf %148, %150 : vector<4x128xf32>
    %c0_165 = arith.constant 0 : index
    %c4_166 = arith.constant 4 : index
    %c0_167 = arith.constant 0 : index
    %c0_168 = arith.constant 0 : index
    %152 = vector.load %arg11[%c0_165, %c4_166, %c0_167, %c0_168] : memref<1x8x4x128xf32, #tpu.memory_space<vmem>>, vector<1x1x4x128xf32>
    %153 = vector.shape_cast %152 : vector<1x1x4x128xf32> to vector<4x128xf32>
    %154 = vector.shape_cast %151 : vector<4x128xf32> to vector<1x1x4x128xf32>
    tpu.vector_store %arg11[%c0_165, %c4_166, %c0_167, %c0_168], %154 {strides = array<i32>} : memref<1x8x4x128xf32, #tpu.memory_space<vmem>>, vector<1x1x4x128xf32>,
    %c0_169 = arith.constant 0 : index
    %c0_170 = arith.constant 0 : index
    %155 = vector.load %arg5[%c0_169, %c0_170] : memref<64x64xbf16, #tpu.memory_space<vmem>>, vector<64x64xbf16>
    %c0_171 = arith.constant 0 : index
    %c0_172 = arith.constant 0 : index
    %c5 = arith.constant 5 : index
    %c0_173 = arith.constant 0 : index
    %c0_174 = arith.constant 0 : index
    %156 = vector.load %arg2[%c0_171, %c0_172, %c5, %c0_173, %c0_174] : memref<1x1x8x64x128xf32, #tpu.memory_space<vmem>>, vector<1x1x1x64x128xf32>
    %157 = vector.shape_cast %156 : vector<1x1x1x64x128xf32> to vector<64x128xf32>
    %158 = arith.truncf %157 : vector<64x128xf32> to vector<64x128xbf16>
    %cst_175 = arith.constant dense<0.000000e+00> : vector<64x128xf32>
    %159 = tpu.matmul %155, %158, %cst_175 {dimension_numbers = #tpu.dot_dimension_numbers<[1], [0], [0], [1], [0, 0, 1, 1], [], []>} : vector<64x64xbf16>, vector<64x128xbf16>, vector<64x128xf32> -> vector<64x128xf32>
    %c0_176 = arith.constant 0 : index
    %c0_177 = arith.constant 0 : index
    %160 = vector.load %arg6[%c0_176, %c0_177] : memref<64x64xbf16, #tpu.memory_space<vmem>>, vector<64x64xbf16>
    %c0_178 = arith.constant 0 : index
    %c0_179 = arith.constant 0 : index
    %c5_180 = arith.constant 5 : index
    %c0_181 = arith.constant 0 : index
    %c0_182 = arith.constant 0 : index
    %161 = vector.load %arg3[%c0_178, %c0_179, %c5_180, %c0_181, %c0_182] : memref<1x1x8x64x128xf32, #tpu.memory_space<vmem>>, vector<1x1x1x64x128xf32>
    %162 = vector.shape_cast %161 : vector<1x1x1x64x128xf32> to vector<64x128xf32>
    %163 = arith.truncf %162 : vector<64x128xf32> to vector<64x128xbf16>
    %cst_183 = arith.constant dense<0.000000e+00> : vector<64x128xf32>
    %164 = tpu.matmul %160, %163, %cst_183 {dimension_numbers = #tpu.dot_dimension_numbers<[1], [0], [0], [1], [0, 0, 1, 1], [], []>} : vector<64x64xbf16>, vector<64x128xbf16>, vector<64x128xf32> -> vector<64x128xf32>
    %165 = arith.addf %159, %164 : vector<64x128xf32>
    %c0_184 = arith.constant 0 : index
    %c0_185 = arith.constant 0 : index
    %166 = vector.load %arg7[%c0_184, %c0_185] : memref<64x4xbf16, #tpu.memory_space<vmem>>, vector<64x4xbf16>
    %c0_186 = arith.constant 0 : index
    %c5_187 = arith.constant 5 : index
    %c0_188 = arith.constant 0 : index
    %c0_189 = arith.constant 0 : index
    %167 = vector.load %arg4[%c0_186, %c5_187, %c0_188, %c0_189] : memref<1x8x4x128xf32, #tpu.memory_space<vmem>>, vector<1x1x4x128xf32>
    %168 = vector.shape_cast %167 : vector<1x1x4x128xf32> to vector<4x128xf32>
    %169 = arith.truncf %168 : vector<4x128xf32> to vector<4x128xbf16>
    %cst_190 = arith.constant dense<0.000000e+00> : vector<64x128xf32>
    %170 = tpu.matmul %166, %169, %cst_190 {dimension_numbers = #tpu.dot_dimension_numbers<[1], [0], [0], [1], [0, 0, 1, 1], [], []>} : vector<64x4xbf16>, vector<4x128xbf16>, vector<64x128xf32> -> vector<64x128xf32>
    %171 = arith.addf %165, %170 : vector<64x128xf32>
    %c0_191 = arith.constant 0 : index
    %c0_192 = arith.constant 0 : index
    %172 = vector.load %arg8[%c0_191, %c0_192] : memref<64x1xf32, #tpu.memory_space<vmem>>, vector<64x1xf32>
    %173 = vector.broadcast %172 : vector<64x1xf32> to vector<64x128xf32>
    %174 = arith.addf %171, %173 : vector<64x128xf32>
    %cst_193 = arith.constant 0.000000e+00 : f32
    %175 = vector.broadcast %cst_193 : f32 to vector<64x128xf32>
    %176 = arith.maximumf %174, %175 : vector<64x128xf32>
    %c0_194 = arith.constant 0 : index
    %c0_195 = arith.constant 0 : index
    %177 = vector.load %arg9[%c0_194, %c0_195] : memref<4x64xbf16, #tpu.memory_space<vmem>>, vector<4x64xbf16>
    %178 = arith.truncf %176 : vector<64x128xf32> to vector<64x128xbf16>
    %cst_196 = arith.constant dense<0.000000e+00> : vector<4x128xf32>
    %179 = tpu.matmul %177, %178, %cst_196 {dimension_numbers = #tpu.dot_dimension_numbers<[1], [0], [0], [1], [0, 0, 1, 1], [], []>} : vector<4x64xbf16>, vector<64x128xbf16>, vector<4x128xf32> -> vector<4x128xf32>
    %c0_197 = arith.constant 0 : index
    %c0_198 = arith.constant 0 : index
    %180 = vector.load %arg10[%c0_197, %c0_198] : memref<4x1xf32, #tpu.memory_space<vmem>>, vector<4x1xf32>
    %181 = vector.broadcast %180 : vector<4x1xf32> to vector<4x128xf32>
    %182 = arith.addf %179, %181 : vector<4x128xf32>
    %c0_199 = arith.constant 0 : index
    %c5_200 = arith.constant 5 : index
    %c0_201 = arith.constant 0 : index
    %c0_202 = arith.constant 0 : index
    %183 = vector.load %arg11[%c0_199, %c5_200, %c0_201, %c0_202] : memref<1x8x4x128xf32, #tpu.memory_space<vmem>>, vector<1x1x4x128xf32>
    %184 = vector.shape_cast %183 : vector<1x1x4x128xf32> to vector<4x128xf32>
    %185 = vector.shape_cast %182 : vector<4x128xf32> to vector<1x1x4x128xf32>
    tpu.vector_store %arg11[%c0_199, %c5_200, %c0_201, %c0_202], %185 {strides = array<i32>} : memref<1x8x4x128xf32, #tpu.memory_space<vmem>>, vector<1x1x4x128xf32>,
    %c0_203 = arith.constant 0 : index
    %c0_204 = arith.constant 0 : index
    %186 = vector.load %arg5[%c0_203, %c0_204] : memref<64x64xbf16, #tpu.memory_space<vmem>>, vector<64x64xbf16>
    %c0_205 = arith.constant 0 : index
    %c0_206 = arith.constant 0 : index
    %c6 = arith.constant 6 : index
    %c0_207 = arith.constant 0 : index
    %c0_208 = arith.constant 0 : index
    %187 = vector.load %arg2[%c0_205, %c0_206, %c6, %c0_207, %c0_208] : memref<1x1x8x64x128xf32, #tpu.memory_space<vmem>>, vector<1x1x1x64x128xf32>
    %188 = vector.shape_cast %187 : vector<1x1x1x64x128xf32> to vector<64x128xf32>
    %189 = arith.truncf %188 : vector<64x128xf32> to vector<64x128xbf16>
    %cst_209 = arith.constant dense<0.000000e+00> : vector<64x128xf32>
    %190 = tpu.matmul %186, %189, %cst_209 {dimension_numbers = #tpu.dot_dimension_numbers<[1], [0], [0], [1], [0, 0, 1, 1], [], []>} : vector<64x64xbf16>, vector<64x128xbf16>, vector<64x128xf32> -> vector<64x128xf32>
    %c0_210 = arith.constant 0 : index
    %c0_211 = arith.constant 0 : index
    %191 = vector.load %arg6[%c0_210, %c0_211] : memref<64x64xbf16, #tpu.memory_space<vmem>>, vector<64x64xbf16>
    %c0_212 = arith.constant 0 : index
    %c0_213 = arith.constant 0 : index
    %c6_214 = arith.constant 6 : index
    %c0_215 = arith.constant 0 : index
    %c0_216 = arith.constant 0 : index
    %192 = vector.load %arg3[%c0_212, %c0_213, %c6_214, %c0_215, %c0_216] : memref<1x1x8x64x128xf32, #tpu.memory_space<vmem>>, vector<1x1x1x64x128xf32>
    %193 = vector.shape_cast %192 : vector<1x1x1x64x128xf32> to vector<64x128xf32>
    %194 = arith.truncf %193 : vector<64x128xf32> to vector<64x128xbf16>
    %cst_217 = arith.constant dense<0.000000e+00> : vector<64x128xf32>
    %195 = tpu.matmul %191, %194, %cst_217 {dimension_numbers = #tpu.dot_dimension_numbers<[1], [0], [0], [1], [0, 0, 1, 1], [], []>} : vector<64x64xbf16>, vector<64x128xbf16>, vector<64x128xf32> -> vector<64x128xf32>
    %196 = arith.addf %190, %195 : vector<64x128xf32>
    %c0_218 = arith.constant 0 : index
    %c0_219 = arith.constant 0 : index
    %197 = vector.load %arg7[%c0_218, %c0_219] : memref<64x4xbf16, #tpu.memory_space<vmem>>, vector<64x4xbf16>
    %c0_220 = arith.constant 0 : index
    %c6_221 = arith.constant 6 : index
    %c0_222 = arith.constant 0 : index
    %c0_223 = arith.constant 0 : index
    %198 = vector.load %arg4[%c0_220, %c6_221, %c0_222, %c0_223] : memref<1x8x4x128xf32, #tpu.memory_space<vmem>>, vector<1x1x4x128xf32>
    %199 = vector.shape_cast %198 : vector<1x1x4x128xf32> to vector<4x128xf32>
    %200 = arith.truncf %199 : vector<4x128xf32> to vector<4x128xbf16>
    %cst_224 = arith.constant dense<0.000000e+00> : vector<64x128xf32>
    %201 = tpu.matmul %197, %200, %cst_224 {dimension_numbers = #tpu.dot_dimension_numbers<[1], [0], [0], [1], [0, 0, 1, 1], [], []>} : vector<64x4xbf16>, vector<4x128xbf16>, vector<64x128xf32> -> vector<64x128xf32>
    %202 = arith.addf %196, %201 : vector<64x128xf32>
    %c0_225 = arith.constant 0 : index
    %c0_226 = arith.constant 0 : index
    %203 = vector.load %arg8[%c0_225, %c0_226] : memref<64x1xf32, #tpu.memory_space<vmem>>, vector<64x1xf32>
    %204 = vector.broadcast %203 : vector<64x1xf32> to vector<64x128xf32>
    %205 = arith.addf %202, %204 : vector<64x128xf32>
    %cst_227 = arith.constant 0.000000e+00 : f32
    %206 = vector.broadcast %cst_227 : f32 to vector<64x128xf32>
    %207 = arith.maximumf %205, %206 : vector<64x128xf32>
    %c0_228 = arith.constant 0 : index
    %c0_229 = arith.constant 0 : index
    %208 = vector.load %arg9[%c0_228, %c0_229] : memref<4x64xbf16, #tpu.memory_space<vmem>>, vector<4x64xbf16>
    %209 = arith.truncf %207 : vector<64x128xf32> to vector<64x128xbf16>
    %cst_230 = arith.constant dense<0.000000e+00> : vector<4x128xf32>
    %210 = tpu.matmul %208, %209, %cst_230 {dimension_numbers = #tpu.dot_dimension_numbers<[1], [0], [0], [1], [0, 0, 1, 1], [], []>} : vector<4x64xbf16>, vector<64x128xbf16>, vector<4x128xf32> -> vector<4x128xf32>
    %c0_231 = arith.constant 0 : index
    %c0_232 = arith.constant 0 : index
    %211 = vector.load %arg10[%c0_231, %c0_232] : memref<4x1xf32, #tpu.memory_space<vmem>>, vector<4x1xf32>
    %212 = vector.broadcast %211 : vector<4x1xf32> to vector<4x128xf32>
    %213 = arith.addf %210, %212 : vector<4x128xf32>
    %c0_233 = arith.constant 0 : index
    %c6_234 = arith.constant 6 : index
    %c0_235 = arith.constant 0 : index
    %c0_236 = arith.constant 0 : index
    %214 = vector.load %arg11[%c0_233, %c6_234, %c0_235, %c0_236] : memref<1x8x4x128xf32, #tpu.memory_space<vmem>>, vector<1x1x4x128xf32>
    %215 = vector.shape_cast %214 : vector<1x1x4x128xf32> to vector<4x128xf32>
    %216 = vector.shape_cast %213 : vector<4x128xf32> to vector<1x1x4x128xf32>
    tpu.vector_store %arg11[%c0_233, %c6_234, %c0_235, %c0_236], %216 {strides = array<i32>} : memref<1x8x4x128xf32, #tpu.memory_space<vmem>>, vector<1x1x4x128xf32>,
    %c0_237 = arith.constant 0 : index
    %c0_238 = arith.constant 0 : index
    %217 = vector.load %arg5[%c0_237, %c0_238] : memref<64x64xbf16, #tpu.memory_space<vmem>>, vector<64x64xbf16>
    %c0_239 = arith.constant 0 : index
    %c0_240 = arith.constant 0 : index
    %c7 = arith.constant 7 : index
    %c0_241 = arith.constant 0 : index
    %c0_242 = arith.constant 0 : index
    %218 = vector.load %arg2[%c0_239, %c0_240, %c7, %c0_241, %c0_242] : memref<1x1x8x64x128xf32, #tpu.memory_space<vmem>>, vector<1x1x1x64x128xf32>
    %219 = vector.shape_cast %218 : vector<1x1x1x64x128xf32> to vector<64x128xf32>
    %220 = arith.truncf %219 : vector<64x128xf32> to vector<64x128xbf16>
    %cst_243 = arith.constant dense<0.000000e+00> : vector<64x128xf32>
    %221 = tpu.matmul %217, %220, %cst_243 {dimension_numbers = #tpu.dot_dimension_numbers<[1], [0], [0], [1], [0, 0, 1, 1], [], []>} : vector<64x64xbf16>, vector<64x128xbf16>, vector<64x128xf32> -> vector<64x128xf32>
    %c0_244 = arith.constant 0 : index
    %c0_245 = arith.constant 0 : index
    %222 = vector.load %arg6[%c0_244, %c0_245] : memref<64x64xbf16, #tpu.memory_space<vmem>>, vector<64x64xbf16>
    %c0_246 = arith.constant 0 : index
    %c0_247 = arith.constant 0 : index
    %c7_248 = arith.constant 7 : index
    %c0_249 = arith.constant 0 : index
    %c0_250 = arith.constant 0 : index
    %223 = vector.load %arg3[%c0_246, %c0_247, %c7_248, %c0_249, %c0_250] : memref<1x1x8x64x128xf32, #tpu.memory_space<vmem>>, vector<1x1x1x64x128xf32>
    %224 = vector.shape_cast %223 : vector<1x1x1x64x128xf32> to vector<64x128xf32>
    %225 = arith.truncf %224 : vector<64x128xf32> to vector<64x128xbf16>
    %cst_251 = arith.constant dense<0.000000e+00> : vector<64x128xf32>
    %226 = tpu.matmul %222, %225, %cst_251 {dimension_numbers = #tpu.dot_dimension_numbers<[1], [0], [0], [1], [0, 0, 1, 1], [], []>} : vector<64x64xbf16>, vector<64x128xbf16>, vector<64x128xf32> -> vector<64x128xf32>
    %227 = arith.addf %221, %226 : vector<64x128xf32>
    %c0_252 = arith.constant 0 : index
    %c0_253 = arith.constant 0 : index
    %228 = vector.load %arg7[%c0_252, %c0_253] : memref<64x4xbf16, #tpu.memory_space<vmem>>, vector<64x4xbf16>
    %c0_254 = arith.constant 0 : index
    %c7_255 = arith.constant 7 : index
    %c0_256 = arith.constant 0 : index
    %c0_257 = arith.constant 0 : index
    %229 = vector.load %arg4[%c0_254, %c7_255, %c0_256, %c0_257] : memref<1x8x4x128xf32, #tpu.memory_space<vmem>>, vector<1x1x4x128xf32>
    %230 = vector.shape_cast %229 : vector<1x1x4x128xf32> to vector<4x128xf32>
    %231 = arith.truncf %230 : vector<4x128xf32> to vector<4x128xbf16>
    %cst_258 = arith.constant dense<0.000000e+00> : vector<64x128xf32>
    %232 = tpu.matmul %228, %231, %cst_258 {dimension_numbers = #tpu.dot_dimension_numbers<[1], [0], [0], [1], [0, 0, 1, 1], [], []>} : vector<64x4xbf16>, vector<4x128xbf16>, vector<64x128xf32> -> vector<64x128xf32>
    %233 = arith.addf %227, %232 : vector<64x128xf32>
    %c0_259 = arith.constant 0 : index
    %c0_260 = arith.constant 0 : index
    %234 = vector.load %arg8[%c0_259, %c0_260] : memref<64x1xf32, #tpu.memory_space<vmem>>, vector<64x1xf32>
    %235 = vector.broadcast %234 : vector<64x1xf32> to vector<64x128xf32>
    %236 = arith.addf %233, %235 : vector<64x128xf32>
    %cst_261 = arith.constant 0.000000e+00 : f32
    %237 = vector.broadcast %cst_261 : f32 to vector<64x128xf32>
    %238 = arith.maximumf %236, %237 : vector<64x128xf32>
    %c0_262 = arith.constant 0 : index
    %c0_263 = arith.constant 0 : index
    %239 = vector.load %arg9[%c0_262, %c0_263] : memref<4x64xbf16, #tpu.memory_space<vmem>>, vector<4x64xbf16>
    %240 = arith.truncf %238 : vector<64x128xf32> to vector<64x128xbf16>
    %cst_264 = arith.constant dense<0.000000e+00> : vector<4x128xf32>
    %241 = tpu.matmul %239, %240, %cst_264 {dimension_numbers = #tpu.dot_dimension_numbers<[1], [0], [0], [1], [0, 0, 1, 1], [], []>} : vector<4x64xbf16>, vector<64x128xbf16>, vector<4x128xf32> -> vector<4x128xf32>
    %c0_265 = arith.constant 0 : index
    %c0_266 = arith.constant 0 : index
    %242 = vector.load %arg10[%c0_265, %c0_266] : memref<4x1xf32, #tpu.memory_space<vmem>>, vector<4x1xf32>
    %243 = vector.broadcast %242 : vector<4x1xf32> to vector<4x128xf32>
    %244 = arith.addf %241, %243 : vector<4x128xf32>
    %c0_267 = arith.constant 0 : index
    %c7_268 = arith.constant 7 : index
    %c0_269 = arith.constant 0 : index
    %c0_270 = arith.constant 0 : index
    %245 = vector.load %arg11[%c0_267, %c7_268, %c0_269, %c0_270] : memref<1x8x4x128xf32, #tpu.memory_space<vmem>>, vector<1x1x4x128xf32>
    %246 = vector.shape_cast %245 : vector<1x1x4x128xf32> to vector<4x128xf32>
    %247 = vector.shape_cast %244 : vector<4x128xf32> to vector<1x1x4x128xf32>
    tpu.vector_store %arg11[%c0_267, %c7_268, %c0_269, %c0_270], %247 {strides = array<i32>} : memref<1x8x4x128xf32, #tpu.memory_space<vmem>>, vector<1x1x4x128xf32>,
    return
  }
  func.func @transform_0(%arg0: i32, %arg1: i32) -> (i32, i32, i32, i32, i32) {
    %c0_i32 = arith.constant 0 : i32
    %c0_i32_0 = arith.constant 0 : i32
    %c0_i32_1 = arith.constant 0 : i32
    %c0_i32_2 = arith.constant 0 : i32
    return %c0_i32, %arg0, %arg1, %c0_i32_0, %c0_i32_1 : i32, i32, i32, i32, i32
  }
  func.func @transform_1(%arg0: i32, %arg1: i32) -> (i32, i32, i32, i32, i32) {
    %c1_i32 = arith.constant 1 : i32
    %c0_i32 = arith.constant 0 : i32
    %c0_i32_0 = arith.constant 0 : i32
    %c0_i32_1 = arith.constant 0 : i32
    return %c1_i32, %arg0, %arg1, %c0_i32, %c0_i32_0 : i32, i32, i32, i32, i32
  }
  func.func @transform_2(%arg0: i32, %arg1: i32) -> (i32, i32, i32, i32) {
    %c0_i32 = arith.constant 0 : i32
    %c0_i32_0 = arith.constant 0 : i32
    %c0_i32_1 = arith.constant 0 : i32
    return %arg0, %arg1, %c0_i32, %c0_i32_0 : i32, i32, i32, i32
  }
  func.func @transform_3(%arg0: i32, %arg1: i32) -> (i32, i32) {
    %c0_i32 = arith.constant 0 : i32
    %c0_i32_0 = arith.constant 0 : i32
    %c0_i32_1 = arith.constant 0 : i32
    return %c0_i32, %c0_i32_0 : i32, i32
  }
  func.func @transform_4(%arg0: i32, %arg1: i32) -> (i32, i32) {
    %c0_i32 = arith.constant 0 : i32
    %c0_i32_0 = arith.constant 0 : i32
    %c0_i32_1 = arith.constant 0 : i32
    return %c0_i32, %c0_i32_0 : i32, i32
  }
  func.func @transform_5(%arg0: i32, %arg1: i32) -> (i32, i32) {
    %c0_i32 = arith.constant 0 : i32
    %c0_i32_0 = arith.constant 0 : i32
    %c0_i32_1 = arith.constant 0 : i32
    return %c0_i32, %c0_i32_0 : i32, i32
  }
  func.func @transform_6(%arg0: i32, %arg1: i32) -> (i32, i32) {
    %c0_i32 = arith.constant 0 : i32
    %c0_i32_0 = arith.constant 0 : i32
    %c0_i32_1 = arith.constant 0 : i32
    return %c0_i32, %c0_i32_0 : i32, i32
  }
  func.func @transform_7(%arg0: i32, %arg1: i32) -> (i32, i32) {
    %c0_i32 = arith.constant 0 : i32
    %c0_i32_0 = arith.constant 0 : i32
    %c0_i32_1 = arith.constant 0 : i32
    return %c0_i32, %c0_i32_0 : i32, i32
  }
  func.func @transform_8(%arg0: i32, %arg1: i32) -> (i32, i32) {
    %c0_i32 = arith.constant 0 : i32
    %c0_i32_0 = arith.constant 0 : i32
    %c0_i32_1 = arith.constant 0 : i32
    return %c0_i32, %c0_i32_0 : i32, i32
  }
  func.func @transform_9(%arg0: i32, %arg1: i32) -> (i32, i32, i32, i32) {
    %c0_i32 = arith.constant 0 : i32
    %c0_i32_0 = arith.constant 0 : i32
    %c0_i32_1 = arith.constant 0 : i32
    return %arg0, %arg1, %c0_i32, %c0_i32_0 : i32, i32, i32, i32
  }
}

</mosaic_0001>

<llo_original>
// kernel: bigril_forward.2
$region0: #{bigril_forward.2}
  #allocation0 [shape = 'u32[]', space=smem, size = 0x4, offset = 0x4, fixed_abs, tag = 'smem constant byte address 0x4 - core index']
  #allocation1 [shape = 'u32[144,128]{1,0:T(1,128)}', space=vmem, size = 0x12000, scoped, tag = 'internal scratch']
  #allocation2 [shape = 'f32[32,128]{1,0:T(8,128)}', space=vmem, size = 0x4000, scoped, tag = 'scratch operand']
  %s0 = inlined_call_operand.smem [shape: u32[30], index: -1, kind: input, shape index: {}]
  %s1 = sld [smem:[%s0]]
  %s2 = scalar_lea.smem %s0, 1
  %s3 = sld [smem:[%s2]]
  %s4 = scalar_lea.smem %s0, 2
  %s5 = sld [smem:[%s4]]
  %s6 = scalar_lea.smem %s0, 3
  %s7 = sld [smem:[%s6]]
  %s8 = scalar_lea.smem %s0, 4
  %s9 = sld [smem:[%s8]]
  %s10 = scalar_lea.smem %s0, 5
  %s11 = sld [smem:[%s10]]
  %s12 = scalar_lea.smem %s0, 6
  %s13 = sld [smem:[%s12]]
  %s14 = scalar_lea.smem %s0, 7
  %s15 = sld [smem:[%s14]]
  %s16 = scalar_lea.smem %s0, 8
  %s17 = sld [smem:[%s16]]
  %s18 = scalar_lea.smem %s0, 9
  %s19 = sld [smem:[%s18]]
  %s20 = scalar_lea.smem %s0, 10
  %s21 = sld [smem:[%s20]]
  %s22 = scalar_lea.smem %s0, 11
  %s23 = sld [smem:[%s22]]
  %s24 = scalar_lea.smem %s0, 12
  %s25 = sld [smem:[%s24]]
  %s26 = scalar_lea.smem %s0, 13
  %s27 = sld [smem:[%s26]]
  %s28 = scalar_lea.smem %s0, 14
  %s29 = sld [smem:[%s28]]
  %s30 = scalar_lea.smem %s0, 15
  %s31 = sld [smem:[%s30]]
  %s32 = scalar_lea.smem %s0, 16
  %s33 = sld [smem:[%s32]]
  %s34 = scalar_lea.smem %s0, 17
  %s35 = sld [smem:[%s34]]
  %s36 = scalar_lea.smem %s0, 18
  %s37 = sld [smem:[%s36]]
  %s38 = scalar_lea.smem %s0, 19
  %s39 = sld [smem:[%s38]]
  %s40 = scalar_lea.smem %s0, 20
  %s41 = sld [smem:[%s40]]
  %s42 = scalar_lea.smem %s0, 21
  %s43 = sld [smem:[%s42]]
  %s44 = scalar_lea.smem %s0, 22
  %s45 = sld [smem:[%s44]]
  %s46 = scalar_lea.smem %s0, 23
  %s47 = sld [smem:[%s46]]
  %s48 = scalar_lea.smem %s0, 24
  %s49 = sld [smem:[%s48]]
  %s50 = scalar_lea.smem %s0, 25
  %s51 = sld [smem:[%s50]]
  %s52 = scalar_lea.smem %s0, 26
  %s53 = sld [smem:[%s52]]
  %s54 = scalar_lea.smem %s0, 27
  %s55 = sld [smem:[%s54]]
  %s56 = scalar_lea.smem %s0, 28
  %s57 = sld [smem:[%s56]]
  %s58 = scalar_lea.smem %s0, 29
  %s59 = sld [smem:[%s58]]
  %60 = xla_tuple %s55, %s57, %s59
  %s61 = sld [smem:[#allocation0]]
  $region172: #{bigril_forward.2} parent=0
    _
  %s63 = ssub.s32 1, %s61
  %s64 = scalar_select 0, %s63, %s61
  $region1: #{bigril_forward.2} parent=0
    #allocation3 [shape = 'u8[512]{0}', space=smem, size = 0x200, scoped, tag = 'input window, operand 0, single buffered']
    #allocation4 [shape = 's32[2]{0}', space=sflag, size = 0x8, scoped, tag = 'scoped memory for bigril_forward.2']
    %65 = vsyncpa [#allocation4], 0
    loop: start=0, step=1, limit=6
    $region2: #{bigril_forward.2} parent=1 // loop_pre_header
      _
    $region3: #{bigril_forward.2} parent=1 // loop_header
      %s67 = sphi 0, %s71
      %p68 = scmp.ge.s32.totalorder %s67, 6
      %s74 = sphi 0, %s93
      %s75 = sphi 0, %s89
      %s76 = sphi 0, %s85
      %s77 = sphi 0, %s74
      %s78 = sphi 0, %s75
      %s79 = sphi 0, %s76
      %s80 = sphi 0, %s77
      %s81 = sphi 0, %s78
      %s82 = sphi 0, %s79
      %s94 = sphi 0, %s94
      %s96 = sphi 0, %s94
      %s97 = sphi 0, %s96
      %s111 = sphi 0, %s97
      %s127 = sphi 0, %s129
      %s130 = sphi 0, %s127
      %s131 = sphi 0, %s130
      %s147 = sphi 0, %s131
      %s163 = sphi 0, %s165
      %s166 = sphi 0, %s163
      %s167 = sphi 0, %s166
      %s183 = sphi 0, %s167
      %s189 = sphi 0, %s191
      %s192 = sphi 0, %s189
      %s193 = sphi 0, %s192
      %s209 = sphi 0, %s193
      %s213 = sphi 0, %s213
      %s215 = sphi 0, %s213
      %s216 = sphi 0, %s215
      %s230 = sphi 0, %s216
      %s234 = sphi 0, %s234
      %s236 = sphi 0, %s234
      %s237 = sphi 0, %s236
      %s251 = sphi 0, %s237
      %s255 = sphi 0, %s255
      %s257 = sphi 0, %s255
      %s258 = sphi 0, %s257
      %s272 = sphi 0, %s258
      %s276 = sphi 0, %s276
      %s278 = sphi 0, %s276
      %s279 = sphi 0, %s278
      %s293 = sphi 0, %s279
      %s299 = sphi 0, %s301
      %s302 = sphi 0, %s299
      %s303 = sphi 0, %s302
      %s319 = sphi 0, %s303
      %s325 = sphi 0, %s327
      %s328 = sphi 0, %s325
      %s329 = sphi 0, %s328
      %s345 = sphi 0, %s329
      %s351 = sphi 0, %s353
      %s354 = sphi 0, %s351
      %s355 = sphi 0, %s354
      %s371 = sphi 0, %s355
      %s377 = sphi 0, %s379
      %s380 = sphi 0, %s377
      %s381 = sphi 0, %s380
      %s397 = sphi 0, %s381
      %s403 = sphi 0, %s405
      %s406 = sphi 0, %s403
      %s407 = sphi 0, %s406
      %s423 = sphi 0, %s407
      %s429 = sphi 0, %s431
      %s432 = sphi 0, %s429
      %s433 = sphi 0, %s432
      %s449 = sphi 0, %s433
      %s455 = sphi 0, %s457
      %s458 = sphi 0, %s455
      %s459 = sphi 0, %s458
      %s475 = sphi 0, %s459
      %s481 = sphi 0, %s483
      %s484 = sphi 0, %s481
      %s485 = sphi 0, %s484
      %s501 = sphi 0, %s485
      %s507 = sphi 0, %s509
      %s510 = sphi 0, %s507
      %s511 = sphi 0, %s510
      %s527 = sphi 0, %s511
      %s533 = sphi 0, %s535
      %s536 = sphi 0, %s533
      %s537 = sphi 0, %s536
      %s553 = sphi 0, %s537
      %s559 = sphi 0, %s561
      %s562 = sphi 0, %s559
      %s563 = sphi 0, %s562
      %s579 = sphi 0, %s563
      %s585 = sphi 0, %s587
      %s588 = sphi 0, %s585
      %s589 = sphi 0, %s588
      %s605 = sphi 0, %s589
      %s611 = sphi 0, %s613
      %s614 = sphi 0, %s611
      %s615 = sphi 0, %s614
      %s631 = sphi 0, %s615
      %s637 = sphi 0, %s639
      %s640 = sphi 0, %s637
      %s641 = sphi 0, %s640
      %s657 = sphi 0, %s641
      %s663 = sphi 0, %s665
      %s666 = sphi 0, %s663
      %s667 = sphi 0, %s666
      %s683 = sphi 0, %s667
      %s689 = sphi 0, %s691
      %s692 = sphi 0, %s689
      %s693 = sphi 0, %s692
      %s709 = sphi 0, %s693
      %s715 = sphi 0, %s717
      %s718 = sphi 0, %s715
      %s719 = sphi 0, %s718
      %s735 = sphi 0, %s719
      %s741 = sphi 0, %s743
      %s744 = sphi 0, %s741
      %s745 = sphi 0, %s744
      %s761 = sphi 0, %s745
      %s767 = sphi 0, %s769
      %s770 = sphi 0, %s767
      %s771 = sphi 0, %s770
      %s787 = sphi 0, %s771
      %s805 = sphi 0, %s807
      %s808 = sphi 0, %s805
      %s809 = sphi 0, %s808
      %s825 = sphi 0, %s809
      %s843 = sphi 0, %s845
      %s846 = sphi 0, %s843
      %s847 = sphi 0, %s846
      %s863 = sphi 0, %s847
      %s881 = sphi 0, %s883
      %s884 = sphi 0, %s881
      %s885 = sphi 0, %s884
      %s901 = sphi 0, %s885
    $region4: #{bigril_forward.2} parent=1 // loop_header_branch
      %70 = sbr.rel (%p68) target = $region8
    $region5: #{bigril_forward.2} parent=1 // loop_body
      %s72 = ssub.s32 %s67, 1
      %s73 = ssub.s32 %s67, 2
      %s83 = sadd.s32 1, %s76
      %p84 = scmp.ge.s32.totalorder %s83, 1
      %s85 = scalar_select %p84, 0, %s83
      %s86 = sadd.s32 1, %s75
      %s87 = scalar_select %p84, %s86, %s75
      %p88 = scmp.ge.s32.totalorder %s87, 2
      %s89 = scalar_select %p88, 0, %s87
      %s90 = sadd.s32 1, %s74
      %s91 = scalar_select %p88, %s90, %s74
      %p92 = scmp.ge.s32.totalorder %s91, 2
      %s93 = scalar_select %p92, 0, %s91
      %s95 = sadd.s32 %s94, 1
      %p98 = scmp.eq.s32.totalorder %s67, 3
      %p99 = scmp.ne.s32.totalorder %s94, %s96
      %p100 = scmp.eq.s32.totalorder %s67, 0
      %p101 = por %p99, %p100
      %p102 = scmp.ne.s32.totalorder %s94, %s96
      %p103 = scmp.eq.s32.totalorder %s72, 3
      %p104 = por %p102, %p103
      %p105 = scmp.ne.s32.totalorder %s96, %s97
      %p106 = scmp.eq.s32.totalorder %s72, 0
      %p107 = por %p105, %p106
      %p108 = scmp.ne.s32.totalorder %s96, %s97
      %p109 = scmp.eq.s32.totalorder %s73, 3
      %p110 = por %p108, %p109
      %p112 = scmp.ne.s32.totalorder %s97, %s111
      %p113 = scmp.eq.s32.totalorder %s73, 0
      %p114 = por %p112, %p113
      %s115 = smul.u32 %s76, 2
      %s116 = ssub.s32 0, %s115
      %s117 = smul.u32 %s74, %s116
      %s118 = sadd.s32 %s76, %s117
      %s119 = smul.u32 %s85, 2
      %s120 = ssub.s32 0, %s119
      %s121 = smul.u32 %s93, %s120
      %s122 = sadd.s32 %s85, %s121
      %s123 = ssub.s32 %s75, %s89
      %s124 = ssub.s32 %s118, %s122
      %s125 = sor.u32 %s123, %s124
      %p126 = scmp.eq.s32.totalorder %s125, 0
      %s128 = sadd.s32 %s127, 1
      %s129 = scalar_select %p126, %s127, %s128
      %p132 = pneg %p126
      %p133 = scmp.eq.s32.totalorder %s67, 3
      %p134 = por %p132, %p133
      %p135 = scmp.ne.s32.totalorder %s127, %s130
      %p136 = scmp.eq.s32.totalorder %s67, 0
      %p137 = por %p135, %p136
      %p138 = scmp.ne.s32.totalorder %s127, %s130
      %p139 = scmp.eq.s32.totalorder %s72, 3
      %p140 = por %p138, %p139
      %p141 = scmp.ne.s32.totalorder %s130, %s131
      %p142 = scmp.eq.s32.totalorder %s72, 0
      %p143 = por %p141, %p142
      %p144 = scmp.ne.s32.totalorder %s130, %s131
      %p145 = scmp.eq.s32.totalorder %s73, 3
      %p146 = por %p144, %p145
      %p148 = scmp.ne.s32.totalorder %s131, %s147
      %p149 = scmp.eq.s32.totalorder %s73, 0
      %p150 = por %p148, %p149
      %s151 = smul.u32 %s76, 2
      %s152 = ssub.s32 0, %s151
      %s153 = smul.u32 %s74, %s152
      %s154 = sadd.s32 %s76, %s153
      %s155 = smul.u32 %s85, 2
      %s156 = ssub.s32 0, %s155
      %s157 = smul.u32 %s93, %s156
      %s158 = sadd.s32 %s85, %s157
      %s159 = ssub.s32 %s75, %s89
      %s160 = ssub.s32 %s154, %s158
      %s161 = sor.u32 %s159, %s160
      %p162 = scmp.eq.s32.totalorder %s161, 0
      %s164 = sadd.s32 %s163, 1
      %s165 = scalar_select %p162, %s163, %s164
      %p168 = pneg %p162
      %p169 = scmp.eq.s32.totalorder %s67, 3
      %p170 = por %p168, %p169
      %p171 = scmp.ne.s32.totalorder %s163, %s166
      %p172 = scmp.eq.s32.totalorder %s67, 0
      %p173 = por %p171, %p172
      %p174 = scmp.ne.s32.totalorder %s163, %s166
      %p175 = scmp.eq.s32.totalorder %s72, 3
      %p176 = por %p174, %p175
      %p177 = scmp.ne.s32.totalorder %s166, %s167
      %p178 = scmp.eq.s32.totalorder %s72, 0
      %p179 = por %p177, %p178
      %p180 = scmp.ne.s32.totalorder %s166, %s167
      %p181 = scmp.eq.s32.totalorder %s73, 3
      %p182 = por %p180, %p181
      %p184 = scmp.ne.s32.totalorder %s167, %s183
      %p185 = scmp.eq.s32.totalorder %s73, 0
      %p186 = por %p184, %p185
      %s187 = ssub.s32 %s74, %s93
      %p188 = scmp.eq.s32.totalorder %s187, 0
      %s190 = sadd.s32 %s189, 1
      %s191 = scalar_select %p188, %s189, %s190
      %p194 = pneg %p188
      %p195 = scmp.eq.s32.totalorder %s67, 3
      %p196 = por %p194, %p195
      %p197 = scmp.ne.s32.totalorder %s189, %s192
      %p198 = scmp.eq.s32.totalorder %s67, 0
      %p199 = por %p197, %p198
      %p200 = scmp.ne.s32.totalorder %s189, %s192
      %p201 = scmp.eq.s32.totalorder %s72, 3
      %p202 = por %p200, %p201
      %p203 = scmp.ne.s32.totalorder %s192, %s193
      %p204 = scmp.eq.s32.totalorder %s72, 0
      %p205 = por %p203, %p204
      %p206 = scmp.ne.s32.totalorder %s192, %s193
      %p207 = scmp.eq.s32.totalorder %s73, 3
      %p208 = por %p206, %p207
      %p210 = scmp.ne.s32.totalorder %s193, %s209
      %p211 = scmp.eq.s32.totalorder %s73, 0
      %p212 = por %p210, %p211
      %s214 = sadd.s32 %s213, 1
      %p217 = scmp.eq.s32.totalorder %s67, 3
      %p218 = scmp.ne.s32.totalorder %s213, %s215
      %p219 = scmp.eq.s32.totalorder %s67, 0
      %p220 = por %p218, %p219
      %p221 = scmp.ne.s32.totalorder %s213, %s215
      %p222 = scmp.eq.s32.totalorder %s72, 3
      %p223 = por %p221, %p222
      %p224 = scmp.ne.s32.totalorder %s215, %s216
      %p225 = scmp.eq.s32.totalorder %s72, 0
      %p226 = por %p224, %p225
      %p227 = scmp.ne.s32.totalorder %s215, %s216
      %p228 = scmp.eq.s32.totalorder %s73, 3
      %p229 = por %p227, %p228
      %p231 = scmp.ne.s32.totalorder %s216, %s230
      %p232 = scmp.eq.s32.totalorder %s73, 0
      %p233 = por %p231, %p232
      %s235 = sadd.s32 %s234, 1
      %p238 = scmp.eq.s32.totalorder %s67, 3
      %p239 = scmp.ne.s32.totalorder %s234, %s236
      %p240 = scmp.eq.s32.totalorder %s67, 0
      %p241 = por %p239, %p240
      %p242 = scmp.ne.s32.totalorder %s234, %s236
      %p243 = scmp.eq.s32.totalorder %s72, 3
      %p244 = por %p242, %p243
      %p245 = scmp.ne.s32.totalorder %s236, %s237
      %p246 = scmp.eq.s32.totalorder %s72, 0
      %p247 = por %p245, %p246
      %p248 = scmp.ne.s32.totalorder %s236, %s237
      %p249 = scmp.eq.s32.totalorder %s73, 3
      %p250 = por %p248, %p249
      %p252 = scmp.ne.s32.totalorder %s237, %s251
      %p253 = scmp.eq.s32.totalorder %s73, 0
      %p254 = por %p252, %p253
      %s256 = sadd.s32 %s255, 1
      %p259 = scmp.eq.s32.totalorder %s67, 3
      %p260 = scmp.ne.s32.totalorder %s255, %s257
      %p261 = scmp.eq.s32.totalorder %s67, 0
      %p262 = por %p260, %p261
      %p263 = scmp.ne.s32.totalorder %s255, %s257
      %p264 = scmp.eq.s32.totalorder %s72, 3
      %p265 = por %p263, %p264
      %p266 = scmp.ne.s32.totalorder %s257, %s258
      %p267 = scmp.eq.s32.totalorder %s72, 0
      %p268 = por %p266, %p267
      %p269 = scmp.ne.s32.totalorder %s257, %s258
      %p270 = scmp.eq.s32.totalorder %s73, 3
      %p271 = por %p269, %p270
      %p273 = scmp.ne.s32.totalorder %s258, %s272
      %p274 = scmp.eq.s32.totalorder %s73, 0
      %p275 = por %p273, %p274
      %s277 = sadd.s32 %s276, 1
      %p280 = scmp.eq.s32.totalorder %s67, 3
      %p281 = scmp.ne.s32.totalorder %s276, %s278
      %p282 = scmp.eq.s32.totalorder %s67, 0
      %p283 = por %p281, %p282
      %p284 = scmp.ne.s32.totalorder %s276, %s278
      %p285 = scmp.eq.s32.totalorder %s72, 3
      %p286 = por %p284, %p285
      %p287 = scmp.ne.s32.totalorder %s278, %s279
      %p288 = scmp.eq.s32.totalorder %s72, 0
      %p289 = por %p287, %p288
      %p290 = scmp.ne.s32.totalorder %s278, %s279
      %p291 = scmp.eq.s32.totalorder %s73, 3
      %p292 = por %p290, %p291
      %p294 = scmp.ne.s32.totalorder %s279, %s293
      %p295 = scmp.eq.s32.totalorder %s73, 0
      %p296 = por %p294, %p295
      %s297 = ssub.s32 %s74, %s93
      %p298 = scmp.eq.s32.totalorder %s297, 0
      %s300 = sadd.s32 %s299, 1
      %s301 = scalar_select %p298, %s299, %s300
      %p304 = pneg %p298
      %p305 = scmp.eq.s32.totalorder %s67, 3
      %p306 = por %p304, %p305
      %p307 = scmp.ne.s32.totalorder %s299, %s302
      %p308 = scmp.eq.s32.totalorder %s67, 0
      %p309 = por %p307, %p308
      %p310 = scmp.ne.s32.totalorder %s299, %s302
      %p311 = scmp.eq.s32.totalorder %s72, 3
      %p312 = por %p310, %p311
      %p313 = scmp.ne.s32.totalorder %s302, %s303
      %p314 = scmp.eq.s32.totalorder %s72, 0
      %p315 = por %p313, %p314
      %p316 = scmp.ne.s32.totalorder %s302, %s303
      %p317 = scmp.eq.s32.totalorder %s73, 3
      %p318 = por %p316, %p317
      %p320 = scmp.ne.s32.totalorder %s303, %s319
      %p321 = scmp.eq.s32.totalorder %s73, 0
      %p322 = por %p320, %p321
      %s323 = ssub.s32 %s74, %s93
      %p324 = scmp.eq.s32.totalorder %s323, 0
      %s326 = sadd.s32 %s325, 1
      %s327 = scalar_select %p324, %s325, %s326
      %p330 = pneg %p324
      %p331 = scmp.eq.s32.totalorder %s67, 3
      %p332 = por %p330, %p331
      %p333 = scmp.ne.s32.totalorder %s325, %s328
      %p334 = scmp.eq.s32.totalorder %s67, 0
      %p335 = por %p333, %p334
      %p336 = scmp.ne.s32.totalorder %s325, %s328
      %p337 = scmp.eq.s32.totalorder %s72, 3
      %p338 = por %p336, %p337
      %p339 = scmp.ne.s32.totalorder %s328, %s329
      %p340 = scmp.eq.s32.totalorder %s72, 0
      %p341 = por %p339, %p340
      %p342 = scmp.ne.s32.totalorder %s328, %s329
      %p343 = scmp.eq.s32.totalorder %s73, 3
      %p344 = por %p342, %p343
      %p346 = scmp.ne.s32.totalorder %s329, %s345
      %p347 = scmp.eq.s32.totalorder %s73, 0
      %p348 = por %p346, %p347
      %s349 = ssub.s32 %s74, %s93
      %p350 = scmp.eq.s32.totalorder %s349, 0
      %s352 = sadd.s32 %s351, 1
      %s353 = scalar_select %p350, %s351, %s352
      %p356 = pneg %p350
      %p357 = scmp.eq.s32.totalorder %s67, 3
      %p358 = por %p356, %p357
      %p359 = scmp.ne.s32.totalorder %s351, %s354
      %p360 = scmp.eq.s32.totalorder %s67, 0
      %p361 = por %p359, %p360
      %p362 = scmp.ne.s32.totalorder %s351, %s354
      %p363 = scmp.eq.s32.totalorder %s72, 3
      %p364 = por %p362, %p363
      %p365 = scmp.ne.s32.totalorder %s354, %s355
      %p366 = scmp.eq.s32.totalorder %s72, 0
      %p367 = por %p365, %p366
      %p368 = scmp.ne.s32.totalorder %s354, %s355
      %p369 = scmp.eq.s32.totalorder %s73, 3
      %p370 = por %p368, %p369
      %p372 = scmp.ne.s32.totalorder %s355, %s371
      %p373 = scmp.eq.s32.totalorder %s73, 0
      %p374 = por %p372, %p373
      %s375 = ssub.s32 %s74, %s93
      %p376 = scmp.eq.s32.totalorder %s375, 0
      %s378 = sadd.s32 %s377, 1
      %s379 = scalar_select %p376, %s377, %s378
      %p382 = pneg %p376
      %p383 = scmp.eq.s32.totalorder %s67, 3
      %p384 = por %p382, %p383
      %p385 = scmp.ne.s32.totalorder %s377, %s380
      %p386 = scmp.eq.s32.totalorder %s67, 0
      %p387 = por %p385, %p386
      %p388 = scmp.ne.s32.totalorder %s377, %s380
      %p389 = scmp.eq.s32.totalorder %s72, 3
      %p390 = por %p388, %p389
      %p391 = scmp.ne.s32.totalorder %s380, %s381
      %p392 = scmp.eq.s32.totalorder %s72, 0
      %p393 = por %p391, %p392
      %p394 = scmp.ne.s32.totalorder %s380, %s381
      %p395 = scmp.eq.s32.totalorder %s73, 3
      %p396 = por %p394, %p395
      %p398 = scmp.ne.s32.totalorder %s381, %s397
      %p399 = scmp.eq.s32.totalorder %s73, 0
      %p400 = por %p398, %p399
      %s401 = ssub.s32 %s74, %s93
      %p402 = scmp.eq.s32.totalorder %s401, 0
      %s404 = sadd.s32 %s403, 1
      %s405 = scalar_select %p402, %s403, %s404
      %p408 = pneg %p402
      %p409 = scmp.eq.s32.totalorder %s67, 3
      %p410 = por %p408, %p409
      %p411 = scmp.ne.s32.totalorder %s403, %s406
      %p412 = scmp.eq.s32.totalorder %s67, 0
      %p413 = por %p411, %p412
      %p414 = scmp.ne.s32.totalorder %s403, %s406
      %p415 = scmp.eq.s32.totalorder %s72, 3
      %p416 = por %p414, %p415
      %p417 = scmp.ne.s32.totalorder %s406, %s407
      %p418 = scmp.eq.s32.totalorder %s72, 0
      %p419 = por %p417, %p418
      %p420 = scmp.ne.s32.totalorder %s406, %s407
      %p421 = scmp.eq.s32.totalorder %s73, 3
      %p422 = por %p420, %p421
      %p424 = scmp.ne.s32.totalorder %s407, %s423
      %p425 = scmp.eq.s32.totalorder %s73, 0
      %p426 = por %p424, %p425
      %s427 = ssub.s32 %s74, %s93
      %p428 = scmp.eq.s32.totalorder %s427, 0
      %s430 = sadd.s32 %s429, 1
      %s431 = scalar_select %p428, %s429, %s430
      %p434 = pneg %p428
      %p435 = scmp.eq.s32.totalorder %s67, 3
      %p436 = por %p434, %p435
      %p437 = scmp.ne.s32.totalorder %s429, %s432
      %p438 = scmp.eq.s32.totalorder %s67, 0
      %p439 = por %p437, %p438
      %p440 = scmp.ne.s32.totalorder %s429, %s432
      %p441 = scmp.eq.s32.totalorder %s72, 3
      %p442 = por %p440, %p441
      %p443 = scmp.ne.s32.totalorder %s432, %s433
      %p444 = scmp.eq.s32.totalorder %s72, 0
      %p445 = por %p443, %p444
      %p446 = scmp.ne.s32.totalorder %s432, %s433
      %p447 = scmp.eq.s32.totalorder %s73, 3
      %p448 = por %p446, %p447
      %p450 = scmp.ne.s32.totalorder %s433, %s449
      %p451 = scmp.eq.s32.totalorder %s73, 0
      %p452 = por %p450, %p451
      %s453 = ssub.s32 %s74, %s93
      %p454 = scmp.eq.s32.totalorder %s453, 0
      %s456 = sadd.s32 %s455, 1
      %s457 = scalar_select %p454, %s455, %s456
      %p460 = pneg %p454
      %p461 = scmp.eq.s32.totalorder %s67, 3
      %p462 = por %p460, %p461
      %p463 = scmp.ne.s32.totalorder %s455, %s458
      %p464 = scmp.eq.s32.totalorder %s67, 0
      %p465 = por %p463, %p464
      %p466 = scmp.ne.s32.totalorder %s455, %s458
      %p467 = scmp.eq.s32.totalorder %s72, 3
      %p468 = por %p466, %p467
      %p469 = scmp.ne.s32.totalorder %s458, %s459
      %p470 = scmp.eq.s32.totalorder %s72, 0
      %p471 = por %p469, %p470
      %p472 = scmp.ne.s32.totalorder %s458, %s459
      %p473 = scmp.eq.s32.totalorder %s73, 3
      %p474 = por %p472, %p473
      %p476 = scmp.ne.s32.totalorder %s459, %s475
      %p477 = scmp.eq.s32.totalorder %s73, 0
      %p478 = por %p476, %p477
      %s479 = ssub.s32 %s74, %s93
      %p480 = scmp.eq.s32.totalorder %s479, 0
      %s482 = sadd.s32 %s481, 1
      %s483 = scalar_select %p480, %s481, %s482
      %p486 = pneg %p480
      %p487 = scmp.eq.s32.totalorder %s67, 3
      %p488 = por %p486, %p487
      %p489 = scmp.ne.s32.totalorder %s481, %s484
      %p490 = scmp.eq.s32.totalorder %s67, 0
      %p491 = por %p489, %p490
      %p492 = scmp.ne.s32.totalorder %s481, %s484
      %p493 = scmp.eq.s32.totalorder %s72, 3
      %p494 = por %p492, %p493
      %p495 = scmp.ne.s32.totalorder %s484, %s485
      %p496 = scmp.eq.s32.totalorder %s72, 0
      %p497 = por %p495, %p496
      %p498 = scmp.ne.s32.totalorder %s484, %s485
      %p499 = scmp.eq.s32.totalorder %s73, 3
      %p500 = por %p498, %p499
      %p502 = scmp.ne.s32.totalorder %s485, %s501
      %p503 = scmp.eq.s32.totalorder %s73, 0
      %p504 = por %p502, %p503
      %s505 = ssub.s32 %s74, %s93
      %p506 = scmp.eq.s32.totalorder %s505, 0
      %s508 = sadd.s32 %s507, 1
      %s509 = scalar_select %p506, %s507, %s508
      %p512 = pneg %p506
      %p513 = scmp.eq.s32.totalorder %s67, 3
      %p514 = por %p512, %p513
      %p515 = scmp.ne.s32.totalorder %s507, %s510
      %p516 = scmp.eq.s32.totalorder %s67, 0
      %p517 = por %p515, %p516
      %p518 = scmp.ne.s32.totalorder %s507, %s510
      %p519 = scmp.eq.s32.totalorder %s72, 3
      %p520 = por %p518, %p519
      %p521 = scmp.ne.s32.totalorder %s510, %s511
      %p522 = scmp.eq.s32.totalorder %s72, 0
      %p523 = por %p521, %p522
      %p524 = scmp.ne.s32.totalorder %s510, %s511
      %p525 = scmp.eq.s32.totalorder %s73, 3
      %p526 = por %p524, %p525
      %p528 = scmp.ne.s32.totalorder %s511, %s527
      %p529 = scmp.eq.s32.totalorder %s73, 0
      %p530 = por %p528, %p529
      %s531 = ssub.s32 %s74, %s93
      %p532 = scmp.eq.s32.totalorder %s531, 0
      %s534 = sadd.s32 %s533, 1
      %s535 = scalar_select %p532, %s533, %s534
      %p538 = pneg %p532
      %p539 = scmp.eq.s32.totalorder %s67, 3
      %p540 = por %p538, %p539
      %p541 = scmp.ne.s32.totalorder %s533, %s536
      %p542 = scmp.eq.s32.totalorder %s67, 0
      %p543 = por %p541, %p542
      %p544 = scmp.ne.s32.totalorder %s533, %s536
      %p545 = scmp.eq.s32.totalorder %s72, 3
      %p546 = por %p544, %p545
      %p547 = scmp.ne.s32.totalorder %s536, %s537
      %p548 = scmp.eq.s32.totalorder %s72, 0
      %p549 = por %p547, %p548
      %p550 = scmp.ne.s32.totalorder %s536, %s537
      %p551 = scmp.eq.s32.totalorder %s73, 3
      %p552 = por %p550, %p551
      %p554 = scmp.ne.s32.totalorder %s537, %s553
      %p555 = scmp.eq.s32.totalorder %s73, 0
      %p556 = por %p554, %p555
      %s557 = ssub.s32 %s74, %s93
      %p558 = scmp.eq.s32.totalorder %s557, 0
      %s560 = sadd.s32 %s559, 1
      %s561 = scalar_select %p558, %s559, %s560
      %p564 = pneg %p558
      %p565 = scmp.eq.s32.totalorder %s67, 3
      %p566 = por %p564, %p565
      %p567 = scmp.ne.s32.totalorder %s559, %s562
      %p568 = scmp.eq.s32.totalorder %s67, 0
      %p569 = por %p567, %p568
      %p570 = scmp.ne.s32.totalorder %s559, %s562
      %p571 = scmp.eq.s32.totalorder %s72, 3
      %p572 = por %p570, %p571
      %p573 = scmp.ne.s32.totalorder %s562, %s563
      %p574 = scmp.eq.s32.totalorder %s72, 0
      %p575 = por %p573, %p574
      %p576 = scmp.ne.s32.totalorder %s562, %s563
      %p577 = scmp.eq.s32.totalorder %s73, 3
      %p578 = por %p576, %p577
      %p580 = scmp.ne.s32.totalorder %s563, %s579
      %p581 = scmp.eq.s32.totalorder %s73, 0
      %p582 = por %p580, %p581
      %s583 = ssub.s32 %s74, %s93
      %p584 = scmp.eq.s32.totalorder %s583, 0
      %s586 = sadd.s32 %s585, 1
      %s587 = scalar_select %p584, %s585, %s586
      %p590 = pneg %p584
      %p591 = scmp.eq.s32.totalorder %s67, 3
      %p592 = por %p590, %p591
      %p593 = scmp.ne.s32.totalorder %s585, %s588
      %p594 = scmp.eq.s32.totalorder %s67, 0
      %p595 = por %p593, %p594
      %p596 = scmp.ne.s32.totalorder %s585, %s588
      %p597 = scmp.eq.s32.totalorder %s72, 3
      %p598 = por %p596, %p597
      %p599 = scmp.ne.s32.totalorder %s588, %s589
      %p600 = scmp.eq.s32.totalorder %s72, 0
      %p601 = por %p599, %p600
      %p602 = scmp.ne.s32.totalorder %s588, %s589
      %p603 = scmp.eq.s32.totalorder %s73, 3
      %p604 = por %p602, %p603
      %p606 = scmp.ne.s32.totalorder %s589, %s605
      %p607 = scmp.eq.s32.totalorder %s73, 0
      %p608 = por %p606, %p607
      %s609 = ssub.s32 %s74, %s93
      %p610 = scmp.eq.s32.totalorder %s609, 0
      %s612 = sadd.s32 %s611, 1
      %s613 = scalar_select %p610, %s611, %s612
      %p616 = pneg %p610
      %p617 = scmp.eq.s32.totalorder %s67, 3
      %p618 = por %p616, %p617
      %p619 = scmp.ne.s32.totalorder %s611, %s614
      %p620 = scmp.eq.s32.totalorder %s67, 0
      %p621 = por %p619, %p620
      %p622 = scmp.ne.s32.totalorder %s611, %s614
      %p623 = scmp.eq.s32.totalorder %s72, 3
      %p624 = por %p622, %p623
      %p625 = scmp.ne.s32.totalorder %s614, %s615
      %p626 = scmp.eq.s32.totalorder %s72, 0
      %p627 = por %p625, %p626
      %p628 = scmp.ne.s32.totalorder %s614, %s615
      %p629 = scmp.eq.s32.totalorder %s73, 3
      %p630 = por %p628, %p629
      %p632 = scmp.ne.s32.totalorder %s615, %s631
      %p633 = scmp.eq.s32.totalorder %s73, 0
      %p634 = por %p632, %p633
      %s635 = ssub.s32 %s74, %s93
      %p636 = scmp.eq.s32.totalorder %s635, 0
      %s638 = sadd.s32 %s637, 1
      %s639 = scalar_select %p636, %s637, %s638
      %p642 = pneg %p636
      %p643 = scmp.eq.s32.totalorder %s67, 3
      %p644 = por %p642, %p643
      %p645 = scmp.ne.s32.totalorder %s637, %s640
      %p646 = scmp.eq.s32.totalorder %s67, 0
      %p647 = por %p645, %p646
      %p648 = scmp.ne.s32.totalorder %s637, %s640
      %p649 = scmp.eq.s32.totalorder %s72, 3
      %p650 = por %p648, %p649
      %p651 = scmp.ne.s32.totalorder %s640, %s641
      %p652 = scmp.eq.s32.totalorder %s72, 0
      %p653 = por %p651, %p652
      %p654 = scmp.ne.s32.totalorder %s640, %s641
      %p655 = scmp.eq.s32.totalorder %s73, 3
      %p656 = por %p654, %p655
      %p658 = scmp.ne.s32.totalorder %s641, %s657
      %p659 = scmp.eq.s32.totalorder %s73, 0
      %p660 = por %p658, %p659
      %s661 = ssub.s32 %s74, %s93
      %p662 = scmp.eq.s32.totalorder %s661, 0
      %s664 = sadd.s32 %s663, 1
      %s665 = scalar_select %p662, %s663, %s664
      %p668 = pneg %p662
      %p669 = scmp.eq.s32.totalorder %s67, 3
      %p670 = por %p668, %p669
      %p671 = scmp.ne.s32.totalorder %s663, %s666
      %p672 = scmp.eq.s32.totalorder %s67, 0
      %p673 = por %p671, %p672
      %p674 = scmp.ne.s32.totalorder %s663, %s666
      %p675 = scmp.eq.s32.totalorder %s72, 3
      %p676 = por %p674, %p675
      %p677 = scmp.ne.s32.totalorder %s666, %s667
      %p678 = scmp.eq.s32.totalorder %s72, 0
      %p679 = por %p677, %p678
      %p680 = scmp.ne.s32.totalorder %s666, %s667
      %p681 = scmp.eq.s32.totalorder %s73, 3
      %p682 = por %p680, %p681
      %p684 = scmp.ne.s32.totalorder %s667, %s683
      %p685 = scmp.eq.s32.totalorder %s73, 0
      %p686 = por %p684, %p685
      %s687 = ssub.s32 %s74, %s93
      %p688 = scmp.eq.s32.totalorder %s687, 0
      %s690 = sadd.s32 %s689, 1
      %s691 = scalar_select %p688, %s689, %s690
      %p694 = pneg %p688
      %p695 = scmp.eq.s32.totalorder %s67, 3
      %p696 = por %p694, %p695
      %p697 = scmp.ne.s32.totalorder %s689, %s692
      %p698 = scmp.eq.s32.totalorder %s67, 0
      %p699 = por %p697, %p698
      %p700 = scmp.ne.s32.totalorder %s689, %s692
      %p701 = scmp.eq.s32.totalorder %s72, 3
      %p702 = por %p700, %p701
      %p703 = scmp.ne.s32.totalorder %s692, %s693
      %p704 = scmp.eq.s32.totalorder %s72, 0
      %p705 = por %p703, %p704
      %p706 = scmp.ne.s32.totalorder %s692, %s693
      %p707 = scmp.eq.s32.totalorder %s73, 3
      %p708 = por %p706, %p707
      %p710 = scmp.ne.s32.totalorder %s693, %s709
      %p711 = scmp.eq.s32.totalorder %s73, 0
      %p712 = por %p710, %p711
      %s713 = ssub.s32 %s74, %s93
      %p714 = scmp.eq.s32.totalorder %s713, 0
      %s716 = sadd.s32 %s715, 1
      %s717 = scalar_select %p714, %s715, %s716
      %p720 = pneg %p714
      %p721 = scmp.eq.s32.totalorder %s67, 3
      %p722 = por %p720, %p721
      %p723 = scmp.ne.s32.totalorder %s715, %s718
      %p724 = scmp.eq.s32.totalorder %s67, 0
      %p725 = por %p723, %p724
      %p726 = scmp.ne.s32.totalorder %s715, %s718
      %p727 = scmp.eq.s32.totalorder %s72, 3
      %p728 = por %p726, %p727
      %p729 = scmp.ne.s32.totalorder %s718, %s719
      %p730 = scmp.eq.s32.totalorder %s72, 0
      %p731 = por %p729, %p730
      %p732 = scmp.ne.s32.totalorder %s718, %s719
      %p733 = scmp.eq.s32.totalorder %s73, 3
      %p734 = por %p732, %p733
      %p736 = scmp.ne.s32.totalorder %s719, %s735
      %p737 = scmp.eq.s32.totalorder %s73, 0
      %p738 = por %p736, %p737
      %s739 = ssub.s32 %s74, %s93
      %p740 = scmp.eq.s32.totalorder %s739, 0
      %s742 = sadd.s32 %s741, 1
      %s743 = scalar_select %p740, %s741, %s742
      %p746 = pneg %p740
      %p747 = scmp.eq.s32.totalorder %s67, 3
      %p748 = por %p746, %p747
      %p749 = scmp.ne.s32.totalorder %s741, %s744
      %p750 = scmp.eq.s32.totalorder %s67, 0
      %p751 = por %p749, %p750
      %p752 = scmp.ne.s32.totalorder %s741, %s744
      %p753 = scmp.eq.s32.totalorder %s72, 3
      %p754 = por %p752, %p753
      %p755 = scmp.ne.s32.totalorder %s744, %s745
      %p756 = scmp.eq.s32.totalorder %s72, 0
      %p757 = por %p755, %p756
      %p758 = scmp.ne.s32.totalorder %s744, %s745
      %p759 = scmp.eq.s32.totalorder %s73, 3
      %p760 = por %p758, %p759
      %p762 = scmp.ne.s32.totalorder %s745, %s761
      %p763 = scmp.eq.s32.totalorder %s73, 0
      %p764 = por %p762, %p763
      %s765 = ssub.s32 %s74, %s93
      %p766 = scmp.eq.s32.totalorder %s765, 0
      %s768 = sadd.s32 %s767, 1
      %s769 = scalar_select %p766, %s767, %s768
      %p772 = pneg %p766
      %p773 = scmp.eq.s32.totalorder %s67, 3
      %p774 = por %p772, %p773
      %p775 = scmp.ne.s32.totalorder %s767, %s770
      %p776 = scmp.eq.s32.totalorder %s67, 0
      %p777 = por %p775, %p776
      %p778 = scmp.ne.s32.totalorder %s767, %s770
      %p779 = scmp.eq.s32.totalorder %s72, 3
      %p780 = por %p778, %p779
      %p781 = scmp.ne.s32.totalorder %s770, %s771
      %p782 = scmp.eq.s32.totalorder %s72, 0
      %p783 = por %p781, %p782
      %p784 = scmp.ne.s32.totalorder %s770, %s771
      %p785 = scmp.eq.s32.totalorder %s73, 3
      %p786 = por %p784, %p785
      %p788 = scmp.ne.s32.totalorder %s771, %s787
      %p789 = scmp.eq.s32.totalorder %s73, 0
      %p790 = por %p788, %p789
      %s791 = smul.u32 %s76, 2
      %s792 = ssub.s32 0, %s791
      %s793 = smul.u32 %s74, %s792
      %s794 = sadd.s32 %s76, %s793
      %s795 = smul.u32 %s85, 2
      %s796 = ssub.s32 0, %s795
      %s797 = smul.u32 %s93, %s796
      %s798 = sadd.s32 %s85, %s797
      %s799 = ssub.s32 %s74, %s93
      %s800 = ssub.s32 %s75, %s89
      %s801 = sor.u32 %s799, %s800
      %s802 = ssub.s32 %s794, %s798
      %s803 = sor.u32 %s801, %s802
      %p804 = scmp.eq.s32.totalorder %s803, 0
      %s806 = sadd.s32 %s805, 1
      %s807 = scalar_select %p804, %s805, %s806
      %p810 = pneg %p804
      %p811 = scmp.eq.s32.totalorder %s67, 3
      %p812 = por %p810, %p811
      %p813 = scmp.ne.s32.totalorder %s805, %s808
      %p814 = scmp.eq.s32.totalorder %s67, 0
      %p815 = por %p813, %p814
      %p816 = scmp.ne.s32.totalorder %s805, %s808
      %p817 = scmp.eq.s32.totalorder %s72, 3
      %p818 = por %p816, %p817
      %p819 = scmp.ne.s32.totalorder %s808, %s809
      %p820 = scmp.eq.s32.totalorder %s72, 0
      %p821 = por %p819, %p820
      %p822 = scmp.ne.s32.totalorder %s808, %s809
      %p823 = scmp.eq.s32.totalorder %s73, 3
      %p824 = por %p822, %p823
      %p826 = scmp.ne.s32.totalorder %s809, %s825
      %p827 = scmp.eq.s32.totalorder %s73, 0
      %p828 = por %p826, %p827
      %s829 = smul.u32 %s76, 2
      %s830 = ssub.s32 0, %s829
      %s831 = smul.u32 %s74, %s830
      %s832 = sadd.s32 %s76, %s831
      %s833 = smul.u32 %s85, 2
      %s834 = ssub.s32 0, %s833
      %s835 = smul.u32 %s93, %s834
      %s836 = sadd.s32 %s85, %s835
      %s837 = ssub.s32 %s74, %s93
      %s838 = ssub.s32 %s75, %s89
      %s839 = sor.u32 %s837, %s838
      %s840 = ssub.s32 %s832, %s836
      %s841 = sor.u32 %s839, %s840
      %p842 = scmp.eq.s32.totalorder %s841, 0
      %s844 = sadd.s32 %s843, 1
      %s845 = scalar_select %p842, %s843, %s844
      %p848 = pneg %p842
      %p849 = scmp.eq.s32.totalorder %s67, 3
      %p850 = por %p848, %p849
      %p851 = scmp.ne.s32.totalorder %s843, %s846
      %p852 = scmp.eq.s32.totalorder %s67, 0
      %p853 = por %p851, %p852
      %p854 = scmp.ne.s32.totalorder %s843, %s846
      %p855 = scmp.eq.s32.totalorder %s72, 3
      %p856 = por %p854, %p855
      %p857 = scmp.ne.s32.totalorder %s846, %s847
      %p858 = scmp.eq.s32.totalorder %s72, 0
      %p859 = por %p857, %p858
      %p860 = scmp.ne.s32.totalorder %s846, %s847
      %p861 = scmp.eq.s32.totalorder %s73, 3
      %p862 = por %p860, %p861
      %p864 = scmp.ne.s32.totalorder %s847, %s863
      %p865 = scmp.eq.s32.totalorder %s73, 0
      %p866 = por %p864, %p865
      %s867 = smul.u32 %s76, 2
      %s868 = ssub.s32 0, %s867
      %s869 = smul.u32 %s74, %s868
      %s870 = sadd.s32 %s76, %s869
      %s871 = smul.u32 %s85, 2
      %s872 = ssub.s32 0, %s871
      %s873 = smul.u32 %s93, %s872
      %s874 = sadd.s32 %s85, %s873
      %s875 = ssub.s32 %s74, %s93
      %s876 = ssub.s32 %s75, %s89
      %s877 = sor.u32 %s875, %s876
      %s878 = ssub.s32 %s870, %s874
      %s879 = sor.u32 %s877, %s878
      %p880 = scmp.eq.s32.totalorder %s879, 0
      %s882 = sadd.s32 %s881, 1
      %s883 = scalar_select %p880, %s881, %s882
      %p886 = pneg %p880
      %p887 = scmp.eq.s32.totalorder %s67, 3
      %p888 = por %p886, %p887
      %p889 = scmp.ne.s32.totalorder %s881, %s884
      %p890 = scmp.eq.s32.totalorder %s67, 0
      %p891 = por %p889, %p890
      %p892 = scmp.ne.s32.totalorder %s881, %s884
      %p893 = scmp.eq.s32.totalorder %s72, 3
      %p894 = por %p892, %p893
      %p895 = scmp.ne.s32.totalorder %s884, %s885
      %p896 = scmp.eq.s32.totalorder %s72, 0
      %p897 = por %p895, %p896
      %p898 = scmp.ne.s32.totalorder %s884, %s885
      %p899 = scmp.eq.s32.totalorder %s73, 3
      %p900 = por %p898, %p899
      %p902 = scmp.ne.s32.totalorder %s885, %s901
      %p903 = scmp.eq.s32.totalorder %s73, 0
      %p904 = por %p902, %p903
      %p905 = scmp.le.s32.totalorder 1, %s67
      %p906 = scmp.lt.s32.totalorder %s67, 5
      %p907 = pnand %p905, %p906
      %p908 = pneg %p907
      // Predicated region
      $region9: #{bigril_forward.2} parent=5 // pred_check
        _
      $region10: #{bigril_forward.2} parent=5 // pred_check_branch
        %910 = sbr.rel (%p907) target = $region12
      $region11: #{bigril_forward.2} parent=5 // pred_region
        %s911 = ssub.s32 %s67, 1
        // Predicated region
        $region13: #{bigril_forward.2} parent=11 // pred_check
          %p912 = pneg %p107
        $region14: #{bigril_forward.2} parent=11 // pred_check_branch
          %914 = sbr.rel (%p912) target = $region16
        $region15: #{bigril_forward.2} parent=11 // pred_region
          %s916 = ssub.s32 16, 16
          %917 = vsyncadd [#allocation4], %s916
          %s919 = sshll.u32 %s1, 4
          %s920 = int_to_ptr.vmem [resolvable:$true] %s919
          %922 = dma.vmem_to_smem %s920, 16, [#allocation3], [#allocation4]
        $region16: #{bigril_forward.2} parent=11 // pred_fallthru
          _
        // Predicated region
        $region17: #{bigril_forward.2} parent=11 // pred_check
          %p923 = pneg %p226
        $region18: #{bigril_forward.2} parent=11 // pred_check_branch
          %925 = sbr.rel (%p923) target = $region20
        $region19: #{bigril_forward.2} parent=11 // pred_region
          _
        $region20: #{bigril_forward.2} parent=11 // pred_fallthru
          _
        // Predicated region
        $region21: #{bigril_forward.2} parent=11 // pred_check
          %p926 = pneg %p247
        $region22: #{bigril_forward.2} parent=11 // pred_check_branch
          %928 = sbr.rel (%p926) target = $region24
        $region23: #{bigril_forward.2} parent=11 // pred_region
          _
        $region24: #{bigril_forward.2} parent=11 // pred_fallthru
          _
        // Predicated region
        $region25: #{bigril_forward.2} parent=11 // pred_check
          %p929 = pneg %p268
        $region26: #{bigril_forward.2} parent=11 // pred_check_branch
          %931 = sbr.rel (%p929) target = $region28
        $region27: #{bigril_forward.2} parent=11 // pred_region
          _
        $region28: #{bigril_forward.2} parent=11 // pred_fallthru
          _
        // Predicated region
        $region29: #{bigril_forward.2} parent=11 // pred_check
          %p932 = pneg %p289
        $region30: #{bigril_forward.2} parent=11 // pred_check_branch
          %934 = sbr.rel (%p932) target = $region32
        $region31: #{bigril_forward.2} parent=11 // pred_region
          _
        $region32: #{bigril_forward.2} parent=11 // pred_fallthru
          _
      $region12: #{bigril_forward.2} parent=5 // pred_fallthru
        _
      %p935 = scmp.lt.s32.totalorder %s67, 4
      // Predicated region
      $region33: #{bigril_forward.2} parent=5 // pred_check
        %p936 = pneg %p935
      $region34: #{bigril_forward.2} parent=5 // pred_check_branch
        %938 = sbr.rel (%p936) target = $region36
      $region35: #{bigril_forward.2} parent=5 // pred_region
        // Predicated region
        $region37: #{bigril_forward.2} parent=35 // pred_check
          %p939 = pneg %p137
        $region38: #{bigril_forward.2} parent=35 // pred_check_branch
          %941 = sbr.rel (%p939) target = $region40
        $region39: #{bigril_forward.2} parent=35 // pred_region
          %s942 = smul.u32 %s76, 2
          %s943 = ssub.s32 0, %s942
          %s944 = smul.u32 %s74, %s943
          %s945 = sadd.s32 %s76, %s944
          %s946 = smul.u32 8, %s945
          %p947 = scmp.lt.s32.totalorder %s75, 1
          %s948 = scalar_select %p947, %s75, 1
          %p949 = scmp.lt.s32.totalorder %s946, 7
          %s950 = scalar_select %p949, %s946, 7
          %s951 = smul.addr %s948, 8
          %s952 = sadd.s32 %s950, %s951
          %s953 = smul.addr %s952, 4
          %s954 = scalar_lea.vmem %s3, %s953
          %s955 = smul.u32 %s76, 2
          %s956 = ssub.s32 0, %s955
          %s957 = smul.u32 %s74, %s956
          %s958 = sadd.s32 %s76, %s957
          %s959 = smul.u32 8, %s958
        $region40: #{bigril_forward.2} parent=35 // pred_fallthru
          _
        // Predicated region
        $region41: #{bigril_forward.2} parent=35 // pred_check
          %p960 = pneg %p173
        $region42: #{bigril_forward.2} parent=35 // pred_check_branch
          %962 = sbr.rel (%p960) target = $region44
        $region43: #{bigril_forward.2} parent=35 // pred_region
          %s963 = smul.u32 %s76, 2
          %s964 = ssub.s32 0, %s963
          %s965 = smul.u32 %s74, %s964
          %s966 = sadd.s32 %s76, %s965
          %s967 = smul.u32 8, %s966
          %p968 = scmp.lt.s32.totalorder %s75, 1
          %s969 = scalar_select %p968, %s75, 1
          %p970 = scmp.lt.s32.totalorder %s967, 7
          %s971 = scalar_select %p970, %s967, 7
          %s972 = smul.addr %s969, 8
          %s973 = sadd.s32 %s971, %s972
          %s974 = smul.addr %s973, 4
          %s975 = scalar_lea.vmem %s5, %s974
          %s976 = smul.u32 %s76, 2
          %s977 = ssub.s32 0, %s976
          %s978 = smul.u32 %s74, %s977
          %s979 = sadd.s32 %s76, %s978
          %s980 = smul.u32 8, %s979
        $region44: #{bigril_forward.2} parent=35 // pred_fallthru
          _
        // Predicated region
        $region45: #{bigril_forward.2} parent=35 // pred_check
          %p981 = pneg %p199
        $region46: #{bigril_forward.2} parent=35 // pred_check_branch
          %983 = sbr.rel (%p981) target = $region48
        $region47: #{bigril_forward.2} parent=35 // pred_region
          %p984 = scmp.lt.s32.totalorder %s74, 1
          %s985 = scalar_select %p984, %s74, 1
          %s986 = smul.addr %s985, 4
          %s987 = smul.addr %s986, 8
          %s988 = scalar_lea.vmem %s7, %s987
        $region48: #{bigril_forward.2} parent=35 // pred_fallthru
          _
        // Predicated region
        $region49: #{bigril_forward.2} parent=35 // pred_check
          %p989 = pneg %p309
        $region50: #{bigril_forward.2} parent=35 // pred_check_branch
          %991 = sbr.rel (%p989) target = $region52
        $region51: #{bigril_forward.2} parent=35 // pred_region
          %p992 = scmp.lt.s32.totalorder %s74, 1
          %s993 = scalar_select %p992, %s74, 1
          %s994 = smul.addr %s993, 2
          %s995 = scalar_lea.vmem %s17, %s994
        $region52: #{bigril_forward.2} parent=35 // pred_fallthru
          _
        // Predicated region
        $region53: #{bigril_forward.2} parent=35 // pred_check
          %p996 = pneg %p335
        $region54: #{bigril_forward.2} parent=35 // pred_check_branch
          %998 = sbr.rel (%p996) target = $region56
        $region55: #{bigril_forward.2} parent=35 // pred_region
          %p999 = scmp.lt.s32.totalorder %s74, 1
          %s1000 = scalar_select %p999, %s74, 1
          %s1001 = smul.addr %s1000, 4
          %s1002 = scalar_lea.vmem %s19, %s1001
        $region56: #{bigril_forward.2} parent=35 // pred_fallthru
          _
        // Predicated region
        $region57: #{bigril_forward.2} parent=35 // pred_check
          %p1003 = pneg %p361
        $region58: #{bigril_forward.2} parent=35 // pred_check_branch
          %1005 = sbr.rel (%p1003) target = $region60
        $region59: #{bigril_forward.2} parent=35 // pred_region
          %p1006 = scmp.lt.s32.totalorder %s74, 1
          %s1007 = scalar_select %p1006, %s74, 1
          %s1008 = smul.addr %s1007, 4
          %s1009 = smul.addr %s1008, 4
          %s1010 = scalar_lea.vmem %s21, %s1009
        $region60: #{bigril_forward.2} parent=35 // pred_fallthru
          _
        // Predicated region
        $region61: #{bigril_forward.2} parent=35 // pred_check
          %p1011 = pneg %p387
        $region62: #{bigril_forward.2} parent=35 // pred_check_branch
          %1013 = sbr.rel (%p1011) target = $region64
        $region63: #{bigril_forward.2} parent=35 // pred_region
          %p1014 = scmp.lt.s32.totalorder %s74, 1
          %s1015 = scalar_select %p1014, %s74, 1
          %s1016 = smul.addr %s1015, 4
          %s1017 = smul.addr %s1016, 4
          %s1018 = scalar_lea.vmem %s23, %s1017
        $region64: #{bigril_forward.2} parent=35 // pred_fallthru
          _
        // Predicated region
        $region65: #{bigril_forward.2} parent=35 // pred_check
          %p1019 = pneg %p413
        $region66: #{bigril_forward.2} parent=35 // pred_check_branch
          %1021 = sbr.rel (%p1019) target = $region68
        $region67: #{bigril_forward.2} parent=35 // pred_region
          %p1022 = scmp.lt.s32.totalorder %s74, 1
          %s1023 = scalar_select %p1022, %s74, 1
          %s1024 = smul.addr %s1023, 4
          %s1025 = smul.addr %s1024, 4
          %s1026 = scalar_lea.vmem %s25, %s1025
        $region68: #{bigril_forward.2} parent=35 // pred_fallthru
          _
        // Predicated region
        $region69: #{bigril_forward.2} parent=35 // pred_check
          %p1027 = pneg %p439
        $region70: #{bigril_forward.2} parent=35 // pred_check_branch
          %1029 = sbr.rel (%p1027) target = $region72
        $region71: #{bigril_forward.2} parent=35 // pred_region
          %p1030 = scmp.lt.s32.totalorder %s74, 1
          %s1031 = scalar_select %p1030, %s74, 1
          %s1032 = smul.addr %s1031, 4
          %s1033 = smul.addr %s1032, 8
          %s1034 = scalar_lea.vmem %s27, %s1033
        $region72: #{bigril_forward.2} parent=35 // pred_fallthru
          _
        // Predicated region
        $region73: #{bigril_forward.2} parent=35 // pred_check
          %p1035 = pneg %p465
        $region74: #{bigril_forward.2} parent=35 // pred_check_branch
          %1037 = sbr.rel (%p1035) target = $region76
        $region75: #{bigril_forward.2} parent=35 // pred_region
          %p1038 = scmp.lt.s32.totalorder %s74, 1
          %s1039 = scalar_select %p1038, %s74, 1
          %s1040 = smul.addr %s1039, 8
          %s1041 = smul.addr %s1040, 4
          %s1042 = scalar_lea.vmem %s29, %s1041
        $region76: #{bigril_forward.2} parent=35 // pred_fallthru
          _
        // Predicated region
        $region77: #{bigril_forward.2} parent=35 // pred_check
          %p1043 = pneg %p491
        $region78: #{bigril_forward.2} parent=35 // pred_check_branch
          %1045 = sbr.rel (%p1043) target = $region80
        $region79: #{bigril_forward.2} parent=35 // pred_region
          %p1046 = scmp.lt.s32.totalorder %s74, 1
          %s1047 = scalar_select %p1046, %s74, 1
          %s1048 = smul.addr %s1047, 4
          %s1049 = smul.addr %s1048, 8
          %s1050 = scalar_lea.vmem %s31, %s1049
        $region80: #{bigril_forward.2} parent=35 // pred_fallthru
          _
        // Predicated region
        $region81: #{bigril_forward.2} parent=35 // pred_check
          %p1051 = pneg %p517
        $region82: #{bigril_forward.2} parent=35 // pred_check_branch
          %1053 = sbr.rel (%p1051) target = $region84
        $region83: #{bigril_forward.2} parent=35 // pred_region
          %p1054 = scmp.lt.s32.totalorder %s74, 1
          %s1055 = scalar_select %p1054, %s74, 1
          %s1056 = smul.addr %s1055, 4
          %s1057 = smul.addr %s1056, 4
          %s1058 = scalar_lea.vmem %s33, %s1057
        $region84: #{bigril_forward.2} parent=35 // pred_fallthru
          _
        // Predicated region
        $region85: #{bigril_forward.2} parent=35 // pred_check
          %p1059 = pneg %p543
        $region86: #{bigril_forward.2} parent=35 // pred_check_branch
          %1061 = sbr.rel (%p1059) target = $region88
        $region87: #{bigril_forward.2} parent=35 // pred_region
          %p1062 = scmp.lt.s32.totalorder %s74, 1
          %s1063 = scalar_select %p1062, %s74, 1
          %s1064 = smul.addr %s1063, 4
          %s1065 = smul.addr %s1064, 4
          %s1066 = scalar_lea.vmem %s35, %s1065
        $region88: #{bigril_forward.2} parent=35 // pred_fallthru
          _
        // Predicated region
        $region89: #{bigril_forward.2} parent=35 // pred_check
          %p1067 = pneg %p569
        $region90: #{bigril_forward.2} parent=35 // pred_check_branch
          %1069 = sbr.rel (%p1067) target = $region92
        $region91: #{bigril_forward.2} parent=35 // pred_region
          %p1070 = scmp.lt.s32.totalorder %s74, 1
          %s1071 = scalar_select %p1070, %s74, 1
          %s1072 = smul.addr %s1071, 4
          %s1073 = smul.addr %s1072, 8
          %s1074 = scalar_lea.vmem %s37, %s1073
        $region92: #{bigril_forward.2} parent=35 // pred_fallthru
          _
        // Predicated region
        $region93: #{bigril_forward.2} parent=35 // pred_check
          %p1075 = pneg %p595
        $region94: #{bigril_forward.2} parent=35 // pred_check_branch
          %1077 = sbr.rel (%p1075) target = $region96
        $region95: #{bigril_forward.2} parent=35 // pred_region
          %p1078 = scmp.lt.s32.totalorder %s74, 1
          %s1079 = scalar_select %p1078, %s74, 1
          %s1080 = smul.addr %s1079, 2
          %s1081 = scalar_lea.vmem %s39, %s1080
        $region96: #{bigril_forward.2} parent=35 // pred_fallthru
          _
        // Predicated region
        $region97: #{bigril_forward.2} parent=35 // pred_check
          %p1082 = pneg %p621
        $region98: #{bigril_forward.2} parent=35 // pred_check_branch
          %1084 = sbr.rel (%p1082) target = $region100
        $region99: #{bigril_forward.2} parent=35 // pred_region
          %p1085 = scmp.lt.s32.totalorder %s74, 1
          %s1086 = scalar_select %p1085, %s74, 1
          %s1087 = smul.addr %s1086, 2
          %s1088 = scalar_lea.vmem %s41, %s1087
        $region100: #{bigril_forward.2} parent=35 // pred_fallthru
          _
        // Predicated region
        $region101: #{bigril_forward.2} parent=35 // pred_check
          %p1089 = pneg %p647
        $region102: #{bigril_forward.2} parent=35 // pred_check_branch
          %1091 = sbr.rel (%p1089) target = $region104
        $region103: #{bigril_forward.2} parent=35 // pred_region
          %p1092 = scmp.lt.s32.totalorder %s74, 1
          %s1093 = scalar_select %p1092, %s74, 1
          %s1094 = smul.addr %s1093, 4
          %s1095 = scalar_lea.vmem %s43, %s1094
        $region104: #{bigril_forward.2} parent=35 // pred_fallthru
          _
        // Predicated region
        $region105: #{bigril_forward.2} parent=35 // pred_check
          %p1096 = pneg %p673
        $region106: #{bigril_forward.2} parent=35 // pred_check_branch
          %1098 = sbr.rel (%p1096) target = $region108
        $region107: #{bigril_forward.2} parent=35 // pred_region
          %p1099 = scmp.lt.s32.totalorder %s74, 1
          %s1100 = scalar_select %p1099, %s74, 1
          %s1101 = smul.addr %s1100, 40
          %s1102 = smul.addr %s1101, 4
          %s1103 = scalar_lea.vmem %s45, %s1102
        $region108: #{bigril_forward.2} parent=35 // pred_fallthru
          _
        // Predicated region
        $region109: #{bigril_forward.2} parent=35 // pred_check
          %p1104 = pneg %p699
        $region110: #{bigril_forward.2} parent=35 // pred_check_branch
          %1106 = sbr.rel (%p1104) target = $region112
        $region111: #{bigril_forward.2} parent=35 // pred_region
          %p1107 = scmp.lt.s32.totalorder %s74, 1
          %s1108 = scalar_select %p1107, %s74, 1
          %s1109 = smul.addr %s1108, 8
          %s1110 = smul.addr %s1109, 8
          %s1111 = scalar_lea.vmem %s47, %s1110
        $region112: #{bigril_forward.2} parent=35 // pred_fallthru
          _
        // Predicated region
        $region113: #{bigril_forward.2} parent=35 // pred_check
          %p1112 = pneg %p725
        $region114: #{bigril_forward.2} parent=35 // pred_check_branch
          %1114 = sbr.rel (%p1112) target = $region116
        $region115: #{bigril_forward.2} parent=35 // pred_region
          %p1115 = scmp.lt.s32.totalorder %s74, 1
          %s1116 = scalar_select %p1115, %s74, 1
          %s1117 = smul.addr %s1116, 20
          %s1118 = smul.addr %s1117, 4
          %s1119 = scalar_lea.vmem %s49, %s1118
        $region116: #{bigril_forward.2} parent=35 // pred_fallthru
          _
        // Predicated region
        $region117: #{bigril_forward.2} parent=35 // pred_check
          %p1120 = pneg %p751
        $region118: #{bigril_forward.2} parent=35 // pred_check_branch
          %1122 = sbr.rel (%p1120) target = $region120
        $region119: #{bigril_forward.2} parent=35 // pred_region
          %p1123 = scmp.lt.s32.totalorder %s74, 1
          %s1124 = scalar_select %p1123, %s74, 1
          %s1125 = smul.addr %s1124, 20
          %s1126 = smul.addr %s1125, 4
          %s1127 = scalar_lea.vmem %s51, %s1126
        $region120: #{bigril_forward.2} parent=35 // pred_fallthru
          _
        // Predicated region
        $region121: #{bigril_forward.2} parent=35 // pred_check
          %p1128 = pneg %p777
        $region122: #{bigril_forward.2} parent=35 // pred_check_branch
          %1130 = sbr.rel (%p1128) target = $region124
        $region123: #{bigril_forward.2} parent=35 // pred_region
          %p1131 = scmp.lt.s32.totalorder %s74, 1
          %s1132 = scalar_select %p1131, %s74, 1
          %s1133 = smul.addr %s1132, 4
          %s1134 = smul.addr %s1133, 8
          %s1135 = scalar_lea.vmem %s53, %s1134
        $region124: #{bigril_forward.2} parent=35 // pred_fallthru
          _
      $region36: #{bigril_forward.2} parent=5 // pred_fallthru
        _
      %p1136 = scmp.le.s32.totalorder 1, %s67
      %p1137 = scmp.lt.s32.totalorder %s67, 5
      %p1138 = pnand %p1136, %p1137
      %p1139 = pneg %p1138
      // Predicated region
      $region125: #{bigril_forward.2} parent=5 // pred_check
        _
      $region126: #{bigril_forward.2} parent=5 // pred_check_branch
        %1141 = sbr.rel (%p1138) target = $region128
      $region127: #{bigril_forward.2} parent=5 // pred_region
        %s1142 = ssub.s32 %s67, 1
        // Predicated region
        $region129: #{bigril_forward.2} parent=127 // pred_check
          %p1143 = pneg %p107
        $region130: #{bigril_forward.2} parent=127 // pred_check_branch
          %1145 = sbr.rel (%p1143) target = $region132
        $region131: #{bigril_forward.2} parent=127 // pred_region
          %1146 = dma.done [#allocation4], 16
        $region132: #{bigril_forward.2} parent=127 // pred_fallthru
          _
        %1147 = sfence
        %p1148 = pneg %p107
        %p1149 = pneg %p104
        %s1150 = smul.u32 %s79, 2
        %s1151 = ssub.s32 0, %s1150
        %s1152 = smul.u32 %s77, %s1151
        %s1153 = sadd.s32 %s79, %s1152
        %s1154 = smul.u32 8, %s1153
        %p1155 = scmp.lt.s32.totalorder %s78, 1
        %s1156 = scalar_select %p1155, %s78, 1
        %p1157 = scmp.lt.s32.totalorder %s1154, 7
        %s1158 = scalar_select %p1157, %s1154, 7
        %s1159 = smul.addr %s1156, 8
        %s1160 = sadd.s32 %s1158, %s1159
        %s1161 = smul.addr %s1160, 4
        %s1162 = scalar_lea.vmem %s3, %s1161
        %p1163 = pneg %p143
        %p1164 = pneg %p140
        %s1165 = smul.u32 %s79, 2
        %s1166 = ssub.s32 0, %s1165
        %s1167 = smul.u32 %s77, %s1166
        %s1168 = sadd.s32 %s79, %s1167
        %s1169 = smul.u32 8, %s1168
        %p1170 = scmp.lt.s32.totalorder %s78, 1
        %s1171 = scalar_select %p1170, %s78, 1
        %p1172 = scmp.lt.s32.totalorder %s1169, 7
        %s1173 = scalar_select %p1172, %s1169, 7
        %s1174 = smul.addr %s1171, 8
        %s1175 = sadd.s32 %s1173, %s1174
        %s1176 = smul.addr %s1175, 4
        %s1177 = scalar_lea.vmem %s5, %s1176
        %p1178 = pneg %p179
        %p1179 = pneg %p176
        %p1180 = scmp.lt.s32.totalorder %s77, 1
        %s1181 = scalar_select %p1180, %s77, 1
        %s1182 = smul.addr %s1181, 4
        %s1183 = smul.addr %s1182, 8
        %s1184 = scalar_lea.vmem %s7, %s1183
        %p1185 = pneg %p205
        %p1186 = pneg %p202
        %p1187 = pneg %p226
        %p1188 = pneg %p223
        %p1189 = pneg %p247
        %p1190 = pneg %p244
        %p1191 = pneg %p268
        %p1192 = pneg %p265
        %p1193 = pneg %p289
        %p1194 = pneg %p286
        %p1195 = scmp.lt.s32.totalorder %s77, 1
        %s1196 = scalar_select %p1195, %s77, 1
        %s1197 = smul.addr %s1196, 2
        %s1198 = scalar_lea.vmem %s17, %s1197
        %p1199 = pneg %p315
        %p1200 = pneg %p312
        %p1201 = scmp.lt.s32.totalorder %s77, 1
        %s1202 = scalar_select %p1201, %s77, 1
        %s1203 = smul.addr %s1202, 4
        %s1204 = scalar_lea.vmem %s19, %s1203
        %p1205 = pneg %p341
        %p1206 = pneg %p338
        %p1207 = scmp.lt.s32.totalorder %s77, 1
        %s1208 = scalar_select %p1207, %s77, 1
        %s1209 = smul.addr %s1208, 4
        %s1210 = smul.addr %s1209, 4
        %s1211 = scalar_lea.vmem %s21, %s1210
        %p1212 = pneg %p367
        %p1213 = pneg %p364
        %p1214 = scmp.lt.s32.totalorder %s77, 1
        %s1215 = scalar_select %p1214, %s77, 1
        %s1216 = smul.addr %s1215, 4
        %s1217 = smul.addr %s1216, 4
        %s1218 = scalar_lea.vmem %s23, %s1217
        %p1219 = pneg %p393
        %p1220 = pneg %p390
        %p1221 = scmp.lt.s32.totalorder %s77, 1
        %s1222 = scalar_select %p1221, %s77, 1
        %s1223 = smul.addr %s1222, 4
        %s1224 = smul.addr %s1223, 4
        %s1225 = scalar_lea.vmem %s25, %s1224
        %p1226 = pneg %p419
        %p1227 = pneg %p416
        %p1228 = scmp.lt.s32.totalorder %s77, 1
        %s1229 = scalar_select %p1228, %s77, 1
        %s1230 = smul.addr %s1229, 4
        %s1231 = smul.addr %s1230, 8
        %s1232 = scalar_lea.vmem %s27, %s1231
        %p1233 = pneg %p445
        %p1234 = pneg %p442
        %p1235 = scmp.lt.s32.totalorder %s77, 1
        %s1236 = scalar_select %p1235, %s77, 1
        %s1237 = smul.addr %s1236, 8
        %s1238 = smul.addr %s1237, 4
        %s1239 = scalar_lea.vmem %s29, %s1238
        %p1240 = pneg %p471
        %p1241 = pneg %p468
        %p1242 = scmp.lt.s32.totalorder %s77, 1
        %s1243 = scalar_select %p1242, %s77, 1
        %s1244 = smul.addr %s1243, 4
        %s1245 = smul.addr %s1244, 8
        %s1246 = scalar_lea.vmem %s31, %s1245
        %p1247 = pneg %p497
        %p1248 = pneg %p494
        %p1249 = scmp.lt.s32.totalorder %s77, 1
        %s1250 = scalar_select %p1249, %s77, 1
        %s1251 = smul.addr %s1250, 4
        %s1252 = smul.addr %s1251, 4
        %s1253 = scalar_lea.vmem %s33, %s1252
        %p1254 = pneg %p523
        %p1255 = pneg %p520
        %p1256 = scmp.lt.s32.totalorder %s77, 1
        %s1257 = scalar_select %p1256, %s77, 1
        %s1258 = smul.addr %s1257, 4
        %s1259 = smul.addr %s1258, 4
        %s1260 = scalar_lea.vmem %s35, %s1259
        %p1261 = pneg %p549
        %p1262 = pneg %p546
        %p1263 = scmp.lt.s32.totalorder %s77, 1
        %s1264 = scalar_select %p1263, %s77, 1
        %s1265 = smul.addr %s1264, 4
        %s1266 = smul.addr %s1265, 8
        %s1267 = scalar_lea.vmem %s37, %s1266
        %p1268 = pneg %p575
        %p1269 = pneg %p572
        %p1270 = scmp.lt.s32.totalorder %s77, 1
        %s1271 = scalar_select %p1270, %s77, 1
        %s1272 = smul.addr %s1271, 2
        %s1273 = scalar_lea.vmem %s39, %s1272
        %p1274 = pneg %p601
        %p1275 = pneg %p598
        %p1276 = scmp.lt.s32.totalorder %s77, 1
        %s1277 = scalar_select %p1276, %s77, 1
        %s1278 = smul.addr %s1277, 2
        %s1279 = scalar_lea.vmem %s41, %s1278
        %p1280 = pneg %p627
        %p1281 = pneg %p624
        %p1282 = scmp.lt.s32.totalorder %s77, 1
        %s1283 = scalar_select %p1282, %s77, 1
        %s1284 = smul.addr %s1283, 4
        %s1285 = scalar_lea.vmem %s43, %s1284
        %p1286 = pneg %p653
        %p1287 = pneg %p650
        %p1288 = scmp.lt.s32.totalorder %s77, 1
        %s1289 = scalar_select %p1288, %s77, 1
        %s1290 = smul.addr %s1289, 40
        %s1291 = smul.addr %s1290, 4
        %s1292 = scalar_lea.vmem %s45, %s1291
        %p1293 = pneg %p679
        %p1294 = pneg %p676
        %p1295 = scmp.lt.s32.totalorder %s77, 1
        %s1296 = scalar_select %p1295, %s77, 1
        %s1297 = smul.addr %s1296, 8
        %s1298 = smul.addr %s1297, 8
        %s1299 = scalar_lea.vmem %s47, %s1298
        %p1300 = pneg %p705
        %p1301 = pneg %p702
        %p1302 = scmp.lt.s32.totalorder %s77, 1
        %s1303 = scalar_select %p1302, %s77, 1
        %s1304 = smul.addr %s1303, 20
        %s1305 = smul.addr %s1304, 4
        %s1306 = scalar_lea.vmem %s49, %s1305
        %p1307 = pneg %p731
        %p1308 = pneg %p728
        %p1309 = scmp.lt.s32.totalorder %s77, 1
        %s1310 = scalar_select %p1309, %s77, 1
        %s1311 = smul.addr %s1310, 20
        %s1312 = smul.addr %s1311, 4
        %s1313 = scalar_lea.vmem %s51, %s1312
        %p1314 = pneg %p757
        %p1315 = pneg %p754
        %p1316 = scmp.lt.s32.totalorder %s77, 1
        %s1317 = scalar_select %p1316, %s77, 1
        %s1318 = smul.addr %s1317, 4
        %s1319 = smul.addr %s1318, 8
        %s1320 = scalar_lea.vmem %s53, %s1319
        %p1321 = pneg %p783
        %p1322 = pneg %p780
        %p1323 = pneg %p821
        %p1324 = pneg %p818
        %s1325 = smul.u32 %s79, 2
        %s1326 = ssub.s32 0, %s1325
        %s1327 = smul.u32 %s77, %s1326
        %s1328 = sadd.s32 %s79, %s1327
        %s1329 = smul.u32 8, %s1328
        %p1330 = scmp.lt.s32.totalorder %s77, 1
        %s1331 = scalar_select %p1330, %s77, 1
        %p1332 = scmp.lt.s32.totalorder %s78, 1
        %s1333 = scalar_select %p1332, %s78, 1
        %p1334 = scmp.lt.s32.totalorder %s1329, 7
        %s1335 = scalar_select %p1334, %s1329, 7
        %s1336 = smul.addr %s1333, 8
        %s1337 = sadd.s32 %s1335, %s1336
        %s1338 = smul.addr %s1331, 16
        %s1339 = sadd.s32 %s1337, %s1338
        %s1340 = smul.addr %s1339, 4
        %s1341 = scalar_lea.vmem %s55, %s1340
        %p1342 = pneg %p859
        %p1343 = pneg %p856
        %s1344 = smul.u32 %s79, 2
        %s1345 = ssub.s32 0, %s1344
        %s1346 = smul.u32 %s77, %s1345
        %s1347 = sadd.s32 %s79, %s1346
        %s1348 = smul.u32 8, %s1347
        %p1349 = scmp.lt.s32.totalorder %s77, 1
        %s1350 = scalar_select %p1349, %s77, 1
        %p1351 = scmp.lt.s32.totalorder %s78, 1
        %s1352 = scalar_select %p1351, %s78, 1
        %p1353 = scmp.lt.s32.totalorder %s1348, 7
        %s1354 = scalar_select %p1353, %s1348, 7
        %s1355 = smul.addr %s1352, 8
        %s1356 = sadd.s32 %s1354, %s1355
        %s1357 = smul.addr %s1350, 16
        %s1358 = sadd.s32 %s1356, %s1357
        %s1359 = smul.addr %s1358, 4
        %s1360 = scalar_lea.vmem %s57, %s1359
        %p1361 = pneg %p897
        %p1362 = pneg %p894
        %s1363 = smul.u32 %s79, 2
        %s1364 = ssub.s32 0, %s1363
        %s1365 = smul.u32 %s77, %s1364
        %s1366 = sadd.s32 %s79, %s1365
        %s1367 = smul.u32 8, %s1366
        %p1368 = scmp.lt.s32.totalorder %s77, 1
        %s1369 = scalar_select %p1368, %s77, 1
        %p1370 = scmp.lt.s32.totalorder %s78, 1
        %s1371 = scalar_select %p1370, %s78, 1
        %p1372 = scmp.lt.s32.totalorder %s1367, 7
        %s1373 = scalar_select %p1372, %s1367, 7
        %s1374 = smul.addr %s1373, 8
        %s1375 = smul.addr %s1371, 64
        %s1376 = sadd.s32 %s1374, %s1375
        %s1377 = smul.addr %s1369, 128
        %s1378 = sadd.s32 %s1376, %s1377
        %s1379 = smul.addr %s1378, 8
        %s1380 = scalar_lea.vmem %s59, %s1379
        %s1381 = smul.u32 %s79, 2
        %s1382 = ssub.s32 0, %s1381
        %s1383 = smul.u32 %s77, %s1382
        %s1384 = sadd.s32 %s79, %s1383
        %s1385 = smul.u32 8, %s1384
        %p1386 = scmp.lt.s32.totalorder %s78, 1
        %s1387 = scalar_select %p1386, %s78, 1
        %p1388 = scmp.lt.s32.totalorder %s1385, 7
        %s1389 = scalar_select %p1388, %s1385, 7
        %s1390 = smul.addr %s1387, 8
        %s1391 = sadd.s32 %s1389, %s1390
        %s1392 = smul.addr %s1391, 4
        %s1393 = scalar_lea.vmem %s3, %s1392
        %s1394 = smul.u32 %s79, 2
        %s1395 = ssub.s32 0, %s1394
        %s1396 = smul.u32 %s77, %s1395
        %s1397 = sadd.s32 %s79, %s1396
        %s1398 = smul.u32 8, %s1397
        %s1399 = smul.u32 %s79, 2
        %s1400 = ssub.s32 0, %s1399
        %s1401 = smul.u32 %s77, %s1400
        %s1402 = sadd.s32 %s79, %s1401
        %s1403 = smul.u32 8, %s1402
        %p1404 = scmp.lt.s32.totalorder %s78, 1
        %s1405 = scalar_select %p1404, %s78, 1
        %p1406 = scmp.lt.s32.totalorder %s1403, 7
        %s1407 = scalar_select %p1406, %s1403, 7
        %s1408 = smul.addr %s1405, 8
        %s1409 = sadd.s32 %s1407, %s1408
        %s1410 = smul.addr %s1409, 4
        %s1411 = scalar_lea.vmem %s5, %s1410
        %s1412 = smul.u32 %s79, 2
        %s1413 = ssub.s32 0, %s1412
        %s1414 = smul.u32 %s77, %s1413
        %s1415 = sadd.s32 %s79, %s1414
        %s1416 = smul.u32 8, %s1415
        %p1417 = scmp.lt.s32.totalorder %s77, 1
        %s1418 = scalar_select %p1417, %s77, 1
        %s1419 = smul.addr %s1418, 4
        %s1420 = smul.addr %s1419, 8
        %s1421 = scalar_lea.vmem %s7, %s1420
        %p1422 = scmp.lt.s32.totalorder %s77, 1
        %s1423 = scalar_select %p1422, %s77, 1
        %s1424 = smul.addr %s1423, 2
        %s1425 = scalar_lea.vmem %s17, %s1424
        %p1426 = scmp.lt.s32.totalorder %s77, 1
        %s1427 = scalar_select %p1426, %s77, 1
        %s1428 = smul.addr %s1427, 4
        %s1429 = scalar_lea.vmem %s19, %s1428
        %p1430 = scmp.lt.s32.totalorder %s77, 1
        %s1431 = scalar_select %p1430, %s77, 1
        %s1432 = smul.addr %s1431, 4
        %s1433 = smul.addr %s1432, 4
        %s1434 = scalar_lea.vmem %s21, %s1433
        %p1435 = scmp.lt.s32.totalorder %s77, 1
        %s1436 = scalar_select %p1435, %s77, 1
        %s1437 = smul.addr %s1436, 4
        %s1438 = smul.addr %s1437, 4
        %s1439 = scalar_lea.vmem %s23, %s1438
        %p1440 = scmp.lt.s32.totalorder %s77, 1
        %s1441 = scalar_select %p1440, %s77, 1
        %s1442 = smul.addr %s1441, 4
        %s1443 = smul.addr %s1442, 4
        %s1444 = scalar_lea.vmem %s25, %s1443
        %p1445 = scmp.lt.s32.totalorder %s77, 1
        %s1446 = scalar_select %p1445, %s77, 1
        %s1447 = smul.addr %s1446, 4
        %s1448 = smul.addr %s1447, 8
        %s1449 = scalar_lea.vmem %s27, %s1448
        %p1450 = scmp.lt.s32.totalorder %s77, 1
        %s1451 = scalar_select %p1450, %s77, 1
        %s1452 = smul.addr %s1451, 8
        %s1453 = smul.addr %s1452, 4
        %s1454 = scalar_lea.vmem %s29, %s1453
        %p1455 = scmp.lt.s32.totalorder %s77, 1
        %s1456 = scalar_select %p1455, %s77, 1
        %s1457 = smul.addr %s1456, 4
        %s1458 = smul.addr %s1457, 8
        %s1459 = scalar_lea.vmem %s31, %s1458
        %p1460 = scmp.lt.s32.totalorder %s77, 1
        %s1461 = scalar_select %p1460, %s77, 1
        %s1462 = smul.addr %s1461, 4
        %s1463 = smul.addr %s1462, 4
        %s1464 = scalar_lea.vmem %s33, %s1463
        %p1465 = scmp.lt.s32.totalorder %s77, 1
        %s1466 = scalar_select %p1465, %s77, 1
        %s1467 = smul.addr %s1466, 4
        %s1468 = smul.addr %s1467, 4
        %s1469 = scalar_lea.vmem %s35, %s1468
        %p1470 = scmp.lt.s32.totalorder %s77, 1
        %s1471 = scalar_select %p1470, %s77, 1
        %s1472 = smul.addr %s1471, 4
        %s1473 = smul.addr %s1472, 8
        %s1474 = scalar_lea.vmem %s37, %s1473
        %p1475 = scmp.lt.s32.totalorder %s77, 1
        %s1476 = scalar_select %p1475, %s77, 1
        %s1477 = smul.addr %s1476, 2
        %s1478 = scalar_lea.vmem %s39, %s1477
        %p1479 = scmp.lt.s32.totalorder %s77, 1
        %s1480 = scalar_select %p1479, %s77, 1
        %s1481 = smul.addr %s1480, 2
        %s1482 = scalar_lea.vmem %s41, %s1481
        %p1483 = scmp.lt.s32.totalorder %s77, 1
        %s1484 = scalar_select %p1483, %s77, 1
        %s1485 = smul.addr %s1484, 4
        %s1486 = scalar_lea.vmem %s43, %s1485
        %p1487 = scmp.lt.s32.totalorder %s77, 1
        %s1488 = scalar_select %p1487, %s77, 1
        %s1489 = smul.addr %s1488, 40
        %s1490 = smul.addr %s1489, 4
        %s1491 = scalar_lea.vmem %s45, %s1490
        %p1492 = scmp.lt.s32.totalorder %s77, 1
        %s1493 = scalar_select %p1492, %s77, 1
        %s1494 = smul.addr %s1493, 8
        %s1495 = smul.addr %s1494, 8
        %s1496 = scalar_lea.vmem %s47, %s1495
        %p1497 = scmp.lt.s32.totalorder %s77, 1
        %s1498 = scalar_select %p1497, %s77, 1
        %s1499 = smul.addr %s1498, 20
        %s1500 = smul.addr %s1499, 4
        %s1501 = scalar_lea.vmem %s49, %s1500
        %p1502 = scmp.lt.s32.totalorder %s77, 1
        %s1503 = scalar_select %p1502, %s77, 1
        %s1504 = smul.addr %s1503, 20
        %s1505 = smul.addr %s1504, 4
        %s1506 = scalar_lea.vmem %s51, %s1505
        %p1507 = scmp.lt.s32.totalorder %s77, 1
        %s1508 = scalar_select %p1507, %s77, 1
        %s1509 = smul.addr %s1508, 4
        %s1510 = smul.addr %s1509, 8
        %s1511 = scalar_lea.vmem %s53, %s1510
        %s1512 = smul.u32 %s79, 2
        %s1513 = ssub.s32 0, %s1512
        %s1514 = smul.u32 %s77, %s1513
        %s1515 = sadd.s32 %s79, %s1514
        %s1516 = smul.u32 8, %s1515
        %p1517 = scmp.lt.s32.totalorder %s77, 1
        %s1518 = scalar_select %p1517, %s77, 1
        %p1519 = scmp.lt.s32.totalorder %s78, 1
        %s1520 = scalar_select %p1519, %s78, 1
        %p1521 = scmp.lt.s32.totalorder %s1516, 7
        %s1522 = scalar_select %p1521, %s1516, 7
        %s1523 = smul.addr %s1520, 8
        %s1524 = sadd.s32 %s1522, %s1523
        %s1525 = smul.addr %s1518, 16
        %s1526 = sadd.s32 %s1524, %s1525
        %s1527 = smul.addr %s1526, 4
        %s1528 = scalar_lea.vmem %s55, %s1527
        %s1529 = smul.u32 %s79, 2
        %s1530 = ssub.s32 0, %s1529
        %s1531 = smul.u32 %s77, %s1530
        %s1532 = sadd.s32 %s79, %s1531
        %s1533 = smul.u32 8, %s1532
        %s1534 = smul.u32 %s79, 2
        %s1535 = ssub.s32 0, %s1534
        %s1536 = smul.u32 %s77, %s1535
        %s1537 = sadd.s32 %s79, %s1536
        %s1538 = smul.u32 8, %s1537
        %p1539 = scmp.lt.s32.totalorder %s77, 1
        %s1540 = scalar_select %p1539, %s77, 1
        %p1541 = scmp.lt.s32.totalorder %s78, 1
        %s1542 = scalar_select %p1541, %s78, 1
        %p1543 = scmp.lt.s32.totalorder %s1538, 7
        %s1544 = scalar_select %p1543, %s1538, 7
        %s1545 = smul.addr %s1542, 8
        %s1546 = sadd.s32 %s1544, %s1545
        %s1547 = smul.addr %s1540, 16
        %s1548 = sadd.s32 %s1546, %s1547
        %s1549 = smul.addr %s1548, 4
        %s1550 = scalar_lea.vmem %s57, %s1549
        %s1551 = smul.u32 %s79, 2
        %s1552 = ssub.s32 0, %s1551
        %s1553 = smul.u32 %s77, %s1552
        %s1554 = sadd.s32 %s79, %s1553
        %s1555 = smul.u32 8, %s1554
        %s1556 = smul.u32 %s79, 2
        %s1557 = ssub.s32 0, %s1556
        %s1558 = smul.u32 %s77, %s1557
        %s1559 = sadd.s32 %s79, %s1558
        %s1560 = smul.u32 8, %s1559
        %p1561 = scmp.lt.s32.totalorder %s77, 1
        %s1562 = scalar_select %p1561, %s77, 1
        %p1563 = scmp.lt.s32.totalorder %s78, 1
        %s1564 = scalar_select %p1563, %s78, 1
        %p1565 = scmp.lt.s32.totalorder %s1560, 7
        %s1566 = scalar_select %p1565, %s1560, 7
        %s1567 = smul.addr %s1566, 8
        %s1568 = smul.addr %s1564, 64
        %s1569 = sadd.s32 %s1567, %s1568
        %s1570 = smul.addr %s1562, 128
        %s1571 = sadd.s32 %s1569, %s1570
        %s1572 = smul.addr %s1571, 8
        %s1573 = scalar_lea.vmem %s59, %s1572
        %s1574 = smul.u32 %s79, 2
        %s1575 = ssub.s32 0, %s1574
        %s1576 = smul.u32 %s77, %s1575
        %s1577 = sadd.s32 %s79, %s1576
        %s1578 = smul.u32 8, %s1577
        %p1580 = scmp.eq.s32.totalorder %s79, 0
        // Predicated region
        $region133: #{bigril_forward.2} parent=127 // pred_check
          %p1581 = pneg %p1580
        $region134: #{bigril_forward.2} parent=127 // pred_check_branch
          %1583 = sbr.rel (%p1581) target = $region136
        $region135: #{bigril_forward.2} parent=127 // pred_region
          %v1584 = vld [vmem:[%s1421] sm:$0xff]
          %v1585 = vld [vmem:[%s1421 + $0x8] sm:$0xff]
          %v1586 = vld [vmem:[%s1421 + $0x10] sm:$0xff]
          %v1587 = vld [vmem:[%s1421 + $0x18] sm:$0xff]
          %1588 = vst [vmem:[#allocation2] sm:$0xff] %v1584
          %1589 = vst [vmem:[#allocation2 + $0x8] sm:$0xff] %v1585
          %1590 = vst [vmem:[#allocation2 + $0x10] sm:$0xff] %v1586
          %1591 = vst [vmem:[#allocation2 + $0x18] sm:$0xff] %v1587
        $region136: #{bigril_forward.2} parent=127 // pred_fallthru
          _
        %s1592 = sld [smem:[#allocation3 + %s77]]
        %v1593 = vld [vmem:[%s9] sm:$0xf]
        %v1594 = vld [vmem:[%s9 + $0x4] sm:$0xf]
        %v1595 = vld [vmem:[%s9 + $0x8] sm:$0xf]
        %v1596 = vld [vmem:[%s9 + $0xc] sm:$0xf]
        %v1597 = vld [vmem:[%s9 + $0x10] sm:$0xf]
        %v1598 = vld [vmem:[%s9 + $0x14] sm:$0xf]
        %v1599 = vld [vmem:[%s9 + $0x18] sm:$0xf]
        %v1600 = vld [vmem:[%s9 + $0x1c] sm:$0xf]
        %v1601 = vld [vmem:[%s9 + $0x20] sm:$0xf]
        %v1602 = vld [vmem:[%s9 + $0x24] sm:$0xf]
        %v1603 = vld [vmem:[%s9 + $0x28] sm:$0xf]
        %v1604 = vld [vmem:[%s9 + $0x2c] sm:$0xf]
        %v1605 = vld [vmem:[%s9 + $0x30] sm:$0xf]
        %v1606 = vld [vmem:[%s9 + $0x34] sm:$0xf]
        %v1607 = vld [vmem:[%s9 + $0x38] sm:$0xf]
        %v1608 = vld [vmem:[%s9 + $0x3c] sm:$0xf]
        %v1609 = vld [vmem:[%s11] sm:$0xf]
        %v1610 = vld [vmem:[%s11 + $0x4] sm:$0xf]
        %v1611 = vld [vmem:[%s11 + $0x8] sm:$0xf]
        %v1612 = vld [vmem:[%s11 + $0xc] sm:$0xf]
        %v1613 = vld [vmem:[%s11 + $0x10] sm:$0xf]
        %v1614 = vld [vmem:[%s11 + $0x14] sm:$0xf]
        %v1615 = vld [vmem:[%s11 + $0x18] sm:$0xf]
        %v1616 = vld [vmem:[%s11 + $0x1c] sm:$0xf]
        %v1617 = vld [vmem:[%s11 + $0x20] sm:$0xf]
        %v1618 = vld [vmem:[%s11 + $0x24] sm:$0xf]
        %v1619 = vld [vmem:[%s11 + $0x28] sm:$0xf]
        %v1620 = vld [vmem:[%s11 + $0x2c] sm:$0xf]
        %v1621 = vld [vmem:[%s11 + $0x30] sm:$0xf]
        %v1622 = vld [vmem:[%s11 + $0x34] sm:$0xf]
        %v1623 = vld [vmem:[%s11 + $0x38] sm:$0xf]
        %v1624 = vld [vmem:[%s11 + $0x3c] sm:$0xf]
        %v1625 = vld [vmem:[%s13] sm:$0xf]
        %v1626 = vld [vmem:[%s13 + $0x4] sm:$0xf]
        %v1627 = vld [vmem:[%s13 + $0x8] sm:$0xf]
        %v1628 = vld [vmem:[%s13 + $0xc] sm:$0xf]
        %v1629 = vld [vmem:[%s13 + $0x10] sm:$0xf]
        %v1630 = vld [vmem:[%s13 + $0x14] sm:$0xf]
        %v1631 = vld [vmem:[%s13 + $0x18] sm:$0xf]
        %v1632 = vld [vmem:[%s13 + $0x1c] sm:$0xf]
        %v1633 = vld [vmem:[%s13 + $0x20] sm:$0xf]
        %v1634 = vld [vmem:[%s13 + $0x24] sm:$0xf]
        %v1635 = vld [vmem:[%s13 + $0x28] sm:$0xf]
        %v1636 = vld [vmem:[%s13 + $0x2c] sm:$0xf]
        %v1637 = vld [vmem:[%s13 + $0x30] sm:$0xf]
        %v1638 = vld [vmem:[%s13 + $0x34] sm:$0xf]
        %v1639 = vld [vmem:[%s13 + $0x38] sm:$0xf]
        %v1640 = vld [vmem:[%s13 + $0x3c] sm:$0xf]
        %v1641 = vld [vmem:[%s15] sm:$0xf]
        %v1642 = vld [vmem:[%s15 + $0x4] sm:$0xf]
        %v1643 = vld [vmem:[%s15 + $0x8] sm:$0xf]
        %v1644 = vld [vmem:[%s15 + $0xc] sm:$0xf]
        %v1645 = vld [vmem:[%s15 + $0x10] sm:$0xf]
        %v1646 = vld [vmem:[%s15 + $0x14] sm:$0xf]
        %v1647 = vld [vmem:[%s15 + $0x18] sm:$0xf]
        %v1648 = vld [vmem:[%s15 + $0x1c] sm:$0xf]
        %v1649 = vld [vmem:[%s15 + $0x20] sm:$0xf]
        %v1650 = vld [vmem:[%s15 + $0x24] sm:$0xf]
        %v1651 = vld [vmem:[%s15 + $0x28] sm:$0xf]
        %v1652 = vld [vmem:[%s15 + $0x2c] sm:$0xf]
        %v1653 = vld [vmem:[%s15 + $0x30] sm:$0xf]
        %v1654 = vld [vmem:[%s15 + $0x34] sm:$0xf]
        %v1655 = vld [vmem:[%s15 + $0x38] sm:$0xf]
        %v1656 = vld [vmem:[%s15 + $0x3c] sm:$0xf]
        %v1657 = vld [vmem:[#allocation2] sm:$0xff]
        %v1658 = vld [vmem:[#allocation2 + $0x8] sm:$0xff]
        %v1659 = vld [vmem:[#allocation2 + $0x10] sm:$0xff]
        %v1660 = vld [vmem:[#allocation2 + $0x18] sm:$0xff]
        loop: start=0, step=1, limit=8
        $region137: #{bigril_forward.2} parent=127 // loop_pre_header
          _
        $region138: #{bigril_forward.2} parent=127 // loop_header
          %s1662 = sphi 0, %s1666
          %p1663 = scmp.ge.s32.totalorder %s1662, 8
          %v1667 = vphi %v1657, %v4662
          %v1668 = vphi %v1658, %v4663
          %v1669 = vphi %v1659, %v4664
          %v1670 = vphi %v1660, %v4665
        $region139: #{bigril_forward.2} parent=127 // loop_header_branch
          %1665 = sbr.rel (%p1663) target = $region143
        $region140: #{bigril_forward.2} parent=127 // loop_body
          %s1671 = smul.u32 %s1662, 2
          %s1672 = ssub.s32 7, %s1671
          %s1673 = smul.u32 %s77, %s1672
          %s1674 = sadd.s32 %s1662, %s1673
          %s1675 = smul.u32 %s1674, 4
          %s1676 = scalar_lea.vmem %s1393, %s1675
          %v1677 = vld [vmem:[%s1676] sm:$0xf]
          %s1678 = scalar_lea.vmem %s1411, %s1675
          %v1679 = vld [vmem:[%s1678] sm:$0xf]
          %vm1680 = vcmp.ne.f32.partialorder %v1679, 0.0
          %v1681 = vld [vmem:[%s1425] sm:$0x3]
          %v1682 = vpack.c.bf16 %v1668, %v1667
          %v1683 = vpack.c.bf16 %v1670, %v1669
          %v1684 = vld [vmem:[%s1429] sm:$0xf]
          %1686 = vset.pattern.permute.xlu0 0
          %1687 = vperm.xlu0 %1686, %v1684
          %v1688 = vpop.permute.xlu0 %1687
          %vm1690 = vcmask 261120
          %v1692 = vsel %vm1690, %v1681, 0
          %1694 = vmatprep.subr.bf16.mxu0 0
          %1695 = vmatpush1.bf16.msra.mxu0 0
          %1696 = vmatprep.subr.bf16.mxu0 0
          %1697 = vmatpush1.bf16.msra.mxu0 0
          %1698 = vmatprep.subr.bf16.mxu0 0
          %1699 = vmatpush1.bf16.msra.mxu0 0
          %1700 = vmatprep.subr.bf16.mxu0 0
          %1701 = vmatpush1.bf16.msra.mxu0 0
          %1702 = vmatprep.subr.bf16.mxu0 0
          %1703 = vmatpush1.bf16.msra.mxu0 0
          %1704 = vmatprep.subr.bf16.mxu0 0
          %1705 = vmatpush1.bf16.msra.mxu0 0
          %1706 = vmatprep.subr.bf16.mxu0 0
          %1707 = vmatpush1.bf16.msra.mxu0 %v1683
          %1708 = vmatprep.subr.bf16.mxu0 0
          %1709 = vmatpush1.bf16.msra.mxu0 %v1682
          %1710 = vmatprep.subr.bf16.mxu0 0
          %1711 = vmatpush2.bf16.msra.mxu0 0
          %1712 = vmatprep.subr.bf16.mxu0 0
          %1713 = vmatpush2.bf16.msra.mxu0 0
          %1714 = vmatprep.subr.bf16.mxu0 0
          %1715 = vmatpush2.bf16.msra.mxu0 0
          %1716 = vmatprep.subr.bf16.mxu0 0
          %1717 = vmatpush2.bf16.msra.mxu0 0
          %1718 = vmatprep.subr.bf16.mxu0 0
          %1719 = vmatpush2.bf16.msra.mxu0 0
          %1720 = vmatprep.subr.bf16.mxu0 0
          %1721 = vmatpush2.bf16.msra.mxu0 0
          %1722 = vmatprep.subr.bf16.mxu0 0
          %1723 = vmatpush2.bf16.msra.mxu0 0
          %1724 = vmatprep.subr.bf16.mxu0 0
          %1725 = vmatpush2.bf16.msra.mxu0 0
          %1726 = vmatprep.mubr.bf16.mxu0 0
          %1727 = vmatmul.mubr.bf16.gmra.mxu0 %v1692
          %v1728 = vpop.f32.mrf.mxu0
          %v1729 = vadd.f32 %v1688, %v1728
          %v1730 = vpop.f32.mrf.mxu0
          %v1731 = vpop.f32.mrf.mxu0
          %v1732 = vpop.f32.mrf.mxu0
          %1733 = vdwg.mxu0
          %v1734 = vsel %vm1680, %v1677, %v1729
          %v1735 = vld [vmem:[%s1434] sm:$0xf]
          %v1736 = vld [vmem:[%s1434 + $0x4] sm:$0xf]
          %v1737 = vld [vmem:[%s1434 + $0x8] sm:$0xf]
          %v1738 = vld [vmem:[%s1434 + $0xc] sm:$0xf]
          %v1739 = vpack.c.bf16 %v1734, %v1734
          %v1740 = vld [vmem:[%s1439] sm:$0xf]
          %v1741 = vld [vmem:[%s1439 + $0x4] sm:$0xf]
          %v1742 = vld [vmem:[%s1439 + $0x8] sm:$0xf]
          %v1743 = vld [vmem:[%s1439 + $0xc] sm:$0xf]
          %v1744 = vpack.c.bf16 %v1679, %v1679
          %v1749 = vunpack.c.l.b16 %v1740
          %v1750 = vunpack.c.l.b16 %v1741
          %v1751 = vunpack.c.l.b16 %v1742
          %v1752 = vunpack.c.l.b16 %v1743
          %v1753 = vpack.c.b16 %v1750, %v1749
          %v1754 = vpack.c.b16 %v1752, %v1751
          %vm1755 = vcmask 31744
          %v1757 = vsel %vm1755, %v1753, 0
          %v1760 = vsel %vm1755, %v1754, 0
          %vm1762 = vcmask 1041408
          %v1764 = vsel %vm1762, %v1744, 0
          %1766 = vmatprep.subr.bf16.mxu0 0
          %1767 = vmatpush1.bf16.msra.mxu0 0
          %1768 = vmatprep.subr.bf16.mxu0 0
          %1769 = vmatpush1.bf16.msra.mxu0 0
          %1770 = vmatprep.subr.bf16.mxu0 0
          %1771 = vmatpush1.bf16.msra.mxu0 0
          %1772 = vmatprep.subr.bf16.mxu0 0
          %1773 = vmatpush1.bf16.msra.mxu0 0
          %1774 = vmatprep.subr.bf16.mxu0 0
          %1775 = vmatpush1.bf16.msra.mxu0 0
          %1776 = vmatprep.subr.bf16.mxu0 0
          %1777 = vmatpush1.bf16.msra.mxu0 0
          %1778 = vmatprep.subr.bf16.mxu0 0
          %1779 = vmatpush1.bf16.msra.mxu0 0
          %1780 = vmatprep.subr.bf16.mxu0 0
          %1781 = vmatpush1.bf16.msra.mxu0 %v1764
          %1782 = vmatprep.subr.bf16.mxu0 0
          %1783 = vmatpush2.bf16.msra.mxu0 0
          %1784 = vmatprep.subr.bf16.mxu0 0
          %1785 = vmatpush2.bf16.msra.mxu0 0
          %1786 = vmatprep.subr.bf16.mxu0 0
          %1787 = vmatpush2.bf16.msra.mxu0 0
          %1788 = vmatprep.subr.bf16.mxu0 0
          %1789 = vmatpush2.bf16.msra.mxu0 0
          %1790 = vmatprep.subr.bf16.mxu0 0
          %1791 = vmatpush2.bf16.msra.mxu0 0
          %1792 = vmatprep.subr.bf16.mxu0 0
          %1793 = vmatpush2.bf16.msra.mxu0 0
          %1794 = vmatprep.subr.bf16.mxu0 0
          %1795 = vmatpush2.bf16.msra.mxu0 0
          %1796 = vmatprep.subr.bf16.mxu0 0
          %1797 = vmatpush2.bf16.msra.mxu0 0
          %1798 = vmatprep.mubr.bf16.mxu0 0
          %1799 = vmatmul.mubr.bf16.gmra.mxu0 %v1757
          %v1800 = vpop.f32.mrf.mxu0
          %v1801 = vadd.f32 0.0, %v1800
          %v1802 = vpop.f32.mrf.mxu0
          %v1803 = vpop.f32.mrf.mxu0
          %v1804 = vadd.f32 0.0, %v1803
          %v1805 = vpop.f32.mrf.mxu0
          %1806 = vmatprep.mubr.bf16.mxu0 0
          %1807 = vmatmul.mubr.bf16.gmra.mxu0 %v1760
          %v1808 = vpop.f32.mrf.mxu0
          %v1809 = vadd.f32 0.0, %v1808
          %v1810 = vpop.f32.mrf.mxu0
          %v1811 = vpop.f32.mrf.mxu0
          %v1812 = vadd.f32 0.0, %v1811
          %v1813 = vpop.f32.mrf.mxu0
          %1814 = vdwg.mxu0
          %v1819 = vunpack.c.l.b16 %v1735
          %v1820 = vunpack.c.l.b16 %v1736
          %v1821 = vunpack.c.l.b16 %v1737
          %v1822 = vunpack.c.l.b16 %v1738
          %v1823 = vpack.c.b16 %v1820, %v1819
          %v1824 = vpack.c.b16 %v1822, %v1821
          %v1826 = vsel %vm1755, %v1823, 0
          %v1829 = vsel %vm1755, %v1824, 0
          %v1832 = vsel %vm1762, %v1739, 0
          %1834 = vmatprep.subr.bf16.mxu0 0
          %1835 = vmatpush1.bf16.msra.mxu0 0
          %1836 = vmatprep.subr.bf16.mxu0 0
          %1837 = vmatpush1.bf16.msra.mxu0 0
          %1838 = vmatprep.subr.bf16.mxu0 0
          %1839 = vmatpush1.bf16.msra.mxu0 0
          %1840 = vmatprep.subr.bf16.mxu0 0
          %1841 = vmatpush1.bf16.msra.mxu0 0
          %1842 = vmatprep.subr.bf16.mxu0 0
          %1843 = vmatpush1.bf16.msra.mxu0 0
          %1844 = vmatprep.subr.bf16.mxu0 0
          %1845 = vmatpush1.bf16.msra.mxu0 0
          %1846 = vmatprep.subr.bf16.mxu0 0
          %1847 = vmatpush1.bf16.msra.mxu0 0
          %1848 = vmatprep.subr.bf16.mxu0 0
          %1849 = vmatpush1.bf16.msra.mxu0 %v1832
          %1850 = vmatprep.subr.bf16.mxu0 0
          %1851 = vmatpush2.bf16.msra.mxu0 0
          %1852 = vmatprep.subr.bf16.mxu0 0
          %1853 = vmatpush2.bf16.msra.mxu0 0
          %1854 = vmatprep.subr.bf16.mxu0 0
          %1855 = vmatpush2.bf16.msra.mxu0 0
          %1856 = vmatprep.subr.bf16.mxu0 0
          %1857 = vmatpush2.bf16.msra.mxu0 0
          %1858 = vmatprep.subr.bf16.mxu0 0
          %1859 = vmatpush2.bf16.msra.mxu0 0
          %1860 = vmatprep.subr.bf16.mxu0 0
          %1861 = vmatpush2.bf16.msra.mxu0 0
          %1862 = vmatprep.subr.bf16.mxu0 0
          %1863 = vmatpush2.bf16.msra.mxu0 0
          %1864 = vmatprep.subr.bf16.mxu0 0
          %1865 = vmatpush2.bf16.msra.mxu0 0
          %1866 = vmatprep.mubr.bf16.mxu0 0
          %1867 = vmatmul.mubr.bf16.gmra.mxu0 %v1826
          %v1868 = vpop.f32.mrf.mxu0
          %v1869 = vadd.f32 %v1801, %v1868
          %v1870 = vpop.f32.mrf.mxu0
          %v1871 = vpop.f32.mrf.mxu0
          %v1872 = vadd.f32 %v1804, %v1871
          %v1873 = vpop.f32.mrf.mxu0
          %1874 = vmatprep.mubr.bf16.mxu0 0
          %1875 = vmatmul.mubr.bf16.gmra.mxu0 %v1829
          %v1876 = vpop.f32.mrf.mxu0
          %v1877 = vadd.f32 %v1809, %v1876
          %v1878 = vpop.f32.mrf.mxu0
          %v1879 = vpop.f32.mrf.mxu0
          %v1880 = vadd.f32 %v1812, %v1879
          %v1881 = vpop.f32.mrf.mxu0
          %1882 = vdwg.mxu0
          %v1883 = vld [vmem:[%s1444] sm:$0xf]
          %v1884 = vld [vmem:[%s1444 + $0x4] sm:$0xf]
          %v1885 = vld [vmem:[%s1444 + $0x8] sm:$0xf]
          %v1886 = vld [vmem:[%s1444 + $0xc] sm:$0xf]
          %v1891 = vunpack.c.l.b16 %v1883
          %v1892 = vunpack.c.l.b16 %v1884
          %v1893 = vunpack.c.l.b16 %v1885
          %v1894 = vunpack.c.l.b16 %v1886
          %v1895 = vpack.c.b16 %v1892, %v1891
          %v1896 = vpack.c.b16 %v1894, %v1893
          %v1898 = vsel %vm1690, %v1895, 0
          %v1901 = vsel %vm1690, %v1896, 0
          %1903 = vmatprep.subr.bf16.mxu0 0
          %1904 = vmatpush1.bf16.msra.mxu0 0
          %1905 = vmatprep.subr.bf16.mxu0 0
          %1906 = vmatpush1.bf16.msra.mxu0 0
          %1907 = vmatprep.subr.bf16.mxu0 0
          %1908 = vmatpush1.bf16.msra.mxu0 0
          %1909 = vmatprep.subr.bf16.mxu0 0
          %1910 = vmatpush1.bf16.msra.mxu0 0
          %1911 = vmatprep.subr.bf16.mxu0 0
          %1912 = vmatpush1.bf16.msra.mxu0 0
          %1913 = vmatprep.subr.bf16.mxu0 0
          %1914 = vmatpush1.bf16.msra.mxu0 0
          %1915 = vmatprep.subr.bf16.mxu0 0
          %1916 = vmatpush1.bf16.msra.mxu0 %v1683
          %1917 = vmatprep.subr.bf16.mxu0 0
          %1918 = vmatpush1.bf16.msra.mxu0 %v1682
          %1919 = vmatprep.subr.bf16.mxu0 0
          %1920 = vmatpush2.bf16.msra.mxu0 0
          %1921 = vmatprep.subr.bf16.mxu0 0
          %1922 = vmatpush2.bf16.msra.mxu0 0
          %1923 = vmatprep.subr.bf16.mxu0 0
          %1924 = vmatpush2.bf16.msra.mxu0 0
          %1925 = vmatprep.subr.bf16.mxu0 0
          %1926 = vmatpush2.bf16.msra.mxu0 0
          %1927 = vmatprep.subr.bf16.mxu0 0
          %1928 = vmatpush2.bf16.msra.mxu0 0
          %1929 = vmatprep.subr.bf16.mxu0 0
          %1930 = vmatpush2.bf16.msra.mxu0 0
          %1931 = vmatprep.subr.bf16.mxu0 0
          %1932 = vmatpush2.bf16.msra.mxu0 0
          %1933 = vmatprep.subr.bf16.mxu0 0
          %1934 = vmatpush2.bf16.msra.mxu0 0
          %1935 = vmatprep.mubr.bf16.mxu0 0
          %1936 = vmatmul.mubr.bf16.gmra.mxu0 %v1898
          %v1937 = vpop.f32.mrf.mxu0
          %v1938 = vadd.f32 0.0, %v1937
          %v1939 = vpop.f32.mrf.mxu0
          %v1940 = vpop.f32.mrf.mxu0
          %v1941 = vadd.f32 0.0, %v1940
          %v1942 = vpop.f32.mrf.mxu0
          %1943 = vmatprep.mubr.bf16.mxu0 0
          %1944 = vmatmul.mubr.bf16.gmra.mxu0 %v1901
          %v1945 = vpop.f32.mrf.mxu0
          %v1946 = vadd.f32 0.0, %v1945
          %v1947 = vpop.f32.mrf.mxu0
          %v1948 = vpop.f32.mrf.mxu0
          %v1949 = vadd.f32 0.0, %v1948
          %v1950 = vpop.f32.mrf.mxu0
          %1951 = vdwg.mxu0
          %v1952 = vadd.f32 %v1869, %v1938
          %v1953 = vadd.f32 %v1872, %v1941
          %v1954 = vadd.f32 %v1877, %v1946
          %v1955 = vadd.f32 %v1880, %v1949
          %v1956 = vld [vmem:[%s1449] sm:$0xff]
          %v1957 = vld [vmem:[%s1449 + $0x8] sm:$0xff]
          %v1958 = vld [vmem:[%s1449 + $0x10] sm:$0xff]
          %v1959 = vld [vmem:[%s1449 + $0x18] sm:$0xff]
          %1961 = vset.pattern.permute.xlu0 0
          %1962 = vperm.xlu0 %1961, %v1956
          %v1963 = vpop.permute.xlu0 %1962
          %1966 = vset.pattern.permute.xlu0 0
          %1967 = vperm.xlu0 %1966, %v1957
          %v1968 = vpop.permute.xlu0 %1967
          %1971 = vset.pattern.permute.xlu0 0
          %1972 = vperm.xlu0 %1971, %v1958
          %v1973 = vpop.permute.xlu0 %1972
          %1976 = vset.pattern.permute.xlu0 0
          %1977 = vperm.xlu0 %1976, %v1959
          %v1978 = vpop.permute.xlu0 %1977
          %v1980 = vadd.f32 %v1952, %v1963
          %v1981 = vadd.f32 %v1953, %v1968
          %v1982 = vadd.f32 %v1954, %v1973
          %v1983 = vadd.f32 %v1955, %v1978
          %v1984 = vld [vmem:[%s1454] sm:$0xf]
          %v1985 = vld [vmem:[%s1454 + $0x4] sm:$0xf]
          %v1986 = vld [vmem:[%s1454 + $0x8] sm:$0xf]
          %v1987 = vld [vmem:[%s1454 + $0xc] sm:$0xf]
          %v1988 = vpack.c.bf16 %v1981, %v1980
          %v1989 = vpack.c.bf16 %v1983, %v1982
          %v2006 = vunpack.c.l.b16 %v1593
          %v2007 = vunpack.c.l.b16 %v1594
          %v2008 = vunpack.c.l.b16 %v1595
          %v2009 = vunpack.c.l.b16 %v1596
          %v2010 = vunpack.c.l.b16 %v1597
          %v2011 = vunpack.c.l.b16 %v1598
          %v2012 = vunpack.c.l.b16 %v1599
          %v2013 = vunpack.c.l.b16 %v1600
          %v2014 = vunpack.c.l.b16 %v1601
          %v2015 = vunpack.c.l.b16 %v1602
          %v2016 = vunpack.c.l.b16 %v1603
          %v2017 = vunpack.c.l.b16 %v1604
          %v2018 = vunpack.c.l.b16 %v1605
          %v2019 = vunpack.c.l.b16 %v1606
          %v2020 = vunpack.c.l.b16 %v1607
          %v2021 = vunpack.c.l.b16 %v1608
          %v2022 = vpack.c.b16 %v2007, %v2006
          %v2023 = vpack.c.b16 %v2009, %v2008
          %v2024 = vpack.c.b16 %v2011, %v2010
          %v2025 = vpack.c.b16 %v2013, %v2012
          %v2026 = vpack.c.b16 %v2015, %v2014
          %v2027 = vpack.c.b16 %v2017, %v2016
          %v2028 = vpack.c.b16 %v2019, %v2018
          %v2029 = vpack.c.b16 %v2021, %v2020
          %2038 = vmatprep.subr.bf16.mxu0 0
          %2039 = vmatpush1.bf16.msra.mxu0 %v2029
          %2040 = vmatprep.subr.bf16.mxu0 0
          %2041 = vmatpush1.bf16.msra.mxu0 %v2028
          %2042 = vmatprep.subr.bf16.mxu0 0
          %2043 = vmatpush1.bf16.msra.mxu0 %v2027
          %2044 = vmatprep.subr.bf16.mxu0 0
          %2045 = vmatpush1.bf16.msra.mxu0 %v2026
          %2046 = vmatprep.subr.bf16.mxu0 0
          %2047 = vmatpush1.bf16.msra.mxu0 %v2025
          %2048 = vmatprep.subr.bf16.mxu0 0
          %2049 = vmatpush1.bf16.msra.mxu0 %v2024
          %2050 = vmatprep.subr.bf16.mxu0 0
          %2051 = vmatpush1.bf16.msra.mxu0 %v2023
          %2052 = vmatprep.subr.bf16.mxu0 0
          %2053 = vmatpush1.bf16.msra.mxu0 %v2022
          %2054 = vmatprep.subr.bf16.mxu0 0
          %2055 = vmatpush2.bf16.msra.mxu0 0
          %2056 = vmatprep.subr.bf16.mxu0 0
          %2057 = vmatpush2.bf16.msra.mxu0 0
          %2058 = vmatprep.subr.bf16.mxu0 0
          %2059 = vmatpush2.bf16.msra.mxu0 0
          %2060 = vmatprep.subr.bf16.mxu0 0
          %2061 = vmatpush2.bf16.msra.mxu0 0
          %2062 = vmatprep.subr.bf16.mxu0 0
          %2063 = vmatpush2.bf16.msra.mxu0 0
          %2064 = vmatprep.subr.bf16.mxu0 0
          %2065 = vmatpush2.bf16.msra.mxu0 0
          %2066 = vmatprep.subr.bf16.mxu0 0
          %2067 = vmatpush2.bf16.msra.mxu0 0
          %2068 = vmatprep.subr.bf16.mxu0 0
          %2069 = vmatpush2.bf16.msra.mxu0 0
          %2070 = vmatprep.mubr.bf16.mxu0 0
          %2071 = vmatmul.mubr.bf16.gmra.mxu0 %v1988
          %v2072 = vpop.f32.mrf.mxu0
          %v2073 = vadd.f32 0.0, %v2072
          %v2074 = vpop.f32.mrf.mxu0
          %v2075 = vpop.f32.mrf.mxu0
          %v2076 = vadd.f32 0.0, %v2075
          %v2077 = vpop.f32.mrf.mxu0
          %2078 = vmatprep.mubr.bf16.mxu0 0
          %2079 = vmatmul.mubr.bf16.gmra.mxu0 %v1989
          %v2080 = vpop.f32.mrf.mxu0
          %v2081 = vadd.f32 0.0, %v2080
          %v2082 = vpop.f32.mrf.mxu0
          %v2083 = vpop.f32.mrf.mxu0
          %v2084 = vadd.f32 0.0, %v2083
          %v2085 = vpop.f32.mrf.mxu0
          %2086 = vdwg.mxu0
          %v2087 = vpack.c.bf16 %v2076, %v2073
          %v2088 = vpack.c.bf16 %v2084, %v2081
          %s2089 = scalar_lea.vmem %s1454, 16
          %v2090 = vld [vmem:[%s2089] sm:$0xf]
          %v2091 = vld [vmem:[%s2089 + $0x4] sm:$0xf]
          %v2092 = vld [vmem:[%s2089 + $0x8] sm:$0xf]
          %v2093 = vld [vmem:[%s2089 + $0xc] sm:$0xf]
          %v2110 = vunpack.c.l.b16 %v1625
          %v2111 = vunpack.c.l.b16 %v1626
          %v2112 = vunpack.c.l.b16 %v1627
          %v2113 = vunpack.c.l.b16 %v1628
          %v2114 = vunpack.c.l.b16 %v1629
          %v2115 = vunpack.c.l.b16 %v1630
          %v2116 = vunpack.c.l.b16 %v1631
          %v2117 = vunpack.c.l.b16 %v1632
          %v2118 = vunpack.c.l.b16 %v1633
          %v2119 = vunpack.c.l.b16 %v1634
          %v2120 = vunpack.c.l.b16 %v1635
          %v2121 = vunpack.c.l.b16 %v1636
          %v2122 = vunpack.c.l.b16 %v1637
          %v2123 = vunpack.c.l.b16 %v1638
          %v2124 = vunpack.c.l.b16 %v1639
          %v2125 = vunpack.c.l.b16 %v1640
          %v2126 = vpack.c.b16 %v2111, %v2110
          %v2127 = vpack.c.b16 %v2113, %v2112
          %v2128 = vpack.c.b16 %v2115, %v2114
          %v2129 = vpack.c.b16 %v2117, %v2116
          %v2130 = vpack.c.b16 %v2119, %v2118
          %v2131 = vpack.c.b16 %v2121, %v2120
          %v2132 = vpack.c.b16 %v2123, %v2122
          %v2133 = vpack.c.b16 %v2125, %v2124
          %2142 = vmatprep.subr.bf16.mxu0 0
          %2143 = vmatpush1.bf16.msra.mxu0 %v2133
          %2144 = vmatprep.subr.bf16.mxu0 0
          %2145 = vmatpush1.bf16.msra.mxu0 %v2132
          %2146 = vmatprep.subr.bf16.mxu0 0
          %2147 = vmatpush1.bf16.msra.mxu0 %v2131
          %2148 = vmatprep.subr.bf16.mxu0 0
          %2149 = vmatpush1.bf16.msra.mxu0 %v2130
          %2150 = vmatprep.subr.bf16.mxu0 0
          %2151 = vmatpush1.bf16.msra.mxu0 %v2129
          %2152 = vmatprep.subr.bf16.mxu0 0
          %2153 = vmatpush1.bf16.msra.mxu0 %v2128
          %2154 = vmatprep.subr.bf16.mxu0 0
          %2155 = vmatpush1.bf16.msra.mxu0 %v2127
          %2156 = vmatprep.subr.bf16.mxu0 0
          %2157 = vmatpush1.bf16.msra.mxu0 %v2126
          %2158 = vmatprep.subr.bf16.mxu0 0
          %2159 = vmatpush2.bf16.msra.mxu0 0
          %2160 = vmatprep.subr.bf16.mxu0 0
          %2161 = vmatpush2.bf16.msra.mxu0 0
          %2162 = vmatprep.subr.bf16.mxu0 0
          %2163 = vmatpush2.bf16.msra.mxu0 0
          %2164 = vmatprep.subr.bf16.mxu0 0
          %2165 = vmatpush2.bf16.msra.mxu0 0
          %2166 = vmatprep.subr.bf16.mxu0 0
          %2167 = vmatpush2.bf16.msra.mxu0 0
          %2168 = vmatprep.subr.bf16.mxu0 0
          %2169 = vmatpush2.bf16.msra.mxu0 0
          %2170 = vmatprep.subr.bf16.mxu0 0
          %2171 = vmatpush2.bf16.msra.mxu0 0
          %2172 = vmatprep.subr.bf16.mxu0 0
          %2173 = vmatpush2.bf16.msra.mxu0 0
          %2174 = vmatprep.mubr.bf16.mxu0 0
          %2175 = vmatmul.mubr.bf16.gmra.mxu0 %v1988
          %v2176 = vpop.f32.mrf.mxu0
          %v2177 = vadd.f32 0.0, %v2176
          %v2178 = vpop.f32.mrf.mxu0
          %v2179 = vpop.f32.mrf.mxu0
          %v2180 = vadd.f32 0.0, %v2179
          %v2181 = vpop.f32.mrf.mxu0
          %2182 = vmatprep.mubr.bf16.mxu0 0
          %2183 = vmatmul.mubr.bf16.gmra.mxu0 %v1989
          %v2184 = vpop.f32.mrf.mxu0
          %v2185 = vadd.f32 0.0, %v2184
          %v2186 = vpop.f32.mrf.mxu0
          %v2187 = vpop.f32.mrf.mxu0
          %v2188 = vadd.f32 0.0, %v2187
          %v2189 = vpop.f32.mrf.mxu0
          %2190 = vdwg.mxu0
          %v2191 = vpack.c.bf16 %v2180, %v2177
          %v2192 = vpack.c.bf16 %v2188, %v2185
          %v2197 = vunpack.c.l.b16 %v2090
          %v2198 = vunpack.c.l.b16 %v2091
          %v2199 = vunpack.c.l.b16 %v2092
          %v2200 = vunpack.c.l.b16 %v2093
          %v2201 = vpack.c.b16 %v2198, %v2197
          %v2202 = vpack.c.b16 %v2200, %v2199
          %v2204 = vsel %vm1690, %v2201, 0
          %v2207 = vsel %vm1690, %v2202, 0
          %2209 = vmatprep.subr.bf16.mxu0 0
          %2210 = vmatpush1.bf16.msra.mxu0 0
          %2211 = vmatprep.subr.bf16.mxu0 0
          %2212 = vmatpush1.bf16.msra.mxu0 0
          %2213 = vmatprep.subr.bf16.mxu0 0
          %2214 = vmatpush1.bf16.msra.mxu0 0
          %2215 = vmatprep.subr.bf16.mxu0 0
          %2216 = vmatpush1.bf16.msra.mxu0 0
          %2217 = vmatprep.subr.bf16.mxu0 0
          %2218 = vmatpush1.bf16.msra.mxu0 0
          %2219 = vmatprep.subr.bf16.mxu0 0
          %2220 = vmatpush1.bf16.msra.mxu0 0
          %2221 = vmatprep.subr.bf16.mxu0 0
          %2222 = vmatpush1.bf16.msra.mxu0 %v2192
          %2223 = vmatprep.subr.bf16.mxu0 0
          %2224 = vmatpush1.bf16.msra.mxu0 %v2191
          %2225 = vmatprep.subr.bf16.mxu0 0
          %2226 = vmatpush2.bf16.msra.mxu0 0
          %2227 = vmatprep.subr.bf16.mxu0 0
          %2228 = vmatpush2.bf16.msra.mxu0 0
          %2229 = vmatprep.subr.bf16.mxu0 0
          %2230 = vmatpush2.bf16.msra.mxu0 0
          %2231 = vmatprep.subr.bf16.mxu0 0
          %2232 = vmatpush2.bf16.msra.mxu0 0
          %2233 = vmatprep.subr.bf16.mxu0 0
          %2234 = vmatpush2.bf16.msra.mxu0 0
          %2235 = vmatprep.subr.bf16.mxu0 0
          %2236 = vmatpush2.bf16.msra.mxu0 0
          %2237 = vmatprep.subr.bf16.mxu0 0
          %2238 = vmatpush2.bf16.msra.mxu0 0
          %2239 = vmatprep.subr.bf16.mxu0 0
          %2240 = vmatpush2.bf16.msra.mxu0 0
          %2241 = vmatprep.mubr.bf16.mxu0 0
          %2242 = vmatmul.mubr.bf16.gmra.mxu0 %v2204
          %v2243 = vpop.f32.mrf.mxu0
          %v2244 = vadd.f32 0.0, %v2243
          %v2245 = vpop.f32.mrf.mxu0
          %v2246 = vpop.f32.mrf.mxu0
          %v2247 = vadd.f32 0.0, %v2246
          %v2248 = vpop.f32.mrf.mxu0
          %2249 = vmatprep.mubr.bf16.mxu0 0
          %2250 = vmatmul.mubr.bf16.gmra.mxu0 %v2207
          %v2251 = vpop.f32.mrf.mxu0
          %v2252 = vadd.f32 0.0, %v2251
          %v2253 = vpop.f32.mrf.mxu0
          %v2254 = vpop.f32.mrf.mxu0
          %v2255 = vadd.f32 0.0, %v2254
          %v2256 = vpop.f32.mrf.mxu0
          %2257 = vdwg.mxu0
          %v2262 = vunpack.c.l.b16 %v1984
          %v2263 = vunpack.c.l.b16 %v1985
          %v2264 = vunpack.c.l.b16 %v1986
          %v2265 = vunpack.c.l.b16 %v1987
          %v2266 = vpack.c.b16 %v2263, %v2262
          %v2267 = vpack.c.b16 %v2265, %v2264
          %v2269 = vsel %vm1690, %v2266, 0
          %v2272 = vsel %vm1690, %v2267, 0
          %2274 = vmatprep.subr.bf16.mxu0 0
          %2275 = vmatpush1.bf16.msra.mxu0 0
          %2276 = vmatprep.subr.bf16.mxu0 0
          %2277 = vmatpush1.bf16.msra.mxu0 0
          %2278 = vmatprep.subr.bf16.mxu0 0
          %2279 = vmatpush1.bf16.msra.mxu0 0
          %2280 = vmatprep.subr.bf16.mxu0 0
          %2281 = vmatpush1.bf16.msra.mxu0 0
          %2282 = vmatprep.subr.bf16.mxu0 0
          %2283 = vmatpush1.bf16.msra.mxu0 0
          %2284 = vmatprep.subr.bf16.mxu0 0
          %2285 = vmatpush1.bf16.msra.mxu0 0
          %2286 = vmatprep.subr.bf16.mxu0 0
          %2287 = vmatpush1.bf16.msra.mxu0 %v2088
          %2288 = vmatprep.subr.bf16.mxu0 0
          %2289 = vmatpush1.bf16.msra.mxu0 %v2087
          %2290 = vmatprep.subr.bf16.mxu0 0
          %2291 = vmatpush2.bf16.msra.mxu0 0
          %2292 = vmatprep.subr.bf16.mxu0 0
          %2293 = vmatpush2.bf16.msra.mxu0 0
          %2294 = vmatprep.subr.bf16.mxu0 0
          %2295 = vmatpush2.bf16.msra.mxu0 0
          %2296 = vmatprep.subr.bf16.mxu0 0
          %2297 = vmatpush2.bf16.msra.mxu0 0
          %2298 = vmatprep.subr.bf16.mxu0 0
          %2299 = vmatpush2.bf16.msra.mxu0 0
          %2300 = vmatprep.subr.bf16.mxu0 0
          %2301 = vmatpush2.bf16.msra.mxu0 0
          %2302 = vmatprep.subr.bf16.mxu0 0
          %2303 = vmatpush2.bf16.msra.mxu0 0
          %2304 = vmatprep.subr.bf16.mxu0 0
          %2305 = vmatpush2.bf16.msra.mxu0 0
          %2306 = vmatprep.mubr.bf16.mxu0 0
          %2307 = vmatmul.mubr.bf16.gmra.mxu0 %v2269
          %v2308 = vpop.f32.mrf.mxu0
          %v2309 = vadd.f32 %v2244, %v2308
          %v2310 = vpop.f32.mrf.mxu0
          %v2311 = vpop.f32.mrf.mxu0
          %v2312 = vadd.f32 %v2247, %v2311
          %v2313 = vpop.f32.mrf.mxu0
          %2314 = vmatprep.mubr.bf16.mxu0 0
          %2315 = vmatmul.mubr.bf16.gmra.mxu0 %v2272
          %v2316 = vpop.f32.mrf.mxu0
          %v2317 = vadd.f32 %v2252, %v2316
          %v2318 = vpop.f32.mrf.mxu0
          %v2319 = vpop.f32.mrf.mxu0
          %v2320 = vadd.f32 %v2255, %v2319
          %v2321 = vpop.f32.mrf.mxu0
          %2322 = vdwg.mxu0
          %v2323 = vld [vmem:[%s1459] sm:$0xff]
          %v2324 = vld [vmem:[%s1459 + $0x8] sm:$0xff]
          %v2325 = vld [vmem:[%s1459 + $0x10] sm:$0xff]
          %v2326 = vld [vmem:[%s1459 + $0x18] sm:$0xff]
          %2328 = vset.pattern.permute.xlu0 0
          %2329 = vperm.xlu0 %2328, %v2323
          %v2330 = vpop.permute.xlu0 %2329
          %2333 = vset.pattern.permute.xlu0 0
          %2334 = vperm.xlu0 %2333, %v2324
          %v2335 = vpop.permute.xlu0 %2334
          %2338 = vset.pattern.permute.xlu0 0
          %2339 = vperm.xlu0 %2338, %v2325
          %v2340 = vpop.permute.xlu0 %2339
          %2343 = vset.pattern.permute.xlu0 0
          %2344 = vperm.xlu0 %2343, %v2326
          %v2345 = vpop.permute.xlu0 %2344
          %v2347 = vadd.f32 %v2309, %v2330
          %v2348 = vadd.f32 %v2312, %v2335
          %v2349 = vadd.f32 %v2317, %v2340
          %v2350 = vadd.f32 %v2320, %v2345
          %v2351 = vld [vmem:[%s1464] sm:$0xf]
          %v2352 = vld [vmem:[%s1464 + $0x4] sm:$0xf]
          %v2353 = vld [vmem:[%s1464 + $0x8] sm:$0xf]
          %v2354 = vld [vmem:[%s1464 + $0xc] sm:$0xf]
          %v2355 = vpack.c.bf16 %v2348, %v2347
          %v2356 = vpack.c.bf16 %v2350, %v2349
          %v2357 = vld [vmem:[%s1469] sm:$0xf]
          %v2358 = vld [vmem:[%s1469 + $0x4] sm:$0xf]
          %v2359 = vld [vmem:[%s1469 + $0x8] sm:$0xf]
          %v2360 = vld [vmem:[%s1469 + $0xc] sm:$0xf]
          %v2365 = vunpack.c.l.b16 %v2357
          %v2366 = vunpack.c.l.b16 %v2358
          %v2367 = vunpack.c.l.b16 %v2359
          %v2368 = vunpack.c.l.b16 %v2360
          %v2369 = vpack.c.b16 %v2366, %v2365
          %v2370 = vpack.c.b16 %v2368, %v2367
          %v2372 = vsel %vm1690, %v2369, 0
          %v2375 = vsel %vm1690, %v2370, 0
          %2377 = vmatprep.subr.bf16.mxu0 0
          %2378 = vmatpush1.bf16.msra.mxu0 0
          %2379 = vmatprep.subr.bf16.mxu0 0
          %2380 = vmatpush1.bf16.msra.mxu0 0
          %2381 = vmatprep.subr.bf16.mxu0 0
          %2382 = vmatpush1.bf16.msra.mxu0 0
          %2383 = vmatprep.subr.bf16.mxu0 0
          %2384 = vmatpush1.bf16.msra.mxu0 0
          %2385 = vmatprep.subr.bf16.mxu0 0
          %2386 = vmatpush1.bf16.msra.mxu0 0
          %2387 = vmatprep.subr.bf16.mxu0 0
          %2388 = vmatpush1.bf16.msra.mxu0 0
          %2389 = vmatprep.subr.bf16.mxu0 0
          %2390 = vmatpush1.bf16.msra.mxu0 %v1683
          %2391 = vmatprep.subr.bf16.mxu0 0
          %2392 = vmatpush1.bf16.msra.mxu0 %v1682
          %2393 = vmatprep.subr.bf16.mxu0 0
          %2394 = vmatpush2.bf16.msra.mxu0 0
          %2395 = vmatprep.subr.bf16.mxu0 0
          %2396 = vmatpush2.bf16.msra.mxu0 0
          %2397 = vmatprep.subr.bf16.mxu0 0
          %2398 = vmatpush2.bf16.msra.mxu0 0
          %2399 = vmatprep.subr.bf16.mxu0 0
          %2400 = vmatpush2.bf16.msra.mxu0 0
          %2401 = vmatprep.subr.bf16.mxu0 0
          %2402 = vmatpush2.bf16.msra.mxu0 0
          %2403 = vmatprep.subr.bf16.mxu0 0
          %2404 = vmatpush2.bf16.msra.mxu0 0
          %2405 = vmatprep.subr.bf16.mxu0 0
          %2406 = vmatpush2.bf16.msra.mxu0 0
          %2407 = vmatprep.subr.bf16.mxu0 0
          %2408 = vmatpush2.bf16.msra.mxu0 0
          %2409 = vmatprep.mubr.bf16.mxu0 0
          %2410 = vmatmul.mubr.bf16.gmra.mxu0 %v2372
          %v2411 = vpop.f32.mrf.mxu0
          %v2412 = vadd.f32 0.0, %v2411
          %v2413 = vpop.f32.mrf.mxu0
          %v2414 = vpop.f32.mrf.mxu0
          %v2415 = vadd.f32 0.0, %v2414
          %v2416 = vpop.f32.mrf.mxu0
          %2417 = vmatprep.mubr.bf16.mxu0 0
          %2418 = vmatmul.mubr.bf16.gmra.mxu0 %v2375
          %v2419 = vpop.f32.mrf.mxu0
          %v2420 = vadd.f32 0.0, %v2419
          %v2421 = vpop.f32.mrf.mxu0
          %v2422 = vpop.f32.mrf.mxu0
          %v2423 = vadd.f32 0.0, %v2422
          %v2424 = vpop.f32.mrf.mxu0
          %2425 = vdwg.mxu0
          %v2430 = vunpack.c.l.b16 %v2351
          %v2431 = vunpack.c.l.b16 %v2352
          %v2432 = vunpack.c.l.b16 %v2353
          %v2433 = vunpack.c.l.b16 %v2354
          %v2434 = vpack.c.b16 %v2431, %v2430
          %v2435 = vpack.c.b16 %v2433, %v2432
          %v2437 = vsel %vm1690, %v2434, 0
          %v2440 = vsel %vm1690, %v2435, 0
          %2442 = vmatprep.subr.bf16.mxu0 0
          %2443 = vmatpush1.bf16.msra.mxu0 0
          %2444 = vmatprep.subr.bf16.mxu0 0
          %2445 = vmatpush1.bf16.msra.mxu0 0
          %2446 = vmatprep.subr.bf16.mxu0 0
          %2447 = vmatpush1.bf16.msra.mxu0 0
          %2448 = vmatprep.subr.bf16.mxu0 0
          %2449 = vmatpush1.bf16.msra.mxu0 0
          %2450 = vmatprep.subr.bf16.mxu0 0
          %2451 = vmatpush1.bf16.msra.mxu0 0
          %2452 = vmatprep.subr.bf16.mxu0 0
          %2453 = vmatpush1.bf16.msra.mxu0 0
          %2454 = vmatprep.subr.bf16.mxu0 0
          %2455 = vmatpush1.bf16.msra.mxu0 %v2356
          %2456 = vmatprep.subr.bf16.mxu0 0
          %2457 = vmatpush1.bf16.msra.mxu0 %v2355
          %2458 = vmatprep.subr.bf16.mxu0 0
          %2459 = vmatpush2.bf16.msra.mxu0 0
          %2460 = vmatprep.subr.bf16.mxu0 0
          %2461 = vmatpush2.bf16.msra.mxu0 0
          %2462 = vmatprep.subr.bf16.mxu0 0
          %2463 = vmatpush2.bf16.msra.mxu0 0
          %2464 = vmatprep.subr.bf16.mxu0 0
          %2465 = vmatpush2.bf16.msra.mxu0 0
          %2466 = vmatprep.subr.bf16.mxu0 0
          %2467 = vmatpush2.bf16.msra.mxu0 0
          %2468 = vmatprep.subr.bf16.mxu0 0
          %2469 = vmatpush2.bf16.msra.mxu0 0
          %2470 = vmatprep.subr.bf16.mxu0 0
          %2471 = vmatpush2.bf16.msra.mxu0 0
          %2472 = vmatprep.subr.bf16.mxu0 0
          %2473 = vmatpush2.bf16.msra.mxu0 0
          %2474 = vmatprep.mubr.bf16.mxu0 0
          %2475 = vmatmul.mubr.bf16.gmra.mxu0 %v2437
          %v2476 = vpop.f32.mrf.mxu0
          %v2477 = vadd.f32 %v2412, %v2476
          %v2478 = vpop.f32.mrf.mxu0
          %v2479 = vpop.f32.mrf.mxu0
          %v2480 = vadd.f32 %v2415, %v2479
          %v2481 = vpop.f32.mrf.mxu0
          %2482 = vmatprep.mubr.bf16.mxu0 0
          %2483 = vmatmul.mubr.bf16.gmra.mxu0 %v2440
          %v2484 = vpop.f32.mrf.mxu0
          %v2485 = vadd.f32 %v2420, %v2484
          %v2486 = vpop.f32.mrf.mxu0
          %v2487 = vpop.f32.mrf.mxu0
          %v2488 = vadd.f32 %v2423, %v2487
          %v2489 = vpop.f32.mrf.mxu0
          %2490 = vdwg.mxu0
          %v2491 = vld [vmem:[%s1474] sm:$0xff]
          %v2492 = vld [vmem:[%s1474 + $0x8] sm:$0xff]
          %v2493 = vld [vmem:[%s1474 + $0x10] sm:$0xff]
          %v2494 = vld [vmem:[%s1474 + $0x18] sm:$0xff]
          %2496 = vset.pattern.permute.xlu0 0
          %2497 = vperm.xlu0 %2496, %v2491
          %v2498 = vpop.permute.xlu0 %2497
          %2501 = vset.pattern.permute.xlu0 0
          %2502 = vperm.xlu0 %2501, %v2492
          %v2503 = vpop.permute.xlu0 %2502
          %2506 = vset.pattern.permute.xlu0 0
          %2507 = vperm.xlu0 %2506, %v2493
          %v2508 = vpop.permute.xlu0 %2507
          %2511 = vset.pattern.permute.xlu0 0
          %2512 = vperm.xlu0 %2511, %v2494
          %v2513 = vpop.permute.xlu0 %2512
          %v2515 = vadd.f32 %v2477, %v2498
          %v2516 = vadd.f32 %v2480, %v2503
          %v2517 = vadd.f32 %v2485, %v2508
          %v2518 = vadd.f32 %v2488, %v2513
          %vm2519 = vcmp.ge.f32.partialorder %v2515, 0.0
          %vm2520 = vcmp.ge.f32.partialorder %v2516, 0.0
          %vm2521 = vcmp.ge.f32.partialorder %v2517, 0.0
          %vm2522 = vcmp.ge.f32.partialorder %v2518, 0.0
          %v2523 = vstv %s1592
          %v2524 = vmul.f32 %v2523, %v2515
          %v2525 = vmul.f32 %v2523, %v2516
          %v2526 = vmul.f32 %v2523, %v2517
          %v2527 = vmul.f32 %v2523, %v2518
          %v2528 = vsel %vm2519, %v2515, %v2524
          %v2529 = vsel %vm2520, %v2516, %v2525
          %v2530 = vsel %vm2521, %v2517, %v2526
          %v2531 = vsel %vm2522, %v2518, %v2527
          %v2532 = vld [vmem:[%s1478] sm:$0x3]
          %v2533 = vpack.c.bf16 %v2529, %v2528
          %v2534 = vpack.c.bf16 %v2531, %v2530
          %v2535 = vld [vmem:[%s1482] sm:$0x3]
          %v2537 = vsel %vm1690, %v2535, 0
          %2539 = vmatprep.subr.bf16.mxu0 0
          %2540 = vmatpush1.bf16.msra.mxu0 0
          %2541 = vmatprep.subr.bf16.mxu0 0
          %2542 = vmatpush1.bf16.msra.mxu0 0
          %2543 = vmatprep.subr.bf16.mxu0 0
          %2544 = vmatpush1.bf16.msra.mxu0 0
          %2545 = vmatprep.subr.bf16.mxu0 0
          %2546 = vmatpush1.bf16.msra.mxu0 0
          %2547 = vmatprep.subr.bf16.mxu0 0
          %2548 = vmatpush1.bf16.msra.mxu0 0
          %2549 = vmatprep.subr.bf16.mxu0 0
          %2550 = vmatpush1.bf16.msra.mxu0 0
          %2551 = vmatprep.subr.bf16.mxu0 0
          %2552 = vmatpush1.bf16.msra.mxu0 %v1683
          %2553 = vmatprep.subr.bf16.mxu0 0
          %2554 = vmatpush1.bf16.msra.mxu0 %v1682
          %2555 = vmatprep.subr.bf16.mxu0 0
          %2556 = vmatpush2.bf16.msra.mxu0 0
          %2557 = vmatprep.subr.bf16.mxu0 0
          %2558 = vmatpush2.bf16.msra.mxu0 0
          %2559 = vmatprep.subr.bf16.mxu0 0
          %2560 = vmatpush2.bf16.msra.mxu0 0
          %2561 = vmatprep.subr.bf16.mxu0 0
          %2562 = vmatpush2.bf16.msra.mxu0 0
          %2563 = vmatprep.subr.bf16.mxu0 0
          %2564 = vmatpush2.bf16.msra.mxu0 0
          %2565 = vmatprep.subr.bf16.mxu0 0
          %2566 = vmatpush2.bf16.msra.mxu0 0
          %2567 = vmatprep.subr.bf16.mxu0 0
          %2568 = vmatpush2.bf16.msra.mxu0 0
          %2569 = vmatprep.subr.bf16.mxu0 0
          %2570 = vmatpush2.bf16.msra.mxu0 0
          %2571 = vmatprep.mubr.bf16.mxu0 0
          %2572 = vmatmul.mubr.bf16.gmra.mxu0 %v2537
          %v2573 = vpop.f32.mrf.mxu0
          %v2574 = vadd.f32 0.0, %v2573
          %v2575 = vpop.f32.mrf.mxu0
          %v2576 = vpop.f32.mrf.mxu0
          %v2577 = vpop.f32.mrf.mxu0
          %2578 = vdwg.mxu0
          %v2580 = vsel %vm1690, %v2532, 0
          %2582 = vmatprep.subr.bf16.mxu0 0
          %2583 = vmatpush1.bf16.msra.mxu0 0
          %2584 = vmatprep.subr.bf16.mxu0 0
          %2585 = vmatpush1.bf16.msra.mxu0 0
          %2586 = vmatprep.subr.bf16.mxu0 0
          %2587 = vmatpush1.bf16.msra.mxu0 0
          %2588 = vmatprep.subr.bf16.mxu0 0
          %2589 = vmatpush1.bf16.msra.mxu0 0
          %2590 = vmatprep.subr.bf16.mxu0 0
          %2591 = vmatpush1.bf16.msra.mxu0 0
          %2592 = vmatprep.subr.bf16.mxu0 0
          %2593 = vmatpush1.bf16.msra.mxu0 0
          %2594 = vmatprep.subr.bf16.mxu0 0
          %2595 = vmatpush1.bf16.msra.mxu0 %v2534
          %2596 = vmatprep.subr.bf16.mxu0 0
          %2597 = vmatpush1.bf16.msra.mxu0 %v2533
          %2598 = vmatprep.subr.bf16.mxu0 0
          %2599 = vmatpush2.bf16.msra.mxu0 0
          %2600 = vmatprep.subr.bf16.mxu0 0
          %2601 = vmatpush2.bf16.msra.mxu0 0
          %2602 = vmatprep.subr.bf16.mxu0 0
          %2603 = vmatpush2.bf16.msra.mxu0 0
          %2604 = vmatprep.subr.bf16.mxu0 0
          %2605 = vmatpush2.bf16.msra.mxu0 0
          %2606 = vmatprep.subr.bf16.mxu0 0
          %2607 = vmatpush2.bf16.msra.mxu0 0
          %2608 = vmatprep.subr.bf16.mxu0 0
          %2609 = vmatpush2.bf16.msra.mxu0 0
          %2610 = vmatprep.subr.bf16.mxu0 0
          %2611 = vmatpush2.bf16.msra.mxu0 0
          %2612 = vmatprep.subr.bf16.mxu0 0
          %2613 = vmatpush2.bf16.msra.mxu0 0
          %2614 = vmatprep.mubr.bf16.mxu0 0
          %2615 = vmatmul.mubr.bf16.gmra.mxu0 %v2580
          %v2616 = vpop.f32.mrf.mxu0
          %v2617 = vadd.f32 %v2574, %v2616
          %v2618 = vpop.f32.mrf.mxu0
          %v2619 = vpop.f32.mrf.mxu0
          %v2620 = vpop.f32.mrf.mxu0
          %2621 = vdwg.mxu0
          %v2622 = vld [vmem:[%s1486] sm:$0xf]
          %2624 = vset.pattern.permute.xlu0 0
          %2625 = vperm.xlu0 %2624, %v2622
          %v2626 = vpop.permute.xlu0 %2625
          %v2628 = vadd.f32 %v2617, %v2626
          %v2629 = vsel %vm1680, %v1677, %v2628
          %s2630 = scalar_lea.vmem %s1528, %s1675
          %2631 = vst [vmem:[%s2630] sm:$0xf] %v1729
          %s2632 = scalar_lea.vmem %s1550, %s1675
          %2633 = vst [vmem:[%s2632] sm:$0xf] %v2628
          %s2634 = smul.u32 %s1674, 64
          %s2635 = scalar_lea.vmem %s1573, %s2634
          %2636 = vst [vmem:[%s2635] sm:$0xff] %v2528
          %2637 = vst [vmem:[%s2635 + $0x8] sm:$0xff] %v2529
          %2638 = vst [vmem:[%s2635 + $0x10] sm:$0xff] %v2530
          %2639 = vst [vmem:[%s2635 + $0x18] sm:$0xff] %v2531
          %2640 = vst [vmem:[%s2635 + $0x20] sm:$0xff] %v1667
          %2641 = vst [vmem:[%s2635 + $0x28] sm:$0xff] %v1668
          %2642 = vst [vmem:[%s2635 + $0x30] sm:$0xff] %v1669
          %2643 = vst [vmem:[%s2635 + $0x38] sm:$0xff] %v1670
          %v2645 = vrot.slane %v1679, 4
          %vm2647 = vcmask 1043456
          %v2648 = vsel %vm2647, %v2629, %v2645
          %v2649 = vpack.c.bf16 %v1667, %v2648
          %v2650 = vpack.c.bf16 %v1669, %v1668
          %v2651 = vpack.c.bf16 %v1670, %v1670
          %2652 = vmatprep.subr.bf16.mxu0 0
          %2653 = vmatpush1.bf16.msra.mxu0 %v2029
          %2654 = vmatprep.subr.bf16.mxu0 0
          %2655 = vmatpush1.bf16.msra.mxu0 %v2028
          %2656 = vmatprep.subr.bf16.mxu0 0
          %2657 = vmatpush1.bf16.msra.mxu0 %v2027
          %2658 = vmatprep.subr.bf16.mxu0 0
          %2659 = vmatpush1.bf16.msra.mxu0 %v2026
          %2660 = vmatprep.subr.bf16.mxu0 0
          %2661 = vmatpush1.bf16.msra.mxu0 %v2025
          %2662 = vmatprep.subr.bf16.mxu0 0
          %2663 = vmatpush1.bf16.msra.mxu0 %v2024
          %2664 = vmatprep.subr.bf16.mxu0 0
          %2665 = vmatpush1.bf16.msra.mxu0 %v2023
          %2666 = vmatprep.subr.bf16.mxu0 0
          %2667 = vmatpush1.bf16.msra.mxu0 %v2022
          %2668 = vmatprep.subr.bf16.mxu0 0
          %2669 = vmatpush2.bf16.msra.mxu0 0
          %2670 = vmatprep.subr.bf16.mxu0 0
          %2671 = vmatpush2.bf16.msra.mxu0 0
          %2672 = vmatprep.subr.bf16.mxu0 0
          %2673 = vmatpush2.bf16.msra.mxu0 0
          %2674 = vmatprep.subr.bf16.mxu0 0
          %2675 = vmatpush2.bf16.msra.mxu0 0
          %2676 = vmatprep.subr.bf16.mxu0 0
          %2677 = vmatpush2.bf16.msra.mxu0 0
          %2678 = vmatprep.subr.bf16.mxu0 0
          %2679 = vmatpush2.bf16.msra.mxu0 0
          %2680 = vmatprep.subr.bf16.mxu0 0
          %2681 = vmatpush2.bf16.msra.mxu0 0
          %2682 = vmatprep.subr.bf16.mxu0 0
          %2683 = vmatpush2.bf16.msra.mxu0 0
          %2684 = vmatprep.mubr.bf16.mxu0 0
          %2685 = vmatmul.mubr.bf16.gmra.mxu0 %v2649
          %v2686 = vpop.f32.mrf.mxu0
          %v2687 = vadd.f32 0.0, %v2686
          %v2688 = vpop.f32.mrf.mxu0
          %v2689 = vpop.f32.mrf.mxu0
          %v2690 = vadd.f32 0.0, %v2689
          %v2691 = vpop.f32.mrf.mxu0
          %2692 = vmatprep.mubr.bf16.mxu0 0
          %2693 = vmatmul.mubr.bf16.gmra.mxu0 %v2650
          %v2694 = vpop.f32.mrf.mxu0
          %v2695 = vadd.f32 0.0, %v2694
          %v2696 = vpop.f32.mrf.mxu0
          %v2697 = vpop.f32.mrf.mxu0
          %v2698 = vadd.f32 0.0, %v2697
          %v2699 = vpop.f32.mrf.mxu0
          %2700 = vmatprep.mubr.bf16.mxu0 0
          %2701 = vmatmul.mubr.bf16.gmra.mxu0 %v2651
          %v2702 = vpop.f32.mrf.mxu0
          %v2703 = vadd.f32 0.0, %v2702
          %v2704 = vpop.f32.mrf.mxu0
          %v2705 = vpop.f32.mrf.mxu0
          %v2706 = vpop.f32.mrf.mxu0
          %2707 = vdwg.mxu0
          %v2724 = vunpack.c.l.b16 %v1609
          %v2725 = vunpack.c.l.b16 %v1610
          %v2726 = vunpack.c.l.b16 %v1611
          %v2727 = vunpack.c.l.b16 %v1612
          %v2728 = vunpack.c.l.b16 %v1613
          %v2729 = vunpack.c.l.b16 %v1614
          %v2730 = vunpack.c.l.b16 %v1615
          %v2731 = vunpack.c.l.b16 %v1616
          %v2732 = vunpack.c.l.b16 %v1617
          %v2733 = vunpack.c.l.b16 %v1618
          %v2734 = vunpack.c.l.b16 %v1619
          %v2735 = vunpack.c.l.b16 %v1620
          %v2736 = vunpack.c.l.b16 %v1621
          %v2737 = vunpack.c.l.b16 %v1622
          %v2738 = vunpack.c.l.b16 %v1623
          %v2739 = vunpack.c.l.b16 %v1624
          %v2740 = vpack.c.b16 %v2725, %v2724
          %v2741 = vpack.c.b16 %v2727, %v2726
          %v2742 = vpack.c.b16 %v2729, %v2728
          %v2743 = vpack.c.b16 %v2731, %v2730
          %v2744 = vpack.c.b16 %v2733, %v2732
          %v2745 = vpack.c.b16 %v2735, %v2734
          %v2746 = vpack.c.b16 %v2737, %v2736
          %v2747 = vpack.c.b16 %v2739, %v2738
          %2756 = vmatprep.subr.bf16.mxu0 0
          %2757 = vmatpush1.bf16.msra.mxu0 %v2747
          %2758 = vmatprep.subr.bf16.mxu0 0
          %2759 = vmatpush1.bf16.msra.mxu0 %v2746
          %2760 = vmatprep.subr.bf16.mxu0 0
          %2761 = vmatpush1.bf16.msra.mxu0 %v2745
          %2762 = vmatprep.subr.bf16.mxu0 0
          %2763 = vmatpush1.bf16.msra.mxu0 %v2744
          %2764 = vmatprep.subr.bf16.mxu0 0
          %2765 = vmatpush1.bf16.msra.mxu0 %v2743
          %2766 = vmatprep.subr.bf16.mxu0 0
          %2767 = vmatpush1.bf16.msra.mxu0 %v2742
          %2768 = vmatprep.subr.bf16.mxu0 0
          %2769 = vmatpush1.bf16.msra.mxu0 %v2741
          %2770 = vmatprep.subr.bf16.mxu0 0
          %2771 = vmatpush1.bf16.msra.mxu0 %v2740
          %2772 = vmatprep.subr.bf16.mxu0 0
          %2773 = vmatpush2.bf16.msra.mxu0 0
          %2774 = vmatprep.subr.bf16.mxu0 0
          %2775 = vmatpush2.bf16.msra.mxu0 0
          %2776 = vmatprep.subr.bf16.mxu0 0
          %2777 = vmatpush2.bf16.msra.mxu0 0
          %2778 = vmatprep.subr.bf16.mxu0 0
          %2779 = vmatpush2.bf16.msra.mxu0 0
          %2780 = vmatprep.subr.bf16.mxu0 0
          %2781 = vmatpush2.bf16.msra.mxu0 0
          %2782 = vmatprep.subr.bf16.mxu0 0
          %2783 = vmatpush2.bf16.msra.mxu0 0
          %2784 = vmatprep.subr.bf16.mxu0 0
          %2785 = vmatpush2.bf16.msra.mxu0 0
          %2786 = vmatprep.subr.bf16.mxu0 0
          %2787 = vmatpush2.bf16.msra.mxu0 0
          %2788 = vmatprep.mubr.bf16.mxu0 0
          %2789 = vmatmul.mubr.bf16.gmra.mxu0 %v2649
          %v2790 = vpop.f32.mrf.mxu0
          %v2791 = vadd.f32 0.0, %v2790
          %v2792 = vpop.f32.mrf.mxu0
          %v2793 = vpop.f32.mrf.mxu0
          %v2794 = vadd.f32 0.0, %v2793
          %v2795 = vpop.f32.mrf.mxu0
          %2796 = vmatprep.mubr.bf16.mxu0 0
          %2797 = vmatmul.mubr.bf16.gmra.mxu0 %v2650
          %v2798 = vpop.f32.mrf.mxu0
          %v2799 = vadd.f32 0.0, %v2798
          %v2800 = vpop.f32.mrf.mxu0
          %v2801 = vpop.f32.mrf.mxu0
          %v2802 = vadd.f32 0.0, %v2801
          %v2803 = vpop.f32.mrf.mxu0
          %2804 = vmatprep.mubr.bf16.mxu0 0
          %2805 = vmatmul.mubr.bf16.gmra.mxu0 %v2651
          %v2806 = vpop.f32.mrf.mxu0
          %v2807 = vadd.f32 0.0, %v2806
          %v2808 = vpop.f32.mrf.mxu0
          %v2809 = vpop.f32.mrf.mxu0
          %v2810 = vpop.f32.mrf.mxu0
          %2811 = vdwg.mxu0
          %2812 = vmatprep.subr.bf16.mxu0 0
          %2813 = vmatpush1.bf16.msra.mxu0 %v2133
          %2814 = vmatprep.subr.bf16.mxu0 0
          %2815 = vmatpush1.bf16.msra.mxu0 %v2132
          %2816 = vmatprep.subr.bf16.mxu0 0
          %2817 = vmatpush1.bf16.msra.mxu0 %v2131
          %2818 = vmatprep.subr.bf16.mxu0 0
          %2819 = vmatpush1.bf16.msra.mxu0 %v2130
          %2820 = vmatprep.subr.bf16.mxu0 0
          %2821 = vmatpush1.bf16.msra.mxu0 %v2129
          %2822 = vmatprep.subr.bf16.mxu0 0
          %2823 = vmatpush1.bf16.msra.mxu0 %v2128
          %2824 = vmatprep.subr.bf16.mxu0 0
          %2825 = vmatpush1.bf16.msra.mxu0 %v2127
          %2826 = vmatprep.subr.bf16.mxu0 0
          %2827 = vmatpush1.bf16.msra.mxu0 %v2126
          %2828 = vmatprep.subr.bf16.mxu0 0
          %2829 = vmatpush2.bf16.msra.mxu0 0
          %2830 = vmatprep.subr.bf16.mxu0 0
          %2831 = vmatpush2.bf16.msra.mxu0 0
          %2832 = vmatprep.subr.bf16.mxu0 0
          %2833 = vmatpush2.bf16.msra.mxu0 0
          %2834 = vmatprep.subr.bf16.mxu0 0
          %2835 = vmatpush2.bf16.msra.mxu0 0
          %2836 = vmatprep.subr.bf16.mxu0 0
          %2837 = vmatpush2.bf16.msra.mxu0 0
          %2838 = vmatprep.subr.bf16.mxu0 0
          %2839 = vmatpush2.bf16.msra.mxu0 0
          %2840 = vmatprep.subr.bf16.mxu0 0
          %2841 = vmatpush2.bf16.msra.mxu0 0
          %2842 = vmatprep.subr.bf16.mxu0 0
          %2843 = vmatpush2.bf16.msra.mxu0 0
          %2844 = vmatprep.mubr.bf16.mxu0 0
          %2845 = vmatmul.mubr.bf16.gmra.mxu0 %v2649
          %v2846 = vpop.f32.mrf.mxu0
          %v2847 = vadd.f32 0.0, %v2846
          %v2848 = vpop.f32.mrf.mxu0
          %v2849 = vpop.f32.mrf.mxu0
          %v2850 = vadd.f32 0.0, %v2849
          %v2851 = vpop.f32.mrf.mxu0
          %2852 = vmatprep.mubr.bf16.mxu0 0
          %2853 = vmatmul.mubr.bf16.gmra.mxu0 %v2650
          %v2854 = vpop.f32.mrf.mxu0
          %v2855 = vadd.f32 0.0, %v2854
          %v2856 = vpop.f32.mrf.mxu0
          %v2857 = vpop.f32.mrf.mxu0
          %v2858 = vadd.f32 0.0, %v2857
          %v2859 = vpop.f32.mrf.mxu0
          %2860 = vmatprep.mubr.bf16.mxu0 0
          %2861 = vmatmul.mubr.bf16.gmra.mxu0 %v2651
          %v2862 = vpop.f32.mrf.mxu0
          %v2863 = vadd.f32 0.0, %v2862
          %v2864 = vpop.f32.mrf.mxu0
          %v2865 = vpop.f32.mrf.mxu0
          %v2866 = vpop.f32.mrf.mxu0
          %2867 = vdwg.mxu0
          %v2884 = vunpack.c.l.b16 %v1641
          %v2885 = vunpack.c.l.b16 %v1642
          %v2886 = vunpack.c.l.b16 %v1643
          %v2887 = vunpack.c.l.b16 %v1644
          %v2888 = vunpack.c.l.b16 %v1645
          %v2889 = vunpack.c.l.b16 %v1646
          %v2890 = vunpack.c.l.b16 %v1647
          %v2891 = vunpack.c.l.b16 %v1648
          %v2892 = vunpack.c.l.b16 %v1649
          %v2893 = vunpack.c.l.b16 %v1650
          %v2894 = vunpack.c.l.b16 %v1651
          %v2895 = vunpack.c.l.b16 %v1652
          %v2896 = vunpack.c.l.b16 %v1653
          %v2897 = vunpack.c.l.b16 %v1654
          %v2898 = vunpack.c.l.b16 %v1655
          %v2899 = vunpack.c.l.b16 %v1656
          %v2900 = vpack.c.b16 %v2885, %v2884
          %v2901 = vpack.c.b16 %v2887, %v2886
          %v2902 = vpack.c.b16 %v2889, %v2888
          %v2903 = vpack.c.b16 %v2891, %v2890
          %v2904 = vpack.c.b16 %v2893, %v2892
          %v2905 = vpack.c.b16 %v2895, %v2894
          %v2906 = vpack.c.b16 %v2897, %v2896
          %v2907 = vpack.c.b16 %v2899, %v2898
          %2916 = vmatprep.subr.bf16.mxu0 0
          %2917 = vmatpush1.bf16.msra.mxu0 %v2907
          %2918 = vmatprep.subr.bf16.mxu0 0
          %2919 = vmatpush1.bf16.msra.mxu0 %v2906
          %2920 = vmatprep.subr.bf16.mxu0 0
          %2921 = vmatpush1.bf16.msra.mxu0 %v2905
          %2922 = vmatprep.subr.bf16.mxu0 0
          %2923 = vmatpush1.bf16.msra.mxu0 %v2904
          %2924 = vmatprep.subr.bf16.mxu0 0
          %2925 = vmatpush1.bf16.msra.mxu0 %v2903
          %2926 = vmatprep.subr.bf16.mxu0 0
          %2927 = vmatpush1.bf16.msra.mxu0 %v2902
          %2928 = vmatprep.subr.bf16.mxu0 0
          %2929 = vmatpush1.bf16.msra.mxu0 %v2901
          %2930 = vmatprep.subr.bf16.mxu0 0
          %2931 = vmatpush1.bf16.msra.mxu0 %v2900
          %2932 = vmatprep.subr.bf16.mxu0 0
          %2933 = vmatpush2.bf16.msra.mxu0 0
          %2934 = vmatprep.subr.bf16.mxu0 0
          %2935 = vmatpush2.bf16.msra.mxu0 0
          %2936 = vmatprep.subr.bf16.mxu0 0
          %2937 = vmatpush2.bf16.msra.mxu0 0
          %2938 = vmatprep.subr.bf16.mxu0 0
          %2939 = vmatpush2.bf16.msra.mxu0 0
          %2940 = vmatprep.subr.bf16.mxu0 0
          %2941 = vmatpush2.bf16.msra.mxu0 0
          %2942 = vmatprep.subr.bf16.mxu0 0
          %2943 = vmatpush2.bf16.msra.mxu0 0
          %2944 = vmatprep.subr.bf16.mxu0 0
          %2945 = vmatpush2.bf16.msra.mxu0 0
          %2946 = vmatprep.subr.bf16.mxu0 0
          %2947 = vmatpush2.bf16.msra.mxu0 0
          %2948 = vmatprep.mubr.bf16.mxu0 0
          %2949 = vmatmul.mubr.bf16.gmra.mxu0 %v2649
          %v2950 = vpop.f32.mrf.mxu0
          %v2951 = vadd.f32 0.0, %v2950
          %v2952 = vpop.f32.mrf.mxu0
          %v2953 = vpop.f32.mrf.mxu0
          %v2954 = vadd.f32 0.0, %v2953
          %v2955 = vpop.f32.mrf.mxu0
          %2956 = vmatprep.mubr.bf16.mxu0 0
          %2957 = vmatmul.mubr.bf16.gmra.mxu0 %v2650
          %v2958 = vpop.f32.mrf.mxu0
          %v2959 = vadd.f32 0.0, %v2958
          %v2960 = vpop.f32.mrf.mxu0
          %v2961 = vpop.f32.mrf.mxu0
          %v2962 = vadd.f32 0.0, %v2961
          %v2963 = vpop.f32.mrf.mxu0
          %2964 = vmatprep.mubr.bf16.mxu0 0
          %2965 = vmatmul.mubr.bf16.gmra.mxu0 %v2651
          %v2966 = vpop.f32.mrf.mxu0
          %v2967 = vadd.f32 0.0, %v2966
          %v2968 = vpop.f32.mrf.mxu0
          %v2969 = vpop.f32.mrf.mxu0
          %v2970 = vpop.f32.mrf.mxu0
          %2971 = vdwg.mxu0
          %v2972 = vld [vmem:[%s1491] sm:$0xf]
          %v2973 = vld [vmem:[%s1491 + $0x4] sm:$0xf]
          %v2974 = vld [vmem:[%s1491 + $0x8] sm:$0xf]
          %v2975 = vld [vmem:[%s1491 + $0xc] sm:$0xf]
          %v2976 = vld [vmem:[%s1491 + $0x10] sm:$0xf]
          %v2977 = vld [vmem:[%s1491 + $0x14] sm:$0xf]
          %v2978 = vld [vmem:[%s1491 + $0x18] sm:$0xf]
          %v2979 = vld [vmem:[%s1491 + $0x1c] sm:$0xf]
          %s2980 = scalar_lea.vmem %s1491, 32
          %v2981 = vld [vmem:[%s2980] sm:$0xf]
          %v2982 = vld [vmem:[%s2980 + $0x4] sm:$0xf]
          %v2983 = vld [vmem:[%s2980 + $0x8] sm:$0xf]
          %v2984 = vld [vmem:[%s2980 + $0xc] sm:$0xf]
          %v2985 = vld [vmem:[%s2980 + $0x10] sm:$0xf]
          %v2986 = vld [vmem:[%s2980 + $0x14] sm:$0xf]
          %v2987 = vld [vmem:[%s2980 + $0x18] sm:$0xf]
          %v2988 = vld [vmem:[%s2980 + $0x1c] sm:$0xf]
          %v2989 = vpack.c.bf16 %v2690, %v2687
          %v2990 = vpack.c.bf16 %v2698, %v2695
          %v2991 = vpack.c.bf16 %v2703, %v2703
          %v3000 = vunpack.c.l.b16 %v2981
          %v3001 = vunpack.c.l.b16 %v2982
          %v3002 = vunpack.c.l.b16 %v2983
          %v3003 = vunpack.c.l.b16 %v2984
          %v3004 = vunpack.c.l.b16 %v2985
          %v3005 = vunpack.c.l.b16 %v2986
          %v3006 = vunpack.c.l.b16 %v2987
          %v3007 = vunpack.c.l.b16 %v2988
          %v3008 = vpack.c.b16 %v3001, %v3000
          %v3009 = vpack.c.b16 %v3003, %v3002
          %v3010 = vpack.c.b16 %v3005, %v3004
          %v3011 = vpack.c.b16 %v3007, %v3006
          %vm3012 = vcmask 326656
          %v3014 = vsel %vm3012, %v3008, 0
          %v3017 = vsel %vm3012, %v3009, 0
          %v3020 = vsel %vm3012, %v3010, 0
          %v3023 = vsel %vm3012, %v3011, 0
          %v3026 = vsel %vm2647, %v2991, 0
          %3028 = vmatprep.subr.bf16.mxu0 0
          %3029 = vmatpush1.bf16.msra.mxu0 0
          %3030 = vmatprep.subr.bf16.mxu0 0
          %3031 = vmatpush1.bf16.msra.mxu0 0
          %3032 = vmatprep.subr.bf16.mxu0 0
          %3033 = vmatpush1.bf16.msra.mxu0 0
          %3034 = vmatprep.subr.bf16.mxu0 0
          %3035 = vmatpush1.bf16.msra.mxu0 0
          %3036 = vmatprep.subr.bf16.mxu0 0
          %3037 = vmatpush1.bf16.msra.mxu0 0
          %3038 = vmatprep.subr.bf16.mxu0 0
          %3039 = vmatpush1.bf16.msra.mxu0 %v3026
          %3040 = vmatprep.subr.bf16.mxu0 0
          %3041 = vmatpush1.bf16.msra.mxu0 %v2990
          %3042 = vmatprep.subr.bf16.mxu0 0
          %3043 = vmatpush1.bf16.msra.mxu0 %v2989
          %3044 = vmatprep.subr.bf16.mxu0 0
          %3045 = vmatpush2.bf16.msra.mxu0 0
          %3046 = vmatprep.subr.bf16.mxu0 0
          %3047 = vmatpush2.bf16.msra.mxu0 0
          %3048 = vmatprep.subr.bf16.mxu0 0
          %3049 = vmatpush2.bf16.msra.mxu0 0
          %3050 = vmatprep.subr.bf16.mxu0 0
          %3051 = vmatpush2.bf16.msra.mxu0 0
          %3052 = vmatprep.subr.bf16.mxu0 0
          %3053 = vmatpush2.bf16.msra.mxu0 0
          %3054 = vmatprep.subr.bf16.mxu0 0
          %3055 = vmatpush2.bf16.msra.mxu0 0
          %3056 = vmatprep.subr.bf16.mxu0 0
          %3057 = vmatpush2.bf16.msra.mxu0 0
          %3058 = vmatprep.subr.bf16.mxu0 0
          %3059 = vmatpush2.bf16.msra.mxu0 0
          %3060 = vmatprep.mubr.bf16.mxu0 0
          %3061 = vmatmul.mubr.bf16.gmra.mxu0 %v3014
          %v3062 = vpop.f32.mrf.mxu0
          %v3063 = vadd.f32 0.0, %v3062
          %v3064 = vpop.f32.mrf.mxu0
          %v3065 = vpop.f32.mrf.mxu0
          %v3066 = vadd.f32 0.0, %v3065
          %v3067 = vpop.f32.mrf.mxu0
          %3068 = vmatprep.mubr.bf16.mxu0 0
          %3069 = vmatmul.mubr.bf16.gmra.mxu0 %v3017
          %v3070 = vpop.f32.mrf.mxu0
          %v3071 = vadd.f32 0.0, %v3070
          %v3072 = vpop.f32.mrf.mxu0
          %v3073 = vpop.f32.mrf.mxu0
          %v3074 = vadd.f32 0.0, %v3073
          %v3075 = vpop.f32.mrf.mxu0
          %3076 = vmatprep.mubr.bf16.mxu0 0
          %3077 = vmatmul.mubr.bf16.gmra.mxu0 %v3020
          %v3078 = vpop.f32.mrf.mxu0
          %v3079 = vadd.f32 0.0, %v3078
          %v3080 = vpop.f32.mrf.mxu0
          %v3081 = vpop.f32.mrf.mxu0
          %v3082 = vadd.f32 0.0, %v3081
          %v3083 = vpop.f32.mrf.mxu0
          %3084 = vmatprep.mubr.bf16.mxu0 0
          %3085 = vmatmul.mubr.bf16.gmra.mxu0 %v3023
          %v3086 = vpop.f32.mrf.mxu0
          %v3087 = vadd.f32 0.0, %v3086
          %v3088 = vpop.f32.mrf.mxu0
          %v3089 = vpop.f32.mrf.mxu0
          %v3090 = vadd.f32 0.0, %v3089
          %v3091 = vpop.f32.mrf.mxu0
          %3092 = vdwg.mxu0
          %v3101 = vunpack.c.l.b16 %v2972
          %v3102 = vunpack.c.l.b16 %v2973
          %v3103 = vunpack.c.l.b16 %v2974
          %v3104 = vunpack.c.l.b16 %v2975
          %v3105 = vunpack.c.l.b16 %v2976
          %v3106 = vunpack.c.l.b16 %v2977
          %v3107 = vunpack.c.l.b16 %v2978
          %v3108 = vunpack.c.l.b16 %v2979
          %v3109 = vpack.c.b16 %v3102, %v3101
          %v3110 = vpack.c.b16 %v3104, %v3103
          %v3111 = vpack.c.b16 %v3106, %v3105
          %v3112 = vpack.c.b16 %v3108, %v3107
          %v3114 = vsel %vm3012, %v3109, 0
          %v3117 = vsel %vm3012, %v3110, 0
          %v3120 = vsel %vm3012, %v3111, 0
          %v3123 = vsel %vm3012, %v3112, 0
          %v3126 = vsel %vm2647, %v2651, 0
          %3128 = vmatprep.subr.bf16.mxu0 0
          %3129 = vmatpush1.bf16.msra.mxu0 0
          %3130 = vmatprep.subr.bf16.mxu0 0
          %3131 = vmatpush1.bf16.msra.mxu0 0
          %3132 = vmatprep.subr.bf16.mxu0 0
          %3133 = vmatpush1.bf16.msra.mxu0 0
          %3134 = vmatprep.subr.bf16.mxu0 0
          %3135 = vmatpush1.bf16.msra.mxu0 0
          %3136 = vmatprep.subr.bf16.mxu0 0
          %3137 = vmatpush1.bf16.msra.mxu0 0
          %3138 = vmatprep.subr.bf16.mxu0 0
          %3139 = vmatpush1.bf16.msra.mxu0 %v3126
          %3140 = vmatprep.subr.bf16.mxu0 0
          %3141 = vmatpush1.bf16.msra.mxu0 %v2650
          %3142 = vmatprep.subr.bf16.mxu0 0
          %3143 = vmatpush1.bf16.msra.mxu0 %v2649
          %3144 = vmatprep.subr.bf16.mxu0 0
          %3145 = vmatpush2.bf16.msra.mxu0 0
          %3146 = vmatprep.subr.bf16.mxu0 0
          %3147 = vmatpush2.bf16.msra.mxu0 0
          %3148 = vmatprep.subr.bf16.mxu0 0
          %3149 = vmatpush2.bf16.msra.mxu0 0
          %3150 = vmatprep.subr.bf16.mxu0 0
          %3151 = vmatpush2.bf16.msra.mxu0 0
          %3152 = vmatprep.subr.bf16.mxu0 0
          %3153 = vmatpush2.bf16.msra.mxu0 0
          %3154 = vmatprep.subr.bf16.mxu0 0
          %3155 = vmatpush2.bf16.msra.mxu0 0
          %3156 = vmatprep.subr.bf16.mxu0 0
          %3157 = vmatpush2.bf16.msra.mxu0 0
          %3158 = vmatprep.subr.bf16.mxu0 0
          %3159 = vmatpush2.bf16.msra.mxu0 0
          %3160 = vmatprep.mubr.bf16.mxu0 0
          %3161 = vmatmul.mubr.bf16.gmra.mxu0 %v3114
          %v3162 = vpop.f32.mrf.mxu0
          %v3163 = vadd.f32 %v3063, %v3162
          %v3164 = vpop.f32.mrf.mxu0
          %v3165 = vpop.f32.mrf.mxu0
          %v3166 = vadd.f32 %v3066, %v3165
          %v3167 = vpop.f32.mrf.mxu0
          %3168 = vmatprep.mubr.bf16.mxu0 0
          %3169 = vmatmul.mubr.bf16.gmra.mxu0 %v3117
          %v3170 = vpop.f32.mrf.mxu0
          %v3171 = vadd.f32 %v3071, %v3170
          %v3172 = vpop.f32.mrf.mxu0
          %v3173 = vpop.f32.mrf.mxu0
          %v3174 = vadd.f32 %v3074, %v3173
          %v3175 = vpop.f32.mrf.mxu0
          %3176 = vmatprep.mubr.bf16.mxu0 0
          %3177 = vmatmul.mubr.bf16.gmra.mxu0 %v3120
          %v3178 = vpop.f32.mrf.mxu0
          %v3179 = vadd.f32 %v3079, %v3178
          %v3180 = vpop.f32.mrf.mxu0
          %v3181 = vpop.f32.mrf.mxu0
          %v3182 = vadd.f32 %v3082, %v3181
          %v3183 = vpop.f32.mrf.mxu0
          %3184 = vmatprep.mubr.bf16.mxu0 0
          %3185 = vmatmul.mubr.bf16.gmra.mxu0 %v3123
          %v3186 = vpop.f32.mrf.mxu0
          %v3187 = vadd.f32 %v3087, %v3186
          %v3188 = vpop.f32.mrf.mxu0
          %v3189 = vpop.f32.mrf.mxu0
          %v3190 = vadd.f32 %v3090, %v3189
          %v3191 = vpop.f32.mrf.mxu0
          %3192 = vdwg.mxu0
          %s3193 = scalar_lea.vmem %s1491, 64
          %v3194 = vld [vmem:[%s3193] sm:$0xf]
          %v3195 = vld [vmem:[%s3193 + $0x4] sm:$0xf]
          %v3196 = vld [vmem:[%s3193 + $0x8] sm:$0xf]
          %v3197 = vld [vmem:[%s3193 + $0xc] sm:$0xf]
          %v3198 = vld [vmem:[%s3193 + $0x10] sm:$0xf]
          %v3199 = vld [vmem:[%s3193 + $0x14] sm:$0xf]
          %v3200 = vld [vmem:[%s3193 + $0x18] sm:$0xf]
          %v3201 = vld [vmem:[%s3193 + $0x1c] sm:$0xf]
          %v3202 = vpack.c.bf16 %v2794, %v2791
          %v3203 = vpack.c.bf16 %v2802, %v2799
          %v3204 = vpack.c.bf16 %v2807, %v2807
          %v3213 = vunpack.c.l.b16 %v3194
          %v3214 = vunpack.c.l.b16 %v3195
          %v3215 = vunpack.c.l.b16 %v3196
          %v3216 = vunpack.c.l.b16 %v3197
          %v3217 = vunpack.c.l.b16 %v3198
          %v3218 = vunpack.c.l.b16 %v3199
          %v3219 = vunpack.c.l.b16 %v3200
          %v3220 = vunpack.c.l.b16 %v3201
          %v3221 = vpack.c.b16 %v3214, %v3213
          %v3222 = vpack.c.b16 %v3216, %v3215
          %v3223 = vpack.c.b16 %v3218, %v3217
          %v3224 = vpack.c.b16 %v3220, %v3219
          %v3226 = vsel %vm3012, %v3221, 0
          %v3229 = vsel %vm3012, %v3222, 0
          %v3232 = vsel %vm3012, %v3223, 0
          %v3235 = vsel %vm3012, %v3224, 0
          %v3238 = vsel %vm2647, %v3204, 0
          %3240 = vmatprep.subr.bf16.mxu0 0
          %3241 = vmatpush1.bf16.msra.mxu0 0
          %3242 = vmatprep.subr.bf16.mxu0 0
          %3243 = vmatpush1.bf16.msra.mxu0 0
          %3244 = vmatprep.subr.bf16.mxu0 0
          %3245 = vmatpush1.bf16.msra.mxu0 0
          %3246 = vmatprep.subr.bf16.mxu0 0
          %3247 = vmatpush1.bf16.msra.mxu0 0
          %3248 = vmatprep.subr.bf16.mxu0 0
          %3249 = vmatpush1.bf16.msra.mxu0 0
          %3250 = vmatprep.subr.bf16.mxu0 0
          %3251 = vmatpush1.bf16.msra.mxu0 %v3238
          %3252 = vmatprep.subr.bf16.mxu0 0
          %3253 = vmatpush1.bf16.msra.mxu0 %v3203
          %3254 = vmatprep.subr.bf16.mxu0 0
          %3255 = vmatpush1.bf16.msra.mxu0 %v3202
          %3256 = vmatprep.subr.bf16.mxu0 0
          %3257 = vmatpush2.bf16.msra.mxu0 0
          %3258 = vmatprep.subr.bf16.mxu0 0
          %3259 = vmatpush2.bf16.msra.mxu0 0
          %3260 = vmatprep.subr.bf16.mxu0 0
          %3261 = vmatpush2.bf16.msra.mxu0 0
          %3262 = vmatprep.subr.bf16.mxu0 0
          %3263 = vmatpush2.bf16.msra.mxu0 0
          %3264 = vmatprep.subr.bf16.mxu0 0
          %3265 = vmatpush2.bf16.msra.mxu0 0
          %3266 = vmatprep.subr.bf16.mxu0 0
          %3267 = vmatpush2.bf16.msra.mxu0 0
          %3268 = vmatprep.subr.bf16.mxu0 0
          %3269 = vmatpush2.bf16.msra.mxu0 0
          %3270 = vmatprep.subr.bf16.mxu0 0
          %3271 = vmatpush2.bf16.msra.mxu0 0
          %3272 = vmatprep.mubr.bf16.mxu0 0
          %3273 = vmatmul.mubr.bf16.gmra.mxu0 %v3226
          %v3274 = vpop.f32.mrf.mxu0
          %v3275 = vadd.f32 0.0, %v3274
          %v3276 = vpop.f32.mrf.mxu0
          %v3277 = vpop.f32.mrf.mxu0
          %v3278 = vadd.f32 0.0, %v3277
          %v3279 = vpop.f32.mrf.mxu0
          %3280 = vmatprep.mubr.bf16.mxu0 0
          %3281 = vmatmul.mubr.bf16.gmra.mxu0 %v3229
          %v3282 = vpop.f32.mrf.mxu0
          %v3283 = vadd.f32 0.0, %v3282
          %v3284 = vpop.f32.mrf.mxu0
          %v3285 = vpop.f32.mrf.mxu0
          %v3286 = vadd.f32 0.0, %v3285
          %v3287 = vpop.f32.mrf.mxu0
          %3288 = vmatprep.mubr.bf16.mxu0 0
          %3289 = vmatmul.mubr.bf16.gmra.mxu0 %v3232
          %v3290 = vpop.f32.mrf.mxu0
          %v3291 = vadd.f32 0.0, %v3290
          %v3292 = vpop.f32.mrf.mxu0
          %v3293 = vpop.f32.mrf.mxu0
          %v3294 = vadd.f32 0.0, %v3293
          %v3295 = vpop.f32.mrf.mxu0
          %3296 = vmatprep.mubr.bf16.mxu0 0
          %3297 = vmatmul.mubr.bf16.gmra.mxu0 %v3235
          %v3298 = vpop.f32.mrf.mxu0
          %v3299 = vadd.f32 0.0, %v3298
          %v3300 = vpop.f32.mrf.mxu0
          %v3301 = vpop.f32.mrf.mxu0
          %v3302 = vadd.f32 0.0, %v3301
          %v3303 = vpop.f32.mrf.mxu0
          %3304 = vdwg.mxu0
          %v3305 = vadd.f32 %v3163, %v3275
          %v3306 = vadd.f32 %v3166, %v3278
          %v3307 = vadd.f32 %v3171, %v3283
          %v3308 = vadd.f32 %v3174, %v3286
          %v3309 = vadd.f32 %v3179, %v3291
          %v3310 = vadd.f32 %v3182, %v3294
          %v3311 = vadd.f32 %v3187, %v3299
          %v3312 = vadd.f32 %v3190, %v3302
          %s3313 = scalar_lea.vmem %s1491, 96
          %v3314 = vld [vmem:[%s3313] sm:$0xf]
          %v3315 = vld [vmem:[%s3313 + $0x4] sm:$0xf]
          %v3316 = vld [vmem:[%s3313 + $0x8] sm:$0xf]
          %v3317 = vld [vmem:[%s3313 + $0xc] sm:$0xf]
          %v3318 = vld [vmem:[%s3313 + $0x10] sm:$0xf]
          %v3319 = vld [vmem:[%s3313 + $0x14] sm:$0xf]
          %v3320 = vld [vmem:[%s3313 + $0x18] sm:$0xf]
          %v3321 = vld [vmem:[%s3313 + $0x1c] sm:$0xf]
          %v3322 = vpack.c.bf16 %v2850, %v2847
          %v3323 = vpack.c.bf16 %v2858, %v2855
          %v3324 = vpack.c.bf16 %v2863, %v2863
          %v3333 = vunpack.c.l.b16 %v3314
          %v3334 = vunpack.c.l.b16 %v3315
          %v3335 = vunpack.c.l.b16 %v3316
          %v3336 = vunpack.c.l.b16 %v3317
          %v3337 = vunpack.c.l.b16 %v3318
          %v3338 = vunpack.c.l.b16 %v3319
          %v3339 = vunpack.c.l.b16 %v3320
          %v3340 = vunpack.c.l.b16 %v3321
          %v3341 = vpack.c.b16 %v3334, %v3333
          %v3342 = vpack.c.b16 %v3336, %v3335
          %v3343 = vpack.c.b16 %v3338, %v3337
          %v3344 = vpack.c.b16 %v3340, %v3339
          %v3346 = vsel %vm3012, %v3341, 0
          %v3349 = vsel %vm3012, %v3342, 0
          %v3352 = vsel %vm3012, %v3343, 0
          %v3355 = vsel %vm3012, %v3344, 0
          %v3358 = vsel %vm2647, %v3324, 0
          %3360 = vmatprep.subr.bf16.mxu0 0
          %3361 = vmatpush1.bf16.msra.mxu0 0
          %3362 = vmatprep.subr.bf16.mxu0 0
          %3363 = vmatpush1.bf16.msra.mxu0 0
          %3364 = vmatprep.subr.bf16.mxu0 0
          %3365 = vmatpush1.bf16.msra.mxu0 0
          %3366 = vmatprep.subr.bf16.mxu0 0
          %3367 = vmatpush1.bf16.msra.mxu0 0
          %3368 = vmatprep.subr.bf16.mxu0 0
          %3369 = vmatpush1.bf16.msra.mxu0 0
          %3370 = vmatprep.subr.bf16.mxu0 0
          %3371 = vmatpush1.bf16.msra.mxu0 %v3358
          %3372 = vmatprep.subr.bf16.mxu0 0
          %3373 = vmatpush1.bf16.msra.mxu0 %v3323
          %3374 = vmatprep.subr.bf16.mxu0 0
          %3375 = vmatpush1.bf16.msra.mxu0 %v3322
          %3376 = vmatprep.subr.bf16.mxu0 0
          %3377 = vmatpush2.bf16.msra.mxu0 0
          %3378 = vmatprep.subr.bf16.mxu0 0
          %3379 = vmatpush2.bf16.msra.mxu0 0
          %3380 = vmatprep.subr.bf16.mxu0 0
          %3381 = vmatpush2.bf16.msra.mxu0 0
          %3382 = vmatprep.subr.bf16.mxu0 0
          %3383 = vmatpush2.bf16.msra.mxu0 0
          %3384 = vmatprep.subr.bf16.mxu0 0
          %3385 = vmatpush2.bf16.msra.mxu0 0
          %3386 = vmatprep.subr.bf16.mxu0 0
          %3387 = vmatpush2.bf16.msra.mxu0 0
          %3388 = vmatprep.subr.bf16.mxu0 0
          %3389 = vmatpush2.bf16.msra.mxu0 0
          %3390 = vmatprep.subr.bf16.mxu0 0
          %3391 = vmatpush2.bf16.msra.mxu0 0
          %3392 = vmatprep.mubr.bf16.mxu0 0
          %3393 = vmatmul.mubr.bf16.gmra.mxu0 %v3346
          %v3394 = vpop.f32.mrf.mxu0
          %v3395 = vadd.f32 0.0, %v3394
          %v3396 = vpop.f32.mrf.mxu0
          %v3397 = vpop.f32.mrf.mxu0
          %v3398 = vadd.f32 0.0, %v3397
          %v3399 = vpop.f32.mrf.mxu0
          %3400 = vmatprep.mubr.bf16.mxu0 0
          %3401 = vmatmul.mubr.bf16.gmra.mxu0 %v3349
          %v3402 = vpop.f32.mrf.mxu0
          %v3403 = vadd.f32 0.0, %v3402
          %v3404 = vpop.f32.mrf.mxu0
          %v3405 = vpop.f32.mrf.mxu0
          %v3406 = vadd.f32 0.0, %v3405
          %v3407 = vpop.f32.mrf.mxu0
          %3408 = vmatprep.mubr.bf16.mxu0 0
          %3409 = vmatmul.mubr.bf16.gmra.mxu0 %v3352
          %v3410 = vpop.f32.mrf.mxu0
          %v3411 = vadd.f32 0.0, %v3410
          %v3412 = vpop.f32.mrf.mxu0
          %v3413 = vpop.f32.mrf.mxu0
          %v3414 = vadd.f32 0.0, %v3413
          %v3415 = vpop.f32.mrf.mxu0
          %3416 = vmatprep.mubr.bf16.mxu0 0
          %3417 = vmatmul.mubr.bf16.gmra.mxu0 %v3355
          %v3418 = vpop.f32.mrf.mxu0
          %v3419 = vadd.f32 0.0, %v3418
          %v3420 = vpop.f32.mrf.mxu0
          %v3421 = vpop.f32.mrf.mxu0
          %v3422 = vadd.f32 0.0, %v3421
          %v3423 = vpop.f32.mrf.mxu0
          %3424 = vdwg.mxu0
          %v3425 = vadd.f32 %v3305, %v3395
          %v3426 = vadd.f32 %v3306, %v3398
          %v3427 = vadd.f32 %v3307, %v3403
          %v3428 = vadd.f32 %v3308, %v3406
          %v3429 = vadd.f32 %v3309, %v3411
          %v3430 = vadd.f32 %v3310, %v3414
          %v3431 = vadd.f32 %v3311, %v3419
          %v3432 = vadd.f32 %v3312, %v3422
          %s3433 = scalar_lea.vmem %s1491, 128
          %v3434 = vld [vmem:[%s3433] sm:$0xf]
          %v3435 = vld [vmem:[%s3433 + $0x4] sm:$0xf]
          %v3436 = vld [vmem:[%s3433 + $0x8] sm:$0xf]
          %v3437 = vld [vmem:[%s3433 + $0xc] sm:$0xf]
          %v3438 = vld [vmem:[%s3433 + $0x10] sm:$0xf]
          %v3439 = vld [vmem:[%s3433 + $0x14] sm:$0xf]
          %v3440 = vld [vmem:[%s3433 + $0x18] sm:$0xf]
          %v3441 = vld [vmem:[%s3433 + $0x1c] sm:$0xf]
          %v3442 = vpack.c.bf16 %v2954, %v2951
          %v3443 = vpack.c.bf16 %v2962, %v2959
          %v3444 = vpack.c.bf16 %v2967, %v2967
          %v3453 = vunpack.c.l.b16 %v3434
          %v3454 = vunpack.c.l.b16 %v3435
          %v3455 = vunpack.c.l.b16 %v3436
          %v3456 = vunpack.c.l.b16 %v3437
          %v3457 = vunpack.c.l.b16 %v3438
          %v3458 = vunpack.c.l.b16 %v3439
          %v3459 = vunpack.c.l.b16 %v3440
          %v3460 = vunpack.c.l.b16 %v3441
          %v3461 = vpack.c.b16 %v3454, %v3453
          %v3462 = vpack.c.b16 %v3456, %v3455
          %v3463 = vpack.c.b16 %v3458, %v3457
          %v3464 = vpack.c.b16 %v3460, %v3459
          %v3466 = vsel %vm3012, %v3461, 0
          %v3469 = vsel %vm3012, %v3462, 0
          %v3472 = vsel %vm3012, %v3463, 0
          %v3475 = vsel %vm3012, %v3464, 0
          %v3478 = vsel %vm2647, %v3444, 0
          %3480 = vmatprep.subr.bf16.mxu0 0
          %3481 = vmatpush1.bf16.msra.mxu0 0
          %3482 = vmatprep.subr.bf16.mxu0 0
          %3483 = vmatpush1.bf16.msra.mxu0 0
          %3484 = vmatprep.subr.bf16.mxu0 0
          %3485 = vmatpush1.bf16.msra.mxu0 0
          %3486 = vmatprep.subr.bf16.mxu0 0
          %3487 = vmatpush1.bf16.msra.mxu0 0
          %3488 = vmatprep.subr.bf16.mxu0 0
          %3489 = vmatpush1.bf16.msra.mxu0 0
          %3490 = vmatprep.subr.bf16.mxu0 0
          %3491 = vmatpush1.bf16.msra.mxu0 %v3478
          %3492 = vmatprep.subr.bf16.mxu0 0
          %3493 = vmatpush1.bf16.msra.mxu0 %v3443
          %3494 = vmatprep.subr.bf16.mxu0 0
          %3495 = vmatpush1.bf16.msra.mxu0 %v3442
          %3496 = vmatprep.subr.bf16.mxu0 0
          %3497 = vmatpush2.bf16.msra.mxu0 0
          %3498 = vmatprep.subr.bf16.mxu0 0
          %3499 = vmatpush2.bf16.msra.mxu0 0
          %3500 = vmatprep.subr.bf16.mxu0 0
          %3501 = vmatpush2.bf16.msra.mxu0 0
          %3502 = vmatprep.subr.bf16.mxu0 0
          %3503 = vmatpush2.bf16.msra.mxu0 0
          %3504 = vmatprep.subr.bf16.mxu0 0
          %3505 = vmatpush2.bf16.msra.mxu0 0
          %3506 = vmatprep.subr.bf16.mxu0 0
          %3507 = vmatpush2.bf16.msra.mxu0 0
          %3508 = vmatprep.subr.bf16.mxu0 0
          %3509 = vmatpush2.bf16.msra.mxu0 0
          %3510 = vmatprep.subr.bf16.mxu0 0
          %3511 = vmatpush2.bf16.msra.mxu0 0
          %3512 = vmatprep.mubr.bf16.mxu0 0
          %3513 = vmatmul.mubr.bf16.gmra.mxu0 %v3466
          %v3514 = vpop.f32.mrf.mxu0
          %v3515 = vadd.f32 0.0, %v3514
          %v3516 = vpop.f32.mrf.mxu0
          %v3517 = vpop.f32.mrf.mxu0
          %v3518 = vadd.f32 0.0, %v3517
          %v3519 = vpop.f32.mrf.mxu0
          %3520 = vmatprep.mubr.bf16.mxu0 0
          %3521 = vmatmul.mubr.bf16.gmra.mxu0 %v3469
          %v3522 = vpop.f32.mrf.mxu0
          %v3523 = vadd.f32 0.0, %v3522
          %v3524 = vpop.f32.mrf.mxu0
          %v3525 = vpop.f32.mrf.mxu0
          %v3526 = vadd.f32 0.0, %v3525
          %v3527 = vpop.f32.mrf.mxu0
          %3528 = vmatprep.mubr.bf16.mxu0 0
          %3529 = vmatmul.mubr.bf16.gmra.mxu0 %v3472
          %v3530 = vpop.f32.mrf.mxu0
          %v3531 = vadd.f32 0.0, %v3530
          %v3532 = vpop.f32.mrf.mxu0
          %v3533 = vpop.f32.mrf.mxu0
          %v3534 = vadd.f32 0.0, %v3533
          %v3535 = vpop.f32.mrf.mxu0
          %3536 = vmatprep.mubr.bf16.mxu0 0
          %3537 = vmatmul.mubr.bf16.gmra.mxu0 %v3475
          %v3538 = vpop.f32.mrf.mxu0
          %v3539 = vadd.f32 0.0, %v3538
          %v3540 = vpop.f32.mrf.mxu0
          %v3541 = vpop.f32.mrf.mxu0
          %v3542 = vadd.f32 0.0, %v3541
          %v3543 = vpop.f32.mrf.mxu0
          %3544 = vdwg.mxu0
          %v3545 = vadd.f32 %v3425, %v3515
          %v3546 = vadd.f32 %v3426, %v3518
          %v3547 = vadd.f32 %v3427, %v3523
          %v3548 = vadd.f32 %v3428, %v3526
          %v3549 = vadd.f32 %v3429, %v3531
          %v3550 = vadd.f32 %v3430, %v3534
          %v3551 = vadd.f32 %v3431, %v3539
          %v3552 = vadd.f32 %v3432, %v3542
          %v3553 = vld [vmem:[%s1496] sm:$0xff]
          %v3554 = vld [vmem:[%s1496 + $0x8] sm:$0xff]
          %v3555 = vld [vmem:[%s1496 + $0x10] sm:$0xff]
          %v3556 = vld [vmem:[%s1496 + $0x18] sm:$0xff]
          %v3557 = vld [vmem:[%s1496 + $0x20] sm:$0xff]
          %v3558 = vld [vmem:[%s1496 + $0x28] sm:$0xff]
          %v3559 = vld [vmem:[%s1496 + $0x30] sm:$0xff]
          %v3560 = vld [vmem:[%s1496 + $0x38] sm:$0xff]
          %3562 = vset.pattern.permute.xlu0 0
          %3563 = vperm.xlu0 %3562, %v3553
          %v3564 = vpop.permute.xlu0 %3563
          %3567 = vset.pattern.permute.xlu0 0
          %3568 = vperm.xlu0 %3567, %v3554
          %v3569 = vpop.permute.xlu0 %3568
          %3572 = vset.pattern.permute.xlu0 0
          %3573 = vperm.xlu0 %3572, %v3555
          %v3574 = vpop.permute.xlu0 %3573
          %3577 = vset.pattern.permute.xlu0 0
          %3578 = vperm.xlu0 %3577, %v3556
          %v3579 = vpop.permute.xlu0 %3578
          %3582 = vset.pattern.permute.xlu0 0
          %3583 = vperm.xlu0 %3582, %v3557
          %v3584 = vpop.permute.xlu0 %3583
          %3587 = vset.pattern.permute.xlu0 0
          %3588 = vperm.xlu0 %3587, %v3558
          %v3589 = vpop.permute.xlu0 %3588
          %3592 = vset.pattern.permute.xlu0 0
          %3593 = vperm.xlu0 %3592, %v3559
          %v3594 = vpop.permute.xlu0 %3593
          %3597 = vset.pattern.permute.xlu0 0
          %3598 = vperm.xlu0 %3597, %v3560
          %v3599 = vpop.permute.xlu0 %3598
          %v3601 = vadd.f32 %v3545, %v3564
          %v3602 = vadd.f32 %v3546, %v3569
          %v3603 = vadd.f32 %v3547, %v3574
          %v3604 = vadd.f32 %v3548, %v3579
          %v3605 = vadd.f32 %v3549, %v3584
          %v3606 = vadd.f32 %v3550, %v3589
          %v3607 = vadd.f32 %v3551, %v3594
          %v3608 = vadd.f32 %v3552, %v3599
          %v3609 = vxor.u32 %v3601, 2147483648
          %v3610 = vxor.u32 %v3602, 2147483648
          %v3611 = vxor.u32 %v3603, 2147483648
          %v3612 = vxor.u32 %v3604, 2147483648
          %v3613 = vxor.u32 %v3605, 2147483648
          %v3614 = vxor.u32 %v3606, 2147483648
          %v3615 = vxor.u32 %v3607, 2147483648
          %v3616 = vxor.u32 %v3608, 2147483648
          %v3617 = vmul.f32 %v3609, 1.442695
          %v3618 = vpow.pop %v3617
          %v3619 = vmul.f32 %v3610, 1.442695
          %v3620 = vpow.pop %v3619
          %v3621 = vmul.f32 %v3611, 1.442695
          %v3622 = vpow.pop %v3621
          %v3623 = vmul.f32 %v3612, 1.442695
          %v3624 = vpow.pop %v3623
          %v3625 = vmul.f32 %v3613, 1.442695
          %v3626 = vpow.pop %v3625
          %v3627 = vmul.f32 %v3614, 1.442695
          %v3628 = vpow.pop %v3627
          %v3629 = vmul.f32 %v3615, 1.442695
          %v3630 = vpow.pop %v3629
          %v3631 = vmul.f32 %v3616, 1.442695
          %v3632 = vpow.pop %v3631
          %v3633 = vadd.f32 %v3618, 1.0
          %v3634 = vadd.f32 %v3620, 1.0
          %v3635 = vadd.f32 %v3622, 1.0
          %v3636 = vadd.f32 %v3624, 1.0
          %v3637 = vadd.f32 %v3626, 1.0
          %v3638 = vadd.f32 %v3628, 1.0
          %v3639 = vadd.f32 %v3630, 1.0
          %v3640 = vadd.f32 %v3632, 1.0
          %v3641 = vrcp.pop %v3633
          %v3642 = vmul.f32 1.0, %v3641
          %v3643 = vrcp.pop %v3634
          %v3644 = vmul.f32 1.0, %v3643
          %v3645 = vrcp.pop %v3635
          %v3646 = vmul.f32 1.0, %v3645
          %v3647 = vrcp.pop %v3636
          %v3648 = vmul.f32 1.0, %v3647
          %v3649 = vrcp.pop %v3637
          %v3650 = vmul.f32 1.0, %v3649
          %v3651 = vrcp.pop %v3638
          %v3652 = vmul.f32 1.0, %v3651
          %v3653 = vrcp.pop %v3639
          %v3654 = vmul.f32 1.0, %v3653
          %v3655 = vrcp.pop %v3640
          %v3656 = vmul.f32 1.0, %v3655
          %v3657 = vmul.f32 %v3642, %v1667
          %v3658 = vmul.f32 %v3644, %v1668
          %v3659 = vmul.f32 %v3646, %v1669
          %v3660 = vmul.f32 %v3648, %v1670
          %v3661 = vpack.c.bf16 %v3658, %v3657
          %v3662 = vpack.c.bf16 %v3660, %v3659
          %3663 = vmatprep.subr.bf16.mxu0 0
          %3664 = vmatpush1.bf16.msra.mxu0 %v2029
          %3665 = vmatprep.subr.bf16.mxu0 0
          %3666 = vmatpush1.bf16.msra.mxu0 %v2028
          %3667 = vmatprep.subr.bf16.mxu0 0
          %3668 = vmatpush1.bf16.msra.mxu0 %v2027
          %3669 = vmatprep.subr.bf16.mxu0 0
          %3670 = vmatpush1.bf16.msra.mxu0 %v2026
          %3671 = vmatprep.subr.bf16.mxu0 0
          %3672 = vmatpush1.bf16.msra.mxu0 %v2025
          %3673 = vmatprep.subr.bf16.mxu0 0
          %3674 = vmatpush1.bf16.msra.mxu0 %v2024
          %3675 = vmatprep.subr.bf16.mxu0 0
          %3676 = vmatpush1.bf16.msra.mxu0 %v2023
          %3677 = vmatprep.subr.bf16.mxu0 0
          %3678 = vmatpush1.bf16.msra.mxu0 %v2022
          %3679 = vmatprep.subr.bf16.mxu0 0
          %3680 = vmatpush2.bf16.msra.mxu0 0
          %3681 = vmatprep.subr.bf16.mxu0 0
          %3682 = vmatpush2.bf16.msra.mxu0 0
          %3683 = vmatprep.subr.bf16.mxu0 0
          %3684 = vmatpush2.bf16.msra.mxu0 0
          %3685 = vmatprep.subr.bf16.mxu0 0
          %3686 = vmatpush2.bf16.msra.mxu0 0
          %3687 = vmatprep.subr.bf16.mxu0 0
          %3688 = vmatpush2.bf16.msra.mxu0 0
          %3689 = vmatprep.subr.bf16.mxu0 0
          %3690 = vmatpush2.bf16.msra.mxu0 0
          %3691 = vmatprep.subr.bf16.mxu0 0
          %3692 = vmatpush2.bf16.msra.mxu0 0
          %3693 = vmatprep.subr.bf16.mxu0 0
          %3694 = vmatpush2.bf16.msra.mxu0 0
          %3695 = vmatprep.mubr.bf16.mxu0 0
          %3696 = vmatmul.mubr.bf16.gmra.mxu0 %v3661
          %v3697 = vpop.f32.mrf.mxu0
          %v3698 = vadd.f32 0.0, %v3697
          %v3699 = vpop.f32.mrf.mxu0
          %v3700 = vpop.f32.mrf.mxu0
          %v3701 = vadd.f32 0.0, %v3700
          %v3702 = vpop.f32.mrf.mxu0
          %3703 = vmatprep.mubr.bf16.mxu0 0
          %3704 = vmatmul.mubr.bf16.gmra.mxu0 %v3662
          %v3705 = vpop.f32.mrf.mxu0
          %v3706 = vadd.f32 0.0, %v3705
          %v3707 = vpop.f32.mrf.mxu0
          %v3708 = vpop.f32.mrf.mxu0
          %v3709 = vadd.f32 0.0, %v3708
          %v3710 = vpop.f32.mrf.mxu0
          %3711 = vdwg.mxu0
          %3712 = vmatprep.subr.bf16.mxu0 0
          %3713 = vmatpush1.bf16.msra.mxu0 %v2747
          %3714 = vmatprep.subr.bf16.mxu0 0
          %3715 = vmatpush1.bf16.msra.mxu0 %v2746
          %3716 = vmatprep.subr.bf16.mxu0 0
          %3717 = vmatpush1.bf16.msra.mxu0 %v2745
          %3718 = vmatprep.subr.bf16.mxu0 0
          %3719 = vmatpush1.bf16.msra.mxu0 %v2744
          %3720 = vmatprep.subr.bf16.mxu0 0
          %3721 = vmatpush1.bf16.msra.mxu0 %v2743
          %3722 = vmatprep.subr.bf16.mxu0 0
          %3723 = vmatpush1.bf16.msra.mxu0 %v2742
          %3724 = vmatprep.subr.bf16.mxu0 0
          %3725 = vmatpush1.bf16.msra.mxu0 %v2741
          %3726 = vmatprep.subr.bf16.mxu0 0
          %3727 = vmatpush1.bf16.msra.mxu0 %v2740
          %3728 = vmatprep.subr.bf16.mxu0 0
          %3729 = vmatpush2.bf16.msra.mxu0 0
          %3730 = vmatprep.subr.bf16.mxu0 0
          %3731 = vmatpush2.bf16.msra.mxu0 0
          %3732 = vmatprep.subr.bf16.mxu0 0
          %3733 = vmatpush2.bf16.msra.mxu0 0
          %3734 = vmatprep.subr.bf16.mxu0 0
          %3735 = vmatpush2.bf16.msra.mxu0 0
          %3736 = vmatprep.subr.bf16.mxu0 0
          %3737 = vmatpush2.bf16.msra.mxu0 0
          %3738 = vmatprep.subr.bf16.mxu0 0
          %3739 = vmatpush2.bf16.msra.mxu0 0
          %3740 = vmatprep.subr.bf16.mxu0 0
          %3741 = vmatpush2.bf16.msra.mxu0 0
          %3742 = vmatprep.subr.bf16.mxu0 0
          %3743 = vmatpush2.bf16.msra.mxu0 0
          %3744 = vmatprep.mubr.bf16.mxu0 0
          %3745 = vmatmul.mubr.bf16.gmra.mxu0 %v3661
          %v3746 = vpop.f32.mrf.mxu0
          %v3747 = vadd.f32 0.0, %v3746
          %v3748 = vpop.f32.mrf.mxu0
          %v3749 = vpop.f32.mrf.mxu0
          %v3750 = vadd.f32 0.0, %v3749
          %v3751 = vpop.f32.mrf.mxu0
          %3752 = vmatprep.mubr.bf16.mxu0 0
          %3753 = vmatmul.mubr.bf16.gmra.mxu0 %v3662
          %v3754 = vpop.f32.mrf.mxu0
          %v3755 = vadd.f32 0.0, %v3754
          %v3756 = vpop.f32.mrf.mxu0
          %v3757 = vpop.f32.mrf.mxu0
          %v3758 = vadd.f32 0.0, %v3757
          %v3759 = vpop.f32.mrf.mxu0
          %3760 = vdwg.mxu0
          %3761 = vmatprep.subr.bf16.mxu0 0
          %3762 = vmatpush1.bf16.msra.mxu0 %v2133
          %3763 = vmatprep.subr.bf16.mxu0 0
          %3764 = vmatpush1.bf16.msra.mxu0 %v2132
          %3765 = vmatprep.subr.bf16.mxu0 0
          %3766 = vmatpush1.bf16.msra.mxu0 %v2131
          %3767 = vmatprep.subr.bf16.mxu0 0
          %3768 = vmatpush1.bf16.msra.mxu0 %v2130
          %3769 = vmatprep.subr.bf16.mxu0 0
          %3770 = vmatpush1.bf16.msra.mxu0 %v2129
          %3771 = vmatprep.subr.bf16.mxu0 0
          %3772 = vmatpush1.bf16.msra.mxu0 %v2128
          %3773 = vmatprep.subr.bf16.mxu0 0
          %3774 = vmatpush1.bf16.msra.mxu0 %v2127
          %3775 = vmatprep.subr.bf16.mxu0 0
          %3776 = vmatpush1.bf16.msra.mxu0 %v2126
          %3777 = vmatprep.subr.bf16.mxu0 0
          %3778 = vmatpush2.bf16.msra.mxu0 0
          %3779 = vmatprep.subr.bf16.mxu0 0
          %3780 = vmatpush2.bf16.msra.mxu0 0
          %3781 = vmatprep.subr.bf16.mxu0 0
          %3782 = vmatpush2.bf16.msra.mxu0 0
          %3783 = vmatprep.subr.bf16.mxu0 0
          %3784 = vmatpush2.bf16.msra.mxu0 0
          %3785 = vmatprep.subr.bf16.mxu0 0
          %3786 = vmatpush2.bf16.msra.mxu0 0
          %3787 = vmatprep.subr.bf16.mxu0 0
          %3788 = vmatpush2.bf16.msra.mxu0 0
          %3789 = vmatprep.subr.bf16.mxu0 0
          %3790 = vmatpush2.bf16.msra.mxu0 0
          %3791 = vmatprep.subr.bf16.mxu0 0
          %3792 = vmatpush2.bf16.msra.mxu0 0
          %3793 = vmatprep.mubr.bf16.mxu0 0
          %3794 = vmatmul.mubr.bf16.gmra.mxu0 %v3661
          %v3795 = vpop.f32.mrf.mxu0
          %v3796 = vadd.f32 0.0, %v3795
          %v3797 = vpop.f32.mrf.mxu0
          %v3798 = vpop.f32.mrf.mxu0
          %v3799 = vadd.f32 0.0, %v3798
          %v3800 = vpop.f32.mrf.mxu0
          %3801 = vmatprep.mubr.bf16.mxu0 0
          %3802 = vmatmul.mubr.bf16.gmra.mxu0 %v3662
          %v3803 = vpop.f32.mrf.mxu0
          %v3804 = vadd.f32 0.0, %v3803
          %v3805 = vpop.f32.mrf.mxu0
          %v3806 = vpop.f32.mrf.mxu0
          %v3807 = vadd.f32 0.0, %v3806
          %v3808 = vpop.f32.mrf.mxu0
          %3809 = vdwg.mxu0
          %3810 = vmatprep.subr.bf16.mxu0 0
          %3811 = vmatpush1.bf16.msra.mxu0 %v2907
          %3812 = vmatprep.subr.bf16.mxu0 0
          %3813 = vmatpush1.bf16.msra.mxu0 %v2906
          %3814 = vmatprep.subr.bf16.mxu0 0
          %3815 = vmatpush1.bf16.msra.mxu0 %v2905
          %3816 = vmatprep.subr.bf16.mxu0 0
          %3817 = vmatpush1.bf16.msra.mxu0 %v2904
          %3818 = vmatprep.subr.bf16.mxu0 0
          %3819 = vmatpush1.bf16.msra.mxu0 %v2903
          %3820 = vmatprep.subr.bf16.mxu0 0
          %3821 = vmatpush1.bf16.msra.mxu0 %v2902
          %3822 = vmatprep.subr.bf16.mxu0 0
          %3823 = vmatpush1.bf16.msra.mxu0 %v2901
          %3824 = vmatprep.subr.bf16.mxu0 0
          %3825 = vmatpush1.bf16.msra.mxu0 %v2900
          %3826 = vmatprep.subr.bf16.mxu0 0
          %3827 = vmatpush2.bf16.msra.mxu0 0
          %3828 = vmatprep.subr.bf16.mxu0 0
          %3829 = vmatpush2.bf16.msra.mxu0 0
          %3830 = vmatprep.subr.bf16.mxu0 0
          %3831 = vmatpush2.bf16.msra.mxu0 0
          %3832 = vmatprep.subr.bf16.mxu0 0
          %3833 = vmatpush2.bf16.msra.mxu0 0
          %3834 = vmatprep.subr.bf16.mxu0 0
          %3835 = vmatpush2.bf16.msra.mxu0 0
          %3836 = vmatprep.subr.bf16.mxu0 0
          %3837 = vmatpush2.bf16.msra.mxu0 0
          %3838 = vmatprep.subr.bf16.mxu0 0
          %3839 = vmatpush2.bf16.msra.mxu0 0
          %3840 = vmatprep.subr.bf16.mxu0 0
          %3841 = vmatpush2.bf16.msra.mxu0 0
          %3842 = vmatprep.mubr.bf16.mxu0 0
          %3843 = vmatmul.mubr.bf16.gmra.mxu0 %v3661
          %v3844 = vpop.f32.mrf.mxu0
          %v3845 = vadd.f32 0.0, %v3844
          %v3846 = vpop.f32.mrf.mxu0
          %v3847 = vpop.f32.mrf.mxu0
          %v3848 = vadd.f32 0.0, %v3847
          %v3849 = vpop.f32.mrf.mxu0
          %3850 = vmatprep.mubr.bf16.mxu0 0
          %3851 = vmatmul.mubr.bf16.gmra.mxu0 %v3662
          %v3852 = vpop.f32.mrf.mxu0
          %v3853 = vadd.f32 0.0, %v3852
          %v3854 = vpop.f32.mrf.mxu0
          %v3855 = vpop.f32.mrf.mxu0
          %v3856 = vadd.f32 0.0, %v3855
          %v3857 = vpop.f32.mrf.mxu0
          %3858 = vdwg.mxu0
          %v3859 = vld [vmem:[%s1501] sm:$0xf]
          %v3860 = vld [vmem:[%s1501 + $0x4] sm:$0xf]
          %v3861 = vld [vmem:[%s1501 + $0x8] sm:$0xf]
          %v3862 = vld [vmem:[%s1501 + $0xc] sm:$0xf]
          %v3863 = vpack.c.bf16 %v2648, %v2648
          %v3864 = vld [vmem:[%s1506] sm:$0xf]
          %v3865 = vld [vmem:[%s1506 + $0x4] sm:$0xf]
          %v3866 = vld [vmem:[%s1506 + $0x8] sm:$0xf]
          %v3867 = vld [vmem:[%s1506 + $0xc] sm:$0xf]
          %v3872 = vunpack.c.l.b16 %v3864
          %v3873 = vunpack.c.l.b16 %v3865
          %v3874 = vunpack.c.l.b16 %v3866
          %v3875 = vunpack.c.l.b16 %v3867
          %v3876 = vpack.c.b16 %v3873, %v3872
          %v3877 = vpack.c.b16 %v3875, %v3874
          %v3879 = vsel %vm1690, %v3876, 0
          %v3882 = vsel %vm1690, %v3877, 0
          %3884 = vmatprep.subr.bf16.mxu0 0
          %3885 = vmatpush1.bf16.msra.mxu0 0
          %3886 = vmatprep.subr.bf16.mxu0 0
          %3887 = vmatpush1.bf16.msra.mxu0 0
          %3888 = vmatprep.subr.bf16.mxu0 0
          %3889 = vmatpush1.bf16.msra.mxu0 0
          %3890 = vmatprep.subr.bf16.mxu0 0
          %3891 = vmatpush1.bf16.msra.mxu0 0
          %3892 = vmatprep.subr.bf16.mxu0 0
          %3893 = vmatpush1.bf16.msra.mxu0 0
          %3894 = vmatprep.subr.bf16.mxu0 0
          %3895 = vmatpush1.bf16.msra.mxu0 0
          %3896 = vmatprep.subr.bf16.mxu0 0
          %3897 = vmatpush1.bf16.msra.mxu0 %v3662
          %3898 = vmatprep.subr.bf16.mxu0 0
          %3899 = vmatpush1.bf16.msra.mxu0 %v3661
          %3900 = vmatprep.subr.bf16.mxu0 0
          %3901 = vmatpush2.bf16.msra.mxu0 0
          %3902 = vmatprep.subr.bf16.mxu0 0
          %3903 = vmatpush2.bf16.msra.mxu0 0
          %3904 = vmatprep.subr.bf16.mxu0 0
          %3905 = vmatpush2.bf16.msra.mxu0 0
          %3906 = vmatprep.subr.bf16.mxu0 0
          %3907 = vmatpush2.bf16.msra.mxu0 0
          %3908 = vmatprep.subr.bf16.mxu0 0
          %3909 = vmatpush2.bf16.msra.mxu0 0
          %3910 = vmatprep.subr.bf16.mxu0 0
          %3911 = vmatpush2.bf16.msra.mxu0 0
          %3912 = vmatprep.subr.bf16.mxu0 0
          %3913 = vmatpush2.bf16.msra.mxu0 0
          %3914 = vmatprep.subr.bf16.mxu0 0
          %3915 = vmatpush2.bf16.msra.mxu0 0
          %3916 = vmatprep.mubr.bf16.mxu0 0
          %3917 = vmatmul.mubr.bf16.gmra.mxu0 %v3879
          %v3918 = vpop.f32.mrf.mxu0
          %v3919 = vadd.f32 0.0, %v3918
          %v3920 = vpop.f32.mrf.mxu0
          %v3921 = vpop.f32.mrf.mxu0
          %v3922 = vadd.f32 0.0, %v3921
          %v3923 = vpop.f32.mrf.mxu0
          %3924 = vmatprep.mubr.bf16.mxu0 0
          %3925 = vmatmul.mubr.bf16.gmra.mxu0 %v3882
          %v3926 = vpop.f32.mrf.mxu0
          %v3927 = vadd.f32 0.0, %v3926
          %v3928 = vpop.f32.mrf.mxu0
          %v3929 = vpop.f32.mrf.mxu0
          %v3930 = vadd.f32 0.0, %v3929
          %v3931 = vpop.f32.mrf.mxu0
          %3932 = vdwg.mxu0
          %v3937 = vunpack.c.l.b16 %v3859
          %v3938 = vunpack.c.l.b16 %v3860
          %v3939 = vunpack.c.l.b16 %v3861
          %v3940 = vunpack.c.l.b16 %v3862
          %v3941 = vpack.c.b16 %v3938, %v3937
          %v3942 = vpack.c.b16 %v3940, %v3939
          %vm3943 = vcmask 64512
          %v3945 = vsel %vm3943, %v3941, 0
          %v3948 = vsel %vm3943, %v3942, 0
          %v3951 = vsel %vm2647, %v3863, 0
          %3953 = vmatprep.subr.bf16.mxu0 0
          %3954 = vmatpush1.bf16.msra.mxu0 0
          %3955 = vmatprep.subr.bf16.mxu0 0
          %3956 = vmatpush1.bf16.msra.mxu0 0
          %3957 = vmatprep.subr.bf16.mxu0 0
          %3958 = vmatpush1.bf16.msra.mxu0 0
          %3959 = vmatprep.subr.bf16.mxu0 0
          %3960 = vmatpush1.bf16.msra.mxu0 0
          %3961 = vmatprep.subr.bf16.mxu0 0
          %3962 = vmatpush1.bf16.msra.mxu0 0
          %3963 = vmatprep.subr.bf16.mxu0 0
          %3964 = vmatpush1.bf16.msra.mxu0 0
          %3965 = vmatprep.subr.bf16.mxu0 0
          %3966 = vmatpush1.bf16.msra.mxu0 0
          %3967 = vmatprep.subr.bf16.mxu0 0
          %3968 = vmatpush1.bf16.msra.mxu0 %v3951
          %3969 = vmatprep.subr.bf16.mxu0 0
          %3970 = vmatpush2.bf16.msra.mxu0 0
          %3971 = vmatprep.subr.bf16.mxu0 0
          %3972 = vmatpush2.bf16.msra.mxu0 0
          %3973 = vmatprep.subr.bf16.mxu0 0
          %3974 = vmatpush2.bf16.msra.mxu0 0
          %3975 = vmatprep.subr.bf16.mxu0 0
          %3976 = vmatpush2.bf16.msra.mxu0 0
          %3977 = vmatprep.subr.bf16.mxu0 0
          %3978 = vmatpush2.bf16.msra.mxu0 0
          %3979 = vmatprep.subr.bf16.mxu0 0
          %3980 = vmatpush2.bf16.msra.mxu0 0
          %3981 = vmatprep.subr.bf16.mxu0 0
          %3982 = vmatpush2.bf16.msra.mxu0 0
          %3983 = vmatprep.subr.bf16.mxu0 0
          %3984 = vmatpush2.bf16.msra.mxu0 0
          %3985 = vmatprep.mubr.bf16.mxu0 0
          %3986 = vmatmul.mubr.bf16.gmra.mxu0 %v3945
          %v3987 = vpop.f32.mrf.mxu0
          %v3988 = vadd.f32 %v3919, %v3987
          %v3989 = vpop.f32.mrf.mxu0
          %v3990 = vpop.f32.mrf.mxu0
          %v3991 = vadd.f32 %v3922, %v3990
          %v3992 = vpop.f32.mrf.mxu0
          %3993 = vmatprep.mubr.bf16.mxu0 0
          %3994 = vmatmul.mubr.bf16.gmra.mxu0 %v3948
          %v3995 = vpop.f32.mrf.mxu0
          %v3996 = vadd.f32 %v3927, %v3995
          %v3997 = vpop.f32.mrf.mxu0
          %v3998 = vpop.f32.mrf.mxu0
          %v3999 = vadd.f32 %v3930, %v3998
          %v4000 = vpop.f32.mrf.mxu0
          %4001 = vdwg.mxu0
          %s4002 = scalar_lea.vmem %s1501, 16
          %v4003 = vld [vmem:[%s4002] sm:$0xf]
          %v4004 = vld [vmem:[%s4002 + $0x4] sm:$0xf]
          %v4005 = vld [vmem:[%s4002 + $0x8] sm:$0xf]
          %v4006 = vld [vmem:[%s4002 + $0xc] sm:$0xf]
          %v4007 = vpack.c.bf16 %v2687, %v2687
          %v4012 = vunpack.c.l.b16 %v4003
          %v4013 = vunpack.c.l.b16 %v4004
          %v4014 = vunpack.c.l.b16 %v4005
          %v4015 = vunpack.c.l.b16 %v4006
          %v4016 = vpack.c.b16 %v4013, %v4012
          %v4017 = vpack.c.b16 %v4015, %v4014
          %v4019 = vsel %vm3943, %v4016, 0
          %v4022 = vsel %vm3943, %v4017, 0
          %v4025 = vsel %vm2647, %v4007, 0
          %4027 = vmatprep.subr.bf16.mxu0 0
          %4028 = vmatpush1.bf16.msra.mxu0 0
          %4029 = vmatprep.subr.bf16.mxu0 0
          %4030 = vmatpush1.bf16.msra.mxu0 0
          %4031 = vmatprep.subr.bf16.mxu0 0
          %4032 = vmatpush1.bf16.msra.mxu0 0
          %4033 = vmatprep.subr.bf16.mxu0 0
          %4034 = vmatpush1.bf16.msra.mxu0 0
          %4035 = vmatprep.subr.bf16.mxu0 0
          %4036 = vmatpush1.bf16.msra.mxu0 0
          %4037 = vmatprep.subr.bf16.mxu0 0
          %4038 = vmatpush1.bf16.msra.mxu0 0
          %4039 = vmatprep.subr.bf16.mxu0 0
          %4040 = vmatpush1.bf16.msra.mxu0 0
          %4041 = vmatprep.subr.bf16.mxu0 0
          %4042 = vmatpush1.bf16.msra.mxu0 %v4025
          %4043 = vmatprep.subr.bf16.mxu0 0
          %4044 = vmatpush2.bf16.msra.mxu0 0
          %4045 = vmatprep.subr.bf16.mxu0 0
          %4046 = vmatpush2.bf16.msra.mxu0 0
          %4047 = vmatprep.subr.bf16.mxu0 0
          %4048 = vmatpush2.bf16.msra.mxu0 0
          %4049 = vmatprep.subr.bf16.mxu0 0
          %4050 = vmatpush2.bf16.msra.mxu0 0
          %4051 = vmatprep.subr.bf16.mxu0 0
          %4052 = vmatpush2.bf16.msra.mxu0 0
          %4053 = vmatprep.subr.bf16.mxu0 0
          %4054 = vmatpush2.bf16.msra.mxu0 0
          %4055 = vmatprep.subr.bf16.mxu0 0
          %4056 = vmatpush2.bf16.msra.mxu0 0
          %4057 = vmatprep.subr.bf16.mxu0 0
          %4058 = vmatpush2.bf16.msra.mxu0 0
          %4059 = vmatprep.mubr.bf16.mxu0 0
          %4060 = vmatmul.mubr.bf16.gmra.mxu0 %v4019
          %v4061 = vpop.f32.mrf.mxu0
          %v4062 = vadd.f32 0.0, %v4061
          %v4063 = vpop.f32.mrf.mxu0
          %v4064 = vpop.f32.mrf.mxu0
          %v4065 = vadd.f32 0.0, %v4064
          %v4066 = vpop.f32.mrf.mxu0
          %4067 = vmatprep.mubr.bf16.mxu0 0
          %4068 = vmatmul.mubr.bf16.gmra.mxu0 %v4022
          %v4069 = vpop.f32.mrf.mxu0
          %v4070 = vadd.f32 0.0, %v4069
          %v4071 = vpop.f32.mrf.mxu0
          %v4072 = vpop.f32.mrf.mxu0
          %v4073 = vadd.f32 0.0, %v4072
          %v4074 = vpop.f32.mrf.mxu0
          %4075 = vdwg.mxu0
          %v4076 = vadd.f32 %v3988, %v4062
          %v4077 = vadd.f32 %v3991, %v4065
          %v4078 = vadd.f32 %v3996, %v4070
          %v4079 = vadd.f32 %v3999, %v4073
          %s4080 = scalar_lea.vmem %s1506, 16
          %v4081 = vld [vmem:[%s4080] sm:$0xf]
          %v4082 = vld [vmem:[%s4080 + $0x4] sm:$0xf]
          %v4083 = vld [vmem:[%s4080 + $0x8] sm:$0xf]
          %v4084 = vld [vmem:[%s4080 + $0xc] sm:$0xf]
          %v4085 = vpack.c.bf16 %v3701, %v3698
          %v4086 = vpack.c.bf16 %v3709, %v3706
          %v4091 = vunpack.c.l.b16 %v4081
          %v4092 = vunpack.c.l.b16 %v4082
          %v4093 = vunpack.c.l.b16 %v4083
          %v4094 = vunpack.c.l.b16 %v4084
          %v4095 = vpack.c.b16 %v4092, %v4091
          %v4096 = vpack.c.b16 %v4094, %v4093
          %v4098 = vsel %vm1690, %v4095, 0
          %v4101 = vsel %vm1690, %v4096, 0
          %4103 = vmatprep.subr.bf16.mxu0 0
          %4104 = vmatpush1.bf16.msra.mxu0 0
          %4105 = vmatprep.subr.bf16.mxu0 0
          %4106 = vmatpush1.bf16.msra.mxu0 0
          %4107 = vmatprep.subr.bf16.mxu0 0
          %4108 = vmatpush1.bf16.msra.mxu0 0
          %4109 = vmatprep.subr.bf16.mxu0 0
          %4110 = vmatpush1.bf16.msra.mxu0 0
          %4111 = vmatprep.subr.bf16.mxu0 0
          %4112 = vmatpush1.bf16.msra.mxu0 0
          %4113 = vmatprep.subr.bf16.mxu0 0
          %4114 = vmatpush1.bf16.msra.mxu0 0
          %4115 = vmatprep.subr.bf16.mxu0 0
          %4116 = vmatpush1.bf16.msra.mxu0 %v4086
          %4117 = vmatprep.subr.bf16.mxu0 0
          %4118 = vmatpush1.bf16.msra.mxu0 %v4085
          %4119 = vmatprep.subr.bf16.mxu0 0
          %4120 = vmatpush2.bf16.msra.mxu0 0
          %4121 = vmatprep.subr.bf16.mxu0 0
          %4122 = vmatpush2.bf16.msra.mxu0 0
          %4123 = vmatprep.subr.bf16.mxu0 0
          %4124 = vmatpush2.bf16.msra.mxu0 0
          %4125 = vmatprep.subr.bf16.mxu0 0
          %4126 = vmatpush2.bf16.msra.mxu0 0
          %4127 = vmatprep.subr.bf16.mxu0 0
          %4128 = vmatpush2.bf16.msra.mxu0 0
          %4129 = vmatprep.subr.bf16.mxu0 0
          %4130 = vmatpush2.bf16.msra.mxu0 0
          %4131 = vmatprep.subr.bf16.mxu0 0
          %4132 = vmatpush2.bf16.msra.mxu0 0
          %4133 = vmatprep.subr.bf16.mxu0 0
          %4134 = vmatpush2.bf16.msra.mxu0 0
          %4135 = vmatprep.mubr.bf16.mxu0 0
          %4136 = vmatmul.mubr.bf16.gmra.mxu0 %v4098
          %v4137 = vpop.f32.mrf.mxu0
          %v4138 = vadd.f32 0.0, %v4137
          %v4139 = vpop.f32.mrf.mxu0
          %v4140 = vpop.f32.mrf.mxu0
          %v4141 = vadd.f32 0.0, %v4140
          %v4142 = vpop.f32.mrf.mxu0
          %4143 = vmatprep.mubr.bf16.mxu0 0
          %4144 = vmatmul.mubr.bf16.gmra.mxu0 %v4101
          %v4145 = vpop.f32.mrf.mxu0
          %v4146 = vadd.f32 0.0, %v4145
          %v4147 = vpop.f32.mrf.mxu0
          %v4148 = vpop.f32.mrf.mxu0
          %v4149 = vadd.f32 0.0, %v4148
          %v4150 = vpop.f32.mrf.mxu0
          %4151 = vdwg.mxu0
          %v4152 = vadd.f32 %v4076, %v4138
          %v4153 = vadd.f32 %v4077, %v4141
          %v4154 = vadd.f32 %v4078, %v4146
          %v4155 = vadd.f32 %v4079, %v4149
          %s4156 = scalar_lea.vmem %s1501, 32
          %v4157 = vld [vmem:[%s4156] sm:$0xf]
          %v4158 = vld [vmem:[%s4156 + $0x4] sm:$0xf]
          %v4159 = vld [vmem:[%s4156 + $0x8] sm:$0xf]
          %v4160 = vld [vmem:[%s4156 + $0xc] sm:$0xf]
          %v4161 = vpack.c.bf16 %v2791, %v2791
          %v4166 = vunpack.c.l.b16 %v4157
          %v4167 = vunpack.c.l.b16 %v4158
          %v4168 = vunpack.c.l.b16 %v4159
          %v4169 = vunpack.c.l.b16 %v4160
          %v4170 = vpack.c.b16 %v4167, %v4166
          %v4171 = vpack.c.b16 %v4169, %v4168
          %v4173 = vsel %vm3943, %v4170, 0
          %v4176 = vsel %vm3943, %v4171, 0
          %v4179 = vsel %vm2647, %v4161, 0
          %4181 = vmatprep.subr.bf16.mxu0 0
          %4182 = vmatpush1.bf16.msra.mxu0 0
          %4183 = vmatprep.subr.bf16.mxu0 0
          %4184 = vmatpush1.bf16.msra.mxu0 0
          %4185 = vmatprep.subr.bf16.mxu0 0
          %4186 = vmatpush1.bf16.msra.mxu0 0
          %4187 = vmatprep.subr.bf16.mxu0 0
          %4188 = vmatpush1.bf16.msra.mxu0 0
          %4189 = vmatprep.subr.bf16.mxu0 0
          %4190 = vmatpush1.bf16.msra.mxu0 0
          %4191 = vmatprep.subr.bf16.mxu0 0
          %4192 = vmatpush1.bf16.msra.mxu0 0
          %4193 = vmatprep.subr.bf16.mxu0 0
          %4194 = vmatpush1.bf16.msra.mxu0 0
          %4195 = vmatprep.subr.bf16.mxu0 0
          %4196 = vmatpush1.bf16.msra.mxu0 %v4179
          %4197 = vmatprep.subr.bf16.mxu0 0
          %4198 = vmatpush2.bf16.msra.mxu0 0
          %4199 = vmatprep.subr.bf16.mxu0 0
          %4200 = vmatpush2.bf16.msra.mxu0 0
          %4201 = vmatprep.subr.bf16.mxu0 0
          %4202 = vmatpush2.bf16.msra.mxu0 0
          %4203 = vmatprep.subr.bf16.mxu0 0
          %4204 = vmatpush2.bf16.msra.mxu0 0
          %4205 = vmatprep.subr.bf16.mxu0 0
          %4206 = vmatpush2.bf16.msra.mxu0 0
          %4207 = vmatprep.subr.bf16.mxu0 0
          %4208 = vmatpush2.bf16.msra.mxu0 0
          %4209 = vmatprep.subr.bf16.mxu0 0
          %4210 = vmatpush2.bf16.msra.mxu0 0
          %4211 = vmatprep.subr.bf16.mxu0 0
          %4212 = vmatpush2.bf16.msra.mxu0 0
          %4213 = vmatprep.mubr.bf16.mxu0 0
          %4214 = vmatmul.mubr.bf16.gmra.mxu0 %v4173
          %v4215 = vpop.f32.mrf.mxu0
          %v4216 = vadd.f32 0.0, %v4215
          %v4217 = vpop.f32.mrf.mxu0
          %v4218 = vpop.f32.mrf.mxu0
          %v4219 = vadd.f32 0.0, %v4218
          %v4220 = vpop.f32.mrf.mxu0
          %4221 = vmatprep.mubr.bf16.mxu0 0
          %4222 = vmatmul.mubr.bf16.gmra.mxu0 %v4176
          %v4223 = vpop.f32.mrf.mxu0
          %v4224 = vadd.f32 0.0, %v4223
          %v4225 = vpop.f32.mrf.mxu0
          %v4226 = vpop.f32.mrf.mxu0
          %v4227 = vadd.f32 0.0, %v4226
          %v4228 = vpop.f32.mrf.mxu0
          %4229 = vdwg.mxu0
          %v4230 = vadd.f32 %v4152, %v4216
          %v4231 = vadd.f32 %v4153, %v4219
          %v4232 = vadd.f32 %v4154, %v4224
          %v4233 = vadd.f32 %v4155, %v4227
          %s4234 = scalar_lea.vmem %s1506, 32
          %v4235 = vld [vmem:[%s4234] sm:$0xf]
          %v4236 = vld [vmem:[%s4234 + $0x4] sm:$0xf]
          %v4237 = vld [vmem:[%s4234 + $0x8] sm:$0xf]
          %v4238 = vld [vmem:[%s4234 + $0xc] sm:$0xf]
          %v4239 = vpack.c.bf16 %v3750, %v3747
          %v4240 = vpack.c.bf16 %v3758, %v3755
          %v4245 = vunpack.c.l.b16 %v4235
          %v4246 = vunpack.c.l.b16 %v4236
          %v4247 = vunpack.c.l.b16 %v4237
          %v4248 = vunpack.c.l.b16 %v4238
          %v4249 = vpack.c.b16 %v4246, %v4245
          %v4250 = vpack.c.b16 %v4248, %v4247
          %v4252 = vsel %vm1690, %v4249, 0
          %v4255 = vsel %vm1690, %v4250, 0
          %4257 = vmatprep.subr.bf16.mxu0 0
          %4258 = vmatpush1.bf16.msra.mxu0 0
          %4259 = vmatprep.subr.bf16.mxu0 0
          %4260 = vmatpush1.bf16.msra.mxu0 0
          %4261 = vmatprep.subr.bf16.mxu0 0
          %4262 = vmatpush1.bf16.msra.mxu0 0
          %4263 = vmatprep.subr.bf16.mxu0 0
          %4264 = vmatpush1.bf16.msra.mxu0 0
          %4265 = vmatprep.subr.bf16.mxu0 0
          %4266 = vmatpush1.bf16.msra.mxu0 0
          %4267 = vmatprep.subr.bf16.mxu0 0
          %4268 = vmatpush1.bf16.msra.mxu0 0
          %4269 = vmatprep.subr.bf16.mxu0 0
          %4270 = vmatpush1.bf16.msra.mxu0 %v4240
          %4271 = vmatprep.subr.bf16.mxu0 0
          %4272 = vmatpush1.bf16.msra.mxu0 %v4239
          %4273 = vmatprep.subr.bf16.mxu0 0
          %4274 = vmatpush2.bf16.msra.mxu0 0
          %4275 = vmatprep.subr.bf16.mxu0 0
          %4276 = vmatpush2.bf16.msra.mxu0 0
          %4277 = vmatprep.subr.bf16.mxu0 0
          %4278 = vmatpush2.bf16.msra.mxu0 0
          %4279 = vmatprep.subr.bf16.mxu0 0
          %4280 = vmatpush2.bf16.msra.mxu0 0
          %4281 = vmatprep.subr.bf16.mxu0 0
          %4282 = vmatpush2.bf16.msra.mxu0 0
          %4283 = vmatprep.subr.bf16.mxu0 0
          %4284 = vmatpush2.bf16.msra.mxu0 0
          %4285 = vmatprep.subr.bf16.mxu0 0
          %4286 = vmatpush2.bf16.msra.mxu0 0
          %4287 = vmatprep.subr.bf16.mxu0 0
          %4288 = vmatpush2.bf16.msra.mxu0 0
          %4289 = vmatprep.mubr.bf16.mxu0 0
          %4290 = vmatmul.mubr.bf16.gmra.mxu0 %v4252
          %v4291 = vpop.f32.mrf.mxu0
          %v4292 = vadd.f32 0.0, %v4291
          %v4293 = vpop.f32.mrf.mxu0
          %v4294 = vpop.f32.mrf.mxu0
          %v4295 = vadd.f32 0.0, %v4294
          %v4296 = vpop.f32.mrf.mxu0
          %4297 = vmatprep.mubr.bf16.mxu0 0
          %4298 = vmatmul.mubr.bf16.gmra.mxu0 %v4255
          %v4299 = vpop.f32.mrf.mxu0
          %v4300 = vadd.f32 0.0, %v4299
          %v4301 = vpop.f32.mrf.mxu0
          %v4302 = vpop.f32.mrf.mxu0
          %v4303 = vadd.f32 0.0, %v4302
          %v4304 = vpop.f32.mrf.mxu0
          %4305 = vdwg.mxu0
          %v4306 = vadd.f32 %v4230, %v4292
          %v4307 = vadd.f32 %v4231, %v4295
          %v4308 = vadd.f32 %v4232, %v4300
          %v4309 = vadd.f32 %v4233, %v4303
          %s4310 = scalar_lea.vmem %s1501, 48
          %v4311 = vld [vmem:[%s4310] sm:$0xf]
          %v4312 = vld [vmem:[%s4310 + $0x4] sm:$0xf]
          %v4313 = vld [vmem:[%s4310 + $0x8] sm:$0xf]
          %v4314 = vld [vmem:[%s4310 + $0xc] sm:$0xf]
          %v4315 = vpack.c.bf16 %v2847, %v2847
          %v4320 = vunpack.c.l.b16 %v4311
          %v4321 = vunpack.c.l.b16 %v4312
          %v4322 = vunpack.c.l.b16 %v4313
          %v4323 = vunpack.c.l.b16 %v4314
          %v4324 = vpack.c.b16 %v4321, %v4320
          %v4325 = vpack.c.b16 %v4323, %v4322
          %v4327 = vsel %vm3943, %v4324, 0
          %v4330 = vsel %vm3943, %v4325, 0
          %v4333 = vsel %vm2647, %v4315, 0
          %4335 = vmatprep.subr.bf16.mxu0 0
          %4336 = vmatpush1.bf16.msra.mxu0 0
          %4337 = vmatprep.subr.bf16.mxu0 0
          %4338 = vmatpush1.bf16.msra.mxu0 0
          %4339 = vmatprep.subr.bf16.mxu0 0
          %4340 = vmatpush1.bf16.msra.mxu0 0
          %4341 = vmatprep.subr.bf16.mxu0 0
          %4342 = vmatpush1.bf16.msra.mxu0 0
          %4343 = vmatprep.subr.bf16.mxu0 0
          %4344 = vmatpush1.bf16.msra.mxu0 0
          %4345 = vmatprep.subr.bf16.mxu0 0
          %4346 = vmatpush1.bf16.msra.mxu0 0
          %4347 = vmatprep.subr.bf16.mxu0 0
          %4348 = vmatpush1.bf16.msra.mxu0 0
          %4349 = vmatprep.subr.bf16.mxu0 0
          %4350 = vmatpush1.bf16.msra.mxu0 %v4333
          %4351 = vmatprep.subr.bf16.mxu0 0
          %4352 = vmatpush2.bf16.msra.mxu0 0
          %4353 = vmatprep.subr.bf16.mxu0 0
          %4354 = vmatpush2.bf16.msra.mxu0 0
          %4355 = vmatprep.subr.bf16.mxu0 0
          %4356 = vmatpush2.bf16.msra.mxu0 0
          %4357 = vmatprep.subr.bf16.mxu0 0
          %4358 = vmatpush2.bf16.msra.mxu0 0
          %4359 = vmatprep.subr.bf16.mxu0 0
          %4360 = vmatpush2.bf16.msra.mxu0 0
          %4361 = vmatprep.subr.bf16.mxu0 0
          %4362 = vmatpush2.bf16.msra.mxu0 0
          %4363 = vmatprep.subr.bf16.mxu0 0
          %4364 = vmatpush2.bf16.msra.mxu0 0
          %4365 = vmatprep.subr.bf16.mxu0 0
          %4366 = vmatpush2.bf16.msra.mxu0 0
          %4367 = vmatprep.mubr.bf16.mxu0 0
          %4368 = vmatmul.mubr.bf16.gmra.mxu0 %v4327
          %v4369 = vpop.f32.mrf.mxu0
          %v4370 = vadd.f32 0.0, %v4369
          %v4371 = vpop.f32.mrf.mxu0
          %v4372 = vpop.f32.mrf.mxu0
          %v4373 = vadd.f32 0.0, %v4372
          %v4374 = vpop.f32.mrf.mxu0
          %4375 = vmatprep.mubr.bf16.mxu0 0
          %4376 = vmatmul.mubr.bf16.gmra.mxu0 %v4330
          %v4377 = vpop.f32.mrf.mxu0
          %v4378 = vadd.f32 0.0, %v4377
          %v4379 = vpop.f32.mrf.mxu0
          %v4380 = vpop.f32.mrf.mxu0
          %v4381 = vadd.f32 0.0, %v4380
          %v4382 = vpop.f32.mrf.mxu0
          %4383 = vdwg.mxu0
          %v4384 = vadd.f32 %v4306, %v4370
          %v4385 = vadd.f32 %v4307, %v4373
          %v4386 = vadd.f32 %v4308, %v4378
          %v4387 = vadd.f32 %v4309, %v4381
          %s4388 = scalar_lea.vmem %s1506, 48
          %v4389 = vld [vmem:[%s4388] sm:$0xf]
          %v4390 = vld [vmem:[%s4388 + $0x4] sm:$0xf]
          %v4391 = vld [vmem:[%s4388 + $0x8] sm:$0xf]
          %v4392 = vld [vmem:[%s4388 + $0xc] sm:$0xf]
          %v4393 = vpack.c.bf16 %v3799, %v3796
          %v4394 = vpack.c.bf16 %v3807, %v3804
          %v4399 = vunpack.c.l.b16 %v4389
          %v4400 = vunpack.c.l.b16 %v4390
          %v4401 = vunpack.c.l.b16 %v4391
          %v4402 = vunpack.c.l.b16 %v4392
          %v4403 = vpack.c.b16 %v4400, %v4399
          %v4404 = vpack.c.b16 %v4402, %v4401
          %v4406 = vsel %vm1690, %v4403, 0
          %v4409 = vsel %vm1690, %v4404, 0
          %4411 = vmatprep.subr.bf16.mxu0 0
          %4412 = vmatpush1.bf16.msra.mxu0 0
          %4413 = vmatprep.subr.bf16.mxu0 0
          %4414 = vmatpush1.bf16.msra.mxu0 0
          %4415 = vmatprep.subr.bf16.mxu0 0
          %4416 = vmatpush1.bf16.msra.mxu0 0
          %4417 = vmatprep.subr.bf16.mxu0 0
          %4418 = vmatpush1.bf16.msra.mxu0 0
          %4419 = vmatprep.subr.bf16.mxu0 0
          %4420 = vmatpush1.bf16.msra.mxu0 0
          %4421 = vmatprep.subr.bf16.mxu0 0
          %4422 = vmatpush1.bf16.msra.mxu0 0
          %4423 = vmatprep.subr.bf16.mxu0 0
          %4424 = vmatpush1.bf16.msra.mxu0 %v4394
          %4425 = vmatprep.subr.bf16.mxu0 0
          %4426 = vmatpush1.bf16.msra.mxu0 %v4393
          %4427 = vmatprep.subr.bf16.mxu0 0
          %4428 = vmatpush2.bf16.msra.mxu0 0
          %4429 = vmatprep.subr.bf16.mxu0 0
          %4430 = vmatpush2.bf16.msra.mxu0 0
          %4431 = vmatprep.subr.bf16.mxu0 0
          %4432 = vmatpush2.bf16.msra.mxu0 0
          %4433 = vmatprep.subr.bf16.mxu0 0
          %4434 = vmatpush2.bf16.msra.mxu0 0
          %4435 = vmatprep.subr.bf16.mxu0 0
          %4436 = vmatpush2.bf16.msra.mxu0 0
          %4437 = vmatprep.subr.bf16.mxu0 0
          %4438 = vmatpush2.bf16.msra.mxu0 0
          %4439 = vmatprep.subr.bf16.mxu0 0
          %4440 = vmatpush2.bf16.msra.mxu0 0
          %4441 = vmatprep.subr.bf16.mxu0 0
          %4442 = vmatpush2.bf16.msra.mxu0 0
          %4443 = vmatprep.mubr.bf16.mxu0 0
          %4444 = vmatmul.mubr.bf16.gmra.mxu0 %v4406
          %v4445 = vpop.f32.mrf.mxu0
          %v4446 = vadd.f32 0.0, %v4445
          %v4447 = vpop.f32.mrf.mxu0
          %v4448 = vpop.f32.mrf.mxu0
          %v4449 = vadd.f32 0.0, %v4448
          %v4450 = vpop.f32.mrf.mxu0
          %4451 = vmatprep.mubr.bf16.mxu0 0
          %4452 = vmatmul.mubr.bf16.gmra.mxu0 %v4409
          %v4453 = vpop.f32.mrf.mxu0
          %v4454 = vadd.f32 0.0, %v4453
          %v4455 = vpop.f32.mrf.mxu0
          %v4456 = vpop.f32.mrf.mxu0
          %v4457 = vadd.f32 0.0, %v4456
          %v4458 = vpop.f32.mrf.mxu0
          %4459 = vdwg.mxu0
          %v4460 = vadd.f32 %v4384, %v4446
          %v4461 = vadd.f32 %v4385, %v4449
          %v4462 = vadd.f32 %v4386, %v4454
          %v4463 = vadd.f32 %v4387, %v4457
          %s4464 = scalar_lea.vmem %s1501, 64
          %v4465 = vld [vmem:[%s4464] sm:$0xf]
          %v4466 = vld [vmem:[%s4464 + $0x4] sm:$0xf]
          %v4467 = vld [vmem:[%s4464 + $0x8] sm:$0xf]
          %v4468 = vld [vmem:[%s4464 + $0xc] sm:$0xf]
          %v4469 = vpack.c.bf16 %v2951, %v2951
          %v4474 = vunpack.c.l.b16 %v4465
          %v4475 = vunpack.c.l.b16 %v4466
          %v4476 = vunpack.c.l.b16 %v4467
          %v4477 = vunpack.c.l.b16 %v4468
          %v4478 = vpack.c.b16 %v4475, %v4474
          %v4479 = vpack.c.b16 %v4477, %v4476
          %v4481 = vsel %vm3943, %v4478, 0
          %v4484 = vsel %vm3943, %v4479, 0
          %v4487 = vsel %vm2647, %v4469, 0
          %4489 = vmatprep.subr.bf16.mxu0 0
          %4490 = vmatpush1.bf16.msra.mxu0 0
          %4491 = vmatprep.subr.bf16.mxu0 0
          %4492 = vmatpush1.bf16.msra.mxu0 0
          %4493 = vmatprep.subr.bf16.mxu0 0
          %4494 = vmatpush1.bf16.msra.mxu0 0
          %4495 = vmatprep.subr.bf16.mxu0 0
          %4496 = vmatpush1.bf16.msra.mxu0 0
          %4497 = vmatprep.subr.bf16.mxu0 0
          %4498 = vmatpush1.bf16.msra.mxu0 0
          %4499 = vmatprep.subr.bf16.mxu0 0
          %4500 = vmatpush1.bf16.msra.mxu0 0
          %4501 = vmatprep.subr.bf16.mxu0 0
          %4502 = vmatpush1.bf16.msra.mxu0 0
          %4503 = vmatprep.subr.bf16.mxu0 0
          %4504 = vmatpush1.bf16.msra.mxu0 %v4487
          %4505 = vmatprep.subr.bf16.mxu0 0
          %4506 = vmatpush2.bf16.msra.mxu0 0
          %4507 = vmatprep.subr.bf16.mxu0 0
          %4508 = vmatpush2.bf16.msra.mxu0 0
          %4509 = vmatprep.subr.bf16.mxu0 0
          %4510 = vmatpush2.bf16.msra.mxu0 0
          %4511 = vmatprep.subr.bf16.mxu0 0
          %4512 = vmatpush2.bf16.msra.mxu0 0
          %4513 = vmatprep.subr.bf16.mxu0 0
          %4514 = vmatpush2.bf16.msra.mxu0 0
          %4515 = vmatprep.subr.bf16.mxu0 0
          %4516 = vmatpush2.bf16.msra.mxu0 0
          %4517 = vmatprep.subr.bf16.mxu0 0
          %4518 = vmatpush2.bf16.msra.mxu0 0
          %4519 = vmatprep.subr.bf16.mxu0 0
          %4520 = vmatpush2.bf16.msra.mxu0 0
          %4521 = vmatprep.mubr.bf16.mxu0 0
          %4522 = vmatmul.mubr.bf16.gmra.mxu0 %v4481
          %v4523 = vpop.f32.mrf.mxu0
          %v4524 = vadd.f32 0.0, %v4523
          %v4525 = vpop.f32.mrf.mxu0
          %v4526 = vpop.f32.mrf.mxu0
          %v4527 = vadd.f32 0.0, %v4526
          %v4528 = vpop.f32.mrf.mxu0
          %4529 = vmatprep.mubr.bf16.mxu0 0
          %4530 = vmatmul.mubr.bf16.gmra.mxu0 %v4484
          %v4531 = vpop.f32.mrf.mxu0
          %v4532 = vadd.f32 0.0, %v4531
          %v4533 = vpop.f32.mrf.mxu0
          %v4534 = vpop.f32.mrf.mxu0
          %v4535 = vadd.f32 0.0, %v4534
          %v4536 = vpop.f32.mrf.mxu0
          %4537 = vdwg.mxu0
          %v4538 = vadd.f32 %v4460, %v4524
          %v4539 = vadd.f32 %v4461, %v4527
          %v4540 = vadd.f32 %v4462, %v4532
          %v4541 = vadd.f32 %v4463, %v4535
          %s4542 = scalar_lea.vmem %s1506, 64
          %v4543 = vld [vmem:[%s4542] sm:$0xf]
          %v4544 = vld [vmem:[%s4542 + $0x4] sm:$0xf]
          %v4545 = vld [vmem:[%s4542 + $0x8] sm:$0xf]
          %v4546 = vld [vmem:[%s4542 + $0xc] sm:$0xf]
          %v4547 = vpack.c.bf16 %v3848, %v3845
          %v4548 = vpack.c.bf16 %v3856, %v3853
          %v4553 = vunpack.c.l.b16 %v4543
          %v4554 = vunpack.c.l.b16 %v4544
          %v4555 = vunpack.c.l.b16 %v4545
          %v4556 = vunpack.c.l.b16 %v4546
          %v4557 = vpack.c.b16 %v4554, %v4553
          %v4558 = vpack.c.b16 %v4556, %v4555
          %v4560 = vsel %vm1690, %v4557, 0
          %v4563 = vsel %vm1690, %v4558, 0
          %4565 = vmatprep.subr.bf16.mxu0 0
          %4566 = vmatpush1.bf16.msra.mxu0 0
          %4567 = vmatprep.subr.bf16.mxu0 0
          %4568 = vmatpush1.bf16.msra.mxu0 0
          %4569 = vmatprep.subr.bf16.mxu0 0
          %4570 = vmatpush1.bf16.msra.mxu0 0
          %4571 = vmatprep.subr.bf16.mxu0 0
          %4572 = vmatpush1.bf16.msra.mxu0 0
          %4573 = vmatprep.subr.bf16.mxu0 0
          %4574 = vmatpush1.bf16.msra.mxu0 0
          %4575 = vmatprep.subr.bf16.mxu0 0
          %4576 = vmatpush1.bf16.msra.mxu0 0
          %4577 = vmatprep.subr.bf16.mxu0 0
          %4578 = vmatpush1.bf16.msra.mxu0 %v4548
          %4579 = vmatprep.subr.bf16.mxu0 0
          %4580 = vmatpush1.bf16.msra.mxu0 %v4547
          %4581 = vmatprep.subr.bf16.mxu0 0
          %4582 = vmatpush2.bf16.msra.mxu0 0
          %4583 = vmatprep.subr.bf16.mxu0 0
          %4584 = vmatpush2.bf16.msra.mxu0 0
          %4585 = vmatprep.subr.bf16.mxu0 0
          %4586 = vmatpush2.bf16.msra.mxu0 0
          %4587 = vmatprep.subr.bf16.mxu0 0
          %4588 = vmatpush2.bf16.msra.mxu0 0
          %4589 = vmatprep.subr.bf16.mxu0 0
          %4590 = vmatpush2.bf16.msra.mxu0 0
          %4591 = vmatprep.subr.bf16.mxu0 0
          %4592 = vmatpush2.bf16.msra.mxu0 0
          %4593 = vmatprep.subr.bf16.mxu0 0
          %4594 = vmatpush2.bf16.msra.mxu0 0
          %4595 = vmatprep.subr.bf16.mxu0 0
          %4596 = vmatpush2.bf16.msra.mxu0 0
          %4597 = vmatprep.mubr.bf16.mxu0 0
          %4598 = vmatmul.mubr.bf16.gmra.mxu0 %v4560
          %v4599 = vpop.f32.mrf.mxu0
          %v4600 = vadd.f32 0.0, %v4599
          %v4601 = vpop.f32.mrf.mxu0
          %v4602 = vpop.f32.mrf.mxu0
          %v4603 = vadd.f32 0.0, %v4602
          %v4604 = vpop.f32.mrf.mxu0
          %4605 = vmatprep.mubr.bf16.mxu0 0
          %4606 = vmatmul.mubr.bf16.gmra.mxu0 %v4563
          %v4607 = vpop.f32.mrf.mxu0
          %v4608 = vadd.f32 0.0, %v4607
          %v4609 = vpop.f32.mrf.mxu0
          %v4610 = vpop.f32.mrf.mxu0
          %v4611 = vadd.f32 0.0, %v4610
          %v4612 = vpop.f32.mrf.mxu0
          %4613 = vdwg.mxu0
          %v4614 = vadd.f32 %v4538, %v4600
          %v4615 = vadd.f32 %v4539, %v4603
          %v4616 = vadd.f32 %v4540, %v4608
          %v4617 = vadd.f32 %v4541, %v4611
          %v4618 = vld [vmem:[%s1511] sm:$0xff]
          %v4619 = vld [vmem:[%s1511 + $0x8] sm:$0xff]
          %v4620 = vld [vmem:[%s1511 + $0x10] sm:$0xff]
          %v4621 = vld [vmem:[%s1511 + $0x18] sm:$0xff]
          %4623 = vset.pattern.permute.xlu0 0
          %4624 = vperm.xlu0 %4623, %v4618
          %v4625 = vpop.permute.xlu0 %4624
          %4628 = vset.pattern.permute.xlu0 0
          %4629 = vperm.xlu0 %4628, %v4619
          %v4630 = vpop.permute.xlu0 %4629
          %4633 = vset.pattern.permute.xlu0 0
          %4634 = vperm.xlu0 %4633, %v4620
          %v4635 = vpop.permute.xlu0 %4634
          %4638 = vset.pattern.permute.xlu0 0
          %4639 = vperm.xlu0 %4638, %v4621
          %v4640 = vpop.permute.xlu0 %4639
          %v4642 = vadd.f32 %v4614, %v4625
          %v4643 = vadd.f32 %v4615, %v4630
          %v4644 = vadd.f32 %v4616, %v4635
          %v4645 = vadd.f32 %v4617, %v4640
          %v4646 = vtanh.pop %v4642
          %v4647 = vtanh.pop %v4643
          %v4648 = vtanh.pop %v4644
          %v4649 = vtanh.pop %v4645
          %v4650 = vmul.f32 %v3650, %v1667
          %v4651 = vmul.f32 %v3652, %v1668
          %v4652 = vmul.f32 %v3654, %v1669
          %v4653 = vmul.f32 %v3656, %v1670
          %v4654 = vsub.f32 1.0, %v3650
          %v4655 = vsub.f32 1.0, %v3652
          %v4656 = vsub.f32 1.0, %v3654
          %v4657 = vsub.f32 1.0, %v3656
          %v4658 = vmul.f32 %v4654, %v4646
          %v4659 = vmul.f32 %v4655, %v4647
          %v4660 = vmul.f32 %v4656, %v4648
          %v4661 = vmul.f32 %v4657, %v4649
          %v4662 = vadd.f32 %v4650, %v4658
          %v4663 = vadd.f32 %v4651, %v4659
          %v4664 = vadd.f32 %v4652, %v4660
          %v4665 = vadd.f32 %v4653, %v4661
        $region141: #{bigril_forward.2} parent=127 // loop_footer
          %s1666 = sadd.s32 1, %s1662
        $region142: #{bigril_forward.2} parent=127 // loop_footer_branch
          %1661 = sbr.rel target = $region138
        $region143: #{bigril_forward.2} parent=127 // loop_exit
          _
        %4666 = vst [vmem:[#allocation2] sm:$0xff] %v1667
        %4667 = vst [vmem:[#allocation2 + $0x8] sm:$0xff] %v1668
        %4668 = vst [vmem:[#allocation2 + $0x10] sm:$0xff] %v1669
        %4669 = vst [vmem:[#allocation2 + $0x18] sm:$0xff] %v1670
        %s4670 = smul.u32 %s79, 2
        %s4671 = ssub.s32 0, %s4670
        %s4672 = smul.u32 %s77, %s4671
        %s4673 = sadd.s32 %s79, %s4672
        %s4674 = smul.u32 8, %s4673
        %p4675 = scmp.lt.s32.totalorder %s77, 1
        %s4676 = scalar_select %p4675, %s77, 1
        %p4677 = scmp.lt.s32.totalorder %s78, 1
        %s4678 = scalar_select %p4677, %s78, 1
        %p4679 = scmp.lt.s32.totalorder %s4674, 7
        %s4680 = scalar_select %p4679, %s4674, 7
        %s4681 = smul.addr %s4678, 8
        %s4682 = sadd.s32 %s4680, %s4681
        %s4683 = smul.addr %s4676, 16
        %s4684 = sadd.s32 %s4682, %s4683
        %s4685 = smul.addr %s4684, 4
        %s4686 = scalar_lea.vmem %s55, %s4685
        %s4687 = smul.u32 %s79, 2
        %s4688 = ssub.s32 0, %s4687
        %s4689 = smul.u32 %s77, %s4688
        %s4690 = sadd.s32 %s79, %s4689
        %s4691 = smul.u32 8, %s4690
        %p4692 = scmp.lt.s32.totalorder %s77, 1
        %s4693 = scalar_select %p4692, %s77, 1
        %p4694 = scmp.lt.s32.totalorder %s78, 1
        %s4695 = scalar_select %p4694, %s78, 1
        %p4696 = scmp.lt.s32.totalorder %s4691, 7
        %s4697 = scalar_select %p4696, %s4691, 7
        %s4698 = smul.addr %s4695, 8
        %s4699 = sadd.s32 %s4697, %s4698
        %s4700 = smul.addr %s4693, 16
        %s4701 = sadd.s32 %s4699, %s4700
        %s4702 = smul.addr %s4701, 4
        %s4703 = scalar_lea.vmem %s57, %s4702
        %s4704 = smul.u32 %s79, 2
        %s4705 = ssub.s32 0, %s4704
        %s4706 = smul.u32 %s77, %s4705
        %s4707 = sadd.s32 %s79, %s4706
        %s4708 = smul.u32 8, %s4707
        %p4709 = scmp.lt.s32.totalorder %s77, 1
        %s4710 = scalar_select %p4709, %s77, 1
        %p4711 = scmp.lt.s32.totalorder %s78, 1
        %s4712 = scalar_select %p4711, %s78, 1
        %p4713 = scmp.lt.s32.totalorder %s4708, 7
        %s4714 = scalar_select %p4713, %s4708, 7
        %s4715 = smul.addr %s4714, 8
        %s4716 = smul.addr %s4712, 64
        %s4717 = sadd.s32 %s4715, %s4716
        %s4718 = smul.addr %s4710, 128
        %s4719 = sadd.s32 %s4717, %s4718
        %s4720 = smul.addr %s4719, 8
        %s4721 = scalar_lea.vmem %s59, %s4720
        // Predicated region
        $region144: #{bigril_forward.2} parent=127 // pred_check
          %p4722 = pneg %p818
        $region145: #{bigril_forward.2} parent=127 // pred_check_branch
          %4724 = sbr.rel (%p4722) target = $region147
        $region146: #{bigril_forward.2} parent=127 // pred_region
          %s4725 = smul.u32 %s79, 2
          %s4726 = ssub.s32 0, %s4725
          %s4727 = smul.u32 %s77, %s4726
          %s4728 = sadd.s32 %s79, %s4727
          %s4729 = smul.u32 8, %s4728
        $region147: #{bigril_forward.2} parent=127 // pred_fallthru
          _
        // Predicated region
        $region148: #{bigril_forward.2} parent=127 // pred_check
          %p4730 = pneg %p856
        $region149: #{bigril_forward.2} parent=127 // pred_check_branch
          %4732 = sbr.rel (%p4730) target = $region151
        $region150: #{bigril_forward.2} parent=127 // pred_region
          %s4733 = smul.u32 %s79, 2
          %s4734 = ssub.s32 0, %s4733
          %s4735 = smul.u32 %s77, %s4734
          %s4736 = sadd.s32 %s79, %s4735
          %s4737 = smul.u32 8, %s4736
        $region151: #{bigril_forward.2} parent=127 // pred_fallthru
          _
        // Predicated region
        $region152: #{bigril_forward.2} parent=127 // pred_check
          %p4738 = pneg %p894
        $region153: #{bigril_forward.2} parent=127 // pred_check_branch
          %4740 = sbr.rel (%p4738) target = $region155
        $region154: #{bigril_forward.2} parent=127 // pred_region
          %s4741 = smul.u32 %s79, 2
          %s4742 = ssub.s32 0, %s4741
          %s4743 = smul.u32 %s77, %s4742
          %s4744 = sadd.s32 %s79, %s4743
          %s4745 = smul.u32 8, %s4744
        $region155: #{bigril_forward.2} parent=127 // pred_fallthru
          _
      $region128: #{bigril_forward.2} parent=5 // pred_fallthru
        _
      %p4746 = scmp.le.s32.totalorder 2, %s67
      // Predicated region
      $region156: #{bigril_forward.2} parent=5 // pred_check
        %p4747 = pneg %p4746
      $region157: #{bigril_forward.2} parent=5 // pred_check_branch
        %4749 = sbr.rel (%p4747) target = $region159
      $region158: #{bigril_forward.2} parent=5 // pred_region
        %s4750 = ssub.s32 %s67, 2
        // Predicated region
        $region160: #{bigril_forward.2} parent=158 // pred_check
          %p4751 = pneg %p824
        $region161: #{bigril_forward.2} parent=158 // pred_check_branch
          %4753 = sbr.rel (%p4751) target = $region163
        $region162: #{bigril_forward.2} parent=158 // pred_region
          %s4754 = smul.u32 %s82, 2
          %s4755 = ssub.s32 0, %s4754
          %s4756 = smul.u32 %s80, %s4755
          %s4757 = sadd.s32 %s82, %s4756
          %s4758 = smul.u32 8, %s4757
          %p4759 = scmp.lt.s32.totalorder %s80, 1
          %s4760 = scalar_select %p4759, %s80, 1
          %p4761 = scmp.lt.s32.totalorder %s81, 1
          %s4762 = scalar_select %p4761, %s81, 1
          %p4763 = scmp.lt.s32.totalorder %s4758, 7
          %s4764 = scalar_select %p4763, %s4758, 7
          %s4765 = smul.addr %s4762, 8
          %s4766 = sadd.s32 %s4764, %s4765
          %s4767 = smul.addr %s4760, 16
          %s4768 = sadd.s32 %s4766, %s4767
          %s4769 = smul.addr %s4768, 4
          %s4770 = scalar_lea.vmem %s55, %s4769
        $region163: #{bigril_forward.2} parent=158 // pred_fallthru
          _
        // Predicated region
        $region164: #{bigril_forward.2} parent=158 // pred_check
          %p4771 = pneg %p862
        $region165: #{bigril_forward.2} parent=158 // pred_check_branch
          %4773 = sbr.rel (%p4771) target = $region167
        $region166: #{bigril_forward.2} parent=158 // pred_region
          %s4774 = smul.u32 %s82, 2
          %s4775 = ssub.s32 0, %s4774
          %s4776 = smul.u32 %s80, %s4775
          %s4777 = sadd.s32 %s82, %s4776
          %s4778 = smul.u32 8, %s4777
          %p4779 = scmp.lt.s32.totalorder %s80, 1
          %s4780 = scalar_select %p4779, %s80, 1
          %p4781 = scmp.lt.s32.totalorder %s81, 1
          %s4782 = scalar_select %p4781, %s81, 1
          %p4783 = scmp.lt.s32.totalorder %s4778, 7
          %s4784 = scalar_select %p4783, %s4778, 7
          %s4785 = smul.addr %s4782, 8
          %s4786 = sadd.s32 %s4784, %s4785
          %s4787 = smul.addr %s4780, 16
          %s4788 = sadd.s32 %s4786, %s4787
          %s4789 = smul.addr %s4788, 4
          %s4790 = scalar_lea.vmem %s57, %s4789
        $region167: #{bigril_forward.2} parent=158 // pred_fallthru
          _
        // Predicated region
        $region168: #{bigril_forward.2} parent=158 // pred_check
          %p4791 = pneg %p900
        $region169: #{bigril_forward.2} parent=158 // pred_check_branch
          %4793 = sbr.rel (%p4791) target = $region171
        $region170: #{bigril_forward.2} parent=158 // pred_region
          %s4794 = smul.u32 %s82, 2
          %s4795 = ssub.s32 0, %s4794
          %s4796 = smul.u32 %s80, %s4795
          %s4797 = sadd.s32 %s82, %s4796
          %s4798 = smul.u32 8, %s4797
          %p4799 = scmp.lt.s32.totalorder %s80, 1
          %s4800 = scalar_select %p4799, %s80, 1
          %p4801 = scmp.lt.s32.totalorder %s81, 1
          %s4802 = scalar_select %p4801, %s81, 1
          %p4803 = scmp.lt.s32.totalorder %s4798, 7
          %s4804 = scalar_select %p4803, %s4798, 7
          %s4805 = smul.addr %s4804, 8
          %s4806 = smul.addr %s4802, 64
          %s4807 = sadd.s32 %s4805, %s4806
          %s4808 = smul.addr %s4800, 128
          %s4809 = sadd.s32 %s4807, %s4808
          %s4810 = smul.addr %s4809, 8
          %s4811 = scalar_lea.vmem %s59, %s4810
        $region171: #{bigril_forward.2} parent=158 // pred_fallthru
          _
      $region159: #{bigril_forward.2} parent=5 // pred_fallthru
        _
    $region6: #{bigril_forward.2} parent=1 // loop_footer
      %s71 = sadd.s32 1, %s67
    $region7: #{bigril_forward.2} parent=1 // loop_footer_branch
      %66 = sbr.rel target = $region3
    $region8: #{bigril_forward.2} parent=1 // loop_exit
      _
    %4812 = vsyncpa [#allocation4], 1
    %s4813 = scalar_lea.sflag [#allocation4], 1
    %4814 = vsyncpa %s4813, 1

// kernel: bigril_forward.3
$region0: #{bigril_forward.3}
  #allocation0 [shape = 'u32[]', space=smem, size = 0x4, offset = 0x4, fixed_abs, tag = 'smem constant byte address 0x4 - core index']
  #allocation1 [shape = 'u32[144,128]{1,0:T(1,128)}', space=vmem, size = 0x12000, scoped, tag = 'internal scratch']
  %s0 = inlined_call_operand.vmem [shape: f32[2,2,8,64,128], index: 0, kind: input, shape index: {}, may-alias: {0,1}]
  %s1 = inlined_call_operand.vmem [shape: f32[2,2,8,64,128], index: 1, kind: input, shape index: {}, may-alias: {0,1}]
  %s2 = inlined_call_operand.vmem [shape: f32[2,8,4,128], index: 2, kind: input, shape index: {}]
  %s3 = inlined_call_operand.vmem [shape: bf16[64,64], index: 3, kind: input, shape index: {}]
  %s4 = inlined_call_operand.vmem [shape: bf16[64,64], index: 4, kind: input, shape index: {}]
  %s5 = inlined_call_operand.vmem [shape: bf16[64,4], index: 5, kind: input, shape index: {}]
  %s6 = inlined_call_operand.vmem [shape: f32[64,1], index: 6, kind: input, shape index: {}]
  %s7 = inlined_call_operand.vmem [shape: bf16[4,64], index: 7, kind: input, shape index: {}]
  %s8 = inlined_call_operand.vmem [shape: f32[4,1], index: 8, kind: input, shape index: {}]
  %s9 = inlined_call_operand.vmem [shape: f32[2,8,4,128], index: 9, kind: output, shape index: {}]
  %s10 = sld [smem:[#allocation0]]
  $region69: #{bigril_forward.3} parent=0
    _
  %s12 = ssub.s32 1, %s10
  %s13 = scalar_select 0, %s12, %s10
  loop: start=0, step=1, limit=4
  $region2: #{bigril_forward.3} parent=0 // loop_pre_header
    _
  $region3: #{bigril_forward.3} parent=0 // loop_header
    %s15 = sphi 0, %s19
    %p16 = scmp.ge.s32.totalorder %s15, 4
    %s22 = sphi 0, %s34
    %s23 = sphi 0, %s30
    %s24 = sphi 0, %s22
    %s25 = sphi 0, %s23
    %s26 = sphi 0, %s24
    %s27 = sphi 0, %s25
    %s39 = sphi 0, %s41
    %s42 = sphi 0, %s39
    %s43 = sphi 0, %s42
    %s59 = sphi 0, %s43
    %s67 = sphi 0, %s69
    %s70 = sphi 0, %s67
    %s71 = sphi 0, %s70
    %s87 = sphi 0, %s71
    %s95 = sphi 0, %s97
    %s98 = sphi 0, %s95
    %s99 = sphi 0, %s98
    %s115 = sphi 0, %s99
    %s119 = sphi 0, %s119
    %s121 = sphi 0, %s119
    %s122 = sphi 0, %s121
    %s136 = sphi 0, %s122
    %s140 = sphi 0, %s140
    %s142 = sphi 0, %s140
    %s143 = sphi 0, %s142
    %s157 = sphi 0, %s143
    %s161 = sphi 0, %s161
    %s163 = sphi 0, %s161
    %s164 = sphi 0, %s163
    %s178 = sphi 0, %s164
    %s182 = sphi 0, %s182
    %s184 = sphi 0, %s182
    %s185 = sphi 0, %s184
    %s199 = sphi 0, %s185
    %s203 = sphi 0, %s203
    %s205 = sphi 0, %s203
    %s206 = sphi 0, %s205
    %s220 = sphi 0, %s206
    %s224 = sphi 0, %s224
    %s226 = sphi 0, %s224
    %s227 = sphi 0, %s226
    %s241 = sphi 0, %s227
    %s249 = sphi 0, %s251
    %s252 = sphi 0, %s249
    %s253 = sphi 0, %s252
    %s269 = sphi 0, %s253
  $region4: #{bigril_forward.3} parent=0 // loop_header_branch
    %18 = sbr.rel (%p16) target = $region8
  $region5: #{bigril_forward.3} parent=0 // loop_body
    %s20 = ssub.s32 %s15, 1
    %s21 = ssub.s32 %s15, 2
    %s28 = sadd.s32 1, %s23
    %p29 = scmp.ge.s32.totalorder %s28, 1
    %s30 = scalar_select %p29, 0, %s28
    %s31 = sadd.s32 1, %s22
    %s32 = scalar_select %p29, %s31, %s22
    %p33 = scmp.ge.s32.totalorder %s32, 2
    %s34 = scalar_select %p33, 0, %s32
    %s35 = ssub.s32 %s22, %s34
    %s36 = ssub.s32 %s23, %s30
    %s37 = sor.u32 %s35, %s36
    %p38 = scmp.eq.s32.totalorder %s37, 0
    %s40 = sadd.s32 %s39, 1
    %s41 = scalar_select %p38, %s39, %s40
    %p44 = pneg %p38
    %p45 = scmp.eq.s32.totalorder %s15, 1
    %p46 = por %p44, %p45
    %p47 = scmp.ne.s32.totalorder %s39, %s42
    %p48 = scmp.eq.s32.totalorder %s15, 0
    %p49 = por %p47, %p48
    %p50 = scmp.ne.s32.totalorder %s39, %s42
    %p51 = scmp.eq.s32.totalorder %s20, 1
    %p52 = por %p50, %p51
    %p53 = scmp.ne.s32.totalorder %s42, %s43
    %p54 = scmp.eq.s32.totalorder %s20, 0
    %p55 = por %p53, %p54
    %p56 = scmp.ne.s32.totalorder %s42, %s43
    %p57 = scmp.eq.s32.totalorder %s21, 1
    %p58 = por %p56, %p57
    %p60 = scmp.ne.s32.totalorder %s43, %s59
    %p61 = scmp.eq.s32.totalorder %s21, 0
    %p62 = por %p60, %p61
    %s63 = ssub.s32 %s22, %s34
    %s64 = ssub.s32 %s23, %s30
    %s65 = sor.u32 %s63, %s64
    %p66 = scmp.eq.s32.totalorder %s65, 0
    %s68 = sadd.s32 %s67, 1
    %s69 = scalar_select %p66, %s67, %s68
    %p72 = pneg %p66
    %p73 = scmp.eq.s32.totalorder %s15, 1
    %p74 = por %p72, %p73
    %p75 = scmp.ne.s32.totalorder %s67, %s70
    %p76 = scmp.eq.s32.totalorder %s15, 0
    %p77 = por %p75, %p76
    %p78 = scmp.ne.s32.totalorder %s67, %s70
    %p79 = scmp.eq.s32.totalorder %s20, 1
    %p80 = por %p78, %p79
    %p81 = scmp.ne.s32.totalorder %s70, %s71
    %p82 = scmp.eq.s32.totalorder %s20, 0
    %p83 = por %p81, %p82
    %p84 = scmp.ne.s32.totalorder %s70, %s71
    %p85 = scmp.eq.s32.totalorder %s21, 1
    %p86 = por %p84, %p85
    %p88 = scmp.ne.s32.totalorder %s71, %s87
    %p89 = scmp.eq.s32.totalorder %s21, 0
    %p90 = por %p88, %p89
    %s91 = ssub.s32 %s22, %s34
    %s92 = ssub.s32 %s23, %s30
    %s93 = sor.u32 %s91, %s92
    %p94 = scmp.eq.s32.totalorder %s93, 0
    %s96 = sadd.s32 %s95, 1
    %s97 = scalar_select %p94, %s95, %s96
    %p100 = pneg %p94
    %p101 = scmp.eq.s32.totalorder %s15, 1
    %p102 = por %p100, %p101
    %p103 = scmp.ne.s32.totalorder %s95, %s98
    %p104 = scmp.eq.s32.totalorder %s15, 0
    %p105 = por %p103, %p104
    %p106 = scmp.ne.s32.totalorder %s95, %s98
    %p107 = scmp.eq.s32.totalorder %s20, 1
    %p108 = por %p106, %p107
    %p109 = scmp.ne.s32.totalorder %s98, %s99
    %p110 = scmp.eq.s32.totalorder %s20, 0
    %p111 = por %p109, %p110
    %p112 = scmp.ne.s32.totalorder %s98, %s99
    %p113 = scmp.eq.s32.totalorder %s21, 1
    %p114 = por %p112, %p113
    %p116 = scmp.ne.s32.totalorder %s99, %s115
    %p117 = scmp.eq.s32.totalorder %s21, 0
    %p118 = por %p116, %p117
    %s120 = sadd.s32 %s119, 1
    %p123 = scmp.eq.s32.totalorder %s15, 1
    %p124 = scmp.ne.s32.totalorder %s119, %s121
    %p125 = scmp.eq.s32.totalorder %s15, 0
    %p126 = por %p124, %p125
    %p127 = scmp.ne.s32.totalorder %s119, %s121
    %p128 = scmp.eq.s32.totalorder %s20, 1
    %p129 = por %p127, %p128
    %p130 = scmp.ne.s32.totalorder %s121, %s122
    %p131 = scmp.eq.s32.totalorder %s20, 0
    %p132 = por %p130, %p131
    %p133 = scmp.ne.s32.totalorder %s121, %s122
    %p134 = scmp.eq.s32.totalorder %s21, 1
    %p135 = por %p133, %p134
    %p137 = scmp.ne.s32.totalorder %s122, %s136
    %p138 = scmp.eq.s32.totalorder %s21, 0
    %p139 = por %p137, %p138
    %s141 = sadd.s32 %s140, 1
    %p144 = scmp.eq.s32.totalorder %s15, 1
    %p145 = scmp.ne.s32.totalorder %s140, %s142
    %p146 = scmp.eq.s32.totalorder %s15, 0
    %p147 = por %p145, %p146
    %p148 = scmp.ne.s32.totalorder %s140, %s142
    %p149 = scmp.eq.s32.totalorder %s20, 1
    %p150 = por %p148, %p149
    %p151 = scmp.ne.s32.totalorder %s142, %s143
    %p152 = scmp.eq.s32.totalorder %s20, 0
    %p153 = por %p151, %p152
    %p154 = scmp.ne.s32.totalorder %s142, %s143
    %p155 = scmp.eq.s32.totalorder %s21, 1
    %p156 = por %p154, %p155
    %p158 = scmp.ne.s32.totalorder %s143, %s157
    %p159 = scmp.eq.s32.totalorder %s21, 0
    %p160 = por %p158, %p159
    %s162 = sadd.s32 %s161, 1
    %p165 = scmp.eq.s32.totalorder %s15, 1
    %p166 = scmp.ne.s32.totalorder %s161, %s163
    %p167 = scmp.eq.s32.totalorder %s15, 0
    %p168 = por %p166, %p167
    %p169 = scmp.ne.s32.totalorder %s161, %s163
    %p170 = scmp.eq.s32.totalorder %s20, 1
    %p171 = por %p169, %p170
    %p172 = scmp.ne.s32.totalorder %s163, %s164
    %p173 = scmp.eq.s32.totalorder %s20, 0
    %p174 = por %p172, %p173
    %p175 = scmp.ne.s32.totalorder %s163, %s164
    %p176 = scmp.eq.s32.totalorder %s21, 1
    %p177 = por %p175, %p176
    %p179 = scmp.ne.s32.totalorder %s164, %s178
    %p180 = scmp.eq.s32.totalorder %s21, 0
    %p181 = por %p179, %p180
    %s183 = sadd.s32 %s182, 1
    %p186 = scmp.eq.s32.totalorder %s15, 1
    %p187 = scmp.ne.s32.totalorder %s182, %s184
    %p188 = scmp.eq.s32.totalorder %s15, 0
    %p189 = por %p187, %p188
    %p190 = scmp.ne.s32.totalorder %s182, %s184
    %p191 = scmp.eq.s32.totalorder %s20, 1
    %p192 = por %p190, %p191
    %p193 = scmp.ne.s32.totalorder %s184, %s185
    %p194 = scmp.eq.s32.totalorder %s20, 0
    %p195 = por %p193, %p194
    %p196 = scmp.ne.s32.totalorder %s184, %s185
    %p197 = scmp.eq.s32.totalorder %s21, 1
    %p198 = por %p196, %p197
    %p200 = scmp.ne.s32.totalorder %s185, %s199
    %p201 = scmp.eq.s32.totalorder %s21, 0
    %p202 = por %p200, %p201
    %s204 = sadd.s32 %s203, 1
    %p207 = scmp.eq.s32.totalorder %s15, 1
    %p208 = scmp.ne.s32.totalorder %s203, %s205
    %p209 = scmp.eq.s32.totalorder %s15, 0
    %p210 = por %p208, %p209
    %p211 = scmp.ne.s32.totalorder %s203, %s205
    %p212 = scmp.eq.s32.totalorder %s20, 1
    %p213 = por %p211, %p212
    %p214 = scmp.ne.s32.totalorder %s205, %s206
    %p215 = scmp.eq.s32.totalorder %s20, 0
    %p216 = por %p214, %p215
    %p217 = scmp.ne.s32.totalorder %s205, %s206
    %p218 = scmp.eq.s32.totalorder %s21, 1
    %p219 = por %p217, %p218
    %p221 = scmp.ne.s32.totalorder %s206, %s220
    %p222 = scmp.eq.s32.totalorder %s21, 0
    %p223 = por %p221, %p222
    %s225 = sadd.s32 %s224, 1
    %p228 = scmp.eq.s32.totalorder %s15, 1
    %p229 = scmp.ne.s32.totalorder %s224, %s226
    %p230 = scmp.eq.s32.totalorder %s15, 0
    %p231 = por %p229, %p230
    %p232 = scmp.ne.s32.totalorder %s224, %s226
    %p233 = scmp.eq.s32.totalorder %s20, 1
    %p234 = por %p232, %p233
    %p235 = scmp.ne.s32.totalorder %s226, %s227
    %p236 = scmp.eq.s32.totalorder %s20, 0
    %p237 = por %p235, %p236
    %p238 = scmp.ne.s32.totalorder %s226, %s227
    %p239 = scmp.eq.s32.totalorder %s21, 1
    %p240 = por %p238, %p239
    %p242 = scmp.ne.s32.totalorder %s227, %s241
    %p243 = scmp.eq.s32.totalorder %s21, 0
    %p244 = por %p242, %p243
    %s245 = ssub.s32 %s22, %s34
    %s246 = ssub.s32 %s23, %s30
    %s247 = sor.u32 %s245, %s246
    %p248 = scmp.eq.s32.totalorder %s247, 0
    %s250 = sadd.s32 %s249, 1
    %s251 = scalar_select %p248, %s249, %s250
    %p254 = pneg %p248
    %p255 = scmp.eq.s32.totalorder %s15, 1
    %p256 = por %p254, %p255
    %p257 = scmp.ne.s32.totalorder %s249, %s252
    %p258 = scmp.eq.s32.totalorder %s15, 0
    %p259 = por %p257, %p258
    %p260 = scmp.ne.s32.totalorder %s249, %s252
    %p261 = scmp.eq.s32.totalorder %s20, 1
    %p262 = por %p260, %p261
    %p263 = scmp.ne.s32.totalorder %s252, %s253
    %p264 = scmp.eq.s32.totalorder %s20, 0
    %p265 = por %p263, %p264
    %p266 = scmp.ne.s32.totalorder %s252, %s253
    %p267 = scmp.eq.s32.totalorder %s21, 1
    %p268 = por %p266, %p267
    %p270 = scmp.ne.s32.totalorder %s253, %s269
    %p271 = scmp.eq.s32.totalorder %s21, 0
    %p272 = por %p270, %p271
    %p273 = scmp.le.s32.totalorder 1, %s15
    %p274 = scmp.lt.s32.totalorder %s15, 3
    %p275 = pnand %p273, %p274
    %p276 = pneg %p275
    // Predicated region
    $region9: #{bigril_forward.3} parent=5 // pred_check
      _
    $region10: #{bigril_forward.3} parent=5 // pred_check_branch
      %278 = sbr.rel (%p275) target = $region12
    $region11: #{bigril_forward.3} parent=5 // pred_region
      %s279 = ssub.s32 %s15, 1
      // Predicated region
      $region13: #{bigril_forward.3} parent=11 // pred_check
        %p280 = pneg %p132
      $region14: #{bigril_forward.3} parent=11 // pred_check_branch
        %282 = sbr.rel (%p280) target = $region16
      $region15: #{bigril_forward.3} parent=11 // pred_region
        _
      $region16: #{bigril_forward.3} parent=11 // pred_fallthru
        _
      // Predicated region
      $region17: #{bigril_forward.3} parent=11 // pred_check
        %p283 = pneg %p153
      $region18: #{bigril_forward.3} parent=11 // pred_check_branch
        %285 = sbr.rel (%p283) target = $region20
      $region19: #{bigril_forward.3} parent=11 // pred_region
        _
      $region20: #{bigril_forward.3} parent=11 // pred_fallthru
        _
      // Predicated region
      $region21: #{bigril_forward.3} parent=11 // pred_check
        %p286 = pneg %p174
      $region22: #{bigril_forward.3} parent=11 // pred_check_branch
        %288 = sbr.rel (%p286) target = $region24
      $region23: #{bigril_forward.3} parent=11 // pred_region
        _
      $region24: #{bigril_forward.3} parent=11 // pred_fallthru
        _
      // Predicated region
      $region25: #{bigril_forward.3} parent=11 // pred_check
        %p289 = pneg %p195
      $region26: #{bigril_forward.3} parent=11 // pred_check_branch
        %291 = sbr.rel (%p289) target = $region28
      $region27: #{bigril_forward.3} parent=11 // pred_region
        _
      $region28: #{bigril_forward.3} parent=11 // pred_fallthru
        _
      // Predicated region
      $region29: #{bigril_forward.3} parent=11 // pred_check
        %p292 = pneg %p216
      $region30: #{bigril_forward.3} parent=11 // pred_check_branch
        %294 = sbr.rel (%p292) target = $region32
      $region31: #{bigril_forward.3} parent=11 // pred_region
        _
      $region32: #{bigril_forward.3} parent=11 // pred_fallthru
        _
      // Predicated region
      $region33: #{bigril_forward.3} parent=11 // pred_check
        %p295 = pneg %p237
      $region34: #{bigril_forward.3} parent=11 // pred_check_branch
        %297 = sbr.rel (%p295) target = $region36
      $region35: #{bigril_forward.3} parent=11 // pred_region
        _
      $region36: #{bigril_forward.3} parent=11 // pred_fallthru
        _
    $region12: #{bigril_forward.3} parent=5 // pred_fallthru
      _
    %p298 = scmp.lt.s32.totalorder %s15, 2
    // Predicated region
    $region37: #{bigril_forward.3} parent=5 // pred_check
      %p299 = pneg %p298
    $region38: #{bigril_forward.3} parent=5 // pred_check_branch
      %301 = sbr.rel (%p299) target = $region40
    $region39: #{bigril_forward.3} parent=5 // pred_region
      // Predicated region
      $region41: #{bigril_forward.3} parent=39 // pred_check
        %p302 = pneg %p49
      $region42: #{bigril_forward.3} parent=39 // pred_check_branch
        %304 = sbr.rel (%p302) target = $region44
      $region43: #{bigril_forward.3} parent=39 // pred_region
        %s305 = smul.u32 8, %s23
        %p306 = scmp.lt.s32.totalorder %s22, 1
        %s307 = scalar_select %p306, %s22, 1
        %p308 = scmp.lt.s32.totalorder %s305, 7
        %s309 = scalar_select %p308, %s305, 7
        %s310 = smul.addr %s309, 8
        %s311 = smul.addr %s307, 64
        %s312 = sadd.s32 %s310, %s311
        %s313 = smul.addr %s312, 8
        %s314 = scalar_lea.vmem %s0, %s313
        %s315 = smul.u32 8, %s23
      $region44: #{bigril_forward.3} parent=39 // pred_fallthru
        _
      // Predicated region
      $region45: #{bigril_forward.3} parent=39 // pred_check
        %p316 = pneg %p77
      $region46: #{bigril_forward.3} parent=39 // pred_check_branch
        %318 = sbr.rel (%p316) target = $region48
      $region47: #{bigril_forward.3} parent=39 // pred_region
        %s319 = smul.u32 8, %s23
        %p320 = scmp.lt.s32.totalorder %s22, 1
        %s321 = scalar_select %p320, %s22, 1
        %p322 = scmp.lt.s32.totalorder %s319, 7
        %s323 = scalar_select %p322, %s319, 7
        %s324 = smul.addr %s323, 8
        %s325 = smul.addr %s321, 64
        %s326 = sadd.s32 %s324, %s325
        %s327 = sadd.s32 %s326, 128
        %s328 = smul.addr %s327, 8
        %s329 = scalar_lea.vmem %s1, %s328
        %s330 = smul.u32 8, %s23
      $region48: #{bigril_forward.3} parent=39 // pred_fallthru
        _
      // Predicated region
      $region49: #{bigril_forward.3} parent=39 // pred_check
        %p331 = pneg %p105
      $region50: #{bigril_forward.3} parent=39 // pred_check_branch
        %333 = sbr.rel (%p331) target = $region52
      $region51: #{bigril_forward.3} parent=39 // pred_region
        %s334 = smul.u32 8, %s23
        %p335 = scmp.lt.s32.totalorder %s22, 1
        %s336 = scalar_select %p335, %s22, 1
        %p337 = scmp.lt.s32.totalorder %s334, 7
        %s338 = scalar_select %p337, %s334, 7
        %s339 = smul.addr %s336, 8
        %s340 = sadd.s32 %s338, %s339
        %s341 = smul.addr %s340, 4
        %s342 = scalar_lea.vmem %s2, %s341
        %s343 = smul.u32 8, %s23
      $region52: #{bigril_forward.3} parent=39 // pred_fallthru
        _
    $region40: #{bigril_forward.3} parent=5 // pred_fallthru
      _
    %p344 = scmp.le.s32.totalorder 1, %s15
    %p345 = scmp.lt.s32.totalorder %s15, 3
    %p346 = pnand %p344, %p345
    %p347 = pneg %p346
    // Predicated region
    $region53: #{bigril_forward.3} parent=5 // pred_check
      _
    $region54: #{bigril_forward.3} parent=5 // pred_check_branch
      %349 = sbr.rel (%p346) target = $region56
    $region55: #{bigril_forward.3} parent=5 // pred_region
      %s350 = ssub.s32 %s15, 1
      %s351 = smul.u32 8, %s25
      %p352 = scmp.lt.s32.totalorder %s24, 1
      %s353 = scalar_select %p352, %s24, 1
      %p354 = scmp.lt.s32.totalorder %s351, 7
      %s355 = scalar_select %p354, %s351, 7
      %s356 = smul.addr %s355, 8
      %s357 = smul.addr %s353, 64
      %s358 = sadd.s32 %s356, %s357
      %s359 = smul.addr %s358, 8
      %s360 = scalar_lea.vmem %s0, %s359
      %p361 = pneg %p55
      %p362 = pneg %p52
      %s363 = smul.u32 8, %s25
      %p364 = scmp.lt.s32.totalorder %s24, 1
      %s365 = scalar_select %p364, %s24, 1
      %p366 = scmp.lt.s32.totalorder %s363, 7
      %s367 = scalar_select %p366, %s363, 7
      %s368 = smul.addr %s367, 8
      %s369 = smul.addr %s365, 64
      %s370 = sadd.s32 %s368, %s369
      %s371 = sadd.s32 %s370, 128
      %s372 = smul.addr %s371, 8
      %s373 = scalar_lea.vmem %s1, %s372
      %p374 = pneg %p83
      %p375 = pneg %p80
      %s376 = smul.u32 8, %s25
      %p377 = scmp.lt.s32.totalorder %s24, 1
      %s378 = scalar_select %p377, %s24, 1
      %p379 = scmp.lt.s32.totalorder %s376, 7
      %s380 = scalar_select %p379, %s376, 7
      %s381 = smul.addr %s378, 8
      %s382 = sadd.s32 %s380, %s381
      %s383 = smul.addr %s382, 4
      %s384 = scalar_lea.vmem %s2, %s383
      %p385 = pneg %p111
      %p386 = pneg %p108
      %p387 = pneg %p132
      %p388 = pneg %p129
      %p389 = pneg %p153
      %p390 = pneg %p150
      %p391 = pneg %p174
      %p392 = pneg %p171
      %p393 = pneg %p195
      %p394 = pneg %p192
      %p395 = pneg %p216
      %p396 = pneg %p213
      %p397 = pneg %p237
      %p398 = pneg %p234
      %p399 = pneg %p265
      %p400 = pneg %p262
      %s401 = smul.u32 8, %s25
      %p402 = scmp.lt.s32.totalorder %s24, 1
      %s403 = scalar_select %p402, %s24, 1
      %p404 = scmp.lt.s32.totalorder %s401, 7
      %s405 = scalar_select %p404, %s401, 7
      %s406 = smul.addr %s403, 8
      %s407 = sadd.s32 %s405, %s406
      %s408 = smul.addr %s407, 4
      %s409 = scalar_lea.vmem %s9, %s408
      %s410 = smul.u32 8, %s25
      %p411 = scmp.lt.s32.totalorder %s24, 1
      %s412 = scalar_select %p411, %s24, 1
      %p413 = scmp.lt.s32.totalorder %s410, 7
      %s414 = scalar_select %p413, %s410, 7
      %s415 = smul.addr %s414, 8
      %s416 = smul.addr %s412, 64
      %s417 = sadd.s32 %s415, %s416
      %s418 = smul.addr %s417, 8
      %s419 = scalar_lea.vmem %s0, %s418
      %s420 = smul.u32 8, %s25
      %s421 = smul.u32 8, %s25
      %p422 = scmp.lt.s32.totalorder %s24, 1
      %s423 = scalar_select %p422, %s24, 1
      %p424 = scmp.lt.s32.totalorder %s421, 7
      %s425 = scalar_select %p424, %s421, 7
      %s426 = smul.addr %s425, 8
      %s427 = smul.addr %s423, 64
      %s428 = sadd.s32 %s426, %s427
      %s429 = sadd.s32 %s428, 128
      %s430 = smul.addr %s429, 8
      %s431 = scalar_lea.vmem %s1, %s430
      %s432 = smul.u32 8, %s25
      %s433 = smul.u32 8, %s25
      %p434 = scmp.lt.s32.totalorder %s24, 1
      %s435 = scalar_select %p434, %s24, 1
      %p436 = scmp.lt.s32.totalorder %s433, 7
      %s437 = scalar_select %p436, %s433, 7
      %s438 = smul.addr %s435, 8
      %s439 = sadd.s32 %s437, %s438
      %s440 = smul.addr %s439, 4
      %s441 = scalar_lea.vmem %s2, %s440
      %s442 = smul.u32 8, %s25
      %s443 = smul.u32 8, %s25
      %p444 = scmp.lt.s32.totalorder %s24, 1
      %s445 = scalar_select %p444, %s24, 1
      %p446 = scmp.lt.s32.totalorder %s443, 7
      %s447 = scalar_select %p446, %s443, 7
      %s448 = smul.addr %s445, 8
      %s449 = sadd.s32 %s447, %s448
      %s450 = smul.addr %s449, 4
      %s451 = scalar_lea.vmem %s9, %s450
      %s452 = smul.u32 8, %s25
      %v454 = vld [vmem:[%s3] sm:$0xf]
      %v455 = vld [vmem:[%s3 + $0x4] sm:$0xf]
      %v456 = vld [vmem:[%s3 + $0x8] sm:$0xf]
      %v457 = vld [vmem:[%s3 + $0xc] sm:$0xf]
      %v458 = vld [vmem:[%s3 + $0x10] sm:$0xf]
      %v459 = vld [vmem:[%s3 + $0x14] sm:$0xf]
      %v460 = vld [vmem:[%s3 + $0x18] sm:$0xf]
      %v461 = vld [vmem:[%s3 + $0x1c] sm:$0xf]
      %v462 = vld [vmem:[%s419] sm:$0xff]
      %v463 = vld [vmem:[%s419 + $0x8] sm:$0xff]
      %v464 = vld [vmem:[%s419 + $0x10] sm:$0xff]
      %v465 = vld [vmem:[%s419 + $0x18] sm:$0xff]
      %v466 = vld [vmem:[%s419 + $0x20] sm:$0xff]
      %v467 = vld [vmem:[%s419 + $0x28] sm:$0xff]
      %v468 = vld [vmem:[%s419 + $0x30] sm:$0xff]
      %v469 = vld [vmem:[%s419 + $0x38] sm:$0xff]
      %v470 = vpack.c.bf16 %v463, %v462
      %v471 = vpack.c.bf16 %v465, %v464
      %v472 = vpack.c.bf16 %v467, %v466
      %v473 = vpack.c.bf16 %v469, %v468
      %v474 = vld [vmem:[%s4] sm:$0xf]
      %v475 = vld [vmem:[%s4 + $0x4] sm:$0xf]
      %v476 = vld [vmem:[%s4 + $0x8] sm:$0xf]
      %v477 = vld [vmem:[%s4 + $0xc] sm:$0xf]
      %v478 = vld [vmem:[%s4 + $0x10] sm:$0xf]
      %v479 = vld [vmem:[%s4 + $0x14] sm:$0xf]
      %v480 = vld [vmem:[%s4 + $0x18] sm:$0xf]
      %v481 = vld [vmem:[%s4 + $0x1c] sm:$0xf]
      %v482 = vld [vmem:[%s431] sm:$0xff]
      %v483 = vld [vmem:[%s431 + $0x8] sm:$0xff]
      %v484 = vld [vmem:[%s431 + $0x10] sm:$0xff]
      %v485 = vld [vmem:[%s431 + $0x18] sm:$0xff]
      %v486 = vld [vmem:[%s431 + $0x20] sm:$0xff]
      %v487 = vld [vmem:[%s431 + $0x28] sm:$0xff]
      %v488 = vld [vmem:[%s431 + $0x30] sm:$0xff]
      %v489 = vld [vmem:[%s431 + $0x38] sm:$0xff]
      %v490 = vpack.c.bf16 %v483, %v482
      %v491 = vpack.c.bf16 %v485, %v484
      %v492 = vpack.c.bf16 %v487, %v486
      %v493 = vpack.c.bf16 %v489, %v488
      %v502 = vunpack.c.l.b16 %v474
      %v503 = vunpack.c.l.b16 %v475
      %v504 = vunpack.c.l.b16 %v476
      %v505 = vunpack.c.l.b16 %v477
      %v506 = vunpack.c.l.b16 %v478
      %v507 = vunpack.c.l.b16 %v479
      %v508 = vunpack.c.l.b16 %v480
      %v509 = vunpack.c.l.b16 %v481
      %v510 = vpack.c.b16 %v503, %v502
      %v511 = vpack.c.b16 %v505, %v504
      %v512 = vpack.c.b16 %v507, %v506
      %v513 = vpack.c.b16 %v509, %v508
      %vm514 = vcmask 523264
      %v516 = vsel %vm514, %v510, 0
      %v519 = vsel %vm514, %v511, 0
      %v522 = vsel %vm514, %v512, 0
      %v525 = vsel %vm514, %v513, 0
      %527 = vmatprep.subr.bf16.mxu0 0
      %528 = vmatpush1.bf16.msra.mxu0 0
      %529 = vmatprep.subr.bf16.mxu0 0
      %530 = vmatpush1.bf16.msra.mxu0 0
      %531 = vmatprep.subr.bf16.mxu0 0
      %532 = vmatpush1.bf16.msra.mxu0 0
      %533 = vmatprep.subr.bf16.mxu0 0
      %534 = vmatpush1.bf16.msra.mxu0 0
      %535 = vmatprep.subr.bf16.mxu0 0
      %536 = vmatpush1.bf16.msra.mxu0 %v493
      %537 = vmatprep.subr.bf16.mxu0 0
      %538 = vmatpush1.bf16.msra.mxu0 %v492
      %539 = vmatprep.subr.bf16.mxu0 0
      %540 = vmatpush1.bf16.msra.mxu0 %v491
      %541 = vmatprep.subr.bf16.mxu0 0
      %542 = vmatpush1.bf16.msra.mxu0 %v490
      %543 = vmatprep.subr.bf16.mxu0 0
      %544 = vmatpush2.bf16.msra.mxu0 0
      %545 = vmatprep.subr.bf16.mxu0 0
      %546 = vmatpush2.bf16.msra.mxu0 0
      %547 = vmatprep.subr.bf16.mxu0 0
      %548 = vmatpush2.bf16.msra.mxu0 0
      %549 = vmatprep.subr.bf16.mxu0 0
      %550 = vmatpush2.bf16.msra.mxu0 0
      %551 = vmatprep.subr.bf16.mxu0 0
      %552 = vmatpush2.bf16.msra.mxu0 0
      %553 = vmatprep.subr.bf16.mxu0 0
      %554 = vmatpush2.bf16.msra.mxu0 0
      %555 = vmatprep.subr.bf16.mxu0 0
      %556 = vmatpush2.bf16.msra.mxu0 0
      %557 = vmatprep.subr.bf16.mxu0 0
      %558 = vmatpush2.bf16.msra.mxu0 0
      %559 = vmatprep.mubr.bf16.mxu0 0
      %560 = vmatmul.mubr.bf16.gmra.mxu0 %v516
      %v561 = vpop.f32.mrf.mxu0
      %v562 = vadd.f32 0.0, %v561
      %v563 = vpop.f32.mrf.mxu0
      %v564 = vpop.f32.mrf.mxu0
      %v565 = vadd.f32 0.0, %v564
      %v566 = vpop.f32.mrf.mxu0
      %567 = vmatprep.mubr.bf16.mxu0 0
      %568 = vmatmul.mubr.bf16.gmra.mxu0 %v519
      %v569 = vpop.f32.mrf.mxu0
      %v570 = vadd.f32 0.0, %v569
      %v571 = vpop.f32.mrf.mxu0
      %v572 = vpop.f32.mrf.mxu0
      %v573 = vadd.f32 0.0, %v572
      %v574 = vpop.f32.mrf.mxu0
      %575 = vmatprep.mubr.bf16.mxu0 0
      %576 = vmatmul.mubr.bf16.gmra.mxu0 %v522
      %v577 = vpop.f32.mrf.mxu0
      %v578 = vadd.f32 0.0, %v577
      %v579 = vpop.f32.mrf.mxu0
      %v580 = vpop.f32.mrf.mxu0
      %v581 = vadd.f32 0.0, %v580
      %v582 = vpop.f32.mrf.mxu0
      %583 = vmatprep.mubr.bf16.mxu0 0
      %584 = vmatmul.mubr.bf16.gmra.mxu0 %v525
      %v585 = vpop.f32.mrf.mxu0
      %v586 = vadd.f32 0.0, %v585
      %v587 = vpop.f32.mrf.mxu0
      %v588 = vpop.f32.mrf.mxu0
      %v589 = vadd.f32 0.0, %v588
      %v590 = vpop.f32.mrf.mxu0
      %591 = vdwg.mxu0
      %v600 = vunpack.c.l.b16 %v454
      %v601 = vunpack.c.l.b16 %v455
      %v602 = vunpack.c.l.b16 %v456
      %v603 = vunpack.c.l.b16 %v457
      %v604 = vunpack.c.l.b16 %v458
      %v605 = vunpack.c.l.b16 %v459
      %v606 = vunpack.c.l.b16 %v460
      %v607 = vunpack.c.l.b16 %v461
      %v608 = vpack.c.b16 %v601, %v600
      %v609 = vpack.c.b16 %v603, %v602
      %v610 = vpack.c.b16 %v605, %v604
      %v611 = vpack.c.b16 %v607, %v606
      %v613 = vsel %vm514, %v608, 0
      %v616 = vsel %vm514, %v609, 0
      %v619 = vsel %vm514, %v610, 0
      %v622 = vsel %vm514, %v611, 0
      %624 = vmatprep.subr.bf16.mxu0 0
      %625 = vmatpush1.bf16.msra.mxu0 0
      %626 = vmatprep.subr.bf16.mxu0 0
      %627 = vmatpush1.bf16.msra.mxu0 0
      %628 = vmatprep.subr.bf16.mxu0 0
      %629 = vmatpush1.bf16.msra.mxu0 0
      %630 = vmatprep.subr.bf16.mxu0 0
      %631 = vmatpush1.bf16.msra.mxu0 0
      %632 = vmatprep.subr.bf16.mxu0 0
      %633 = vmatpush1.bf16.msra.mxu0 %v473
      %634 = vmatprep.subr.bf16.mxu0 0
      %635 = vmatpush1.bf16.msra.mxu0 %v472
      %636 = vmatprep.subr.bf16.mxu0 0
      %637 = vmatpush1.bf16.msra.mxu0 %v471
      %638 = vmatprep.subr.bf16.mxu0 0
      %639 = vmatpush1.bf16.msra.mxu0 %v470
      %640 = vmatprep.subr.bf16.mxu0 0
      %641 = vmatpush2.bf16.msra.mxu0 0
      %642 = vmatprep.subr.bf16.mxu0 0
      %643 = vmatpush2.bf16.msra.mxu0 0
      %644 = vmatprep.subr.bf16.mxu0 0
      %645 = vmatpush2.bf16.msra.mxu0 0
      %646 = vmatprep.subr.bf16.mxu0 0
      %647 = vmatpush2.bf16.msra.mxu0 0
      %648 = vmatprep.subr.bf16.mxu0 0
      %649 = vmatpush2.bf16.msra.mxu0 0
      %650 = vmatprep.subr.bf16.mxu0 0
      %651 = vmatpush2.bf16.msra.mxu0 0
      %652 = vmatprep.subr.bf16.mxu0 0
      %653 = vmatpush2.bf16.msra.mxu0 0
      %654 = vmatprep.subr.bf16.mxu0 0
      %655 = vmatpush2.bf16.msra.mxu0 0
      %656 = vmatprep.mubr.bf16.mxu0 0
      %657 = vmatmul.mubr.bf16.gmra.mxu0 %v613
      %v658 = vpop.f32.mrf.mxu0
      %v659 = vadd.f32 %v562, %v658
      %v660 = vpop.f32.mrf.mxu0
      %v661 = vpop.f32.mrf.mxu0
      %v662 = vadd.f32 %v565, %v661
      %v663 = vpop.f32.mrf.mxu0
      %664 = vmatprep.mubr.bf16.mxu0 0
      %665 = vmatmul.mubr.bf16.gmra.mxu0 %v616
      %v666 = vpop.f32.mrf.mxu0
      %v667 = vadd.f32 %v570, %v666
      %v668 = vpop.f32.mrf.mxu0
      %v669 = vpop.f32.mrf.mxu0
      %v670 = vadd.f32 %v573, %v669
      %v671 = vpop.f32.mrf.mxu0
      %672 = vmatprep.mubr.bf16.mxu0 0
      %673 = vmatmul.mubr.bf16.gmra.mxu0 %v619
      %v674 = vpop.f32.mrf.mxu0
      %v675 = vadd.f32 %v578, %v674
      %v676 = vpop.f32.mrf.mxu0
      %v677 = vpop.f32.mrf.mxu0
      %v678 = vadd.f32 %v581, %v677
      %v679 = vpop.f32.mrf.mxu0
      %680 = vmatprep.mubr.bf16.mxu0 0
      %681 = vmatmul.mubr.bf16.gmra.mxu0 %v622
      %v682 = vpop.f32.mrf.mxu0
      %v683 = vadd.f32 %v586, %v682
      %v684 = vpop.f32.mrf.mxu0
      %v685 = vpop.f32.mrf.mxu0
      %v686 = vadd.f32 %v589, %v685
      %v687 = vpop.f32.mrf.mxu0
      %688 = vdwg.mxu0
      %v689 = vld [vmem:[%s5] sm:$0xf]
      %v690 = vld [vmem:[%s5 + $0x4] sm:$0xf]
      %v691 = vld [vmem:[%s5 + $0x8] sm:$0xf]
      %v692 = vld [vmem:[%s5 + $0xc] sm:$0xf]
      %v693 = vld [vmem:[%s5 + $0x10] sm:$0xf]
      %v694 = vld [vmem:[%s5 + $0x14] sm:$0xf]
      %v695 = vld [vmem:[%s5 + $0x18] sm:$0xf]
      %v696 = vld [vmem:[%s5 + $0x1c] sm:$0xf]
      %v697 = vld [vmem:[%s441] sm:$0xf]
      %v698 = vpack.c.bf16 %v697, %v697
      %v707 = vunpack.c.l.b16 %v689
      %v708 = vunpack.c.l.b16 %v690
      %v709 = vunpack.c.l.b16 %v691
      %v710 = vunpack.c.l.b16 %v692
      %v711 = vunpack.c.l.b16 %v693
      %v712 = vunpack.c.l.b16 %v694
      %v713 = vunpack.c.l.b16 %v695
      %v714 = vunpack.c.l.b16 %v696
      %v715 = vpack.c.b16 %v708, %v707
      %v716 = vpack.c.b16 %v710, %v709
      %v717 = vpack.c.b16 %v712, %v711
      %v718 = vpack.c.b16 %v714, %v713
      %vm719 = vcmask 31744
      %v721 = vsel %vm719, %v715, 0
      %v724 = vsel %vm719, %v716, 0
      %v727 = vsel %vm719, %v717, 0
      %v730 = vsel %vm719, %v718, 0
      %vm732 = vcmask 1041408
      %v734 = vsel %vm732, %v698, 0
      %736 = vmatprep.subr.bf16.mxu0 0
      %737 = vmatpush1.bf16.msra.mxu0 0
      %738 = vmatprep.subr.bf16.mxu0 0
      %739 = vmatpush1.bf16.msra.mxu0 0
      %740 = vmatprep.subr.bf16.mxu0 0
      %741 = vmatpush1.bf16.msra.mxu0 0
      %742 = vmatprep.subr.bf16.mxu0 0
      %743 = vmatpush1.bf16.msra.mxu0 0
      %744 = vmatprep.subr.bf16.mxu0 0
      %745 = vmatpush1.bf16.msra.mxu0 0
      %746 = vmatprep.subr.bf16.mxu0 0
      %747 = vmatpush1.bf16.msra.mxu0 0
      %748 = vmatprep.subr.bf16.mxu0 0
      %749 = vmatpush1.bf16.msra.mxu0 0
      %750 = vmatprep.subr.bf16.mxu0 0
      %751 = vmatpush1.bf16.msra.mxu0 %v734
      %752 = vmatprep.subr.bf16.mxu0 0
      %753 = vmatpush2.bf16.msra.mxu0 0
      %754 = vmatprep.subr.bf16.mxu0 0
      %755 = vmatpush2.bf16.msra.mxu0 0
      %756 = vmatprep.subr.bf16.mxu0 0
      %757 = vmatpush2.bf16.msra.mxu0 0
      %758 = vmatprep.subr.bf16.mxu0 0
      %759 = vmatpush2.bf16.msra.mxu0 0
      %760 = vmatprep.subr.bf16.mxu0 0
      %761 = vmatpush2.bf16.msra.mxu0 0
      %762 = vmatprep.subr.bf16.mxu0 0
      %763 = vmatpush2.bf16.msra.mxu0 0
      %764 = vmatprep.subr.bf16.mxu0 0
      %765 = vmatpush2.bf16.msra.mxu0 0
      %766 = vmatprep.subr.bf16.mxu0 0
      %767 = vmatpush2.bf16.msra.mxu0 0
      %768 = vmatprep.mubr.bf16.mxu0 0
      %769 = vmatmul.mubr.bf16.gmra.mxu0 %v721
      %v770 = vpop.f32.mrf.mxu0
      %v771 = vadd.f32 0.0, %v770
      %v772 = vpop.f32.mrf.mxu0
      %v773 = vpop.f32.mrf.mxu0
      %v774 = vadd.f32 0.0, %v773
      %v775 = vpop.f32.mrf.mxu0
      %776 = vmatprep.mubr.bf16.mxu0 0
      %777 = vmatmul.mubr.bf16.gmra.mxu0 %v724
      %v778 = vpop.f32.mrf.mxu0
      %v779 = vadd.f32 0.0, %v778
      %v780 = vpop.f32.mrf.mxu0
      %v781 = vpop.f32.mrf.mxu0
      %v782 = vadd.f32 0.0, %v781
      %v783 = vpop.f32.mrf.mxu0
      %784 = vmatprep.mubr.bf16.mxu0 0
      %785 = vmatmul.mubr.bf16.gmra.mxu0 %v727
      %v786 = vpop.f32.mrf.mxu0
      %v787 = vadd.f32 0.0, %v786
      %v788 = vpop.f32.mrf.mxu0
      %v789 = vpop.f32.mrf.mxu0
      %v790 = vadd.f32 0.0, %v789
      %v791 = vpop.f32.mrf.mxu0
      %792 = vmatprep.mubr.bf16.mxu0 0
      %793 = vmatmul.mubr.bf16.gmra.mxu0 %v730
      %v794 = vpop.f32.mrf.mxu0
      %v795 = vadd.f32 0.0, %v794
      %v796 = vpop.f32.mrf.mxu0
      %v797 = vpop.f32.mrf.mxu0
      %v798 = vadd.f32 0.0, %v797
      %v799 = vpop.f32.mrf.mxu0
      %800 = vdwg.mxu0
      %v801 = vadd.f32 %v659, %v771
      %v802 = vadd.f32 %v662, %v774
      %v803 = vadd.f32 %v667, %v779
      %v804 = vadd.f32 %v670, %v782
      %v805 = vadd.f32 %v675, %v787
      %v806 = vadd.f32 %v678, %v790
      %v807 = vadd.f32 %v683, %v795
      %v808 = vadd.f32 %v686, %v798
      %v809 = vld [vmem:[%s6] sm:$0xff]
      %v810 = vld [vmem:[%s6 + $0x8] sm:$0xff]
      %v811 = vld [vmem:[%s6 + $0x10] sm:$0xff]
      %v812 = vld [vmem:[%s6 + $0x18] sm:$0xff]
      %v813 = vld [vmem:[%s6 + $0x20] sm:$0xff]
      %v814 = vld [vmem:[%s6 + $0x28] sm:$0xff]
      %v815 = vld [vmem:[%s6 + $0x30] sm:$0xff]
      %v816 = vld [vmem:[%s6 + $0x38] sm:$0xff]
      %818 = vset.pattern.permute.xlu0 0
      %819 = vperm.xlu0 %818, %v809
      %v820 = vpop.permute.xlu0 %819
      %823 = vset.pattern.permute.xlu0 0
      %824 = vperm.xlu0 %823, %v810
      %v825 = vpop.permute.xlu0 %824
      %828 = vset.pattern.permute.xlu0 0
      %829 = vperm.xlu0 %828, %v811
      %v830 = vpop.permute.xlu0 %829
      %833 = vset.pattern.permute.xlu0 0
      %834 = vperm.xlu0 %833, %v812
      %v835 = vpop.permute.xlu0 %834
      %838 = vset.pattern.permute.xlu0 0
      %839 = vperm.xlu0 %838, %v813
      %v840 = vpop.permute.xlu0 %839
      %843 = vset.pattern.permute.xlu0 0
      %844 = vperm.xlu0 %843, %v814
      %v845 = vpop.permute.xlu0 %844
      %848 = vset.pattern.permute.xlu0 0
      %849 = vperm.xlu0 %848, %v815
      %v850 = vpop.permute.xlu0 %849
      %853 = vset.pattern.permute.xlu0 0
      %854 = vperm.xlu0 %853, %v816
      %v855 = vpop.permute.xlu0 %854
      %v857 = vadd.f32 %v801, %v820
      %v858 = vadd.f32 %v802, %v825
      %v859 = vadd.f32 %v803, %v830
      %v860 = vadd.f32 %v804, %v835
      %v861 = vadd.f32 %v805, %v840
      %v862 = vadd.f32 %v806, %v845
      %v863 = vadd.f32 %v807, %v850
      %v864 = vadd.f32 %v808, %v855
      %v865 = vmax.f32 %v857, 0.0
      %v866 = vmax.f32 %v858, 0.0
      %v867 = vmax.f32 %v859, 0.0
      %v868 = vmax.f32 %v860, 0.0
      %v869 = vmax.f32 %v861, 0.0
      %v870 = vmax.f32 %v862, 0.0
      %v871 = vmax.f32 %v863, 0.0
      %v872 = vmax.f32 %v864, 0.0
      %v873 = vld [vmem:[%s7] sm:$0x3]
      %v874 = vpack.c.bf16 %v866, %v865
      %v875 = vpack.c.bf16 %v868, %v867
      %v876 = vpack.c.bf16 %v870, %v869
      %v877 = vpack.c.bf16 %v872, %v871
      %v878 = vld [vmem:[%s8] sm:$0xf]
      %880 = vset.pattern.permute.xlu0 0
      %881 = vperm.xlu0 %880, %v878
      %v882 = vpop.permute.xlu0 %881
      %v885 = vsel %vm514, %v873, 0
      %887 = vmatprep.subr.bf16.mxu0 0
      %888 = vmatpush1.bf16.msra.mxu0 0
      %889 = vmatprep.subr.bf16.mxu0 0
      %890 = vmatpush1.bf16.msra.mxu0 0
      %891 = vmatprep.subr.bf16.mxu0 0
      %892 = vmatpush1.bf16.msra.mxu0 0
      %893 = vmatprep.subr.bf16.mxu0 0
      %894 = vmatpush1.bf16.msra.mxu0 0
      %895 = vmatprep.subr.bf16.mxu0 0
      %896 = vmatpush1.bf16.msra.mxu0 %v877
      %897 = vmatprep.subr.bf16.mxu0 0
      %898 = vmatpush1.bf16.msra.mxu0 %v876
      %899 = vmatprep.subr.bf16.mxu0 0
      %900 = vmatpush1.bf16.msra.mxu0 %v875
      %901 = vmatprep.subr.bf16.mxu0 0
      %902 = vmatpush1.bf16.msra.mxu0 %v874
      %903 = vmatprep.subr.bf16.mxu0 0
      %904 = vmatpush2.bf16.msra.mxu0 0
      %905 = vmatprep.subr.bf16.mxu0 0
      %906 = vmatpush2.bf16.msra.mxu0 0
      %907 = vmatprep.subr.bf16.mxu0 0
      %908 = vmatpush2.bf16.msra.mxu0 0
      %909 = vmatprep.subr.bf16.mxu0 0
      %910 = vmatpush2.bf16.msra.mxu0 0
      %911 = vmatprep.subr.bf16.mxu0 0
      %912 = vmatpush2.bf16.msra.mxu0 0
      %913 = vmatprep.subr.bf16.mxu0 0
      %914 = vmatpush2.bf16.msra.mxu0 0
      %915 = vmatprep.subr.bf16.mxu0 0
      %916 = vmatpush2.bf16.msra.mxu0 0
      %917 = vmatprep.subr.bf16.mxu0 0
      %918 = vmatpush2.bf16.msra.mxu0 0
      %919 = vmatprep.mubr.bf16.mxu0 0
      %920 = vmatmul.mubr.bf16.gmra.mxu0 %v885
      %v921 = vpop.f32.mrf.mxu0
      %v922 = vadd.f32 %v882, %v921
      %v923 = vpop.f32.mrf.mxu0
      %v924 = vpop.f32.mrf.mxu0
      %v925 = vpop.f32.mrf.mxu0
      %926 = vdwg.mxu0
      %927 = vst [vmem:[%s451] sm:$0xf] %v922
      %v928 = vld [vmem:[%s3] sm:$0xf]
      %v929 = vld [vmem:[%s3 + $0x4] sm:$0xf]
      %v930 = vld [vmem:[%s3 + $0x8] sm:$0xf]
      %v931 = vld [vmem:[%s3 + $0xc] sm:$0xf]
      %v932 = vld [vmem:[%s3 + $0x10] sm:$0xf]
      %v933 = vld [vmem:[%s3 + $0x14] sm:$0xf]
      %v934 = vld [vmem:[%s3 + $0x18] sm:$0xf]
      %v935 = vld [vmem:[%s3 + $0x1c] sm:$0xf]
      %s936 = scalar_lea.vmem %s419, 64
      %v937 = vld [vmem:[%s936] sm:$0xff]
      %v938 = vld [vmem:[%s936 + $0x8] sm:$0xff]
      %v939 = vld [vmem:[%s936 + $0x10] sm:$0xff]
      %v940 = vld [vmem:[%s936 + $0x18] sm:$0xff]
      %v941 = vld [vmem:[%s936 + $0x20] sm:$0xff]
      %v942 = vld [vmem:[%s936 + $0x28] sm:$0xff]
      %v943 = vld [vmem:[%s936 + $0x30] sm:$0xff]
      %v944 = vld [vmem:[%s936 + $0x38] sm:$0xff]
      %v945 = vpack.c.bf16 %v938, %v937
      %v946 = vpack.c.bf16 %v940, %v939
      %v947 = vpack.c.bf16 %v942, %v941
      %v948 = vpack.c.bf16 %v944, %v943
      %v949 = vld [vmem:[%s4] sm:$0xf]
      %v950 = vld [vmem:[%s4 + $0x4] sm:$0xf]
      %v951 = vld [vmem:[%s4 + $0x8] sm:$0xf]
      %v952 = vld [vmem:[%s4 + $0xc] sm:$0xf]
      %v953 = vld [vmem:[%s4 + $0x10] sm:$0xf]
      %v954 = vld [vmem:[%s4 + $0x14] sm:$0xf]
      %v955 = vld [vmem:[%s4 + $0x18] sm:$0xf]
      %v956 = vld [vmem:[%s4 + $0x1c] sm:$0xf]
      %s957 = scalar_lea.vmem %s431, 64
      %v958 = vld [vmem:[%s957] sm:$0xff]
      %v959 = vld [vmem:[%s957 + $0x8] sm:$0xff]
      %v960 = vld [vmem:[%s957 + $0x10] sm:$0xff]
      %v961 = vld [vmem:[%s957 + $0x18] sm:$0xff]
      %v962 = vld [vmem:[%s957 + $0x20] sm:$0xff]
      %v963 = vld [vmem:[%s957 + $0x28] sm:$0xff]
      %v964 = vld [vmem:[%s957 + $0x30] sm:$0xff]
      %v965 = vld [vmem:[%s957 + $0x38] sm:$0xff]
      %v966 = vpack.c.bf16 %v959, %v958
      %v967 = vpack.c.bf16 %v961, %v960
      %v968 = vpack.c.bf16 %v963, %v962
      %v969 = vpack.c.bf16 %v965, %v964
      %v978 = vunpack.c.l.b16 %v949
      %v979 = vunpack.c.l.b16 %v950
      %v980 = vunpack.c.l.b16 %v951
      %v981 = vunpack.c.l.b16 %v952
      %v982 = vunpack.c.l.b16 %v953
      %v983 = vunpack.c.l.b16 %v954
      %v984 = vunpack.c.l.b16 %v955
      %v985 = vunpack.c.l.b16 %v956
      %v986 = vpack.c.b16 %v979, %v978
      %v987 = vpack.c.b16 %v981, %v980
      %v988 = vpack.c.b16 %v983, %v982
      %v989 = vpack.c.b16 %v985, %v984
      %v991 = vsel %vm514, %v986, 0
      %v994 = vsel %vm514, %v987, 0
      %v997 = vsel %vm514, %v988, 0
      %v1000 = vsel %vm514, %v989, 0
      %1002 = vmatprep.subr.bf16.mxu0 0
      %1003 = vmatpush1.bf16.msra.mxu0 0
      %1004 = vmatprep.subr.bf16.mxu0 0
      %1005 = vmatpush1.bf16.msra.mxu0 0
      %1006 = vmatprep.subr.bf16.mxu0 0
      %1007 = vmatpush1.bf16.msra.mxu0 0
      %1008 = vmatprep.subr.bf16.mxu0 0
      %1009 = vmatpush1.bf16.msra.mxu0 0
      %1010 = vmatprep.subr.bf16.mxu0 0
      %1011 = vmatpush1.bf16.msra.mxu0 %v969
      %1012 = vmatprep.subr.bf16.mxu0 0
      %1013 = vmatpush1.bf16.msra.mxu0 %v968
      %1014 = vmatprep.subr.bf16.mxu0 0
      %1015 = vmatpush1.bf16.msra.mxu0 %v967
      %1016 = vmatprep.subr.bf16.mxu0 0
      %1017 = vmatpush1.bf16.msra.mxu0 %v966
      %1018 = vmatprep.subr.bf16.mxu0 0
      %1019 = vmatpush2.bf16.msra.mxu0 0
      %1020 = vmatprep.subr.bf16.mxu0 0
      %1021 = vmatpush2.bf16.msra.mxu0 0
      %1022 = vmatprep.subr.bf16.mxu0 0
      %1023 = vmatpush2.bf16.msra.mxu0 0
      %1024 = vmatprep.subr.bf16.mxu0 0
      %1025 = vmatpush2.bf16.msra.mxu0 0
      %1026 = vmatprep.subr.bf16.mxu0 0
      %1027 = vmatpush2.bf16.msra.mxu0 0
      %1028 = vmatprep.subr.bf16.mxu0 0
      %1029 = vmatpush2.bf16.msra.mxu0 0
      %1030 = vmatprep.subr.bf16.mxu0 0
      %1031 = vmatpush2.bf16.msra.mxu0 0
      %1032 = vmatprep.subr.bf16.mxu0 0
      %1033 = vmatpush2.bf16.msra.mxu0 0
      %1034 = vmatprep.mubr.bf16.mxu0 0
      %1035 = vmatmul.mubr.bf16.gmra.mxu0 %v991
      %v1036 = vpop.f32.mrf.mxu0
      %v1037 = vadd.f32 0.0, %v1036
      %v1038 = vpop.f32.mrf.mxu0
      %v1039 = vpop.f32.mrf.mxu0
      %v1040 = vadd.f32 0.0, %v1039
      %v1041 = vpop.f32.mrf.mxu0
      %1042 = vmatprep.mubr.bf16.mxu0 0
      %1043 = vmatmul.mubr.bf16.gmra.mxu0 %v994
      %v1044 = vpop.f32.mrf.mxu0
      %v1045 = vadd.f32 0.0, %v1044
      %v1046 = vpop.f32.mrf.mxu0
      %v1047 = vpop.f32.mrf.mxu0
      %v1048 = vadd.f32 0.0, %v1047
      %v1049 = vpop.f32.mrf.mxu0
      %1050 = vmatprep.mubr.bf16.mxu0 0
      %1051 = vmatmul.mubr.bf16.gmra.mxu0 %v997
      %v1052 = vpop.f32.mrf.mxu0
      %v1053 = vadd.f32 0.0, %v1052
      %v1054 = vpop.f32.mrf.mxu0
      %v1055 = vpop.f32.mrf.mxu0
      %v1056 = vadd.f32 0.0, %v1055
      %v1057 = vpop.f32.mrf.mxu0
      %1058 = vmatprep.mubr.bf16.mxu0 0
      %1059 = vmatmul.mubr.bf16.gmra.mxu0 %v1000
      %v1060 = vpop.f32.mrf.mxu0
      %v1061 = vadd.f32 0.0, %v1060
      %v1062 = vpop.f32.mrf.mxu0
      %v1063 = vpop.f32.mrf.mxu0
      %v1064 = vadd.f32 0.0, %v1063
      %v1065 = vpop.f32.mrf.mxu0
      %1066 = vdwg.mxu0
      %v1075 = vunpack.c.l.b16 %v928
      %v1076 = vunpack.c.l.b16 %v929
      %v1077 = vunpack.c.l.b16 %v930
      %v1078 = vunpack.c.l.b16 %v931
      %v1079 = vunpack.c.l.b16 %v932
      %v1080 = vunpack.c.l.b16 %v933
      %v1081 = vunpack.c.l.b16 %v934
      %v1082 = vunpack.c.l.b16 %v935
      %v1083 = vpack.c.b16 %v1076, %v1075
      %v1084 = vpack.c.b16 %v1078, %v1077
      %v1085 = vpack.c.b16 %v1080, %v1079
      %v1086 = vpack.c.b16 %v1082, %v1081
      %v1088 = vsel %vm514, %v1083, 0
      %v1091 = vsel %vm514, %v1084, 0
      %v1094 = vsel %vm514, %v1085, 0
      %v1097 = vsel %vm514, %v1086, 0
      %1099 = vmatprep.subr.bf16.mxu0 0
      %1100 = vmatpush1.bf16.msra.mxu0 0
      %1101 = vmatprep.subr.bf16.mxu0 0
      %1102 = vmatpush1.bf16.msra.mxu0 0
      %1103 = vmatprep.subr.bf16.mxu0 0
      %1104 = vmatpush1.bf16.msra.mxu0 0
      %1105 = vmatprep.subr.bf16.mxu0 0
      %1106 = vmatpush1.bf16.msra.mxu0 0
      %1107 = vmatprep.subr.bf16.mxu0 0
      %1108 = vmatpush1.bf16.msra.mxu0 %v948
      %1109 = vmatprep.subr.bf16.mxu0 0
      %1110 = vmatpush1.bf16.msra.mxu0 %v947
      %1111 = vmatprep.subr.bf16.mxu0 0
      %1112 = vmatpush1.bf16.msra.mxu0 %v946
      %1113 = vmatprep.subr.bf16.mxu0 0
      %1114 = vmatpush1.bf16.msra.mxu0 %v945
      %1115 = vmatprep.subr.bf16.mxu0 0
      %1116 = vmatpush2.bf16.msra.mxu0 0
      %1117 = vmatprep.subr.bf16.mxu0 0
      %1118 = vmatpush2.bf16.msra.mxu0 0
      %1119 = vmatprep.subr.bf16.mxu0 0
      %1120 = vmatpush2.bf16.msra.mxu0 0
      %1121 = vmatprep.subr.bf16.mxu0 0
      %1122 = vmatpush2.bf16.msra.mxu0 0
      %1123 = vmatprep.subr.bf16.mxu0 0
      %1124 = vmatpush2.bf16.msra.mxu0 0
      %1125 = vmatprep.subr.bf16.mxu0 0
      %1126 = vmatpush2.bf16.msra.mxu0 0
      %1127 = vmatprep.subr.bf16.mxu0 0
      %1128 = vmatpush2.bf16.msra.mxu0 0
      %1129 = vmatprep.subr.bf16.mxu0 0
      %1130 = vmatpush2.bf16.msra.mxu0 0
      %1131 = vmatprep.mubr.bf16.mxu0 0
      %1132 = vmatmul.mubr.bf16.gmra.mxu0 %v1088
      %v1133 = vpop.f32.mrf.mxu0
      %v1134 = vadd.f32 %v1037, %v1133
      %v1135 = vpop.f32.mrf.mxu0
      %v1136 = vpop.f32.mrf.mxu0
      %v1137 = vadd.f32 %v1040, %v1136
      %v1138 = vpop.f32.mrf.mxu0
      %1139 = vmatprep.mubr.bf16.mxu0 0
      %1140 = vmatmul.mubr.bf16.gmra.mxu0 %v1091
      %v1141 = vpop.f32.mrf.mxu0
      %v1142 = vadd.f32 %v1045, %v1141
      %v1143 = vpop.f32.mrf.mxu0
      %v1144 = vpop.f32.mrf.mxu0
      %v1145 = vadd.f32 %v1048, %v1144
      %v1146 = vpop.f32.mrf.mxu0
      %1147 = vmatprep.mubr.bf16.mxu0 0
      %1148 = vmatmul.mubr.bf16.gmra.mxu0 %v1094
      %v1149 = vpop.f32.mrf.mxu0
      %v1150 = vadd.f32 %v1053, %v1149
      %v1151 = vpop.f32.mrf.mxu0
      %v1152 = vpop.f32.mrf.mxu0
      %v1153 = vadd.f32 %v1056, %v1152
      %v1154 = vpop.f32.mrf.mxu0
      %1155 = vmatprep.mubr.bf16.mxu0 0
      %1156 = vmatmul.mubr.bf16.gmra.mxu0 %v1097
      %v1157 = vpop.f32.mrf.mxu0
      %v1158 = vadd.f32 %v1061, %v1157
      %v1159 = vpop.f32.mrf.mxu0
      %v1160 = vpop.f32.mrf.mxu0
      %v1161 = vadd.f32 %v1064, %v1160
      %v1162 = vpop.f32.mrf.mxu0
      %1163 = vdwg.mxu0
      %v1164 = vld [vmem:[%s5] sm:$0xf]
      %v1165 = vld [vmem:[%s5 + $0x4] sm:$0xf]
      %v1166 = vld [vmem:[%s5 + $0x8] sm:$0xf]
      %v1167 = vld [vmem:[%s5 + $0xc] sm:$0xf]
      %v1168 = vld [vmem:[%s5 + $0x10] sm:$0xf]
      %v1169 = vld [vmem:[%s5 + $0x14] sm:$0xf]
      %v1170 = vld [vmem:[%s5 + $0x18] sm:$0xf]
      %v1171 = vld [vmem:[%s5 + $0x1c] sm:$0xf]
      %s1172 = scalar_lea.vmem %s441, 4
      %v1173 = vld [vmem:[%s1172] sm:$0xf]
      %v1174 = vpack.c.bf16 %v1173, %v1173
      %v1183 = vunpack.c.l.b16 %v1164
      %v1184 = vunpack.c.l.b16 %v1165
      %v1185 = vunpack.c.l.b16 %v1166
      %v1186 = vunpack.c.l.b16 %v1167
      %v1187 = vunpack.c.l.b16 %v1168
      %v1188 = vunpack.c.l.b16 %v1169
      %v1189 = vunpack.c.l.b16 %v1170
      %v1190 = vunpack.c.l.b16 %v1171
      %v1191 = vpack.c.b16 %v1184, %v1183
      %v1192 = vpack.c.b16 %v1186, %v1185
      %v1193 = vpack.c.b16 %v1188, %v1187
      %v1194 = vpack.c.b16 %v1190, %v1189
      %v1196 = vsel %vm719, %v1191, 0
      %v1199 = vsel %vm719, %v1192, 0
      %v1202 = vsel %vm719, %v1193, 0
      %v1205 = vsel %vm719, %v1194, 0
      %v1208 = vsel %vm732, %v1174, 0
      %1210 = vmatprep.subr.bf16.mxu0 0
      %1211 = vmatpush1.bf16.msra.mxu0 0
      %1212 = vmatprep.subr.bf16.mxu0 0
      %1213 = vmatpush1.bf16.msra.mxu0 0
      %1214 = vmatprep.subr.bf16.mxu0 0
      %1215 = vmatpush1.bf16.msra.mxu0 0
      %1216 = vmatprep.subr.bf16.mxu0 0
      %1217 = vmatpush1.bf16.msra.mxu0 0
      %1218 = vmatprep.subr.bf16.mxu0 0
      %1219 = vmatpush1.bf16.msra.mxu0 0
      %1220 = vmatprep.subr.bf16.mxu0 0
      %1221 = vmatpush1.bf16.msra.mxu0 0
      %1222 = vmatprep.subr.bf16.mxu0 0
      %1223 = vmatpush1.bf16.msra.mxu0 0
      %1224 = vmatprep.subr.bf16.mxu0 0
      %1225 = vmatpush1.bf16.msra.mxu0 %v1208
      %1226 = vmatprep.subr.bf16.mxu0 0
      %1227 = vmatpush2.bf16.msra.mxu0 0
      %1228 = vmatprep.subr.bf16.mxu0 0
      %1229 = vmatpush2.bf16.msra.mxu0 0
      %1230 = vmatprep.subr.bf16.mxu0 0
      %1231 = vmatpush2.bf16.msra.mxu0 0
      %1232 = vmatprep.subr.bf16.mxu0 0
      %1233 = vmatpush2.bf16.msra.mxu0 0
      %1234 = vmatprep.subr.bf16.mxu0 0
      %1235 = vmatpush2.bf16.msra.mxu0 0
      %1236 = vmatprep.subr.bf16.mxu0 0
      %1237 = vmatpush2.bf16.msra.mxu0 0
      %1238 = vmatprep.subr.bf16.mxu0 0
      %1239 = vmatpush2.bf16.msra.mxu0 0
      %1240 = vmatprep.subr.bf16.mxu0 0
      %1241 = vmatpush2.bf16.msra.mxu0 0
      %1242 = vmatprep.mubr.bf16.mxu0 0
      %1243 = vmatmul.mubr.bf16.gmra.mxu0 %v1196
      %v1244 = vpop.f32.mrf.mxu0
      %v1245 = vadd.f32 0.0, %v1244
      %v1246 = vpop.f32.mrf.mxu0
      %v1247 = vpop.f32.mrf.mxu0
      %v1248 = vadd.f32 0.0, %v1247
      %v1249 = vpop.f32.mrf.mxu0
      %1250 = vmatprep.mubr.bf16.mxu0 0
      %1251 = vmatmul.mubr.bf16.gmra.mxu0 %v1199
      %v1252 = vpop.f32.mrf.mxu0
      %v1253 = vadd.f32 0.0, %v1252
      %v1254 = vpop.f32.mrf.mxu0
      %v1255 = vpop.f32.mrf.mxu0
      %v1256 = vadd.f32 0.0, %v1255
      %v1257 = vpop.f32.mrf.mxu0
      %1258 = vmatprep.mubr.bf16.mxu0 0
      %1259 = vmatmul.mubr.bf16.gmra.mxu0 %v1202
      %v1260 = vpop.f32.mrf.mxu0
      %v1261 = vadd.f32 0.0, %v1260
      %v1262 = vpop.f32.mrf.mxu0
      %v1263 = vpop.f32.mrf.mxu0
      %v1264 = vadd.f32 0.0, %v1263
      %v1265 = vpop.f32.mrf.mxu0
      %1266 = vmatprep.mubr.bf16.mxu0 0
      %1267 = vmatmul.mubr.bf16.gmra.mxu0 %v1205
      %v1268 = vpop.f32.mrf.mxu0
      %v1269 = vadd.f32 0.0, %v1268
      %v1270 = vpop.f32.mrf.mxu0
      %v1271 = vpop.f32.mrf.mxu0
      %v1272 = vadd.f32 0.0, %v1271
      %v1273 = vpop.f32.mrf.mxu0
      %1274 = vdwg.mxu0
      %v1275 = vadd.f32 %v1134, %v1245
      %v1276 = vadd.f32 %v1137, %v1248
      %v1277 = vadd.f32 %v1142, %v1253
      %v1278 = vadd.f32 %v1145, %v1256
      %v1279 = vadd.f32 %v1150, %v1261
      %v1280 = vadd.f32 %v1153, %v1264
      %v1281 = vadd.f32 %v1158, %v1269
      %v1282 = vadd.f32 %v1161, %v1272
      %v1283 = vld [vmem:[%s6] sm:$0xff]
      %v1284 = vld [vmem:[%s6 + $0x8] sm:$0xff]
      %v1285 = vld [vmem:[%s6 + $0x10] sm:$0xff]
      %v1286 = vld [vmem:[%s6 + $0x18] sm:$0xff]
      %v1287 = vld [vmem:[%s6 + $0x20] sm:$0xff]
      %v1288 = vld [vmem:[%s6 + $0x28] sm:$0xff]
      %v1289 = vld [vmem:[%s6 + $0x30] sm:$0xff]
      %v1290 = vld [vmem:[%s6 + $0x38] sm:$0xff]
      %1292 = vset.pattern.permute.xlu0 0
      %1293 = vperm.xlu0 %1292, %v1283
      %v1294 = vpop.permute.xlu0 %1293
      %1297 = vset.pattern.permute.xlu0 0
      %1298 = vperm.xlu0 %1297, %v1284
      %v1299 = vpop.permute.xlu0 %1298
      %1302 = vset.pattern.permute.xlu0 0
      %1303 = vperm.xlu0 %1302, %v1285
      %v1304 = vpop.permute.xlu0 %1303
      %1307 = vset.pattern.permute.xlu0 0
      %1308 = vperm.xlu0 %1307, %v1286
      %v1309 = vpop.permute.xlu0 %1308
      %1312 = vset.pattern.permute.xlu0 0
      %1313 = vperm.xlu0 %1312, %v1287
      %v1314 = vpop.permute.xlu0 %1313
      %1317 = vset.pattern.permute.xlu0 0
      %1318 = vperm.xlu0 %1317, %v1288
      %v1319 = vpop.permute.xlu0 %1318
      %1322 = vset.pattern.permute.xlu0 0
      %1323 = vperm.xlu0 %1322, %v1289
      %v1324 = vpop.permute.xlu0 %1323
      %1327 = vset.pattern.permute.xlu0 0
      %1328 = vperm.xlu0 %1327, %v1290
      %v1329 = vpop.permute.xlu0 %1328
      %v1331 = vadd.f32 %v1275, %v1294
      %v1332 = vadd.f32 %v1276, %v1299
      %v1333 = vadd.f32 %v1277, %v1304
      %v1334 = vadd.f32 %v1278, %v1309
      %v1335 = vadd.f32 %v1279, %v1314
      %v1336 = vadd.f32 %v1280, %v1319
      %v1337 = vadd.f32 %v1281, %v1324
      %v1338 = vadd.f32 %v1282, %v1329
      %v1339 = vmax.f32 %v1331, 0.0
      %v1340 = vmax.f32 %v1332, 0.0
      %v1341 = vmax.f32 %v1333, 0.0
      %v1342 = vmax.f32 %v1334, 0.0
      %v1343 = vmax.f32 %v1335, 0.0
      %v1344 = vmax.f32 %v1336, 0.0
      %v1345 = vmax.f32 %v1337, 0.0
      %v1346 = vmax.f32 %v1338, 0.0
      %v1347 = vld [vmem:[%s7] sm:$0x3]
      %v1348 = vpack.c.bf16 %v1340, %v1339
      %v1349 = vpack.c.bf16 %v1342, %v1341
      %v1350 = vpack.c.bf16 %v1344, %v1343
      %v1351 = vpack.c.bf16 %v1346, %v1345
      %v1352 = vld [vmem:[%s8] sm:$0xf]
      %1354 = vset.pattern.permute.xlu0 0
      %1355 = vperm.xlu0 %1354, %v1352
      %v1356 = vpop.permute.xlu0 %1355
      %v1359 = vsel %vm514, %v1347, 0
      %1361 = vmatprep.subr.bf16.mxu0 0
      %1362 = vmatpush1.bf16.msra.mxu0 0
      %1363 = vmatprep.subr.bf16.mxu0 0
      %1364 = vmatpush1.bf16.msra.mxu0 0
      %1365 = vmatprep.subr.bf16.mxu0 0
      %1366 = vmatpush1.bf16.msra.mxu0 0
      %1367 = vmatprep.subr.bf16.mxu0 0
      %1368 = vmatpush1.bf16.msra.mxu0 0
      %1369 = vmatprep.subr.bf16.mxu0 0
      %1370 = vmatpush1.bf16.msra.mxu0 %v1351
      %1371 = vmatprep.subr.bf16.mxu0 0
      %1372 = vmatpush1.bf16.msra.mxu0 %v1350
      %1373 = vmatprep.subr.bf16.mxu0 0
      %1374 = vmatpush1.bf16.msra.mxu0 %v1349
      %1375 = vmatprep.subr.bf16.mxu0 0
      %1376 = vmatpush1.bf16.msra.mxu0 %v1348
      %1377 = vmatprep.subr.bf16.mxu0 0
      %1378 = vmatpush2.bf16.msra.mxu0 0
      %1379 = vmatprep.subr.bf16.mxu0 0
      %1380 = vmatpush2.bf16.msra.mxu0 0
      %1381 = vmatprep.subr.bf16.mxu0 0
      %1382 = vmatpush2.bf16.msra.mxu0 0
      %1383 = vmatprep.subr.bf16.mxu0 0
      %1384 = vmatpush2.bf16.msra.mxu0 0
      %1385 = vmatprep.subr.bf16.mxu0 0
      %1386 = vmatpush2.bf16.msra.mxu0 0
      %1387 = vmatprep.subr.bf16.mxu0 0
      %1388 = vmatpush2.bf16.msra.mxu0 0
      %1389 = vmatprep.subr.bf16.mxu0 0
      %1390 = vmatpush2.bf16.msra.mxu0 0
      %1391 = vmatprep.subr.bf16.mxu0 0
      %1392 = vmatpush2.bf16.msra.mxu0 0
      %1393 = vmatprep.mubr.bf16.mxu0 0
      %1394 = vmatmul.mubr.bf16.gmra.mxu0 %v1359
      %v1395 = vpop.f32.mrf.mxu0
      %v1396 = vadd.f32 %v1356, %v1395
      %v1397 = vpop.f32.mrf.mxu0
      %v1398 = vpop.f32.mrf.mxu0
      %v1399 = vpop.f32.mrf.mxu0
      %1400 = vdwg.mxu0
      %s1401 = scalar_lea.vmem %s451, 4
      %1402 = vst [vmem:[%s1401] sm:$0xf] %v1396
      %v1403 = vld [vmem:[%s3] sm:$0xf]
      %v1404 = vld [vmem:[%s3 + $0x4] sm:$0xf]
      %v1405 = vld [vmem:[%s3 + $0x8] sm:$0xf]
      %v1406 = vld [vmem:[%s3 + $0xc] sm:$0xf]
      %v1407 = vld [vmem:[%s3 + $0x10] sm:$0xf]
      %v1408 = vld [vmem:[%s3 + $0x14] sm:$0xf]
      %v1409 = vld [vmem:[%s3 + $0x18] sm:$0xf]
      %v1410 = vld [vmem:[%s3 + $0x1c] sm:$0xf]
      %s1411 = scalar_lea.vmem %s419, 128
      %v1412 = vld [vmem:[%s1411] sm:$0xff]
      %v1413 = vld [vmem:[%s1411 + $0x8] sm:$0xff]
      %v1414 = vld [vmem:[%s1411 + $0x10] sm:$0xff]
      %v1415 = vld [vmem:[%s1411 + $0x18] sm:$0xff]
      %v1416 = vld [vmem:[%s1411 + $0x20] sm:$0xff]
      %v1417 = vld [vmem:[%s1411 + $0x28] sm:$0xff]
      %v1418 = vld [vmem:[%s1411 + $0x30] sm:$0xff]
      %v1419 = vld [vmem:[%s1411 + $0x38] sm:$0xff]
      %v1420 = vpack.c.bf16 %v1413, %v1412
      %v1421 = vpack.c.bf16 %v1415, %v1414
      %v1422 = vpack.c.bf16 %v1417, %v1416
      %v1423 = vpack.c.bf16 %v1419, %v1418
      %v1424 = vld [vmem:[%s4] sm:$0xf]
      %v1425 = vld [vmem:[%s4 + $0x4] sm:$0xf]
      %v1426 = vld [vmem:[%s4 + $0x8] sm:$0xf]
      %v1427 = vld [vmem:[%s4 + $0xc] sm:$0xf]
      %v1428 = vld [vmem:[%s4 + $0x10] sm:$0xf]
      %v1429 = vld [vmem:[%s4 + $0x14] sm:$0xf]
      %v1430 = vld [vmem:[%s4 + $0x18] sm:$0xf]
      %v1431 = vld [vmem:[%s4 + $0x1c] sm:$0xf]
      %s1432 = scalar_lea.vmem %s431, 128
      %v1433 = vld [vmem:[%s1432] sm:$0xff]
      %v1434 = vld [vmem:[%s1432 + $0x8] sm:$0xff]
      %v1435 = vld [vmem:[%s1432 + $0x10] sm:$0xff]
      %v1436 = vld [vmem:[%s1432 + $0x18] sm:$0xff]
      %v1437 = vld [vmem:[%s1432 + $0x20] sm:$0xff]
      %v1438 = vld [vmem:[%s1432 + $0x28] sm:$0xff]
      %v1439 = vld [vmem:[%s1432 + $0x30] sm:$0xff]
      %v1440 = vld [vmem:[%s1432 + $0x38] sm:$0xff]
      %v1441 = vpack.c.bf16 %v1434, %v1433
      %v1442 = vpack.c.bf16 %v1436, %v1435
      %v1443 = vpack.c.bf16 %v1438, %v1437
      %v1444 = vpack.c.bf16 %v1440, %v1439
      %v1453 = vunpack.c.l.b16 %v1424
      %v1454 = vunpack.c.l.b16 %v1425
      %v1455 = vunpack.c.l.b16 %v1426
      %v1456 = vunpack.c.l.b16 %v1427
      %v1457 = vunpack.c.l.b16 %v1428
      %v1458 = vunpack.c.l.b16 %v1429
      %v1459 = vunpack.c.l.b16 %v1430
      %v1460 = vunpack.c.l.b16 %v1431
      %v1461 = vpack.c.b16 %v1454, %v1453
      %v1462 = vpack.c.b16 %v1456, %v1455
      %v1463 = vpack.c.b16 %v1458, %v1457
      %v1464 = vpack.c.b16 %v1460, %v1459
      %v1466 = vsel %vm514, %v1461, 0
      %v1469 = vsel %vm514, %v1462, 0
      %v1472 = vsel %vm514, %v1463, 0
      %v1475 = vsel %vm514, %v1464, 0
      %1477 = vmatprep.subr.bf16.mxu0 0
      %1478 = vmatpush1.bf16.msra.mxu0 0
      %1479 = vmatprep.subr.bf16.mxu0 0
      %1480 = vmatpush1.bf16.msra.mxu0 0
      %1481 = vmatprep.subr.bf16.mxu0 0
      %1482 = vmatpush1.bf16.msra.mxu0 0
      %1483 = vmatprep.subr.bf16.mxu0 0
      %1484 = vmatpush1.bf16.msra.mxu0 0
      %1485 = vmatprep.subr.bf16.mxu0 0
      %1486 = vmatpush1.bf16.msra.mxu0 %v1444
      %1487 = vmatprep.subr.bf16.mxu0 0
      %1488 = vmatpush1.bf16.msra.mxu0 %v1443
      %1489 = vmatprep.subr.bf16.mxu0 0
      %1490 = vmatpush1.bf16.msra.mxu0 %v1442
      %1491 = vmatprep.subr.bf16.mxu0 0
      %1492 = vmatpush1.bf16.msra.mxu0 %v1441
      %1493 = vmatprep.subr.bf16.mxu0 0
      %1494 = vmatpush2.bf16.msra.mxu0 0
      %1495 = vmatprep.subr.bf16.mxu0 0
      %1496 = vmatpush2.bf16.msra.mxu0 0
      %1497 = vmatprep.subr.bf16.mxu0 0
      %1498 = vmatpush2.bf16.msra.mxu0 0
      %1499 = vmatprep.subr.bf16.mxu0 0
      %1500 = vmatpush2.bf16.msra.mxu0 0
      %1501 = vmatprep.subr.bf16.mxu0 0
      %1502 = vmatpush2.bf16.msra.mxu0 0
      %1503 = vmatprep.subr.bf16.mxu0 0
      %1504 = vmatpush2.bf16.msra.mxu0 0
      %1505 = vmatprep.subr.bf16.mxu0 0
      %1506 = vmatpush2.bf16.msra.mxu0 0
      %1507 = vmatprep.subr.bf16.mxu0 0
      %1508 = vmatpush2.bf16.msra.mxu0 0
      %1509 = vmatprep.mubr.bf16.mxu0 0
      %1510 = vmatmul.mubr.bf16.gmra.mxu0 %v1466
      %v1511 = vpop.f32.mrf.mxu0
      %v1512 = vadd.f32 0.0, %v1511
      %v1513 = vpop.f32.mrf.mxu0
      %v1514 = vpop.f32.mrf.mxu0
      %v1515 = vadd.f32 0.0, %v1514
      %v1516 = vpop.f32.mrf.mxu0
      %1517 = vmatprep.mubr.bf16.mxu0 0
      %1518 = vmatmul.mubr.bf16.gmra.mxu0 %v1469
      %v1519 = vpop.f32.mrf.mxu0
      %v1520 = vadd.f32 0.0, %v1519
      %v1521 = vpop.f32.mrf.mxu0
      %v1522 = vpop.f32.mrf.mxu0
      %v1523 = vadd.f32 0.0, %v1522
      %v1524 = vpop.f32.mrf.mxu0
      %1525 = vmatprep.mubr.bf16.mxu0 0
      %1526 = vmatmul.mubr.bf16.gmra.mxu0 %v1472
      %v1527 = vpop.f32.mrf.mxu0
      %v1528 = vadd.f32 0.0, %v1527
      %v1529 = vpop.f32.mrf.mxu0
      %v1530 = vpop.f32.mrf.mxu0
      %v1531 = vadd.f32 0.0, %v1530
      %v1532 = vpop.f32.mrf.mxu0
      %1533 = vmatprep.mubr.bf16.mxu0 0
      %1534 = vmatmul.mubr.bf16.gmra.mxu0 %v1475
      %v1535 = vpop.f32.mrf.mxu0
      %v1536 = vadd.f32 0.0, %v1535
      %v1537 = vpop.f32.mrf.mxu0
      %v1538 = vpop.f32.mrf.mxu0
      %v1539 = vadd.f32 0.0, %v1538
      %v1540 = vpop.f32.mrf.mxu0
      %1541 = vdwg.mxu0
      %v1550 = vunpack.c.l.b16 %v1403
      %v1551 = vunpack.c.l.b16 %v1404
      %v1552 = vunpack.c.l.b16 %v1405
      %v1553 = vunpack.c.l.b16 %v1406
      %v1554 = vunpack.c.l.b16 %v1407
      %v1555 = vunpack.c.l.b16 %v1408
      %v1556 = vunpack.c.l.b16 %v1409
      %v1557 = vunpack.c.l.b16 %v1410
      %v1558 = vpack.c.b16 %v1551, %v1550
      %v1559 = vpack.c.b16 %v1553, %v1552
      %v1560 = vpack.c.b16 %v1555, %v1554
      %v1561 = vpack.c.b16 %v1557, %v1556
      %v1563 = vsel %vm514, %v1558, 0
      %v1566 = vsel %vm514, %v1559, 0
      %v1569 = vsel %vm514, %v1560, 0
      %v1572 = vsel %vm514, %v1561, 0
      %1574 = vmatprep.subr.bf16.mxu0 0
      %1575 = vmatpush1.bf16.msra.mxu0 0
      %1576 = vmatprep.subr.bf16.mxu0 0
      %1577 = vmatpush1.bf16.msra.mxu0 0
      %1578 = vmatprep.subr.bf16.mxu0 0
      %1579 = vmatpush1.bf16.msra.mxu0 0
      %1580 = vmatprep.subr.bf16.mxu0 0
      %1581 = vmatpush1.bf16.msra.mxu0 0
      %1582 = vmatprep.subr.bf16.mxu0 0
      %1583 = vmatpush1.bf16.msra.mxu0 %v1423
      %1584 = vmatprep.subr.bf16.mxu0 0
      %1585 = vmatpush1.bf16.msra.mxu0 %v1422
      %1586 = vmatprep.subr.bf16.mxu0 0
      %1587 = vmatpush1.bf16.msra.mxu0 %v1421
      %1588 = vmatprep.subr.bf16.mxu0 0
      %1589 = vmatpush1.bf16.msra.mxu0 %v1420
      %1590 = vmatprep.subr.bf16.mxu0 0
      %1591 = vmatpush2.bf16.msra.mxu0 0
      %1592 = vmatprep.subr.bf16.mxu0 0
      %1593 = vmatpush2.bf16.msra.mxu0 0
      %1594 = vmatprep.subr.bf16.mxu0 0
      %1595 = vmatpush2.bf16.msra.mxu0 0
      %1596 = vmatprep.subr.bf16.mxu0 0
      %1597 = vmatpush2.bf16.msra.mxu0 0
      %1598 = vmatprep.subr.bf16.mxu0 0
      %1599 = vmatpush2.bf16.msra.mxu0 0
      %1600 = vmatprep.subr.bf16.mxu0 0
      %1601 = vmatpush2.bf16.msra.mxu0 0
      %1602 = vmatprep.subr.bf16.mxu0 0
      %1603 = vmatpush2.bf16.msra.mxu0 0
      %1604 = vmatprep.subr.bf16.mxu0 0
      %1605 = vmatpush2.bf16.msra.mxu0 0
      %1606 = vmatprep.mubr.bf16.mxu0 0
      %1607 = vmatmul.mubr.bf16.gmra.mxu0 %v1563
      %v1608 = vpop.f32.mrf.mxu0
      %v1609 = vadd.f32 %v1512, %v1608
      %v1610 = vpop.f32.mrf.mxu0
      %v1611 = vpop.f32.mrf.mxu0
      %v1612 = vadd.f32 %v1515, %v1611
      %v1613 = vpop.f32.mrf.mxu0
      %1614 = vmatprep.mubr.bf16.mxu0 0
      %1615 = vmatmul.mubr.bf16.gmra.mxu0 %v1566
      %v1616 = vpop.f32.mrf.mxu0
      %v1617 = vadd.f32 %v1520, %v1616
      %v1618 = vpop.f32.mrf.mxu0
      %v1619 = vpop.f32.mrf.mxu0
      %v1620 = vadd.f32 %v1523, %v1619
      %v1621 = vpop.f32.mrf.mxu0
      %1622 = vmatprep.mubr.bf16.mxu0 0
      %1623 = vmatmul.mubr.bf16.gmra.mxu0 %v1569
      %v1624 = vpop.f32.mrf.mxu0
      %v1625 = vadd.f32 %v1528, %v1624
      %v1626 = vpop.f32.mrf.mxu0
      %v1627 = vpop.f32.mrf.mxu0
      %v1628 = vadd.f32 %v1531, %v1627
      %v1629 = vpop.f32.mrf.mxu0
      %1630 = vmatprep.mubr.bf16.mxu0 0
      %1631 = vmatmul.mubr.bf16.gmra.mxu0 %v1572
      %v1632 = vpop.f32.mrf.mxu0
      %v1633 = vadd.f32 %v1536, %v1632
      %v1634 = vpop.f32.mrf.mxu0
      %v1635 = vpop.f32.mrf.mxu0
      %v1636 = vadd.f32 %v1539, %v1635
      %v1637 = vpop.f32.mrf.mxu0
      %1638 = vdwg.mxu0
      %v1639 = vld [vmem:[%s5] sm:$0xf]
      %v1640 = vld [vmem:[%s5 + $0x4] sm:$0xf]
      %v1641 = vld [vmem:[%s5 + $0x8] sm:$0xf]
      %v1642 = vld [vmem:[%s5 + $0xc] sm:$0xf]
      %v1643 = vld [vmem:[%s5 + $0x10] sm:$0xf]
      %v1644 = vld [vmem:[%s5 + $0x14] sm:$0xf]
      %v1645 = vld [vmem:[%s5 + $0x18] sm:$0xf]
      %v1646 = vld [vmem:[%s5 + $0x1c] sm:$0xf]
      %s1647 = scalar_lea.vmem %s441, 8
      %v1648 = vld [vmem:[%s1647] sm:$0xf]
      %v1649 = vpack.c.bf16 %v1648, %v1648
      %v1658 = vunpack.c.l.b16 %v1639
      %v1659 = vunpack.c.l.b16 %v1640
      %v1660 = vunpack.c.l.b16 %v1641
      %v1661 = vunpack.c.l.b16 %v1642
      %v1662 = vunpack.c.l.b16 %v1643
      %v1663 = vunpack.c.l.b16 %v1644
      %v1664 = vunpack.c.l.b16 %v1645
      %v1665 = vunpack.c.l.b16 %v1646
      %v1666 = vpack.c.b16 %v1659, %v1658
      %v1667 = vpack.c.b16 %v1661, %v1660
      %v1668 = vpack.c.b16 %v1663, %v1662
      %v1669 = vpack.c.b16 %v1665, %v1664
      %v1671 = vsel %vm719, %v1666, 0
      %v1674 = vsel %vm719, %v1667, 0
      %v1677 = vsel %vm719, %v1668, 0
      %v1680 = vsel %vm719, %v1669, 0
      %v1683 = vsel %vm732, %v1649, 0
      %1685 = vmatprep.subr.bf16.mxu0 0
      %1686 = vmatpush1.bf16.msra.mxu0 0
      %1687 = vmatprep.subr.bf16.mxu0 0
      %1688 = vmatpush1.bf16.msra.mxu0 0
      %1689 = vmatprep.subr.bf16.mxu0 0
      %1690 = vmatpush1.bf16.msra.mxu0 0
      %1691 = vmatprep.subr.bf16.mxu0 0
      %1692 = vmatpush1.bf16.msra.mxu0 0
      %1693 = vmatprep.subr.bf16.mxu0 0
      %1694 = vmatpush1.bf16.msra.mxu0 0
      %1695 = vmatprep.subr.bf16.mxu0 0
      %1696 = vmatpush1.bf16.msra.mxu0 0
      %1697 = vmatprep.subr.bf16.mxu0 0
      %1698 = vmatpush1.bf16.msra.mxu0 0
      %1699 = vmatprep.subr.bf16.mxu0 0
      %1700 = vmatpush1.bf16.msra.mxu0 %v1683
      %1701 = vmatprep.subr.bf16.mxu0 0
      %1702 = vmatpush2.bf16.msra.mxu0 0
      %1703 = vmatprep.subr.bf16.mxu0 0
      %1704 = vmatpush2.bf16.msra.mxu0 0
      %1705 = vmatprep.subr.bf16.mxu0 0
      %1706 = vmatpush2.bf16.msra.mxu0 0
      %1707 = vmatprep.subr.bf16.mxu0 0
      %1708 = vmatpush2.bf16.msra.mxu0 0
      %1709 = vmatprep.subr.bf16.mxu0 0
      %1710 = vmatpush2.bf16.msra.mxu0 0
      %1711 = vmatprep.subr.bf16.mxu0 0
      %1712 = vmatpush2.bf16.msra.mxu0 0
      %1713 = vmatprep.subr.bf16.mxu0 0
      %1714 = vmatpush2.bf16.msra.mxu0 0
      %1715 = vmatprep.subr.bf16.mxu0 0
      %1716 = vmatpush2.bf16.msra.mxu0 0
      %1717 = vmatprep.mubr.bf16.mxu0 0
      %1718 = vmatmul.mubr.bf16.gmra.mxu0 %v1671
      %v1719 = vpop.f32.mrf.mxu0
      %v1720 = vadd.f32 0.0, %v1719
      %v1721 = vpop.f32.mrf.mxu0
      %v1722 = vpop.f32.mrf.mxu0
      %v1723 = vadd.f32 0.0, %v1722
      %v1724 = vpop.f32.mrf.mxu0
      %1725 = vmatprep.mubr.bf16.mxu0 0
      %1726 = vmatmul.mubr.bf16.gmra.mxu0 %v1674
      %v1727 = vpop.f32.mrf.mxu0
      %v1728 = vadd.f32 0.0, %v1727
      %v1729 = vpop.f32.mrf.mxu0
      %v1730 = vpop.f32.mrf.mxu0
      %v1731 = vadd.f32 0.0, %v1730
      %v1732 = vpop.f32.mrf.mxu0
      %1733 = vmatprep.mubr.bf16.mxu0 0
      %1734 = vmatmul.mubr.bf16.gmra.mxu0 %v1677
      %v1735 = vpop.f32.mrf.mxu0
      %v1736 = vadd.f32 0.0, %v1735
      %v1737 = vpop.f32.mrf.mxu0
      %v1738 = vpop.f32.mrf.mxu0
      %v1739 = vadd.f32 0.0, %v1738
      %v1740 = vpop.f32.mrf.mxu0
      %1741 = vmatprep.mubr.bf16.mxu0 0
      %1742 = vmatmul.mubr.bf16.gmra.mxu0 %v1680
      %v1743 = vpop.f32.mrf.mxu0
      %v1744 = vadd.f32 0.0, %v1743
      %v1745 = vpop.f32.mrf.mxu0
      %v1746 = vpop.f32.mrf.mxu0
      %v1747 = vadd.f32 0.0, %v1746
      %v1748 = vpop.f32.mrf.mxu0
      %1749 = vdwg.mxu0
      %v1750 = vadd.f32 %v1609, %v1720
      %v1751 = vadd.f32 %v1612, %v1723
      %v1752 = vadd.f32 %v1617, %v1728
      %v1753 = vadd.f32 %v1620, %v1731
      %v1754 = vadd.f32 %v1625, %v1736
      %v1755 = vadd.f32 %v1628, %v1739
      %v1756 = vadd.f32 %v1633, %v1744
      %v1757 = vadd.f32 %v1636, %v1747
      %v1758 = vld [vmem:[%s6] sm:$0xff]
      %v1759 = vld [vmem:[%s6 + $0x8] sm:$0xff]
      %v1760 = vld [vmem:[%s6 + $0x10] sm:$0xff]
      %v1761 = vld [vmem:[%s6 + $0x18] sm:$0xff]
      %v1762 = vld [vmem:[%s6 + $0x20] sm:$0xff]
      %v1763 = vld [vmem:[%s6 + $0x28] sm:$0xff]
      %v1764 = vld [vmem:[%s6 + $0x30] sm:$0xff]
      %v1765 = vld [vmem:[%s6 + $0x38] sm:$0xff]
      %1767 = vset.pattern.permute.xlu0 0
      %1768 = vperm.xlu0 %1767, %v1758
      %v1769 = vpop.permute.xlu0 %1768
      %1772 = vset.pattern.permute.xlu0 0
      %1773 = vperm.xlu0 %1772, %v1759
      %v1774 = vpop.permute.xlu0 %1773
      %1777 = vset.pattern.permute.xlu0 0
      %1778 = vperm.xlu0 %1777, %v1760
      %v1779 = vpop.permute.xlu0 %1778
      %1782 = vset.pattern.permute.xlu0 0
      %1783 = vperm.xlu0 %1782, %v1761
      %v1784 = vpop.permute.xlu0 %1783
      %1787 = vset.pattern.permute.xlu0 0
      %1788 = vperm.xlu0 %1787, %v1762
      %v1789 = vpop.permute.xlu0 %1788
      %1792 = vset.pattern.permute.xlu0 0
      %1793 = vperm.xlu0 %1792, %v1763
      %v1794 = vpop.permute.xlu0 %1793
      %1797 = vset.pattern.permute.xlu0 0
      %1798 = vperm.xlu0 %1797, %v1764
      %v1799 = vpop.permute.xlu0 %1798
      %1802 = vset.pattern.permute.xlu0 0
      %1803 = vperm.xlu0 %1802, %v1765
      %v1804 = vpop.permute.xlu0 %1803
      %v1806 = vadd.f32 %v1750, %v1769
      %v1807 = vadd.f32 %v1751, %v1774
      %v1808 = vadd.f32 %v1752, %v1779
      %v1809 = vadd.f32 %v1753, %v1784
      %v1810 = vadd.f32 %v1754, %v1789
      %v1811 = vadd.f32 %v1755, %v1794
      %v1812 = vadd.f32 %v1756, %v1799
      %v1813 = vadd.f32 %v1757, %v1804
      %v1814 = vmax.f32 %v1806, 0.0
      %v1815 = vmax.f32 %v1807, 0.0
      %v1816 = vmax.f32 %v1808, 0.0
      %v1817 = vmax.f32 %v1809, 0.0
      %v1818 = vmax.f32 %v1810, 0.0
      %v1819 = vmax.f32 %v1811, 0.0
      %v1820 = vmax.f32 %v1812, 0.0
      %v1821 = vmax.f32 %v1813, 0.0
      %v1822 = vld [vmem:[%s7] sm:$0x3]
      %v1823 = vpack.c.bf16 %v1815, %v1814
      %v1824 = vpack.c.bf16 %v1817, %v1816
      %v1825 = vpack.c.bf16 %v1819, %v1818
      %v1826 = vpack.c.bf16 %v1821, %v1820
      %v1827 = vld [vmem:[%s8] sm:$0xf]
      %1829 = vset.pattern.permute.xlu0 0
      %1830 = vperm.xlu0 %1829, %v1827
      %v1831 = vpop.permute.xlu0 %1830
      %v1834 = vsel %vm514, %v1822, 0
      %1836 = vmatprep.subr.bf16.mxu0 0
      %1837 = vmatpush1.bf16.msra.mxu0 0
      %1838 = vmatprep.subr.bf16.mxu0 0
      %1839 = vmatpush1.bf16.msra.mxu0 0
      %1840 = vmatprep.subr.bf16.mxu0 0
      %1841 = vmatpush1.bf16.msra.mxu0 0
      %1842 = vmatprep.subr.bf16.mxu0 0
      %1843 = vmatpush1.bf16.msra.mxu0 0
      %1844 = vmatprep.subr.bf16.mxu0 0
      %1845 = vmatpush1.bf16.msra.mxu0 %v1826
      %1846 = vmatprep.subr.bf16.mxu0 0
      %1847 = vmatpush1.bf16.msra.mxu0 %v1825
      %1848 = vmatprep.subr.bf16.mxu0 0
      %1849 = vmatpush1.bf16.msra.mxu0 %v1824
      %1850 = vmatprep.subr.bf16.mxu0 0
      %1851 = vmatpush1.bf16.msra.mxu0 %v1823
      %1852 = vmatprep.subr.bf16.mxu0 0
      %1853 = vmatpush2.bf16.msra.mxu0 0
      %1854 = vmatprep.subr.bf16.mxu0 0
      %1855 = vmatpush2.bf16.msra.mxu0 0
      %1856 = vmatprep.subr.bf16.mxu0 0
      %1857 = vmatpush2.bf16.msra.mxu0 0
      %1858 = vmatprep.subr.bf16.mxu0 0
      %1859 = vmatpush2.bf16.msra.mxu0 0
      %1860 = vmatprep.subr.bf16.mxu0 0
      %1861 = vmatpush2.bf16.msra.mxu0 0
      %1862 = vmatprep.subr.bf16.mxu0 0
      %1863 = vmatpush2.bf16.msra.mxu0 0
      %1864 = vmatprep.subr.bf16.mxu0 0
      %1865 = vmatpush2.bf16.msra.mxu0 0
      %1866 = vmatprep.subr.bf16.mxu0 0
      %1867 = vmatpush2.bf16.msra.mxu0 0
      %1868 = vmatprep.mubr.bf16.mxu0 0
      %1869 = vmatmul.mubr.bf16.gmra.mxu0 %v1834
      %v1870 = vpop.f32.mrf.mxu0
      %v1871 = vadd.f32 %v1831, %v1870
      %v1872 = vpop.f32.mrf.mxu0
      %v1873 = vpop.f32.mrf.mxu0
      %v1874 = vpop.f32.mrf.mxu0
      %1875 = vdwg.mxu0
      %s1876 = scalar_lea.vmem %s451, 8
      %1877 = vst [vmem:[%s1876] sm:$0xf] %v1871
      %v1878 = vld [vmem:[%s3] sm:$0xf]
      %v1879 = vld [vmem:[%s3 + $0x4] sm:$0xf]
      %v1880 = vld [vmem:[%s3 + $0x8] sm:$0xf]
      %v1881 = vld [vmem:[%s3 + $0xc] sm:$0xf]
      %v1882 = vld [vmem:[%s3 + $0x10] sm:$0xf]
      %v1883 = vld [vmem:[%s3 + $0x14] sm:$0xf]
      %v1884 = vld [vmem:[%s3 + $0x18] sm:$0xf]
      %v1885 = vld [vmem:[%s3 + $0x1c] sm:$0xf]
      %s1886 = scalar_lea.vmem %s419, 192
      %v1887 = vld [vmem:[%s1886] sm:$0xff]
      %v1888 = vld [vmem:[%s1886 + $0x8] sm:$0xff]
      %v1889 = vld [vmem:[%s1886 + $0x10] sm:$0xff]
      %v1890 = vld [vmem:[%s1886 + $0x18] sm:$0xff]
      %v1891 = vld [vmem:[%s1886 + $0x20] sm:$0xff]
      %v1892 = vld [vmem:[%s1886 + $0x28] sm:$0xff]
      %v1893 = vld [vmem:[%s1886 + $0x30] sm:$0xff]
      %v1894 = vld [vmem:[%s1886 + $0x38] sm:$0xff]
      %v1895 = vpack.c.bf16 %v1888, %v1887
      %v1896 = vpack.c.bf16 %v1890, %v1889
      %v1897 = vpack.c.bf16 %v1892, %v1891
      %v1898 = vpack.c.bf16 %v1894, %v1893
      %v1899 = vld [vmem:[%s4] sm:$0xf]
      %v1900 = vld [vmem:[%s4 + $0x4] sm:$0xf]
      %v1901 = vld [vmem:[%s4 + $0x8] sm:$0xf]
      %v1902 = vld [vmem:[%s4 + $0xc] sm:$0xf]
      %v1903 = vld [vmem:[%s4 + $0x10] sm:$0xf]
      %v1904 = vld [vmem:[%s4 + $0x14] sm:$0xf]
      %v1905 = vld [vmem:[%s4 + $0x18] sm:$0xf]
      %v1906 = vld [vmem:[%s4 + $0x1c] sm:$0xf]
      %s1907 = scalar_lea.vmem %s431, 192
      %v1908 = vld [vmem:[%s1907] sm:$0xff]
      %v1909 = vld [vmem:[%s1907 + $0x8] sm:$0xff]
      %v1910 = vld [vmem:[%s1907 + $0x10] sm:$0xff]
      %v1911 = vld [vmem:[%s1907 + $0x18] sm:$0xff]
      %v1912 = vld [vmem:[%s1907 + $0x20] sm:$0xff]
      %v1913 = vld [vmem:[%s1907 + $0x28] sm:$0xff]
      %v1914 = vld [vmem:[%s1907 + $0x30] sm:$0xff]
      %v1915 = vld [vmem:[%s1907 + $0x38] sm:$0xff]
      %v1916 = vpack.c.bf16 %v1909, %v1908
      %v1917 = vpack.c.bf16 %v1911, %v1910
      %v1918 = vpack.c.bf16 %v1913, %v1912
      %v1919 = vpack.c.bf16 %v1915, %v1914
      %v1928 = vunpack.c.l.b16 %v1899
      %v1929 = vunpack.c.l.b16 %v1900
      %v1930 = vunpack.c.l.b16 %v1901
      %v1931 = vunpack.c.l.b16 %v1902
      %v1932 = vunpack.c.l.b16 %v1903
      %v1933 = vunpack.c.l.b16 %v1904
      %v1934 = vunpack.c.l.b16 %v1905
      %v1935 = vunpack.c.l.b16 %v1906
      %v1936 = vpack.c.b16 %v1929, %v1928
      %v1937 = vpack.c.b16 %v1931, %v1930
      %v1938 = vpack.c.b16 %v1933, %v1932
      %v1939 = vpack.c.b16 %v1935, %v1934
      %v1941 = vsel %vm514, %v1936, 0
      %v1944 = vsel %vm514, %v1937, 0
      %v1947 = vsel %vm514, %v1938, 0
      %v1950 = vsel %vm514, %v1939, 0
      %1952 = vmatprep.subr.bf16.mxu0 0
      %1953 = vmatpush1.bf16.msra.mxu0 0
      %1954 = vmatprep.subr.bf16.mxu0 0
      %1955 = vmatpush1.bf16.msra.mxu0 0
      %1956 = vmatprep.subr.bf16.mxu0 0
      %1957 = vmatpush1.bf16.msra.mxu0 0
      %1958 = vmatprep.subr.bf16.mxu0 0
      %1959 = vmatpush1.bf16.msra.mxu0 0
      %1960 = vmatprep.subr.bf16.mxu0 0
      %1961 = vmatpush1.bf16.msra.mxu0 %v1919
      %1962 = vmatprep.subr.bf16.mxu0 0
      %1963 = vmatpush1.bf16.msra.mxu0 %v1918
      %1964 = vmatprep.subr.bf16.mxu0 0
      %1965 = vmatpush1.bf16.msra.mxu0 %v1917
      %1966 = vmatprep.subr.bf16.mxu0 0
      %1967 = vmatpush1.bf16.msra.mxu0 %v1916
      %1968 = vmatprep.subr.bf16.mxu0 0
      %1969 = vmatpush2.bf16.msra.mxu0 0
      %1970 = vmatprep.subr.bf16.mxu0 0
      %1971 = vmatpush2.bf16.msra.mxu0 0
      %1972 = vmatprep.subr.bf16.mxu0 0
      %1973 = vmatpush2.bf16.msra.mxu0 0
      %1974 = vmatprep.subr.bf16.mxu0 0
      %1975 = vmatpush2.bf16.msra.mxu0 0
      %1976 = vmatprep.subr.bf16.mxu0 0
      %1977 = vmatpush2.bf16.msra.mxu0 0
      %1978 = vmatprep.subr.bf16.mxu0 0
      %1979 = vmatpush2.bf16.msra.mxu0 0
      %1980 = vmatprep.subr.bf16.mxu0 0
      %1981 = vmatpush2.bf16.msra.mxu0 0
      %1982 = vmatprep.subr.bf16.mxu0 0
      %1983 = vmatpush2.bf16.msra.mxu0 0
      %1984 = vmatprep.mubr.bf16.mxu0 0
      %1985 = vmatmul.mubr.bf16.gmra.mxu0 %v1941
      %v1986 = vpop.f32.mrf.mxu0
      %v1987 = vadd.f32 0.0, %v1986
      %v1988 = vpop.f32.mrf.mxu0
      %v1989 = vpop.f32.mrf.mxu0
      %v1990 = vadd.f32 0.0, %v1989
      %v1991 = vpop.f32.mrf.mxu0
      %1992 = vmatprep.mubr.bf16.mxu0 0
      %1993 = vmatmul.mubr.bf16.gmra.mxu0 %v1944
      %v1994 = vpop.f32.mrf.mxu0
      %v1995 = vadd.f32 0.0, %v1994
      %v1996 = vpop.f32.mrf.mxu0
      %v1997 = vpop.f32.mrf.mxu0
      %v1998 = vadd.f32 0.0, %v1997
      %v1999 = vpop.f32.mrf.mxu0
      %2000 = vmatprep.mubr.bf16.mxu0 0
      %2001 = vmatmul.mubr.bf16.gmra.mxu0 %v1947
      %v2002 = vpop.f32.mrf.mxu0
      %v2003 = vadd.f32 0.0, %v2002
      %v2004 = vpop.f32.mrf.mxu0
      %v2005 = vpop.f32.mrf.mxu0
      %v2006 = vadd.f32 0.0, %v2005
      %v2007 = vpop.f32.mrf.mxu0
      %2008 = vmatprep.mubr.bf16.mxu0 0
      %2009 = vmatmul.mubr.bf16.gmra.mxu0 %v1950
      %v2010 = vpop.f32.mrf.mxu0
      %v2011 = vadd.f32 0.0, %v2010
      %v2012 = vpop.f32.mrf.mxu0
      %v2013 = vpop.f32.mrf.mxu0
      %v2014 = vadd.f32 0.0, %v2013
      %v2015 = vpop.f32.mrf.mxu0
      %2016 = vdwg.mxu0
      %v2025 = vunpack.c.l.b16 %v1878
      %v2026 = vunpack.c.l.b16 %v1879
      %v2027 = vunpack.c.l.b16 %v1880
      %v2028 = vunpack.c.l.b16 %v1881
      %v2029 = vunpack.c.l.b16 %v1882
      %v2030 = vunpack.c.l.b16 %v1883
      %v2031 = vunpack.c.l.b16 %v1884
      %v2032 = vunpack.c.l.b16 %v1885
      %v2033 = vpack.c.b16 %v2026, %v2025
      %v2034 = vpack.c.b16 %v2028, %v2027
      %v2035 = vpack.c.b16 %v2030, %v2029
      %v2036 = vpack.c.b16 %v2032, %v2031
      %v2038 = vsel %vm514, %v2033, 0
      %v2041 = vsel %vm514, %v2034, 0
      %v2044 = vsel %vm514, %v2035, 0
      %v2047 = vsel %vm514, %v2036, 0
      %2049 = vmatprep.subr.bf16.mxu0 0
      %2050 = vmatpush1.bf16.msra.mxu0 0
      %2051 = vmatprep.subr.bf16.mxu0 0
      %2052 = vmatpush1.bf16.msra.mxu0 0
      %2053 = vmatprep.subr.bf16.mxu0 0
      %2054 = vmatpush1.bf16.msra.mxu0 0
      %2055 = vmatprep.subr.bf16.mxu0 0
      %2056 = vmatpush1.bf16.msra.mxu0 0
      %2057 = vmatprep.subr.bf16.mxu0 0
      %2058 = vmatpush1.bf16.msra.mxu0 %v1898
      %2059 = vmatprep.subr.bf16.mxu0 0
      %2060 = vmatpush1.bf16.msra.mxu0 %v1897
      %2061 = vmatprep.subr.bf16.mxu0 0
      %2062 = vmatpush1.bf16.msra.mxu0 %v1896
      %2063 = vmatprep.subr.bf16.mxu0 0
      %2064 = vmatpush1.bf16.msra.mxu0 %v1895
      %2065 = vmatprep.subr.bf16.mxu0 0
      %2066 = vmatpush2.bf16.msra.mxu0 0
      %2067 = vmatprep.subr.bf16.mxu0 0
      %2068 = vmatpush2.bf16.msra.mxu0 0
      %2069 = vmatprep.subr.bf16.mxu0 0
      %2070 = vmatpush2.bf16.msra.mxu0 0
      %2071 = vmatprep.subr.bf16.mxu0 0
      %2072 = vmatpush2.bf16.msra.mxu0 0
      %2073 = vmatprep.subr.bf16.mxu0 0
      %2074 = vmatpush2.bf16.msra.mxu0 0
      %2075 = vmatprep.subr.bf16.mxu0 0
      %2076 = vmatpush2.bf16.msra.mxu0 0
      %2077 = vmatprep.subr.bf16.mxu0 0
      %2078 = vmatpush2.bf16.msra.mxu0 0
      %2079 = vmatprep.subr.bf16.mxu0 0
      %2080 = vmatpush2.bf16.msra.mxu0 0
      %2081 = vmatprep.mubr.bf16.mxu0 0
      %2082 = vmatmul.mubr.bf16.gmra.mxu0 %v2038
      %v2083 = vpop.f32.mrf.mxu0
      %v2084 = vadd.f32 %v1987, %v2083
      %v2085 = vpop.f32.mrf.mxu0
      %v2086 = vpop.f32.mrf.mxu0
      %v2087 = vadd.f32 %v1990, %v2086
      %v2088 = vpop.f32.mrf.mxu0
      %2089 = vmatprep.mubr.bf16.mxu0 0
      %2090 = vmatmul.mubr.bf16.gmra.mxu0 %v2041
      %v2091 = vpop.f32.mrf.mxu0
      %v2092 = vadd.f32 %v1995, %v2091
      %v2093 = vpop.f32.mrf.mxu0
      %v2094 = vpop.f32.mrf.mxu0
      %v2095 = vadd.f32 %v1998, %v2094
      %v2096 = vpop.f32.mrf.mxu0
      %2097 = vmatprep.mubr.bf16.mxu0 0
      %2098 = vmatmul.mubr.bf16.gmra.mxu0 %v2044
      %v2099 = vpop.f32.mrf.mxu0
      %v2100 = vadd.f32 %v2003, %v2099
      %v2101 = vpop.f32.mrf.mxu0
      %v2102 = vpop.f32.mrf.mxu0
      %v2103 = vadd.f32 %v2006, %v2102
      %v2104 = vpop.f32.mrf.mxu0
      %2105 = vmatprep.mubr.bf16.mxu0 0
      %2106 = vmatmul.mubr.bf16.gmra.mxu0 %v2047
      %v2107 = vpop.f32.mrf.mxu0
      %v2108 = vadd.f32 %v2011, %v2107
      %v2109 = vpop.f32.mrf.mxu0
      %v2110 = vpop.f32.mrf.mxu0
      %v2111 = vadd.f32 %v2014, %v2110
      %v2112 = vpop.f32.mrf.mxu0
      %2113 = vdwg.mxu0
      %v2114 = vld [vmem:[%s5] sm:$0xf]
      %v2115 = vld [vmem:[%s5 + $0x4] sm:$0xf]
      %v2116 = vld [vmem:[%s5 + $0x8] sm:$0xf]
      %v2117 = vld [vmem:[%s5 + $0xc] sm:$0xf]
      %v2118 = vld [vmem:[%s5 + $0x10] sm:$0xf]
      %v2119 = vld [vmem:[%s5 + $0x14] sm:$0xf]
      %v2120 = vld [vmem:[%s5 + $0x18] sm:$0xf]
      %v2121 = vld [vmem:[%s5 + $0x1c] sm:$0xf]
      %s2122 = scalar_lea.vmem %s441, 12
      %v2123 = vld [vmem:[%s2122] sm:$0xf]
      %v2124 = vpack.c.bf16 %v2123, %v2123
      %v2133 = vunpack.c.l.b16 %v2114
      %v2134 = vunpack.c.l.b16 %v2115
      %v2135 = vunpack.c.l.b16 %v2116
      %v2136 = vunpack.c.l.b16 %v2117
      %v2137 = vunpack.c.l.b16 %v2118
      %v2138 = vunpack.c.l.b16 %v2119
      %v2139 = vunpack.c.l.b16 %v2120
      %v2140 = vunpack.c.l.b16 %v2121
      %v2141 = vpack.c.b16 %v2134, %v2133
      %v2142 = vpack.c.b16 %v2136, %v2135
      %v2143 = vpack.c.b16 %v2138, %v2137
      %v2144 = vpack.c.b16 %v2140, %v2139
      %v2146 = vsel %vm719, %v2141, 0
      %v2149 = vsel %vm719, %v2142, 0
      %v2152 = vsel %vm719, %v2143, 0
      %v2155 = vsel %vm719, %v2144, 0
      %v2158 = vsel %vm732, %v2124, 0
      %2160 = vmatprep.subr.bf16.mxu0 0
      %2161 = vmatpush1.bf16.msra.mxu0 0
      %2162 = vmatprep.subr.bf16.mxu0 0
      %2163 = vmatpush1.bf16.msra.mxu0 0
      %2164 = vmatprep.subr.bf16.mxu0 0
      %2165 = vmatpush1.bf16.msra.mxu0 0
      %2166 = vmatprep.subr.bf16.mxu0 0
      %2167 = vmatpush1.bf16.msra.mxu0 0
      %2168 = vmatprep.subr.bf16.mxu0 0
      %2169 = vmatpush1.bf16.msra.mxu0 0
      %2170 = vmatprep.subr.bf16.mxu0 0
      %2171 = vmatpush1.bf16.msra.mxu0 0
      %2172 = vmatprep.subr.bf16.mxu0 0
      %2173 = vmatpush1.bf16.msra.mxu0 0
      %2174 = vmatprep.subr.bf16.mxu0 0
      %2175 = vmatpush1.bf16.msra.mxu0 %v2158
      %2176 = vmatprep.subr.bf16.mxu0 0
      %2177 = vmatpush2.bf16.msra.mxu0 0
      %2178 = vmatprep.subr.bf16.mxu0 0
      %2179 = vmatpush2.bf16.msra.mxu0 0
      %2180 = vmatprep.subr.bf16.mxu0 0
      %2181 = vmatpush2.bf16.msra.mxu0 0
      %2182 = vmatprep.subr.bf16.mxu0 0
      %2183 = vmatpush2.bf16.msra.mxu0 0
      %2184 = vmatprep.subr.bf16.mxu0 0
      %2185 = vmatpush2.bf16.msra.mxu0 0
      %2186 = vmatprep.subr.bf16.mxu0 0
      %2187 = vmatpush2.bf16.msra.mxu0 0
      %2188 = vmatprep.subr.bf16.mxu0 0
      %2189 = vmatpush2.bf16.msra.mxu0 0
      %2190 = vmatprep.subr.bf16.mxu0 0
      %2191 = vmatpush2.bf16.msra.mxu0 0
      %2192 = vmatprep.mubr.bf16.mxu0 0
      %2193 = vmatmul.mubr.bf16.gmra.mxu0 %v2146
      %v2194 = vpop.f32.mrf.mxu0
      %v2195 = vadd.f32 0.0, %v2194
      %v2196 = vpop.f32.mrf.mxu0
      %v2197 = vpop.f32.mrf.mxu0
      %v2198 = vadd.f32 0.0, %v2197
      %v2199 = vpop.f32.mrf.mxu0
      %2200 = vmatprep.mubr.bf16.mxu0 0
      %2201 = vmatmul.mubr.bf16.gmra.mxu0 %v2149
      %v2202 = vpop.f32.mrf.mxu0
      %v2203 = vadd.f32 0.0, %v2202
      %v2204 = vpop.f32.mrf.mxu0
      %v2205 = vpop.f32.mrf.mxu0
      %v2206 = vadd.f32 0.0, %v2205
      %v2207 = vpop.f32.mrf.mxu0
      %2208 = vmatprep.mubr.bf16.mxu0 0
      %2209 = vmatmul.mubr.bf16.gmra.mxu0 %v2152
      %v2210 = vpop.f32.mrf.mxu0
      %v2211 = vadd.f32 0.0, %v2210
      %v2212 = vpop.f32.mrf.mxu0
      %v2213 = vpop.f32.mrf.mxu0
      %v2214 = vadd.f32 0.0, %v2213
      %v2215 = vpop.f32.mrf.mxu0
      %2216 = vmatprep.mubr.bf16.mxu0 0
      %2217 = vmatmul.mubr.bf16.gmra.mxu0 %v2155
      %v2218 = vpop.f32.mrf.mxu0
      %v2219 = vadd.f32 0.0, %v2218
      %v2220 = vpop.f32.mrf.mxu0
      %v2221 = vpop.f32.mrf.mxu0
      %v2222 = vadd.f32 0.0, %v2221
      %v2223 = vpop.f32.mrf.mxu0
      %2224 = vdwg.mxu0
      %v2225 = vadd.f32 %v2084, %v2195
      %v2226 = vadd.f32 %v2087, %v2198
      %v2227 = vadd.f32 %v2092, %v2203
      %v2228 = vadd.f32 %v2095, %v2206
      %v2229 = vadd.f32 %v2100, %v2211
      %v2230 = vadd.f32 %v2103, %v2214
      %v2231 = vadd.f32 %v2108, %v2219
      %v2232 = vadd.f32 %v2111, %v2222
      %v2233 = vld [vmem:[%s6] sm:$0xff]
      %v2234 = vld [vmem:[%s6 + $0x8] sm:$0xff]
      %v2235 = vld [vmem:[%s6 + $0x10] sm:$0xff]
      %v2236 = vld [vmem:[%s6 + $0x18] sm:$0xff]
      %v2237 = vld [vmem:[%s6 + $0x20] sm:$0xff]
      %v2238 = vld [vmem:[%s6 + $0x28] sm:$0xff]
      %v2239 = vld [vmem:[%s6 + $0x30] sm:$0xff]
      %v2240 = vld [vmem:[%s6 + $0x38] sm:$0xff]
      %2242 = vset.pattern.permute.xlu0 0
      %2243 = vperm.xlu0 %2242, %v2233
      %v2244 = vpop.permute.xlu0 %2243
      %2247 = vset.pattern.permute.xlu0 0
      %2248 = vperm.xlu0 %2247, %v2234
      %v2249 = vpop.permute.xlu0 %2248
      %2252 = vset.pattern.permute.xlu0 0
      %2253 = vperm.xlu0 %2252, %v2235
      %v2254 = vpop.permute.xlu0 %2253
      %2257 = vset.pattern.permute.xlu0 0
      %2258 = vperm.xlu0 %2257, %v2236
      %v2259 = vpop.permute.xlu0 %2258
      %2262 = vset.pattern.permute.xlu0 0
      %2263 = vperm.xlu0 %2262, %v2237
      %v2264 = vpop.permute.xlu0 %2263
      %2267 = vset.pattern.permute.xlu0 0
      %2268 = vperm.xlu0 %2267, %v2238
      %v2269 = vpop.permute.xlu0 %2268
      %2272 = vset.pattern.permute.xlu0 0
      %2273 = vperm.xlu0 %2272, %v2239
      %v2274 = vpop.permute.xlu0 %2273
      %2277 = vset.pattern.permute.xlu0 0
      %2278 = vperm.xlu0 %2277, %v2240
      %v2279 = vpop.permute.xlu0 %2278
      %v2281 = vadd.f32 %v2225, %v2244
      %v2282 = vadd.f32 %v2226, %v2249
      %v2283 = vadd.f32 %v2227, %v2254
      %v2284 = vadd.f32 %v2228, %v2259
      %v2285 = vadd.f32 %v2229, %v2264
      %v2286 = vadd.f32 %v2230, %v2269
      %v2287 = vadd.f32 %v2231, %v2274
      %v2288 = vadd.f32 %v2232, %v2279
      %v2289 = vmax.f32 %v2281, 0.0
      %v2290 = vmax.f32 %v2282, 0.0
      %v2291 = vmax.f32 %v2283, 0.0
      %v2292 = vmax.f32 %v2284, 0.0
      %v2293 = vmax.f32 %v2285, 0.0
      %v2294 = vmax.f32 %v2286, 0.0
      %v2295 = vmax.f32 %v2287, 0.0
      %v2296 = vmax.f32 %v2288, 0.0
      %v2297 = vld [vmem:[%s7] sm:$0x3]
      %v2298 = vpack.c.bf16 %v2290, %v2289
      %v2299 = vpack.c.bf16 %v2292, %v2291
      %v2300 = vpack.c.bf16 %v2294, %v2293
      %v2301 = vpack.c.bf16 %v2296, %v2295
      %v2302 = vld [vmem:[%s8] sm:$0xf]
      %2304 = vset.pattern.permute.xlu0 0
      %2305 = vperm.xlu0 %2304, %v2302
      %v2306 = vpop.permute.xlu0 %2305
      %v2309 = vsel %vm514, %v2297, 0
      %2311 = vmatprep.subr.bf16.mxu0 0
      %2312 = vmatpush1.bf16.msra.mxu0 0
      %2313 = vmatprep.subr.bf16.mxu0 0
      %2314 = vmatpush1.bf16.msra.mxu0 0
      %2315 = vmatprep.subr.bf16.mxu0 0
      %2316 = vmatpush1.bf16.msra.mxu0 0
      %2317 = vmatprep.subr.bf16.mxu0 0
      %2318 = vmatpush1.bf16.msra.mxu0 0
      %2319 = vmatprep.subr.bf16.mxu0 0
      %2320 = vmatpush1.bf16.msra.mxu0 %v2301
      %2321 = vmatprep.subr.bf16.mxu0 0
      %2322 = vmatpush1.bf16.msra.mxu0 %v2300
      %2323 = vmatprep.subr.bf16.mxu0 0
      %2324 = vmatpush1.bf16.msra.mxu0 %v2299
      %2325 = vmatprep.subr.bf16.mxu0 0
      %2326 = vmatpush1.bf16.msra.mxu0 %v2298
      %2327 = vmatprep.subr.bf16.mxu0 0
      %2328 = vmatpush2.bf16.msra.mxu0 0
      %2329 = vmatprep.subr.bf16.mxu0 0
      %2330 = vmatpush2.bf16.msra.mxu0 0
      %2331 = vmatprep.subr.bf16.mxu0 0
      %2332 = vmatpush2.bf16.msra.mxu0 0
      %2333 = vmatprep.subr.bf16.mxu0 0
      %2334 = vmatpush2.bf16.msra.mxu0 0
      %2335 = vmatprep.subr.bf16.mxu0 0
      %2336 = vmatpush2.bf16.msra.mxu0 0
      %2337 = vmatprep.subr.bf16.mxu0 0
      %2338 = vmatpush2.bf16.msra.mxu0 0
      %2339 = vmatprep.subr.bf16.mxu0 0
      %2340 = vmatpush2.bf16.msra.mxu0 0
      %2341 = vmatprep.subr.bf16.mxu0 0
      %2342 = vmatpush2.bf16.msra.mxu0 0
      %2343 = vmatprep.mubr.bf16.mxu0 0
      %2344 = vmatmul.mubr.bf16.gmra.mxu0 %v2309
      %v2345 = vpop.f32.mrf.mxu0
      %v2346 = vadd.f32 %v2306, %v2345
      %v2347 = vpop.f32.mrf.mxu0
      %v2348 = vpop.f32.mrf.mxu0
      %v2349 = vpop.f32.mrf.mxu0
      %2350 = vdwg.mxu0
      %s2351 = scalar_lea.vmem %s451, 12
      %2352 = vst [vmem:[%s2351] sm:$0xf] %v2346
      %v2353 = vld [vmem:[%s3] sm:$0xf]
      %v2354 = vld [vmem:[%s3 + $0x4] sm:$0xf]
      %v2355 = vld [vmem:[%s3 + $0x8] sm:$0xf]
      %v2356 = vld [vmem:[%s3 + $0xc] sm:$0xf]
      %v2357 = vld [vmem:[%s3 + $0x10] sm:$0xf]
      %v2358 = vld [vmem:[%s3 + $0x14] sm:$0xf]
      %v2359 = vld [vmem:[%s3 + $0x18] sm:$0xf]
      %v2360 = vld [vmem:[%s3 + $0x1c] sm:$0xf]
      %s2361 = scalar_lea.vmem %s419, 256
      %v2362 = vld [vmem:[%s2361] sm:$0xff]
      %v2363 = vld [vmem:[%s2361 + $0x8] sm:$0xff]
      %v2364 = vld [vmem:[%s2361 + $0x10] sm:$0xff]
      %v2365 = vld [vmem:[%s2361 + $0x18] sm:$0xff]
      %v2366 = vld [vmem:[%s2361 + $0x20] sm:$0xff]
      %v2367 = vld [vmem:[%s2361 + $0x28] sm:$0xff]
      %v2368 = vld [vmem:[%s2361 + $0x30] sm:$0xff]
      %v2369 = vld [vmem:[%s2361 + $0x38] sm:$0xff]
      %v2370 = vpack.c.bf16 %v2363, %v2362
      %v2371 = vpack.c.bf16 %v2365, %v2364
      %v2372 = vpack.c.bf16 %v2367, %v2366
      %v2373 = vpack.c.bf16 %v2369, %v2368
      %v2374 = vld [vmem:[%s4] sm:$0xf]
      %v2375 = vld [vmem:[%s4 + $0x4] sm:$0xf]
      %v2376 = vld [vmem:[%s4 + $0x8] sm:$0xf]
      %v2377 = vld [vmem:[%s4 + $0xc] sm:$0xf]
      %v2378 = vld [vmem:[%s4 + $0x10] sm:$0xf]
      %v2379 = vld [vmem:[%s4 + $0x14] sm:$0xf]
      %v2380 = vld [vmem:[%s4 + $0x18] sm:$0xf]
      %v2381 = vld [vmem:[%s4 + $0x1c] sm:$0xf]
      %s2382 = scalar_lea.vmem %s431, 256
      %v2383 = vld [vmem:[%s2382] sm:$0xff]
      %v2384 = vld [vmem:[%s2382 + $0x8] sm:$0xff]
      %v2385 = vld [vmem:[%s2382 + $0x10] sm:$0xff]
      %v2386 = vld [vmem:[%s2382 + $0x18] sm:$0xff]
      %v2387 = vld [vmem:[%s2382 + $0x20] sm:$0xff]
      %v2388 = vld [vmem:[%s2382 + $0x28] sm:$0xff]
      %v2389 = vld [vmem:[%s2382 + $0x30] sm:$0xff]
      %v2390 = vld [vmem:[%s2382 + $0x38] sm:$0xff]
      %v2391 = vpack.c.bf16 %v2384, %v2383
      %v2392 = vpack.c.bf16 %v2386, %v2385
      %v2393 = vpack.c.bf16 %v2388, %v2387
      %v2394 = vpack.c.bf16 %v2390, %v2389
      %v2403 = vunpack.c.l.b16 %v2374
      %v2404 = vunpack.c.l.b16 %v2375
      %v2405 = vunpack.c.l.b16 %v2376
      %v2406 = vunpack.c.l.b16 %v2377
      %v2407 = vunpack.c.l.b16 %v2378
      %v2408 = vunpack.c.l.b16 %v2379
      %v2409 = vunpack.c.l.b16 %v2380
      %v2410 = vunpack.c.l.b16 %v2381
      %v2411 = vpack.c.b16 %v2404, %v2403
      %v2412 = vpack.c.b16 %v2406, %v2405
      %v2413 = vpack.c.b16 %v2408, %v2407
      %v2414 = vpack.c.b16 %v2410, %v2409
      %v2416 = vsel %vm514, %v2411, 0
      %v2419 = vsel %vm514, %v2412, 0
      %v2422 = vsel %vm514, %v2413, 0
      %v2425 = vsel %vm514, %v2414, 0
      %2427 = vmatprep.subr.bf16.mxu0 0
      %2428 = vmatpush1.bf16.msra.mxu0 0
      %2429 = vmatprep.subr.bf16.mxu0 0
      %2430 = vmatpush1.bf16.msra.mxu0 0
      %2431 = vmatprep.subr.bf16.mxu0 0
      %2432 = vmatpush1.bf16.msra.mxu0 0
      %2433 = vmatprep.subr.bf16.mxu0 0
      %2434 = vmatpush1.bf16.msra.mxu0 0
      %2435 = vmatprep.subr.bf16.mxu0 0
      %2436 = vmatpush1.bf16.msra.mxu0 %v2394
      %2437 = vmatprep.subr.bf16.mxu0 0
      %2438 = vmatpush1.bf16.msra.mxu0 %v2393
      %2439 = vmatprep.subr.bf16.mxu0 0
      %2440 = vmatpush1.bf16.msra.mxu0 %v2392
      %2441 = vmatprep.subr.bf16.mxu0 0
      %2442 = vmatpush1.bf16.msra.mxu0 %v2391
      %2443 = vmatprep.subr.bf16.mxu0 0
      %2444 = vmatpush2.bf16.msra.mxu0 0
      %2445 = vmatprep.subr.bf16.mxu0 0
      %2446 = vmatpush2.bf16.msra.mxu0 0
      %2447 = vmatprep.subr.bf16.mxu0 0
      %2448 = vmatpush2.bf16.msra.mxu0 0
      %2449 = vmatprep.subr.bf16.mxu0 0
      %2450 = vmatpush2.bf16.msra.mxu0 0
      %2451 = vmatprep.subr.bf16.mxu0 0
      %2452 = vmatpush2.bf16.msra.mxu0 0
      %2453 = vmatprep.subr.bf16.mxu0 0
      %2454 = vmatpush2.bf16.msra.mxu0 0
      %2455 = vmatprep.subr.bf16.mxu0 0
      %2456 = vmatpush2.bf16.msra.mxu0 0
      %2457 = vmatprep.subr.bf16.mxu0 0
      %2458 = vmatpush2.bf16.msra.mxu0 0
      %2459 = vmatprep.mubr.bf16.mxu0 0
      %2460 = vmatmul.mubr.bf16.gmra.mxu0 %v2416
      %v2461 = vpop.f32.mrf.mxu0
      %v2462 = vadd.f32 0.0, %v2461
      %v2463 = vpop.f32.mrf.mxu0
      %v2464 = vpop.f32.mrf.mxu0
      %v2465 = vadd.f32 0.0, %v2464
      %v2466 = vpop.f32.mrf.mxu0
      %2467 = vmatprep.mubr.bf16.mxu0 0
      %2468 = vmatmul.mubr.bf16.gmra.mxu0 %v2419
      %v2469 = vpop.f32.mrf.mxu0
      %v2470 = vadd.f32 0.0, %v2469
      %v2471 = vpop.f32.mrf.mxu0
      %v2472 = vpop.f32.mrf.mxu0
      %v2473 = vadd.f32 0.0, %v2472
      %v2474 = vpop.f32.mrf.mxu0
      %2475 = vmatprep.mubr.bf16.mxu0 0
      %2476 = vmatmul.mubr.bf16.gmra.mxu0 %v2422
      %v2477 = vpop.f32.mrf.mxu0
      %v2478 = vadd.f32 0.0, %v2477
      %v2479 = vpop.f32.mrf.mxu0
      %v2480 = vpop.f32.mrf.mxu0
      %v2481 = vadd.f32 0.0, %v2480
      %v2482 = vpop.f32.mrf.mxu0
      %2483 = vmatprep.mubr.bf16.mxu0 0
      %2484 = vmatmul.mubr.bf16.gmra.mxu0 %v2425
      %v2485 = vpop.f32.mrf.mxu0
      %v2486 = vadd.f32 0.0, %v2485
      %v2487 = vpop.f32.mrf.mxu0
      %v2488 = vpop.f32.mrf.mxu0
      %v2489 = vadd.f32 0.0, %v2488
      %v2490 = vpop.f32.mrf.mxu0
      %2491 = vdwg.mxu0
      %v2500 = vunpack.c.l.b16 %v2353
      %v2501 = vunpack.c.l.b16 %v2354
      %v2502 = vunpack.c.l.b16 %v2355
      %v2503 = vunpack.c.l.b16 %v2356
      %v2504 = vunpack.c.l.b16 %v2357
      %v2505 = vunpack.c.l.b16 %v2358
      %v2506 = vunpack.c.l.b16 %v2359
      %v2507 = vunpack.c.l.b16 %v2360
      %v2508 = vpack.c.b16 %v2501, %v2500
      %v2509 = vpack.c.b16 %v2503, %v2502
      %v2510 = vpack.c.b16 %v2505, %v2504
      %v2511 = vpack.c.b16 %v2507, %v2506
      %v2513 = vsel %vm514, %v2508, 0
      %v2516 = vsel %vm514, %v2509, 0
      %v2519 = vsel %vm514, %v2510, 0
      %v2522 = vsel %vm514, %v2511, 0
      %2524 = vmatprep.subr.bf16.mxu0 0
      %2525 = vmatpush1.bf16.msra.mxu0 0
      %2526 = vmatprep.subr.bf16.mxu0 0
      %2527 = vmatpush1.bf16.msra.mxu0 0
      %2528 = vmatprep.subr.bf16.mxu0 0
      %2529 = vmatpush1.bf16.msra.mxu0 0
      %2530 = vmatprep.subr.bf16.mxu0 0
      %2531 = vmatpush1.bf16.msra.mxu0 0
      %2532 = vmatprep.subr.bf16.mxu0 0
      %2533 = vmatpush1.bf16.msra.mxu0 %v2373
      %2534 = vmatprep.subr.bf16.mxu0 0
      %2535 = vmatpush1.bf16.msra.mxu0 %v2372
      %2536 = vmatprep.subr.bf16.mxu0 0
      %2537 = vmatpush1.bf16.msra.mxu0 %v2371
      %2538 = vmatprep.subr.bf16.mxu0 0
      %2539 = vmatpush1.bf16.msra.mxu0 %v2370
      %2540 = vmatprep.subr.bf16.mxu0 0
      %2541 = vmatpush2.bf16.msra.mxu0 0
      %2542 = vmatprep.subr.bf16.mxu0 0
      %2543 = vmatpush2.bf16.msra.mxu0 0
      %2544 = vmatprep.subr.bf16.mxu0 0
      %2545 = vmatpush2.bf16.msra.mxu0 0
      %2546 = vmatprep.subr.bf16.mxu0 0
      %2547 = vmatpush2.bf16.msra.mxu0 0
      %2548 = vmatprep.subr.bf16.mxu0 0
      %2549 = vmatpush2.bf16.msra.mxu0 0
      %2550 = vmatprep.subr.bf16.mxu0 0
      %2551 = vmatpush2.bf16.msra.mxu0 0
      %2552 = vmatprep.subr.bf16.mxu0 0
      %2553 = vmatpush2.bf16.msra.mxu0 0
      %2554 = vmatprep.subr.bf16.mxu0 0
      %2555 = vmatpush2.bf16.msra.mxu0 0
      %2556 = vmatprep.mubr.bf16.mxu0 0
      %2557 = vmatmul.mubr.bf16.gmra.mxu0 %v2513
      %v2558 = vpop.f32.mrf.mxu0
      %v2559 = vadd.f32 %v2462, %v2558
      %v2560 = vpop.f32.mrf.mxu0
      %v2561 = vpop.f32.mrf.mxu0
      %v2562 = vadd.f32 %v2465, %v2561
      %v2563 = vpop.f32.mrf.mxu0
      %2564 = vmatprep.mubr.bf16.mxu0 0
      %2565 = vmatmul.mubr.bf16.gmra.mxu0 %v2516
      %v2566 = vpop.f32.mrf.mxu0
      %v2567 = vadd.f32 %v2470, %v2566
      %v2568 = vpop.f32.mrf.mxu0
      %v2569 = vpop.f32.mrf.mxu0
      %v2570 = vadd.f32 %v2473, %v2569
      %v2571 = vpop.f32.mrf.mxu0
      %2572 = vmatprep.mubr.bf16.mxu0 0
      %2573 = vmatmul.mubr.bf16.gmra.mxu0 %v2519
      %v2574 = vpop.f32.mrf.mxu0
      %v2575 = vadd.f32 %v2478, %v2574
      %v2576 = vpop.f32.mrf.mxu0
      %v2577 = vpop.f32.mrf.mxu0
      %v2578 = vadd.f32 %v2481, %v2577
      %v2579 = vpop.f32.mrf.mxu0
      %2580 = vmatprep.mubr.bf16.mxu0 0
      %2581 = vmatmul.mubr.bf16.gmra.mxu0 %v2522
      %v2582 = vpop.f32.mrf.mxu0
      %v2583 = vadd.f32 %v2486, %v2582
      %v2584 = vpop.f32.mrf.mxu0
      %v2585 = vpop.f32.mrf.mxu0
      %v2586 = vadd.f32 %v2489, %v2585
      %v2587 = vpop.f32.mrf.mxu0
      %2588 = vdwg.mxu0
      %v2589 = vld [vmem:[%s5] sm:$0xf]
      %v2590 = vld [vmem:[%s5 + $0x4] sm:$0xf]
      %v2591 = vld [vmem:[%s5 + $0x8] sm:$0xf]
      %v2592 = vld [vmem:[%s5 + $0xc] sm:$0xf]
      %v2593 = vld [vmem:[%s5 + $0x10] sm:$0xf]
      %v2594 = vld [vmem:[%s5 + $0x14] sm:$0xf]
      %v2595 = vld [vmem:[%s5 + $0x18] sm:$0xf]
      %v2596 = vld [vmem:[%s5 + $0x1c] sm:$0xf]
      %s2597 = scalar_lea.vmem %s441, 16
      %v2598 = vld [vmem:[%s2597] sm:$0xf]
      %v2599 = vpack.c.bf16 %v2598, %v2598
      %v2608 = vunpack.c.l.b16 %v2589
      %v2609 = vunpack.c.l.b16 %v2590
      %v2610 = vunpack.c.l.b16 %v2591
      %v2611 = vunpack.c.l.b16 %v2592
      %v2612 = vunpack.c.l.b16 %v2593
      %v2613 = vunpack.c.l.b16 %v2594
      %v2614 = vunpack.c.l.b16 %v2595
      %v2615 = vunpack.c.l.b16 %v2596
      %v2616 = vpack.c.b16 %v2609, %v2608
      %v2617 = vpack.c.b16 %v2611, %v2610
      %v2618 = vpack.c.b16 %v2613, %v2612
      %v2619 = vpack.c.b16 %v2615, %v2614
      %v2621 = vsel %vm719, %v2616, 0
      %v2624 = vsel %vm719, %v2617, 0
      %v2627 = vsel %vm719, %v2618, 0
      %v2630 = vsel %vm719, %v2619, 0
      %v2633 = vsel %vm732, %v2599, 0
      %2635 = vmatprep.subr.bf16.mxu0 0
      %2636 = vmatpush1.bf16.msra.mxu0 0
      %2637 = vmatprep.subr.bf16.mxu0 0
      %2638 = vmatpush1.bf16.msra.mxu0 0
      %2639 = vmatprep.subr.bf16.mxu0 0
      %2640 = vmatpush1.bf16.msra.mxu0 0
      %2641 = vmatprep.subr.bf16.mxu0 0
      %2642 = vmatpush1.bf16.msra.mxu0 0
      %2643 = vmatprep.subr.bf16.mxu0 0
      %2644 = vmatpush1.bf16.msra.mxu0 0
      %2645 = vmatprep.subr.bf16.mxu0 0
      %2646 = vmatpush1.bf16.msra.mxu0 0
      %2647 = vmatprep.subr.bf16.mxu0 0
      %2648 = vmatpush1.bf16.msra.mxu0 0
      %2649 = vmatprep.subr.bf16.mxu0 0
      %2650 = vmatpush1.bf16.msra.mxu0 %v2633
      %2651 = vmatprep.subr.bf16.mxu0 0
      %2652 = vmatpush2.bf16.msra.mxu0 0
      %2653 = vmatprep.subr.bf16.mxu0 0
      %2654 = vmatpush2.bf16.msra.mxu0 0
      %2655 = vmatprep.subr.bf16.mxu0 0
      %2656 = vmatpush2.bf16.msra.mxu0 0
      %2657 = vmatprep.subr.bf16.mxu0 0
      %2658 = vmatpush2.bf16.msra.mxu0 0
      %2659 = vmatprep.subr.bf16.mxu0 0
      %2660 = vmatpush2.bf16.msra.mxu0 0
      %2661 = vmatprep.subr.bf16.mxu0 0
      %2662 = vmatpush2.bf16.msra.mxu0 0
      %2663 = vmatprep.subr.bf16.mxu0 0
      %2664 = vmatpush2.bf16.msra.mxu0 0
      %2665 = vmatprep.subr.bf16.mxu0 0
      %2666 = vmatpush2.bf16.msra.mxu0 0
      %2667 = vmatprep.mubr.bf16.mxu0 0
      %2668 = vmatmul.mubr.bf16.gmra.mxu0 %v2621
      %v2669 = vpop.f32.mrf.mxu0
      %v2670 = vadd.f32 0.0, %v2669
      %v2671 = vpop.f32.mrf.mxu0
      %v2672 = vpop.f32.mrf.mxu0
      %v2673 = vadd.f32 0.0, %v2672
      %v2674 = vpop.f32.mrf.mxu0
      %2675 = vmatprep.mubr.bf16.mxu0 0
      %2676 = vmatmul.mubr.bf16.gmra.mxu0 %v2624
      %v2677 = vpop.f32.mrf.mxu0
      %v2678 = vadd.f32 0.0, %v2677
      %v2679 = vpop.f32.mrf.mxu0
      %v2680 = vpop.f32.mrf.mxu0
      %v2681 = vadd.f32 0.0, %v2680
      %v2682 = vpop.f32.mrf.mxu0
      %2683 = vmatprep.mubr.bf16.mxu0 0
      %2684 = vmatmul.mubr.bf16.gmra.mxu0 %v2627
      %v2685 = vpop.f32.mrf.mxu0
      %v2686 = vadd.f32 0.0, %v2685
      %v2687 = vpop.f32.mrf.mxu0
      %v2688 = vpop.f32.mrf.mxu0
      %v2689 = vadd.f32 0.0, %v2688
      %v2690 = vpop.f32.mrf.mxu0
      %2691 = vmatprep.mubr.bf16.mxu0 0
      %2692 = vmatmul.mubr.bf16.gmra.mxu0 %v2630
      %v2693 = vpop.f32.mrf.mxu0
      %v2694 = vadd.f32 0.0, %v2693
      %v2695 = vpop.f32.mrf.mxu0
      %v2696 = vpop.f32.mrf.mxu0
      %v2697 = vadd.f32 0.0, %v2696
      %v2698 = vpop.f32.mrf.mxu0
      %2699 = vdwg.mxu0
      %v2700 = vadd.f32 %v2559, %v2670
      %v2701 = vadd.f32 %v2562, %v2673
      %v2702 = vadd.f32 %v2567, %v2678
      %v2703 = vadd.f32 %v2570, %v2681
      %v2704 = vadd.f32 %v2575, %v2686
      %v2705 = vadd.f32 %v2578, %v2689
      %v2706 = vadd.f32 %v2583, %v2694
      %v2707 = vadd.f32 %v2586, %v2697
      %v2708 = vld [vmem:[%s6] sm:$0xff]
      %v2709 = vld [vmem:[%s6 + $0x8] sm:$0xff]
      %v2710 = vld [vmem:[%s6 + $0x10] sm:$0xff]
      %v2711 = vld [vmem:[%s6 + $0x18] sm:$0xff]
      %v2712 = vld [vmem:[%s6 + $0x20] sm:$0xff]
      %v2713 = vld [vmem:[%s6 + $0x28] sm:$0xff]
      %v2714 = vld [vmem:[%s6 + $0x30] sm:$0xff]
      %v2715 = vld [vmem:[%s6 + $0x38] sm:$0xff]
      %2717 = vset.pattern.permute.xlu0 0
      %2718 = vperm.xlu0 %2717, %v2708
      %v2719 = vpop.permute.xlu0 %2718
      %2722 = vset.pattern.permute.xlu0 0
      %2723 = vperm.xlu0 %2722, %v2709
      %v2724 = vpop.permute.xlu0 %2723
      %2727 = vset.pattern.permute.xlu0 0
      %2728 = vperm.xlu0 %2727, %v2710
      %v2729 = vpop.permute.xlu0 %2728
      %2732 = vset.pattern.permute.xlu0 0
      %2733 = vperm.xlu0 %2732, %v2711
      %v2734 = vpop.permute.xlu0 %2733
      %2737 = vset.pattern.permute.xlu0 0
      %2738 = vperm.xlu0 %2737, %v2712
      %v2739 = vpop.permute.xlu0 %2738
      %2742 = vset.pattern.permute.xlu0 0
      %2743 = vperm.xlu0 %2742, %v2713
      %v2744 = vpop.permute.xlu0 %2743
      %2747 = vset.pattern.permute.xlu0 0
      %2748 = vperm.xlu0 %2747, %v2714
      %v2749 = vpop.permute.xlu0 %2748
      %2752 = vset.pattern.permute.xlu0 0
      %2753 = vperm.xlu0 %2752, %v2715
      %v2754 = vpop.permute.xlu0 %2753
      %v2756 = vadd.f32 %v2700, %v2719
      %v2757 = vadd.f32 %v2701, %v2724
      %v2758 = vadd.f32 %v2702, %v2729
      %v2759 = vadd.f32 %v2703, %v2734
      %v2760 = vadd.f32 %v2704, %v2739
      %v2761 = vadd.f32 %v2705, %v2744
      %v2762 = vadd.f32 %v2706, %v2749
      %v2763 = vadd.f32 %v2707, %v2754
      %v2764 = vmax.f32 %v2756, 0.0
      %v2765 = vmax.f32 %v2757, 0.0
      %v2766 = vmax.f32 %v2758, 0.0
      %v2767 = vmax.f32 %v2759, 0.0
      %v2768 = vmax.f32 %v2760, 0.0
      %v2769 = vmax.f32 %v2761, 0.0
      %v2770 = vmax.f32 %v2762, 0.0
      %v2771 = vmax.f32 %v2763, 0.0
      %v2772 = vld [vmem:[%s7] sm:$0x3]
      %v2773 = vpack.c.bf16 %v2765, %v2764
      %v2774 = vpack.c.bf16 %v2767, %v2766
      %v2775 = vpack.c.bf16 %v2769, %v2768
      %v2776 = vpack.c.bf16 %v2771, %v2770
      %v2777 = vld [vmem:[%s8] sm:$0xf]
      %2779 = vset.pattern.permute.xlu0 0
      %2780 = vperm.xlu0 %2779, %v2777
      %v2781 = vpop.permute.xlu0 %2780
      %v2784 = vsel %vm514, %v2772, 0
      %2786 = vmatprep.subr.bf16.mxu0 0
      %2787 = vmatpush1.bf16.msra.mxu0 0
      %2788 = vmatprep.subr.bf16.mxu0 0
      %2789 = vmatpush1.bf16.msra.mxu0 0
      %2790 = vmatprep.subr.bf16.mxu0 0
      %2791 = vmatpush1.bf16.msra.mxu0 0
      %2792 = vmatprep.subr.bf16.mxu0 0
      %2793 = vmatpush1.bf16.msra.mxu0 0
      %2794 = vmatprep.subr.bf16.mxu0 0
      %2795 = vmatpush1.bf16.msra.mxu0 %v2776
      %2796 = vmatprep.subr.bf16.mxu0 0
      %2797 = vmatpush1.bf16.msra.mxu0 %v2775
      %2798 = vmatprep.subr.bf16.mxu0 0
      %2799 = vmatpush1.bf16.msra.mxu0 %v2774
      %2800 = vmatprep.subr.bf16.mxu0 0
      %2801 = vmatpush1.bf16.msra.mxu0 %v2773
      %2802 = vmatprep.subr.bf16.mxu0 0
      %2803 = vmatpush2.bf16.msra.mxu0 0
      %2804 = vmatprep.subr.bf16.mxu0 0
      %2805 = vmatpush2.bf16.msra.mxu0 0
      %2806 = vmatprep.subr.bf16.mxu0 0
      %2807 = vmatpush2.bf16.msra.mxu0 0
      %2808 = vmatprep.subr.bf16.mxu0 0
      %2809 = vmatpush2.bf16.msra.mxu0 0
      %2810 = vmatprep.subr.bf16.mxu0 0
      %2811 = vmatpush2.bf16.msra.mxu0 0
      %2812 = vmatprep.subr.bf16.mxu0 0
      %2813 = vmatpush2.bf16.msra.mxu0 0
      %2814 = vmatprep.subr.bf16.mxu0 0
      %2815 = vmatpush2.bf16.msra.mxu0 0
      %2816 = vmatprep.subr.bf16.mxu0 0
      %2817 = vmatpush2.bf16.msra.mxu0 0
      %2818 = vmatprep.mubr.bf16.mxu0 0
      %2819 = vmatmul.mubr.bf16.gmra.mxu0 %v2784
      %v2820 = vpop.f32.mrf.mxu0
      %v2821 = vadd.f32 %v2781, %v2820
      %v2822 = vpop.f32.mrf.mxu0
      %v2823 = vpop.f32.mrf.mxu0
      %v2824 = vpop.f32.mrf.mxu0
      %2825 = vdwg.mxu0
      %s2826 = scalar_lea.vmem %s451, 16
      %2827 = vst [vmem:[%s2826] sm:$0xf] %v2821
      %v2828 = vld [vmem:[%s3] sm:$0xf]
      %v2829 = vld [vmem:[%s3 + $0x4] sm:$0xf]
      %v2830 = vld [vmem:[%s3 + $0x8] sm:$0xf]
      %v2831 = vld [vmem:[%s3 + $0xc] sm:$0xf]
      %v2832 = vld [vmem:[%s3 + $0x10] sm:$0xf]
      %v2833 = vld [vmem:[%s3 + $0x14] sm:$0xf]
      %v2834 = vld [vmem:[%s3 + $0x18] sm:$0xf]
      %v2835 = vld [vmem:[%s3 + $0x1c] sm:$0xf]
      %s2836 = scalar_lea.vmem %s419, 320
      %v2837 = vld [vmem:[%s2836] sm:$0xff]
      %v2838 = vld [vmem:[%s2836 + $0x8] sm:$0xff]
      %v2839 = vld [vmem:[%s2836 + $0x10] sm:$0xff]
      %v2840 = vld [vmem:[%s2836 + $0x18] sm:$0xff]
      %v2841 = vld [vmem:[%s2836 + $0x20] sm:$0xff]
      %v2842 = vld [vmem:[%s2836 + $0x28] sm:$0xff]
      %v2843 = vld [vmem:[%s2836 + $0x30] sm:$0xff]
      %v2844 = vld [vmem:[%s2836 + $0x38] sm:$0xff]
      %v2845 = vpack.c.bf16 %v2838, %v2837
      %v2846 = vpack.c.bf16 %v2840, %v2839
      %v2847 = vpack.c.bf16 %v2842, %v2841
      %v2848 = vpack.c.bf16 %v2844, %v2843
      %v2849 = vld [vmem:[%s4] sm:$0xf]
      %v2850 = vld [vmem:[%s4 + $0x4] sm:$0xf]
      %v2851 = vld [vmem:[%s4 + $0x8] sm:$0xf]
      %v2852 = vld [vmem:[%s4 + $0xc] sm:$0xf]
      %v2853 = vld [vmem:[%s4 + $0x10] sm:$0xf]
      %v2854 = vld [vmem:[%s4 + $0x14] sm:$0xf]
      %v2855 = vld [vmem:[%s4 + $0x18] sm:$0xf]
      %v2856 = vld [vmem:[%s4 + $0x1c] sm:$0xf]
      %s2857 = scalar_lea.vmem %s431, 320
      %v2858 = vld [vmem:[%s2857] sm:$0xff]
      %v2859 = vld [vmem:[%s2857 + $0x8] sm:$0xff]
      %v2860 = vld [vmem:[%s2857 + $0x10] sm:$0xff]
      %v2861 = vld [vmem:[%s2857 + $0x18] sm:$0xff]
      %v2862 = vld [vmem:[%s2857 + $0x20] sm:$0xff]
      %v2863 = vld [vmem:[%s2857 + $0x28] sm:$0xff]
      %v2864 = vld [vmem:[%s2857 + $0x30] sm:$0xff]
      %v2865 = vld [vmem:[%s2857 + $0x38] sm:$0xff]
      %v2866 = vpack.c.bf16 %v2859, %v2858
      %v2867 = vpack.c.bf16 %v2861, %v2860
      %v2868 = vpack.c.bf16 %v2863, %v2862
      %v2869 = vpack.c.bf16 %v2865, %v2864
      %v2878 = vunpack.c.l.b16 %v2849
      %v2879 = vunpack.c.l.b16 %v2850
      %v2880 = vunpack.c.l.b16 %v2851
      %v2881 = vunpack.c.l.b16 %v2852
      %v2882 = vunpack.c.l.b16 %v2853
      %v2883 = vunpack.c.l.b16 %v2854
      %v2884 = vunpack.c.l.b16 %v2855
      %v2885 = vunpack.c.l.b16 %v2856
      %v2886 = vpack.c.b16 %v2879, %v2878
      %v2887 = vpack.c.b16 %v2881, %v2880
      %v2888 = vpack.c.b16 %v2883, %v2882
      %v2889 = vpack.c.b16 %v2885, %v2884
      %v2891 = vsel %vm514, %v2886, 0
      %v2894 = vsel %vm514, %v2887, 0
      %v2897 = vsel %vm514, %v2888, 0
      %v2900 = vsel %vm514, %v2889, 0
      %2902 = vmatprep.subr.bf16.mxu0 0
      %2903 = vmatpush1.bf16.msra.mxu0 0
      %2904 = vmatprep.subr.bf16.mxu0 0
      %2905 = vmatpush1.bf16.msra.mxu0 0
      %2906 = vmatprep.subr.bf16.mxu0 0
      %2907 = vmatpush1.bf16.msra.mxu0 0
      %2908 = vmatprep.subr.bf16.mxu0 0
      %2909 = vmatpush1.bf16.msra.mxu0 0
      %2910 = vmatprep.subr.bf16.mxu0 0
      %2911 = vmatpush1.bf16.msra.mxu0 %v2869
      %2912 = vmatprep.subr.bf16.mxu0 0
      %2913 = vmatpush1.bf16.msra.mxu0 %v2868
      %2914 = vmatprep.subr.bf16.mxu0 0
      %2915 = vmatpush1.bf16.msra.mxu0 %v2867
      %2916 = vmatprep.subr.bf16.mxu0 0
      %2917 = vmatpush1.bf16.msra.mxu0 %v2866
      %2918 = vmatprep.subr.bf16.mxu0 0
      %2919 = vmatpush2.bf16.msra.mxu0 0
      %2920 = vmatprep.subr.bf16.mxu0 0
      %2921 = vmatpush2.bf16.msra.mxu0 0
      %2922 = vmatprep.subr.bf16.mxu0 0
      %2923 = vmatpush2.bf16.msra.mxu0 0
      %2924 = vmatprep.subr.bf16.mxu0 0
      %2925 = vmatpush2.bf16.msra.mxu0 0
      %2926 = vmatprep.subr.bf16.mxu0 0
      %2927 = vmatpush2.bf16.msra.mxu0 0
      %2928 = vmatprep.subr.bf16.mxu0 0
      %2929 = vmatpush2.bf16.msra.mxu0 0
      %2930 = vmatprep.subr.bf16.mxu0 0
      %2931 = vmatpush2.bf16.msra.mxu0 0
      %2932 = vmatprep.subr.bf16.mxu0 0
      %2933 = vmatpush2.bf16.msra.mxu0 0
      %2934 = vmatprep.mubr.bf16.mxu0 0
      %2935 = vmatmul.mubr.bf16.gmra.mxu0 %v2891
      %v2936 = vpop.f32.mrf.mxu0
      %v2937 = vadd.f32 0.0, %v2936
      %v2938 = vpop.f32.mrf.mxu0
      %v2939 = vpop.f32.mrf.mxu0
      %v2940 = vadd.f32 0.0, %v2939
      %v2941 = vpop.f32.mrf.mxu0
      %2942 = vmatprep.mubr.bf16.mxu0 0
      %2943 = vmatmul.mubr.bf16.gmra.mxu0 %v2894
      %v2944 = vpop.f32.mrf.mxu0
      %v2945 = vadd.f32 0.0, %v2944
      %v2946 = vpop.f32.mrf.mxu0
      %v2947 = vpop.f32.mrf.mxu0
      %v2948 = vadd.f32 0.0, %v2947
      %v2949 = vpop.f32.mrf.mxu0
      %2950 = vmatprep.mubr.bf16.mxu0 0
      %2951 = vmatmul.mubr.bf16.gmra.mxu0 %v2897
      %v2952 = vpop.f32.mrf.mxu0
      %v2953 = vadd.f32 0.0, %v2952
      %v2954 = vpop.f32.mrf.mxu0
      %v2955 = vpop.f32.mrf.mxu0
      %v2956 = vadd.f32 0.0, %v2955
      %v2957 = vpop.f32.mrf.mxu0
      %2958 = vmatprep.mubr.bf16.mxu0 0
      %2959 = vmatmul.mubr.bf16.gmra.mxu0 %v2900
      %v2960 = vpop.f32.mrf.mxu0
      %v2961 = vadd.f32 0.0, %v2960
      %v2962 = vpop.f32.mrf.mxu0
      %v2963 = vpop.f32.mrf.mxu0
      %v2964 = vadd.f32 0.0, %v2963
      %v2965 = vpop.f32.mrf.mxu0
      %2966 = vdwg.mxu0
      %v2975 = vunpack.c.l.b16 %v2828
      %v2976 = vunpack.c.l.b16 %v2829
      %v2977 = vunpack.c.l.b16 %v2830
      %v2978 = vunpack.c.l.b16 %v2831
      %v2979 = vunpack.c.l.b16 %v2832
      %v2980 = vunpack.c.l.b16 %v2833
      %v2981 = vunpack.c.l.b16 %v2834
      %v2982 = vunpack.c.l.b16 %v2835
      %v2983 = vpack.c.b16 %v2976, %v2975
      %v2984 = vpack.c.b16 %v2978, %v2977
      %v2985 = vpack.c.b16 %v2980, %v2979
      %v2986 = vpack.c.b16 %v2982, %v2981
      %v2988 = vsel %vm514, %v2983, 0
      %v2991 = vsel %vm514, %v2984, 0
      %v2994 = vsel %vm514, %v2985, 0
      %v2997 = vsel %vm514, %v2986, 0
      %2999 = vmatprep.subr.bf16.mxu0 0
      %3000 = vmatpush1.bf16.msra.mxu0 0
      %3001 = vmatprep.subr.bf16.mxu0 0
      %3002 = vmatpush1.bf16.msra.mxu0 0
      %3003 = vmatprep.subr.bf16.mxu0 0
      %3004 = vmatpush1.bf16.msra.mxu0 0
      %3005 = vmatprep.subr.bf16.mxu0 0
      %3006 = vmatpush1.bf16.msra.mxu0 0
      %3007 = vmatprep.subr.bf16.mxu0 0
      %3008 = vmatpush1.bf16.msra.mxu0 %v2848
      %3009 = vmatprep.subr.bf16.mxu0 0
      %3010 = vmatpush1.bf16.msra.mxu0 %v2847
      %3011 = vmatprep.subr.bf16.mxu0 0
      %3012 = vmatpush1.bf16.msra.mxu0 %v2846
      %3013 = vmatprep.subr.bf16.mxu0 0
      %3014 = vmatpush1.bf16.msra.mxu0 %v2845
      %3015 = vmatprep.subr.bf16.mxu0 0
      %3016 = vmatpush2.bf16.msra.mxu0 0
      %3017 = vmatprep.subr.bf16.mxu0 0
      %3018 = vmatpush2.bf16.msra.mxu0 0
      %3019 = vmatprep.subr.bf16.mxu0 0
      %3020 = vmatpush2.bf16.msra.mxu0 0
      %3021 = vmatprep.subr.bf16.mxu0 0
      %3022 = vmatpush2.bf16.msra.mxu0 0
      %3023 = vmatprep.subr.bf16.mxu0 0
      %3024 = vmatpush2.bf16.msra.mxu0 0
      %3025 = vmatprep.subr.bf16.mxu0 0
      %3026 = vmatpush2.bf16.msra.mxu0 0
      %3027 = vmatprep.subr.bf16.mxu0 0
      %3028 = vmatpush2.bf16.msra.mxu0 0
      %3029 = vmatprep.subr.bf16.mxu0 0
      %3030 = vmatpush2.bf16.msra.mxu0 0
      %3031 = vmatprep.mubr.bf16.mxu0 0
      %3032 = vmatmul.mubr.bf16.gmra.mxu0 %v2988
      %v3033 = vpop.f32.mrf.mxu0
      %v3034 = vadd.f32 %v2937, %v3033
      %v3035 = vpop.f32.mrf.mxu0
      %v3036 = vpop.f32.mrf.mxu0
      %v3037 = vadd.f32 %v2940, %v3036
      %v3038 = vpop.f32.mrf.mxu0
      %3039 = vmatprep.mubr.bf16.mxu0 0
      %3040 = vmatmul.mubr.bf16.gmra.mxu0 %v2991
      %v3041 = vpop.f32.mrf.mxu0
      %v3042 = vadd.f32 %v2945, %v3041
      %v3043 = vpop.f32.mrf.mxu0
      %v3044 = vpop.f32.mrf.mxu0
      %v3045 = vadd.f32 %v2948, %v3044
      %v3046 = vpop.f32.mrf.mxu0
      %3047 = vmatprep.mubr.bf16.mxu0 0
      %3048 = vmatmul.mubr.bf16.gmra.mxu0 %v2994
      %v3049 = vpop.f32.mrf.mxu0
      %v3050 = vadd.f32 %v2953, %v3049
      %v3051 = vpop.f32.mrf.mxu0
      %v3052 = vpop.f32.mrf.mxu0
      %v3053 = vadd.f32 %v2956, %v3052
      %v3054 = vpop.f32.mrf.mxu0
      %3055 = vmatprep.mubr.bf16.mxu0 0
      %3056 = vmatmul.mubr.bf16.gmra.mxu0 %v2997
      %v3057 = vpop.f32.mrf.mxu0
      %v3058 = vadd.f32 %v2961, %v3057
      %v3059 = vpop.f32.mrf.mxu0
      %v3060 = vpop.f32.mrf.mxu0
      %v3061 = vadd.f32 %v2964, %v3060
      %v3062 = vpop.f32.mrf.mxu0
      %3063 = vdwg.mxu0
      %v3064 = vld [vmem:[%s5] sm:$0xf]
      %v3065 = vld [vmem:[%s5 + $0x4] sm:$0xf]
      %v3066 = vld [vmem:[%s5 + $0x8] sm:$0xf]
      %v3067 = vld [vmem:[%s5 + $0xc] sm:$0xf]
      %v3068 = vld [vmem:[%s5 + $0x10] sm:$0xf]
      %v3069 = vld [vmem:[%s5 + $0x14] sm:$0xf]
      %v3070 = vld [vmem:[%s5 + $0x18] sm:$0xf]
      %v3071 = vld [vmem:[%s5 + $0x1c] sm:$0xf]
      %s3072 = scalar_lea.vmem %s441, 20
      %v3073 = vld [vmem:[%s3072] sm:$0xf]
      %v3074 = vpack.c.bf16 %v3073, %v3073
      %v3083 = vunpack.c.l.b16 %v3064
      %v3084 = vunpack.c.l.b16 %v3065
      %v3085 = vunpack.c.l.b16 %v3066
      %v3086 = vunpack.c.l.b16 %v3067
      %v3087 = vunpack.c.l.b16 %v3068
      %v3088 = vunpack.c.l.b16 %v3069
      %v3089 = vunpack.c.l.b16 %v3070
      %v3090 = vunpack.c.l.b16 %v3071
      %v3091 = vpack.c.b16 %v3084, %v3083
      %v3092 = vpack.c.b16 %v3086, %v3085
      %v3093 = vpack.c.b16 %v3088, %v3087
      %v3094 = vpack.c.b16 %v3090, %v3089
      %v3096 = vsel %vm719, %v3091, 0
      %v3099 = vsel %vm719, %v3092, 0
      %v3102 = vsel %vm719, %v3093, 0
      %v3105 = vsel %vm719, %v3094, 0
      %v3108 = vsel %vm732, %v3074, 0
      %3110 = vmatprep.subr.bf16.mxu0 0
      %3111 = vmatpush1.bf16.msra.mxu0 0
      %3112 = vmatprep.subr.bf16.mxu0 0
      %3113 = vmatpush1.bf16.msra.mxu0 0
      %3114 = vmatprep.subr.bf16.mxu0 0
      %3115 = vmatpush1.bf16.msra.mxu0 0
      %3116 = vmatprep.subr.bf16.mxu0 0
      %3117 = vmatpush1.bf16.msra.mxu0 0
      %3118 = vmatprep.subr.bf16.mxu0 0
      %3119 = vmatpush1.bf16.msra.mxu0 0
      %3120 = vmatprep.subr.bf16.mxu0 0
      %3121 = vmatpush1.bf16.msra.mxu0 0
      %3122 = vmatprep.subr.bf16.mxu0 0
      %3123 = vmatpush1.bf16.msra.mxu0 0
      %3124 = vmatprep.subr.bf16.mxu0 0
      %3125 = vmatpush1.bf16.msra.mxu0 %v3108
      %3126 = vmatprep.subr.bf16.mxu0 0
      %3127 = vmatpush2.bf16.msra.mxu0 0
      %3128 = vmatprep.subr.bf16.mxu0 0
      %3129 = vmatpush2.bf16.msra.mxu0 0
      %3130 = vmatprep.subr.bf16.mxu0 0
      %3131 = vmatpush2.bf16.msra.mxu0 0
      %3132 = vmatprep.subr.bf16.mxu0 0
      %3133 = vmatpush2.bf16.msra.mxu0 0
      %3134 = vmatprep.subr.bf16.mxu0 0
      %3135 = vmatpush2.bf16.msra.mxu0 0
      %3136 = vmatprep.subr.bf16.mxu0 0
      %3137 = vmatpush2.bf16.msra.mxu0 0
      %3138 = vmatprep.subr.bf16.mxu0 0
      %3139 = vmatpush2.bf16.msra.mxu0 0
      %3140 = vmatprep.subr.bf16.mxu0 0
      %3141 = vmatpush2.bf16.msra.mxu0 0
      %3142 = vmatprep.mubr.bf16.mxu0 0
      %3143 = vmatmul.mubr.bf16.gmra.mxu0 %v3096
      %v3144 = vpop.f32.mrf.mxu0
      %v3145 = vadd.f32 0.0, %v3144
      %v3146 = vpop.f32.mrf.mxu0
      %v3147 = vpop.f32.mrf.mxu0
      %v3148 = vadd.f32 0.0, %v3147
      %v3149 = vpop.f32.mrf.mxu0
      %3150 = vmatprep.mubr.bf16.mxu0 0
      %3151 = vmatmul.mubr.bf16.gmra.mxu0 %v3099
      %v3152 = vpop.f32.mrf.mxu0
      %v3153 = vadd.f32 0.0, %v3152
      %v3154 = vpop.f32.mrf.mxu0
      %v3155 = vpop.f32.mrf.mxu0
      %v3156 = vadd.f32 0.0, %v3155
      %v3157 = vpop.f32.mrf.mxu0
      %3158 = vmatprep.mubr.bf16.mxu0 0
      %3159 = vmatmul.mubr.bf16.gmra.mxu0 %v3102
      %v3160 = vpop.f32.mrf.mxu0
      %v3161 = vadd.f32 0.0, %v3160
      %v3162 = vpop.f32.mrf.mxu0
      %v3163 = vpop.f32.mrf.mxu0
      %v3164 = vadd.f32 0.0, %v3163
      %v3165 = vpop.f32.mrf.mxu0
      %3166 = vmatprep.mubr.bf16.mxu0 0
      %3167 = vmatmul.mubr.bf16.gmra.mxu0 %v3105
      %v3168 = vpop.f32.mrf.mxu0
      %v3169 = vadd.f32 0.0, %v3168
      %v3170 = vpop.f32.mrf.mxu0
      %v3171 = vpop.f32.mrf.mxu0
      %v3172 = vadd.f32 0.0, %v3171
      %v3173 = vpop.f32.mrf.mxu0
      %3174 = vdwg.mxu0
      %v3175 = vadd.f32 %v3034, %v3145
      %v3176 = vadd.f32 %v3037, %v3148
      %v3177 = vadd.f32 %v3042, %v3153
      %v3178 = vadd.f32 %v3045, %v3156
      %v3179 = vadd.f32 %v3050, %v3161
      %v3180 = vadd.f32 %v3053, %v3164
      %v3181 = vadd.f32 %v3058, %v3169
      %v3182 = vadd.f32 %v3061, %v3172
      %v3183 = vld [vmem:[%s6] sm:$0xff]
      %v3184 = vld [vmem:[%s6 + $0x8] sm:$0xff]
      %v3185 = vld [vmem:[%s6 + $0x10] sm:$0xff]
      %v3186 = vld [vmem:[%s6 + $0x18] sm:$0xff]
      %v3187 = vld [vmem:[%s6 + $0x20] sm:$0xff]
      %v3188 = vld [vmem:[%s6 + $0x28] sm:$0xff]
      %v3189 = vld [vmem:[%s6 + $0x30] sm:$0xff]
      %v3190 = vld [vmem:[%s6 + $0x38] sm:$0xff]
      %3192 = vset.pattern.permute.xlu0 0
      %3193 = vperm.xlu0 %3192, %v3183
      %v3194 = vpop.permute.xlu0 %3193
      %3197 = vset.pattern.permute.xlu0 0
      %3198 = vperm.xlu0 %3197, %v3184
      %v3199 = vpop.permute.xlu0 %3198
      %3202 = vset.pattern.permute.xlu0 0
      %3203 = vperm.xlu0 %3202, %v3185
      %v3204 = vpop.permute.xlu0 %3203
      %3207 = vset.pattern.permute.xlu0 0
      %3208 = vperm.xlu0 %3207, %v3186
      %v3209 = vpop.permute.xlu0 %3208
      %3212 = vset.pattern.permute.xlu0 0
      %3213 = vperm.xlu0 %3212, %v3187
      %v3214 = vpop.permute.xlu0 %3213
      %3217 = vset.pattern.permute.xlu0 0
      %3218 = vperm.xlu0 %3217, %v3188
      %v3219 = vpop.permute.xlu0 %3218
      %3222 = vset.pattern.permute.xlu0 0
      %3223 = vperm.xlu0 %3222, %v3189
      %v3224 = vpop.permute.xlu0 %3223
      %3227 = vset.pattern.permute.xlu0 0
      %3228 = vperm.xlu0 %3227, %v3190
      %v3229 = vpop.permute.xlu0 %3228
      %v3231 = vadd.f32 %v3175, %v3194
      %v3232 = vadd.f32 %v3176, %v3199
      %v3233 = vadd.f32 %v3177, %v3204
      %v3234 = vadd.f32 %v3178, %v3209
      %v3235 = vadd.f32 %v3179, %v3214
      %v3236 = vadd.f32 %v3180, %v3219
      %v3237 = vadd.f32 %v3181, %v3224
      %v3238 = vadd.f32 %v3182, %v3229
      %v3239 = vmax.f32 %v3231, 0.0
      %v3240 = vmax.f32 %v3232, 0.0
      %v3241 = vmax.f32 %v3233, 0.0
      %v3242 = vmax.f32 %v3234, 0.0
      %v3243 = vmax.f32 %v3235, 0.0
      %v3244 = vmax.f32 %v3236, 0.0
      %v3245 = vmax.f32 %v3237, 0.0
      %v3246 = vmax.f32 %v3238, 0.0
      %v3247 = vld [vmem:[%s7] sm:$0x3]
      %v3248 = vpack.c.bf16 %v3240, %v3239
      %v3249 = vpack.c.bf16 %v3242, %v3241
      %v3250 = vpack.c.bf16 %v3244, %v3243
      %v3251 = vpack.c.bf16 %v3246, %v3245
      %v3252 = vld [vmem:[%s8] sm:$0xf]
      %3254 = vset.pattern.permute.xlu0 0
      %3255 = vperm.xlu0 %3254, %v3252
      %v3256 = vpop.permute.xlu0 %3255
      %v3259 = vsel %vm514, %v3247, 0
      %3261 = vmatprep.subr.bf16.mxu0 0
      %3262 = vmatpush1.bf16.msra.mxu0 0
      %3263 = vmatprep.subr.bf16.mxu0 0
      %3264 = vmatpush1.bf16.msra.mxu0 0
      %3265 = vmatprep.subr.bf16.mxu0 0
      %3266 = vmatpush1.bf16.msra.mxu0 0
      %3267 = vmatprep.subr.bf16.mxu0 0
      %3268 = vmatpush1.bf16.msra.mxu0 0
      %3269 = vmatprep.subr.bf16.mxu0 0
      %3270 = vmatpush1.bf16.msra.mxu0 %v3251
      %3271 = vmatprep.subr.bf16.mxu0 0
      %3272 = vmatpush1.bf16.msra.mxu0 %v3250
      %3273 = vmatprep.subr.bf16.mxu0 0
      %3274 = vmatpush1.bf16.msra.mxu0 %v3249
      %3275 = vmatprep.subr.bf16.mxu0 0
      %3276 = vmatpush1.bf16.msra.mxu0 %v3248
      %3277 = vmatprep.subr.bf16.mxu0 0
      %3278 = vmatpush2.bf16.msra.mxu0 0
      %3279 = vmatprep.subr.bf16.mxu0 0
      %3280 = vmatpush2.bf16.msra.mxu0 0
      %3281 = vmatprep.subr.bf16.mxu0 0
      %3282 = vmatpush2.bf16.msra.mxu0 0
      %3283 = vmatprep.subr.bf16.mxu0 0
      %3284 = vmatpush2.bf16.msra.mxu0 0
      %3285 = vmatprep.subr.bf16.mxu0 0
      %3286 = vmatpush2.bf16.msra.mxu0 0
      %3287 = vmatprep.subr.bf16.mxu0 0
      %3288 = vmatpush2.bf16.msra.mxu0 0
      %3289 = vmatprep.subr.bf16.mxu0 0
      %3290 = vmatpush2.bf16.msra.mxu0 0
      %3291 = vmatprep.subr.bf16.mxu0 0
      %3292 = vmatpush2.bf16.msra.mxu0 0
      %3293 = vmatprep.mubr.bf16.mxu0 0
      %3294 = vmatmul.mubr.bf16.gmra.mxu0 %v3259
      %v3295 = vpop.f32.mrf.mxu0
      %v3296 = vadd.f32 %v3256, %v3295
      %v3297 = vpop.f32.mrf.mxu0
      %v3298 = vpop.f32.mrf.mxu0
      %v3299 = vpop.f32.mrf.mxu0
      %3300 = vdwg.mxu0
      %s3301 = scalar_lea.vmem %s451, 20
      %3302 = vst [vmem:[%s3301] sm:$0xf] %v3296
      %v3303 = vld [vmem:[%s3] sm:$0xf]
      %v3304 = vld [vmem:[%s3 + $0x4] sm:$0xf]
      %v3305 = vld [vmem:[%s3 + $0x8] sm:$0xf]
      %v3306 = vld [vmem:[%s3 + $0xc] sm:$0xf]
      %v3307 = vld [vmem:[%s3 + $0x10] sm:$0xf]
      %v3308 = vld [vmem:[%s3 + $0x14] sm:$0xf]
      %v3309 = vld [vmem:[%s3 + $0x18] sm:$0xf]
      %v3310 = vld [vmem:[%s3 + $0x1c] sm:$0xf]
      %s3311 = scalar_lea.vmem %s419, 384
      %v3312 = vld [vmem:[%s3311] sm:$0xff]
      %v3313 = vld [vmem:[%s3311 + $0x8] sm:$0xff]
      %v3314 = vld [vmem:[%s3311 + $0x10] sm:$0xff]
      %v3315 = vld [vmem:[%s3311 + $0x18] sm:$0xff]
      %v3316 = vld [vmem:[%s3311 + $0x20] sm:$0xff]
      %v3317 = vld [vmem:[%s3311 + $0x28] sm:$0xff]
      %v3318 = vld [vmem:[%s3311 + $0x30] sm:$0xff]
      %v3319 = vld [vmem:[%s3311 + $0x38] sm:$0xff]
      %v3320 = vpack.c.bf16 %v3313, %v3312
      %v3321 = vpack.c.bf16 %v3315, %v3314
      %v3322 = vpack.c.bf16 %v3317, %v3316
      %v3323 = vpack.c.bf16 %v3319, %v3318
      %v3324 = vld [vmem:[%s4] sm:$0xf]
      %v3325 = vld [vmem:[%s4 + $0x4] sm:$0xf]
      %v3326 = vld [vmem:[%s4 + $0x8] sm:$0xf]
      %v3327 = vld [vmem:[%s4 + $0xc] sm:$0xf]
      %v3328 = vld [vmem:[%s4 + $0x10] sm:$0xf]
      %v3329 = vld [vmem:[%s4 + $0x14] sm:$0xf]
      %v3330 = vld [vmem:[%s4 + $0x18] sm:$0xf]
      %v3331 = vld [vmem:[%s4 + $0x1c] sm:$0xf]
      %s3332 = scalar_lea.vmem %s431, 384
      %v3333 = vld [vmem:[%s3332] sm:$0xff]
      %v3334 = vld [vmem:[%s3332 + $0x8] sm:$0xff]
      %v3335 = vld [vmem:[%s3332 + $0x10] sm:$0xff]
      %v3336 = vld [vmem:[%s3332 + $0x18] sm:$0xff]
      %v3337 = vld [vmem:[%s3332 + $0x20] sm:$0xff]
      %v3338 = vld [vmem:[%s3332 + $0x28] sm:$0xff]
      %v3339 = vld [vmem:[%s3332 + $0x30] sm:$0xff]
      %v3340 = vld [vmem:[%s3332 + $0x38] sm:$0xff]
      %v3341 = vpack.c.bf16 %v3334, %v3333
      %v3342 = vpack.c.bf16 %v3336, %v3335
      %v3343 = vpack.c.bf16 %v3338, %v3337
      %v3344 = vpack.c.bf16 %v3340, %v3339
      %v3353 = vunpack.c.l.b16 %v3324
      %v3354 = vunpack.c.l.b16 %v3325
      %v3355 = vunpack.c.l.b16 %v3326
      %v3356 = vunpack.c.l.b16 %v3327
      %v3357 = vunpack.c.l.b16 %v3328
      %v3358 = vunpack.c.l.b16 %v3329
      %v3359 = vunpack.c.l.b16 %v3330
      %v3360 = vunpack.c.l.b16 %v3331
      %v3361 = vpack.c.b16 %v3354, %v3353
      %v3362 = vpack.c.b16 %v3356, %v3355
      %v3363 = vpack.c.b16 %v3358, %v3357
      %v3364 = vpack.c.b16 %v3360, %v3359
      %v3366 = vsel %vm514, %v3361, 0
      %v3369 = vsel %vm514, %v3362, 0
      %v3372 = vsel %vm514, %v3363, 0
      %v3375 = vsel %vm514, %v3364, 0
      %3377 = vmatprep.subr.bf16.mxu0 0
      %3378 = vmatpush1.bf16.msra.mxu0 0
      %3379 = vmatprep.subr.bf16.mxu0 0
      %3380 = vmatpush1.bf16.msra.mxu0 0
      %3381 = vmatprep.subr.bf16.mxu0 0
      %3382 = vmatpush1.bf16.msra.mxu0 0
      %3383 = vmatprep.subr.bf16.mxu0 0
      %3384 = vmatpush1.bf16.msra.mxu0 0
      %3385 = vmatprep.subr.bf16.mxu0 0
      %3386 = vmatpush1.bf16.msra.mxu0 %v3344
      %3387 = vmatprep.subr.bf16.mxu0 0
      %3388 = vmatpush1.bf16.msra.mxu0 %v3343
      %3389 = vmatprep.subr.bf16.mxu0 0
      %3390 = vmatpush1.bf16.msra.mxu0 %v3342
      %3391 = vmatprep.subr.bf16.mxu0 0
      %3392 = vmatpush1.bf16.msra.mxu0 %v3341
      %3393 = vmatprep.subr.bf16.mxu0 0
      %3394 = vmatpush2.bf16.msra.mxu0 0
      %3395 = vmatprep.subr.bf16.mxu0 0
      %3396 = vmatpush2.bf16.msra.mxu0 0
      %3397 = vmatprep.subr.bf16.mxu0 0
      %3398 = vmatpush2.bf16.msra.mxu0 0
      %3399 = vmatprep.subr.bf16.mxu0 0
      %3400 = vmatpush2.bf16.msra.mxu0 0
      %3401 = vmatprep.subr.bf16.mxu0 0
      %3402 = vmatpush2.bf16.msra.mxu0 0
      %3403 = vmatprep.subr.bf16.mxu0 0
      %3404 = vmatpush2.bf16.msra.mxu0 0
      %3405 = vmatprep.subr.bf16.mxu0 0
      %3406 = vmatpush2.bf16.msra.mxu0 0
      %3407 = vmatprep.subr.bf16.mxu0 0
      %3408 = vmatpush2.bf16.msra.mxu0 0
      %3409 = vmatprep.mubr.bf16.mxu0 0
      %3410 = vmatmul.mubr.bf16.gmra.mxu0 %v3366
      %v3411 = vpop.f32.mrf.mxu0
      %v3412 = vadd.f32 0.0, %v3411
      %v3413 = vpop.f32.mrf.mxu0
      %v3414 = vpop.f32.mrf.mxu0
      %v3415 = vadd.f32 0.0, %v3414
      %v3416 = vpop.f32.mrf.mxu0
      %3417 = vmatprep.mubr.bf16.mxu0 0
      %3418 = vmatmul.mubr.bf16.gmra.mxu0 %v3369
      %v3419 = vpop.f32.mrf.mxu0
      %v3420 = vadd.f32 0.0, %v3419
      %v3421 = vpop.f32.mrf.mxu0
      %v3422 = vpop.f32.mrf.mxu0
      %v3423 = vadd.f32 0.0, %v3422
      %v3424 = vpop.f32.mrf.mxu0
      %3425 = vmatprep.mubr.bf16.mxu0 0
      %3426 = vmatmul.mubr.bf16.gmra.mxu0 %v3372
      %v3427 = vpop.f32.mrf.mxu0
      %v3428 = vadd.f32 0.0, %v3427
      %v3429 = vpop.f32.mrf.mxu0
      %v3430 = vpop.f32.mrf.mxu0
      %v3431 = vadd.f32 0.0, %v3430
      %v3432 = vpop.f32.mrf.mxu0
      %3433 = vmatprep.mubr.bf16.mxu0 0
      %3434 = vmatmul.mubr.bf16.gmra.mxu0 %v3375
      %v3435 = vpop.f32.mrf.mxu0
      %v3436 = vadd.f32 0.0, %v3435
      %v3437 = vpop.f32.mrf.mxu0
      %v3438 = vpop.f32.mrf.mxu0
      %v3439 = vadd.f32 0.0, %v3438
      %v3440 = vpop.f32.mrf.mxu0
      %3441 = vdwg.mxu0
      %v3450 = vunpack.c.l.b16 %v3303
      %v3451 = vunpack.c.l.b16 %v3304
      %v3452 = vunpack.c.l.b16 %v3305
      %v3453 = vunpack.c.l.b16 %v3306
      %v3454 = vunpack.c.l.b16 %v3307
      %v3455 = vunpack.c.l.b16 %v3308
      %v3456 = vunpack.c.l.b16 %v3309
      %v3457 = vunpack.c.l.b16 %v3310
      %v3458 = vpack.c.b16 %v3451, %v3450
      %v3459 = vpack.c.b16 %v3453, %v3452
      %v3460 = vpack.c.b16 %v3455, %v3454
      %v3461 = vpack.c.b16 %v3457, %v3456
      %v3463 = vsel %vm514, %v3458, 0
      %v3466 = vsel %vm514, %v3459, 0
      %v3469 = vsel %vm514, %v3460, 0
      %v3472 = vsel %vm514, %v3461, 0
      %3474 = vmatprep.subr.bf16.mxu0 0
      %3475 = vmatpush1.bf16.msra.mxu0 0
      %3476 = vmatprep.subr.bf16.mxu0 0
      %3477 = vmatpush1.bf16.msra.mxu0 0
      %3478 = vmatprep.subr.bf16.mxu0 0
      %3479 = vmatpush1.bf16.msra.mxu0 0
      %3480 = vmatprep.subr.bf16.mxu0 0
      %3481 = vmatpush1.bf16.msra.mxu0 0
      %3482 = vmatprep.subr.bf16.mxu0 0
      %3483 = vmatpush1.bf16.msra.mxu0 %v3323
      %3484 = vmatprep.subr.bf16.mxu0 0
      %3485 = vmatpush1.bf16.msra.mxu0 %v3322
      %3486 = vmatprep.subr.bf16.mxu0 0
      %3487 = vmatpush1.bf16.msra.mxu0 %v3321
      %3488 = vmatprep.subr.bf16.mxu0 0
      %3489 = vmatpush1.bf16.msra.mxu0 %v3320
      %3490 = vmatprep.subr.bf16.mxu0 0
      %3491 = vmatpush2.bf16.msra.mxu0 0
      %3492 = vmatprep.subr.bf16.mxu0 0
      %3493 = vmatpush2.bf16.msra.mxu0 0
      %3494 = vmatprep.subr.bf16.mxu0 0
      %3495 = vmatpush2.bf16.msra.mxu0 0
      %3496 = vmatprep.subr.bf16.mxu0 0
      %3497 = vmatpush2.bf16.msra.mxu0 0
      %3498 = vmatprep.subr.bf16.mxu0 0
      %3499 = vmatpush2.bf16.msra.mxu0 0
      %3500 = vmatprep.subr.bf16.mxu0 0
      %3501 = vmatpush2.bf16.msra.mxu0 0
      %3502 = vmatprep.subr.bf16.mxu0 0
      %3503 = vmatpush2.bf16.msra.mxu0 0
      %3504 = vmatprep.subr.bf16.mxu0 0
      %3505 = vmatpush2.bf16.msra.mxu0 0
      %3506 = vmatprep.mubr.bf16.mxu0 0
      %3507 = vmatmul.mubr.bf16.gmra.mxu0 %v3463
      %v3508 = vpop.f32.mrf.mxu0
      %v3509 = vadd.f32 %v3412, %v3508
      %v3510 = vpop.f32.mrf.mxu0
      %v3511 = vpop.f32.mrf.mxu0
      %v3512 = vadd.f32 %v3415, %v3511
      %v3513 = vpop.f32.mrf.mxu0
      %3514 = vmatprep.mubr.bf16.mxu0 0
      %3515 = vmatmul.mubr.bf16.gmra.mxu0 %v3466
      %v3516 = vpop.f32.mrf.mxu0
      %v3517 = vadd.f32 %v3420, %v3516
      %v3518 = vpop.f32.mrf.mxu0
      %v3519 = vpop.f32.mrf.mxu0
      %v3520 = vadd.f32 %v3423, %v3519
      %v3521 = vpop.f32.mrf.mxu0
      %3522 = vmatprep.mubr.bf16.mxu0 0
      %3523 = vmatmul.mubr.bf16.gmra.mxu0 %v3469
      %v3524 = vpop.f32.mrf.mxu0
      %v3525 = vadd.f32 %v3428, %v3524
      %v3526 = vpop.f32.mrf.mxu0
      %v3527 = vpop.f32.mrf.mxu0
      %v3528 = vadd.f32 %v3431, %v3527
      %v3529 = vpop.f32.mrf.mxu0
      %3530 = vmatprep.mubr.bf16.mxu0 0
      %3531 = vmatmul.mubr.bf16.gmra.mxu0 %v3472
      %v3532 = vpop.f32.mrf.mxu0
      %v3533 = vadd.f32 %v3436, %v3532
      %v3534 = vpop.f32.mrf.mxu0
      %v3535 = vpop.f32.mrf.mxu0
      %v3536 = vadd.f32 %v3439, %v3535
      %v3537 = vpop.f32.mrf.mxu0
      %3538 = vdwg.mxu0
      %v3539 = vld [vmem:[%s5] sm:$0xf]
      %v3540 = vld [vmem:[%s5 + $0x4] sm:$0xf]
      %v3541 = vld [vmem:[%s5 + $0x8] sm:$0xf]
      %v3542 = vld [vmem:[%s5 + $0xc] sm:$0xf]
      %v3543 = vld [vmem:[%s5 + $0x10] sm:$0xf]
      %v3544 = vld [vmem:[%s5 + $0x14] sm:$0xf]
      %v3545 = vld [vmem:[%s5 + $0x18] sm:$0xf]
      %v3546 = vld [vmem:[%s5 + $0x1c] sm:$0xf]
      %s3547 = scalar_lea.vmem %s441, 24
      %v3548 = vld [vmem:[%s3547] sm:$0xf]
      %v3549 = vpack.c.bf16 %v3548, %v3548
      %v3558 = vunpack.c.l.b16 %v3539
      %v3559 = vunpack.c.l.b16 %v3540
      %v3560 = vunpack.c.l.b16 %v3541
      %v3561 = vunpack.c.l.b16 %v3542
      %v3562 = vunpack.c.l.b16 %v3543
      %v3563 = vunpack.c.l.b16 %v3544
      %v3564 = vunpack.c.l.b16 %v3545
      %v3565 = vunpack.c.l.b16 %v3546
      %v3566 = vpack.c.b16 %v3559, %v3558
      %v3567 = vpack.c.b16 %v3561, %v3560
      %v3568 = vpack.c.b16 %v3563, %v3562
      %v3569 = vpack.c.b16 %v3565, %v3564
      %v3571 = vsel %vm719, %v3566, 0
      %v3574 = vsel %vm719, %v3567, 0
      %v3577 = vsel %vm719, %v3568, 0
      %v3580 = vsel %vm719, %v3569, 0
      %v3583 = vsel %vm732, %v3549, 0
      %3585 = vmatprep.subr.bf16.mxu0 0
      %3586 = vmatpush1.bf16.msra.mxu0 0
      %3587 = vmatprep.subr.bf16.mxu0 0
      %3588 = vmatpush1.bf16.msra.mxu0 0
      %3589 = vmatprep.subr.bf16.mxu0 0
      %3590 = vmatpush1.bf16.msra.mxu0 0
      %3591 = vmatprep.subr.bf16.mxu0 0
      %3592 = vmatpush1.bf16.msra.mxu0 0
      %3593 = vmatprep.subr.bf16.mxu0 0
      %3594 = vmatpush1.bf16.msra.mxu0 0
      %3595 = vmatprep.subr.bf16.mxu0 0
      %3596 = vmatpush1.bf16.msra.mxu0 0
      %3597 = vmatprep.subr.bf16.mxu0 0
      %3598 = vmatpush1.bf16.msra.mxu0 0
      %3599 = vmatprep.subr.bf16.mxu0 0
      %3600 = vmatpush1.bf16.msra.mxu0 %v3583
      %3601 = vmatprep.subr.bf16.mxu0 0
      %3602 = vmatpush2.bf16.msra.mxu0 0
      %3603 = vmatprep.subr.bf16.mxu0 0
      %3604 = vmatpush2.bf16.msra.mxu0 0
      %3605 = vmatprep.subr.bf16.mxu0 0
      %3606 = vmatpush2.bf16.msra.mxu0 0
      %3607 = vmatprep.subr.bf16.mxu0 0
      %3608 = vmatpush2.bf16.msra.mxu0 0
      %3609 = vmatprep.subr.bf16.mxu0 0
      %3610 = vmatpush2.bf16.msra.mxu0 0
      %3611 = vmatprep.subr.bf16.mxu0 0
      %3612 = vmatpush2.bf16.msra.mxu0 0
      %3613 = vmatprep.subr.bf16.mxu0 0
      %3614 = vmatpush2.bf16.msra.mxu0 0
      %3615 = vmatprep.subr.bf16.mxu0 0
      %3616 = vmatpush2.bf16.msra.mxu0 0
      %3617 = vmatprep.mubr.bf16.mxu0 0
      %3618 = vmatmul.mubr.bf16.gmra.mxu0 %v3571
      %v3619 = vpop.f32.mrf.mxu0
      %v3620 = vadd.f32 0.0, %v3619
      %v3621 = vpop.f32.mrf.mxu0
      %v3622 = vpop.f32.mrf.mxu0
      %v3623 = vadd.f32 0.0, %v3622
      %v3624 = vpop.f32.mrf.mxu0
      %3625 = vmatprep.mubr.bf16.mxu0 0
      %3626 = vmatmul.mubr.bf16.gmra.mxu0 %v3574
      %v3627 = vpop.f32.mrf.mxu0
      %v3628 = vadd.f32 0.0, %v3627
      %v3629 = vpop.f32.mrf.mxu0
      %v3630 = vpop.f32.mrf.mxu0
      %v3631 = vadd.f32 0.0, %v3630
      %v3632 = vpop.f32.mrf.mxu0
      %3633 = vmatprep.mubr.bf16.mxu0 0
      %3634 = vmatmul.mubr.bf16.gmra.mxu0 %v3577
      %v3635 = vpop.f32.mrf.mxu0
      %v3636 = vadd.f32 0.0, %v3635
      %v3637 = vpop.f32.mrf.mxu0
      %v3638 = vpop.f32.mrf.mxu0
      %v3639 = vadd.f32 0.0, %v3638
      %v3640 = vpop.f32.mrf.mxu0
      %3641 = vmatprep.mubr.bf16.mxu0 0
      %3642 = vmatmul.mubr.bf16.gmra.mxu0 %v3580
      %v3643 = vpop.f32.mrf.mxu0
      %v3644 = vadd.f32 0.0, %v3643
      %v3645 = vpop.f32.mrf.mxu0
      %v3646 = vpop.f32.mrf.mxu0
      %v3647 = vadd.f32 0.0, %v3646
      %v3648 = vpop.f32.mrf.mxu0
      %3649 = vdwg.mxu0
      %v3650 = vadd.f32 %v3509, %v3620
      %v3651 = vadd.f32 %v3512, %v3623
      %v3652 = vadd.f32 %v3517, %v3628
      %v3653 = vadd.f32 %v3520, %v3631
      %v3654 = vadd.f32 %v3525, %v3636
      %v3655 = vadd.f32 %v3528, %v3639
      %v3656 = vadd.f32 %v3533, %v3644
      %v3657 = vadd.f32 %v3536, %v3647
      %v3658 = vld [vmem:[%s6] sm:$0xff]
      %v3659 = vld [vmem:[%s6 + $0x8] sm:$0xff]
      %v3660 = vld [vmem:[%s6 + $0x10] sm:$0xff]
      %v3661 = vld [vmem:[%s6 + $0x18] sm:$0xff]
      %v3662 = vld [vmem:[%s6 + $0x20] sm:$0xff]
      %v3663 = vld [vmem:[%s6 + $0x28] sm:$0xff]
      %v3664 = vld [vmem:[%s6 + $0x30] sm:$0xff]
      %v3665 = vld [vmem:[%s6 + $0x38] sm:$0xff]
      %3667 = vset.pattern.permute.xlu0 0
      %3668 = vperm.xlu0 %3667, %v3658
      %v3669 = vpop.permute.xlu0 %3668
      %3672 = vset.pattern.permute.xlu0 0
      %3673 = vperm.xlu0 %3672, %v3659
      %v3674 = vpop.permute.xlu0 %3673
      %3677 = vset.pattern.permute.xlu0 0
      %3678 = vperm.xlu0 %3677, %v3660
      %v3679 = vpop.permute.xlu0 %3678
      %3682 = vset.pattern.permute.xlu0 0
      %3683 = vperm.xlu0 %3682, %v3661
      %v3684 = vpop.permute.xlu0 %3683
      %3687 = vset.pattern.permute.xlu0 0
      %3688 = vperm.xlu0 %3687, %v3662
      %v3689 = vpop.permute.xlu0 %3688
      %3692 = vset.pattern.permute.xlu0 0
      %3693 = vperm.xlu0 %3692, %v3663
      %v3694 = vpop.permute.xlu0 %3693
      %3697 = vset.pattern.permute.xlu0 0
      %3698 = vperm.xlu0 %3697, %v3664
      %v3699 = vpop.permute.xlu0 %3698
      %3702 = vset.pattern.permute.xlu0 0
      %3703 = vperm.xlu0 %3702, %v3665
      %v3704 = vpop.permute.xlu0 %3703
      %v3706 = vadd.f32 %v3650, %v3669
      %v3707 = vadd.f32 %v3651, %v3674
      %v3708 = vadd.f32 %v3652, %v3679
      %v3709 = vadd.f32 %v3653, %v3684
      %v3710 = vadd.f32 %v3654, %v3689
      %v3711 = vadd.f32 %v3655, %v3694
      %v3712 = vadd.f32 %v3656, %v3699
      %v3713 = vadd.f32 %v3657, %v3704
      %v3714 = vmax.f32 %v3706, 0.0
      %v3715 = vmax.f32 %v3707, 0.0
      %v3716 = vmax.f32 %v3708, 0.0
      %v3717 = vmax.f32 %v3709, 0.0
      %v3718 = vmax.f32 %v3710, 0.0
      %v3719 = vmax.f32 %v3711, 0.0
      %v3720 = vmax.f32 %v3712, 0.0
      %v3721 = vmax.f32 %v3713, 0.0
      %v3722 = vld [vmem:[%s7] sm:$0x3]
      %v3723 = vpack.c.bf16 %v3715, %v3714
      %v3724 = vpack.c.bf16 %v3717, %v3716
      %v3725 = vpack.c.bf16 %v3719, %v3718
      %v3726 = vpack.c.bf16 %v3721, %v3720
      %v3727 = vld [vmem:[%s8] sm:$0xf]
      %3729 = vset.pattern.permute.xlu0 0
      %3730 = vperm.xlu0 %3729, %v3727
      %v3731 = vpop.permute.xlu0 %3730
      %v3734 = vsel %vm514, %v3722, 0
      %3736 = vmatprep.subr.bf16.mxu0 0
      %3737 = vmatpush1.bf16.msra.mxu0 0
      %3738 = vmatprep.subr.bf16.mxu0 0
      %3739 = vmatpush1.bf16.msra.mxu0 0
      %3740 = vmatprep.subr.bf16.mxu0 0
      %3741 = vmatpush1.bf16.msra.mxu0 0
      %3742 = vmatprep.subr.bf16.mxu0 0
      %3743 = vmatpush1.bf16.msra.mxu0 0
      %3744 = vmatprep.subr.bf16.mxu0 0
      %3745 = vmatpush1.bf16.msra.mxu0 %v3726
      %3746 = vmatprep.subr.bf16.mxu0 0
      %3747 = vmatpush1.bf16.msra.mxu0 %v3725
      %3748 = vmatprep.subr.bf16.mxu0 0
      %3749 = vmatpush1.bf16.msra.mxu0 %v3724
      %3750 = vmatprep.subr.bf16.mxu0 0
      %3751 = vmatpush1.bf16.msra.mxu0 %v3723
      %3752 = vmatprep.subr.bf16.mxu0 0
      %3753 = vmatpush2.bf16.msra.mxu0 0
      %3754 = vmatprep.subr.bf16.mxu0 0
      %3755 = vmatpush2.bf16.msra.mxu0 0
      %3756 = vmatprep.subr.bf16.mxu0 0
      %3757 = vmatpush2.bf16.msra.mxu0 0
      %3758 = vmatprep.subr.bf16.mxu0 0
      %3759 = vmatpush2.bf16.msra.mxu0 0
      %3760 = vmatprep.subr.bf16.mxu0 0
      %3761 = vmatpush2.bf16.msra.mxu0 0
      %3762 = vmatprep.subr.bf16.mxu0 0
      %3763 = vmatpush2.bf16.msra.mxu0 0
      %3764 = vmatprep.subr.bf16.mxu0 0
      %3765 = vmatpush2.bf16.msra.mxu0 0
      %3766 = vmatprep.subr.bf16.mxu0 0
      %3767 = vmatpush2.bf16.msra.mxu0 0
      %3768 = vmatprep.mubr.bf16.mxu0 0
      %3769 = vmatmul.mubr.bf16.gmra.mxu0 %v3734
      %v3770 = vpop.f32.mrf.mxu0
      %v3771 = vadd.f32 %v3731, %v3770
      %v3772 = vpop.f32.mrf.mxu0
      %v3773 = vpop.f32.mrf.mxu0
      %v3774 = vpop.f32.mrf.mxu0
      %3775 = vdwg.mxu0
      %s3776 = scalar_lea.vmem %s451, 24
      %3777 = vst [vmem:[%s3776] sm:$0xf] %v3771
      %v3778 = vld [vmem:[%s3] sm:$0xf]
      %v3779 = vld [vmem:[%s3 + $0x4] sm:$0xf]
      %v3780 = vld [vmem:[%s3 + $0x8] sm:$0xf]
      %v3781 = vld [vmem:[%s3 + $0xc] sm:$0xf]
      %v3782 = vld [vmem:[%s3 + $0x10] sm:$0xf]
      %v3783 = vld [vmem:[%s3 + $0x14] sm:$0xf]
      %v3784 = vld [vmem:[%s3 + $0x18] sm:$0xf]
      %v3785 = vld [vmem:[%s3 + $0x1c] sm:$0xf]
      %s3786 = scalar_lea.vmem %s419, 448
      %v3787 = vld [vmem:[%s3786] sm:$0xff]
      %v3788 = vld [vmem:[%s3786 + $0x8] sm:$0xff]
      %v3789 = vld [vmem:[%s3786 + $0x10] sm:$0xff]
      %v3790 = vld [vmem:[%s3786 + $0x18] sm:$0xff]
      %v3791 = vld [vmem:[%s3786 + $0x20] sm:$0xff]
      %v3792 = vld [vmem:[%s3786 + $0x28] sm:$0xff]
      %v3793 = vld [vmem:[%s3786 + $0x30] sm:$0xff]
      %v3794 = vld [vmem:[%s3786 + $0x38] sm:$0xff]
      %v3795 = vpack.c.bf16 %v3788, %v3787
      %v3796 = vpack.c.bf16 %v3790, %v3789
      %v3797 = vpack.c.bf16 %v3792, %v3791
      %v3798 = vpack.c.bf16 %v3794, %v3793
      %v3799 = vld [vmem:[%s4] sm:$0xf]
      %v3800 = vld [vmem:[%s4 + $0x4] sm:$0xf]
      %v3801 = vld [vmem:[%s4 + $0x8] sm:$0xf]
      %v3802 = vld [vmem:[%s4 + $0xc] sm:$0xf]
      %v3803 = vld [vmem:[%s4 + $0x10] sm:$0xf]
      %v3804 = vld [vmem:[%s4 + $0x14] sm:$0xf]
      %v3805 = vld [vmem:[%s4 + $0x18] sm:$0xf]
      %v3806 = vld [vmem:[%s4 + $0x1c] sm:$0xf]
      %s3807 = scalar_lea.vmem %s431, 448
      %v3808 = vld [vmem:[%s3807] sm:$0xff]
      %v3809 = vld [vmem:[%s3807 + $0x8] sm:$0xff]
      %v3810 = vld [vmem:[%s3807 + $0x10] sm:$0xff]
      %v3811 = vld [vmem:[%s3807 + $0x18] sm:$0xff]
      %v3812 = vld [vmem:[%s3807 + $0x20] sm:$0xff]
      %v3813 = vld [vmem:[%s3807 + $0x28] sm:$0xff]
      %v3814 = vld [vmem:[%s3807 + $0x30] sm:$0xff]
      %v3815 = vld [vmem:[%s3807 + $0x38] sm:$0xff]
      %v3816 = vpack.c.bf16 %v3809, %v3808
      %v3817 = vpack.c.bf16 %v3811, %v3810
      %v3818 = vpack.c.bf16 %v3813, %v3812
      %v3819 = vpack.c.bf16 %v3815, %v3814
      %v3828 = vunpack.c.l.b16 %v3799
      %v3829 = vunpack.c.l.b16 %v3800
      %v3830 = vunpack.c.l.b16 %v3801
      %v3831 = vunpack.c.l.b16 %v3802
      %v3832 = vunpack.c.l.b16 %v3803
      %v3833 = vunpack.c.l.b16 %v3804
      %v3834 = vunpack.c.l.b16 %v3805
      %v3835 = vunpack.c.l.b16 %v3806
      %v3836 = vpack.c.b16 %v3829, %v3828
      %v3837 = vpack.c.b16 %v3831, %v3830
      %v3838 = vpack.c.b16 %v3833, %v3832
      %v3839 = vpack.c.b16 %v3835, %v3834
      %v3841 = vsel %vm514, %v3836, 0
      %v3844 = vsel %vm514, %v3837, 0
      %v3847 = vsel %vm514, %v3838, 0
      %v3850 = vsel %vm514, %v3839, 0
      %3852 = vmatprep.subr.bf16.mxu0 0
      %3853 = vmatpush1.bf16.msra.mxu0 0
      %3854 = vmatprep.subr.bf16.mxu0 0
      %3855 = vmatpush1.bf16.msra.mxu0 0
      %3856 = vmatprep.subr.bf16.mxu0 0
      %3857 = vmatpush1.bf16.msra.mxu0 0
      %3858 = vmatprep.subr.bf16.mxu0 0
      %3859 = vmatpush1.bf16.msra.mxu0 0
      %3860 = vmatprep.subr.bf16.mxu0 0
      %3861 = vmatpush1.bf16.msra.mxu0 %v3819
      %3862 = vmatprep.subr.bf16.mxu0 0
      %3863 = vmatpush1.bf16.msra.mxu0 %v3818
      %3864 = vmatprep.subr.bf16.mxu0 0
      %3865 = vmatpush1.bf16.msra.mxu0 %v3817
      %3866 = vmatprep.subr.bf16.mxu0 0
      %3867 = vmatpush1.bf16.msra.mxu0 %v3816
      %3868 = vmatprep.subr.bf16.mxu0 0
      %3869 = vmatpush2.bf16.msra.mxu0 0
      %3870 = vmatprep.subr.bf16.mxu0 0
      %3871 = vmatpush2.bf16.msra.mxu0 0
      %3872 = vmatprep.subr.bf16.mxu0 0
      %3873 = vmatpush2.bf16.msra.mxu0 0
      %3874 = vmatprep.subr.bf16.mxu0 0
      %3875 = vmatpush2.bf16.msra.mxu0 0
      %3876 = vmatprep.subr.bf16.mxu0 0
      %3877 = vmatpush2.bf16.msra.mxu0 0
      %3878 = vmatprep.subr.bf16.mxu0 0
      %3879 = vmatpush2.bf16.msra.mxu0 0
      %3880 = vmatprep.subr.bf16.mxu0 0
      %3881 = vmatpush2.bf16.msra.mxu0 0
      %3882 = vmatprep.subr.bf16.mxu0 0
      %3883 = vmatpush2.bf16.msra.mxu0 0
      %3884 = vmatprep.mubr.bf16.mxu0 0
      %3885 = vmatmul.mubr.bf16.gmra.mxu0 %v3841
      %v3886 = vpop.f32.mrf.mxu0
      %v3887 = vadd.f32 0.0, %v3886
      %v3888 = vpop.f32.mrf.mxu0
      %v3889 = vpop.f32.mrf.mxu0
      %v3890 = vadd.f32 0.0, %v3889
      %v3891 = vpop.f32.mrf.mxu0
      %3892 = vmatprep.mubr.bf16.mxu0 0
      %3893 = vmatmul.mubr.bf16.gmra.mxu0 %v3844
      %v3894 = vpop.f32.mrf.mxu0
      %v3895 = vadd.f32 0.0, %v3894
      %v3896 = vpop.f32.mrf.mxu0
      %v3897 = vpop.f32.mrf.mxu0
      %v3898 = vadd.f32 0.0, %v3897
      %v3899 = vpop.f32.mrf.mxu0
      %3900 = vmatprep.mubr.bf16.mxu0 0
      %3901 = vmatmul.mubr.bf16.gmra.mxu0 %v3847
      %v3902 = vpop.f32.mrf.mxu0
      %v3903 = vadd.f32 0.0, %v3902
      %v3904 = vpop.f32.mrf.mxu0
      %v3905 = vpop.f32.mrf.mxu0
      %v3906 = vadd.f32 0.0, %v3905
      %v3907 = vpop.f32.mrf.mxu0
      %3908 = vmatprep.mubr.bf16.mxu0 0
      %3909 = vmatmul.mubr.bf16.gmra.mxu0 %v3850
      %v3910 = vpop.f32.mrf.mxu0
      %v3911 = vadd.f32 0.0, %v3910
      %v3912 = vpop.f32.mrf.mxu0
      %v3913 = vpop.f32.mrf.mxu0
      %v3914 = vadd.f32 0.0, %v3913
      %v3915 = vpop.f32.mrf.mxu0
      %3916 = vdwg.mxu0
      %v3925 = vunpack.c.l.b16 %v3778
      %v3926 = vunpack.c.l.b16 %v3779
      %v3927 = vunpack.c.l.b16 %v3780
      %v3928 = vunpack.c.l.b16 %v3781
      %v3929 = vunpack.c.l.b16 %v3782
      %v3930 = vunpack.c.l.b16 %v3783
      %v3931 = vunpack.c.l.b16 %v3784
      %v3932 = vunpack.c.l.b16 %v3785
      %v3933 = vpack.c.b16 %v3926, %v3925
      %v3934 = vpack.c.b16 %v3928, %v3927
      %v3935 = vpack.c.b16 %v3930, %v3929
      %v3936 = vpack.c.b16 %v3932, %v3931
      %v3938 = vsel %vm514, %v3933, 0
      %v3941 = vsel %vm514, %v3934, 0
      %v3944 = vsel %vm514, %v3935, 0
      %v3947 = vsel %vm514, %v3936, 0
      %3949 = vmatprep.subr.bf16.mxu0 0
      %3950 = vmatpush1.bf16.msra.mxu0 0
      %3951 = vmatprep.subr.bf16.mxu0 0
      %3952 = vmatpush1.bf16.msra.mxu0 0
      %3953 = vmatprep.subr.bf16.mxu0 0
      %3954 = vmatpush1.bf16.msra.mxu0 0
      %3955 = vmatprep.subr.bf16.mxu0 0
      %3956 = vmatpush1.bf16.msra.mxu0 0
      %3957 = vmatprep.subr.bf16.mxu0 0
      %3958 = vmatpush1.bf16.msra.mxu0 %v3798
      %3959 = vmatprep.subr.bf16.mxu0 0
      %3960 = vmatpush1.bf16.msra.mxu0 %v3797
      %3961 = vmatprep.subr.bf16.mxu0 0
      %3962 = vmatpush1.bf16.msra.mxu0 %v3796
      %3963 = vmatprep.subr.bf16.mxu0 0
      %3964 = vmatpush1.bf16.msra.mxu0 %v3795
      %3965 = vmatprep.subr.bf16.mxu0 0
      %3966 = vmatpush2.bf16.msra.mxu0 0
      %3967 = vmatprep.subr.bf16.mxu0 0
      %3968 = vmatpush2.bf16.msra.mxu0 0
      %3969 = vmatprep.subr.bf16.mxu0 0
      %3970 = vmatpush2.bf16.msra.mxu0 0
      %3971 = vmatprep.subr.bf16.mxu0 0
      %3972 = vmatpush2.bf16.msra.mxu0 0
      %3973 = vmatprep.subr.bf16.mxu0 0
      %3974 = vmatpush2.bf16.msra.mxu0 0
      %3975 = vmatprep.subr.bf16.mxu0 0
      %3976 = vmatpush2.bf16.msra.mxu0 0
      %3977 = vmatprep.subr.bf16.mxu0 0
      %3978 = vmatpush2.bf16.msra.mxu0 0
      %3979 = vmatprep.subr.bf16.mxu0 0
      %3980 = vmatpush2.bf16.msra.mxu0 0
      %3981 = vmatprep.mubr.bf16.mxu0 0
      %3982 = vmatmul.mubr.bf16.gmra.mxu0 %v3938
      %v3983 = vpop.f32.mrf.mxu0
      %v3984 = vadd.f32 %v3887, %v3983
      %v3985 = vpop.f32.mrf.mxu0
      %v3986 = vpop.f32.mrf.mxu0
      %v3987 = vadd.f32 %v3890, %v3986
      %v3988 = vpop.f32.mrf.mxu0
      %3989 = vmatprep.mubr.bf16.mxu0 0
      %3990 = vmatmul.mubr.bf16.gmra.mxu0 %v3941
      %v3991 = vpop.f32.mrf.mxu0
      %v3992 = vadd.f32 %v3895, %v3991
      %v3993 = vpop.f32.mrf.mxu0
      %v3994 = vpop.f32.mrf.mxu0
      %v3995 = vadd.f32 %v3898, %v3994
      %v3996 = vpop.f32.mrf.mxu0
      %3997 = vmatprep.mubr.bf16.mxu0 0
      %3998 = vmatmul.mubr.bf16.gmra.mxu0 %v3944
      %v3999 = vpop.f32.mrf.mxu0
      %v4000 = vadd.f32 %v3903, %v3999
      %v4001 = vpop.f32.mrf.mxu0
      %v4002 = vpop.f32.mrf.mxu0
      %v4003 = vadd.f32 %v3906, %v4002
      %v4004 = vpop.f32.mrf.mxu0
      %4005 = vmatprep.mubr.bf16.mxu0 0
      %4006 = vmatmul.mubr.bf16.gmra.mxu0 %v3947
      %v4007 = vpop.f32.mrf.mxu0
      %v4008 = vadd.f32 %v3911, %v4007
      %v4009 = vpop.f32.mrf.mxu0
      %v4010 = vpop.f32.mrf.mxu0
      %v4011 = vadd.f32 %v3914, %v4010
      %v4012 = vpop.f32.mrf.mxu0
      %4013 = vdwg.mxu0
      %v4014 = vld [vmem:[%s5] sm:$0xf]
      %v4015 = vld [vmem:[%s5 + $0x4] sm:$0xf]
      %v4016 = vld [vmem:[%s5 + $0x8] sm:$0xf]
      %v4017 = vld [vmem:[%s5 + $0xc] sm:$0xf]
      %v4018 = vld [vmem:[%s5 + $0x10] sm:$0xf]
      %v4019 = vld [vmem:[%s5 + $0x14] sm:$0xf]
      %v4020 = vld [vmem:[%s5 + $0x18] sm:$0xf]
      %v4021 = vld [vmem:[%s5 + $0x1c] sm:$0xf]
      %s4022 = scalar_lea.vmem %s441, 28
      %v4023 = vld [vmem:[%s4022] sm:$0xf]
      %v4024 = vpack.c.bf16 %v4023, %v4023
      %v4033 = vunpack.c.l.b16 %v4014
      %v4034 = vunpack.c.l.b16 %v4015
      %v4035 = vunpack.c.l.b16 %v4016
      %v4036 = vunpack.c.l.b16 %v4017
      %v4037 = vunpack.c.l.b16 %v4018
      %v4038 = vunpack.c.l.b16 %v4019
      %v4039 = vunpack.c.l.b16 %v4020
      %v4040 = vunpack.c.l.b16 %v4021
      %v4041 = vpack.c.b16 %v4034, %v4033
      %v4042 = vpack.c.b16 %v4036, %v4035
      %v4043 = vpack.c.b16 %v4038, %v4037
      %v4044 = vpack.c.b16 %v4040, %v4039
      %v4046 = vsel %vm719, %v4041, 0
      %v4049 = vsel %vm719, %v4042, 0
      %v4052 = vsel %vm719, %v4043, 0
      %v4055 = vsel %vm719, %v4044, 0
      %v4058 = vsel %vm732, %v4024, 0
      %4060 = vmatprep.subr.bf16.mxu0 0
      %4061 = vmatpush1.bf16.msra.mxu0 0
      %4062 = vmatprep.subr.bf16.mxu0 0
      %4063 = vmatpush1.bf16.msra.mxu0 0
      %4064 = vmatprep.subr.bf16.mxu0 0
      %4065 = vmatpush1.bf16.msra.mxu0 0
      %4066 = vmatprep.subr.bf16.mxu0 0
      %4067 = vmatpush1.bf16.msra.mxu0 0
      %4068 = vmatprep.subr.bf16.mxu0 0
      %4069 = vmatpush1.bf16.msra.mxu0 0
      %4070 = vmatprep.subr.bf16.mxu0 0
      %4071 = vmatpush1.bf16.msra.mxu0 0
      %4072 = vmatprep.subr.bf16.mxu0 0
      %4073 = vmatpush1.bf16.msra.mxu0 0
      %4074 = vmatprep.subr.bf16.mxu0 0
      %4075 = vmatpush1.bf16.msra.mxu0 %v4058
      %4076 = vmatprep.subr.bf16.mxu0 0
      %4077 = vmatpush2.bf16.msra.mxu0 0
      %4078 = vmatprep.subr.bf16.mxu0 0
      %4079 = vmatpush2.bf16.msra.mxu0 0
      %4080 = vmatprep.subr.bf16.mxu0 0
      %4081 = vmatpush2.bf16.msra.mxu0 0
      %4082 = vmatprep.subr.bf16.mxu0 0
      %4083 = vmatpush2.bf16.msra.mxu0 0
      %4084 = vmatprep.subr.bf16.mxu0 0
      %4085 = vmatpush2.bf16.msra.mxu0 0
      %4086 = vmatprep.subr.bf16.mxu0 0
      %4087 = vmatpush2.bf16.msra.mxu0 0
      %4088 = vmatprep.subr.bf16.mxu0 0
      %4089 = vmatpush2.bf16.msra.mxu0 0
      %4090 = vmatprep.subr.bf16.mxu0 0
      %4091 = vmatpush2.bf16.msra.mxu0 0
      %4092 = vmatprep.mubr.bf16.mxu0 0
      %4093 = vmatmul.mubr.bf16.gmra.mxu0 %v4046
      %v4094 = vpop.f32.mrf.mxu0
      %v4095 = vadd.f32 0.0, %v4094
      %v4096 = vpop.f32.mrf.mxu0
      %v4097 = vpop.f32.mrf.mxu0
      %v4098 = vadd.f32 0.0, %v4097
      %v4099 = vpop.f32.mrf.mxu0
      %4100 = vmatprep.mubr.bf16.mxu0 0
      %4101 = vmatmul.mubr.bf16.gmra.mxu0 %v4049
      %v4102 = vpop.f32.mrf.mxu0
      %v4103 = vadd.f32 0.0, %v4102
      %v4104 = vpop.f32.mrf.mxu0
      %v4105 = vpop.f32.mrf.mxu0
      %v4106 = vadd.f32 0.0, %v4105
      %v4107 = vpop.f32.mrf.mxu0
      %4108 = vmatprep.mubr.bf16.mxu0 0
      %4109 = vmatmul.mubr.bf16.gmra.mxu0 %v4052
      %v4110 = vpop.f32.mrf.mxu0
      %v4111 = vadd.f32 0.0, %v4110
      %v4112 = vpop.f32.mrf.mxu0
      %v4113 = vpop.f32.mrf.mxu0
      %v4114 = vadd.f32 0.0, %v4113
      %v4115 = vpop.f32.mrf.mxu0
      %4116 = vmatprep.mubr.bf16.mxu0 0
      %4117 = vmatmul.mubr.bf16.gmra.mxu0 %v4055
      %v4118 = vpop.f32.mrf.mxu0
      %v4119 = vadd.f32 0.0, %v4118
      %v4120 = vpop.f32.mrf.mxu0
      %v4121 = vpop.f32.mrf.mxu0
      %v4122 = vadd.f32 0.0, %v4121
      %v4123 = vpop.f32.mrf.mxu0
      %4124 = vdwg.mxu0
      %v4125 = vadd.f32 %v3984, %v4095
      %v4126 = vadd.f32 %v3987, %v4098
      %v4127 = vadd.f32 %v3992, %v4103
      %v4128 = vadd.f32 %v3995, %v4106
      %v4129 = vadd.f32 %v4000, %v4111
      %v4130 = vadd.f32 %v4003, %v4114
      %v4131 = vadd.f32 %v4008, %v4119
      %v4132 = vadd.f32 %v4011, %v4122
      %v4133 = vld [vmem:[%s6] sm:$0xff]
      %v4134 = vld [vmem:[%s6 + $0x8] sm:$0xff]
      %v4135 = vld [vmem:[%s6 + $0x10] sm:$0xff]
      %v4136 = vld [vmem:[%s6 + $0x18] sm:$0xff]
      %v4137 = vld [vmem:[%s6 + $0x20] sm:$0xff]
      %v4138 = vld [vmem:[%s6 + $0x28] sm:$0xff]
      %v4139 = vld [vmem:[%s6 + $0x30] sm:$0xff]
      %v4140 = vld [vmem:[%s6 + $0x38] sm:$0xff]
      %4142 = vset.pattern.permute.xlu0 0
      %4143 = vperm.xlu0 %4142, %v4133
      %v4144 = vpop.permute.xlu0 %4143
      %4147 = vset.pattern.permute.xlu0 0
      %4148 = vperm.xlu0 %4147, %v4134
      %v4149 = vpop.permute.xlu0 %4148
      %4152 = vset.pattern.permute.xlu0 0
      %4153 = vperm.xlu0 %4152, %v4135
      %v4154 = vpop.permute.xlu0 %4153
      %4157 = vset.pattern.permute.xlu0 0
      %4158 = vperm.xlu0 %4157, %v4136
      %v4159 = vpop.permute.xlu0 %4158
      %4162 = vset.pattern.permute.xlu0 0
      %4163 = vperm.xlu0 %4162, %v4137
      %v4164 = vpop.permute.xlu0 %4163
      %4167 = vset.pattern.permute.xlu0 0
      %4168 = vperm.xlu0 %4167, %v4138
      %v4169 = vpop.permute.xlu0 %4168
      %4172 = vset.pattern.permute.xlu0 0
      %4173 = vperm.xlu0 %4172, %v4139
      %v4174 = vpop.permute.xlu0 %4173
      %4177 = vset.pattern.permute.xlu0 0
      %4178 = vperm.xlu0 %4177, %v4140
      %v4179 = vpop.permute.xlu0 %4178
      %v4181 = vadd.f32 %v4125, %v4144
      %v4182 = vadd.f32 %v4126, %v4149
      %v4183 = vadd.f32 %v4127, %v4154
      %v4184 = vadd.f32 %v4128, %v4159
      %v4185 = vadd.f32 %v4129, %v4164
      %v4186 = vadd.f32 %v4130, %v4169
      %v4187 = vadd.f32 %v4131, %v4174
      %v4188 = vadd.f32 %v4132, %v4179
      %v4189 = vmax.f32 %v4181, 0.0
      %v4190 = vmax.f32 %v4182, 0.0
      %v4191 = vmax.f32 %v4183, 0.0
      %v4192 = vmax.f32 %v4184, 0.0
      %v4193 = vmax.f32 %v4185, 0.0
      %v4194 = vmax.f32 %v4186, 0.0
      %v4195 = vmax.f32 %v4187, 0.0
      %v4196 = vmax.f32 %v4188, 0.0
      %v4197 = vld [vmem:[%s7] sm:$0x3]
      %v4198 = vpack.c.bf16 %v4190, %v4189
      %v4199 = vpack.c.bf16 %v4192, %v4191
      %v4200 = vpack.c.bf16 %v4194, %v4193
      %v4201 = vpack.c.bf16 %v4196, %v4195
      %v4202 = vld [vmem:[%s8] sm:$0xf]
      %4204 = vset.pattern.permute.xlu0 0
      %4205 = vperm.xlu0 %4204, %v4202
      %v4206 = vpop.permute.xlu0 %4205
      %v4209 = vsel %vm514, %v4197, 0
      %4211 = vmatprep.subr.bf16.mxu0 0
      %4212 = vmatpush1.bf16.msra.mxu0 0
      %4213 = vmatprep.subr.bf16.mxu0 0
      %4214 = vmatpush1.bf16.msra.mxu0 0
      %4215 = vmatprep.subr.bf16.mxu0 0
      %4216 = vmatpush1.bf16.msra.mxu0 0
      %4217 = vmatprep.subr.bf16.mxu0 0
      %4218 = vmatpush1.bf16.msra.mxu0 0
      %4219 = vmatprep.subr.bf16.mxu0 0
      %4220 = vmatpush1.bf16.msra.mxu0 %v4201
      %4221 = vmatprep.subr.bf16.mxu0 0
      %4222 = vmatpush1.bf16.msra.mxu0 %v4200
      %4223 = vmatprep.subr.bf16.mxu0 0
      %4224 = vmatpush1.bf16.msra.mxu0 %v4199
      %4225 = vmatprep.subr.bf16.mxu0 0
      %4226 = vmatpush1.bf16.msra.mxu0 %v4198
      %4227 = vmatprep.subr.bf16.mxu0 0
      %4228 = vmatpush2.bf16.msra.mxu0 0
      %4229 = vmatprep.subr.bf16.mxu0 0
      %4230 = vmatpush2.bf16.msra.mxu0 0
      %4231 = vmatprep.subr.bf16.mxu0 0
      %4232 = vmatpush2.bf16.msra.mxu0 0
      %4233 = vmatprep.subr.bf16.mxu0 0
      %4234 = vmatpush2.bf16.msra.mxu0 0
      %4235 = vmatprep.subr.bf16.mxu0 0
      %4236 = vmatpush2.bf16.msra.mxu0 0
      %4237 = vmatprep.subr.bf16.mxu0 0
      %4238 = vmatpush2.bf16.msra.mxu0 0
      %4239 = vmatprep.subr.bf16.mxu0 0
      %4240 = vmatpush2.bf16.msra.mxu0 0
      %4241 = vmatprep.subr.bf16.mxu0 0
      %4242 = vmatpush2.bf16.msra.mxu0 0
      %4243 = vmatprep.mubr.bf16.mxu0 0
      %4244 = vmatmul.mubr.bf16.gmra.mxu0 %v4209
      %v4245 = vpop.f32.mrf.mxu0
      %v4246 = vadd.f32 %v4206, %v4245
      %v4247 = vpop.f32.mrf.mxu0
      %v4248 = vpop.f32.mrf.mxu0
      %v4249 = vpop.f32.mrf.mxu0
      %4250 = vdwg.mxu0
      %s4251 = scalar_lea.vmem %s451, 28
      %4252 = vst [vmem:[%s4251] sm:$0xf] %v4246
      %s4253 = smul.u32 8, %s25
      %p4254 = scmp.lt.s32.totalorder %s24, 1
      %s4255 = scalar_select %p4254, %s24, 1
      %p4256 = scmp.lt.s32.totalorder %s4253, 7
      %s4257 = scalar_select %p4256, %s4253, 7
      %s4258 = smul.addr %s4255, 8
      %s4259 = sadd.s32 %s4257, %s4258
      %s4260 = smul.addr %s4259, 4
      %s4261 = scalar_lea.vmem %s9, %s4260
      // Predicated region
      $region57: #{bigril_forward.3} parent=55 // pred_check
        %p4262 = pneg %p262
      $region58: #{bigril_forward.3} parent=55 // pred_check_branch
        %4264 = sbr.rel (%p4262) target = $region60
      $region59: #{bigril_forward.3} parent=55 // pred_region
        %s4265 = smul.u32 8, %s25
      $region60: #{bigril_forward.3} parent=55 // pred_fallthru
        _
    $region56: #{bigril_forward.3} parent=5 // pred_fallthru
      _
    %p4266 = scmp.le.s32.totalorder 2, %s15
    // Predicated region
    $region61: #{bigril_forward.3} parent=5 // pred_check
      %p4267 = pneg %p4266
    $region62: #{bigril_forward.3} parent=5 // pred_check_branch
      %4269 = sbr.rel (%p4267) target = $region64
    $region63: #{bigril_forward.3} parent=5 // pred_region
      %s4270 = ssub.s32 %s15, 2
      // Predicated region
      $region65: #{bigril_forward.3} parent=63 // pred_check
        %p4271 = pneg %p268
      $region66: #{bigril_forward.3} parent=63 // pred_check_branch
        %4273 = sbr.rel (%p4271) target = $region68
      $region67: #{bigril_forward.3} parent=63 // pred_region
        %s4274 = smul.u32 8, %s27
        %p4275 = scmp.lt.s32.totalorder %s26, 1
        %s4276 = scalar_select %p4275, %s26, 1
        %p4277 = scmp.lt.s32.totalorder %s4274, 7
        %s4278 = scalar_select %p4277, %s4274, 7
        %s4279 = smul.addr %s4276, 8
        %s4280 = sadd.s32 %s4278, %s4279
        %s4281 = smul.addr %s4280, 4
        %s4282 = scalar_lea.vmem %s9, %s4281
      $region68: #{bigril_forward.3} parent=63 // pred_fallthru
        _
    $region64: #{bigril_forward.3} parent=5 // pred_fallthru
      _
  $region6: #{bigril_forward.3} parent=0 // loop_footer
    %s19 = sadd.s32 1, %s15
  $region7: #{bigril_forward.3} parent=0 // loop_footer_branch
    %14 = sbr.rel target = $region3
  $region8: #{bigril_forward.3} parent=0 // loop_exit
    _

</llo_original>
